<compile_context>
chip_gen: v7x
topology: tpu7x:2x2x1
jax: 0.10.0
libtpu: 0.0.40
codegen_flags: <defaults>
</compile_context>

<pallas_src>
import functools

import jax
import jax.numpy as jnp
from jax import lax
from jax.experimental import pallas as pl
from jax.experimental.pallas import tpu as pltpu


# ----------------------------------------------------------------------------
# Kernel
# ----------------------------------------------------------------------------
def bahdanau_kernel(enc_ref, att2_ref, we_t_ref, wf_ref, bf_ref,
                    awe_ref, alpha_ref, e_ref, *, n_valid, nc):
    """One batch tile: enc (TB,Np,E), att2 (TB,A) -> awe (TB,E), alpha (TB,Np)."""
    TB, Np, E = enc_ref.shape
    A = we_t_ref.shape[1]
    n_chunks = Np // nc

    att2 = att2_ref[...].astype(jnp.float32)           # (TB, A); be+bd folded in
    wf = wf_ref[...][0].astype(jnp.float32)            # (A,)
    bf = bf_ref[0, 0]                                   # SMEM scalar

    # Pass 1 (chunked over locations): e = full_att(relu(att1 + att2)) + bf.
    # Chunking keeps the f32 (TB, nc, A) intermediates small so TB can grow.
    for c in range(n_chunks):                           # static -> fully unrolled
        s = c * nc
        enc_c = enc_ref[:, s:s + nc, :]                 # (TB, nc, E); nc%8==0 -> free reshape
        att1 = jnp.dot(enc_c.reshape(TB * nc, E), we_t_ref[...],
                       preferred_element_type=jnp.float32)   # MXU, f32 accumulate
        comb = jnp.maximum(att1.reshape(TB, nc, A) + att2[:, None, :], 0.0)
        # width-1 full_att projection: VPU multiply + XLU lane reduce
        # (not an output-width-1 MXU matmul).
        e_ref[:, s:s + nc] = jnp.sum(comb * wf[None, None, :], axis=-1) + bf

    # Masked, max-stabilised softmax over the (padded) location axis.
    e = e_ref[...]                                      # (TB, Np) f32
    if n_valid != Np:                                   # static lane padding mask
        col = lax.broadcasted_iota(jnp.int32, (TB, Np), 1)
        e = jnp.where(col < n_valid, e, jnp.float32(-1e30))
    m = jnp.max(e, axis=1, keepdims=True)
    p = jnp.exp(e - m)
    denom = jnp.sum(p, axis=1, keepdims=True)
    alpha = p * pl.reciprocal(denom, approx=True)       # EUP vrcp (own VLIW slot)

    # Pass 2 (chunked): attention_weighted_encoding as batched MXU contractions
    # on the already-resident encoder tile.  alpha has N on lanes (lhs K) and
    # enc has N on sublanes (rhs K) -> no transpose needed.
    alpha_c = alpha.astype(enc_ref.dtype)
    awe = jnp.zeros((TB, 1, E), jnp.float32)
    for c in range(n_chunks):
        s = c * nc
        awe = awe + lax.dot_general(
            alpha_c[:, None, s:s + nc], enc_ref[:, s:s + nc, :],
            dimension_numbers=(((2,), (1,)), ((0,), (0,))),
            preferred_element_type=jnp.float32)         # (TB, 1, E)

    awe_ref[...] = awe.reshape(TB, E).astype(awe_ref.dtype)
    alpha_ref[...] = alpha.astype(alpha_ref.dtype)


# ----------------------------------------------------------------------------
# Tiling helpers (generation-aware)
# ----------------------------------------------------------------------------
def _vmem_capacity_bytes():
    """Per-core VMEM capacity; conservative 64 MiB (v7x) if it cannot be queried."""
    try:
        cap = getattr(pltpu.get_tpu_info(), "vmem_capacity_bytes", None)
        if cap:
            return int(cap)
    except Exception:
        pass
    return 64 << 20


def _tile_footprint_bytes(tb, Np, E, A, NC, enc_isz, out_isz):
    """VMEM working set of one grid step, incl. the f32 in-kernel intermediates."""
    stream = 2 * tb * Np * E * enc_isz          # encoder tile (double-buffered)
    stream += 2 * tb * A * 4                    # hoisted att2 tile (f32)
    stream += 2 * tb * (E + Np) * out_isz       # awe / alpha output tiles
    weights = E * A * enc_isz + A * 4 + 4       # resident, single-buffered weights
    interm = 2 * tb * NC * E * enc_isz          # encoder-chunk values (pass 1 + 2)
    interm += 2 * tb * NC * A * 4               # f32 att1 + relu chunk
    interm += 3 * tb * Np * 4                   # e scratch, masked e, alpha (f32)
    interm += tb * E * 4                        # f32 awe accumulator
    return stream + weights + interm


def _pick_block_b(B, Np, E, A, NC, enc_isz, out_isz, budget_bytes, max_tb=256):
    """Largest power-of-two TB (>=8) whose working set fits the VMEM budget."""
    tb = 8
    while (tb < max_tb and
           _tile_footprint_bytes(2 * tb, Np, E, A, NC, enc_isz, out_isz)
           <= budget_bytes):
        tb *= 2
    # Keep >=2 grid steps (and an even count when small) so the "parallel"
    # batch axis can be split across both TensorCores on dual-core parts (v7x).
    steps = lambda t: -(-B // t)
    while tb > 8 and (steps(tb) < 2 or (steps(tb) < 8 and steps(tb) % 2 == 1)):
        tb //= 2
    return tb


def _resident_spec(shape, single_buffer):
    """Constant-index weight spec; single-buffered (DMA'd once) when supported."""
    idx = lambda b: (0,) * len(shape)
    if single_buffer:
        try:
            return pl.BlockSpec(shape, idx, pipeline_mode=pl.Buffered(1))
        except (AttributeError, TypeError):   # older BlockSpec w/o pipeline_mode
            pass
    return pl.BlockSpec(shape, idx)


# ----------------------------------------------------------------------------
# Wrapper
# ----------------------------------------------------------------------------
def bahdanau_attention(encoder_out, decoder_hidden, params, *,
                       block_b=None, use_bf16=True, single_buffer_weights=True,
                       vmem_budget_bytes=None):
    """Pallas forward pass of BahdanauAttention.  Returns (awe, alpha)."""
    B, N, E = encoder_out.shape
    A = params['we'].shape[0]
    out_dtype = encoder_out.dtype
    compute_dtype = jnp.bfloat16 if use_bf16 else encoder_out.dtype

    # --- hoist the tiny decoder projection + both biases to one XLA matmul ---
    att2 = (decoder_hidden.astype(jnp.float32)
            @ params['wd'].T.astype(jnp.float32)
            + params['bd'].astype(jnp.float32)[0]
            + params['be'].astype(jnp.float32)[0])          # (B, A) f32

    # --- pad locations to a lane multiple (dense alpha stores, free reshape) --
    Np = max(128, -(-N // 128) * 128)
    enc = encoder_out
    if Np != N:
        enc = jnp.pad(enc, ((0, 0), (0, Np - N), (0, 0)))
    enc = enc.astype(compute_dtype)                          # bf16 halves HBM bytes

    we_t = params['we'].T.astype(compute_dtype)              # (E, A), pre-transposed
    wf = params['wf'].astype(jnp.float32)                    # (1, A)
    bf = params['bf'].astype(jnp.float32)                    # (1, 1) -> SMEM

    NC = 256 if Np % 256 == 0 else 128                       # location chunk size
    enc_isz = jnp.dtype(compute_dtype).itemsize
    out_isz = jnp.dtype(out_dtype).itemsize

    # --- generation-aware tile size & compiler VMEM limit --------------------
    vmem_cap = _vmem_capacity_bytes()
    if vmem_budget_bytes is None:
        vmem_budget_bytes = int(vmem_cap * 0.40)   # ~25 MiB v7x, ~51 MiB v5e/v6e
    if block_b is None:
        block_b = _pick_block_b(B, Np, E, A, NC, enc_isz, out_isz,
                                vmem_budget_bytes)
    TB = block_b
    vmem_limit = int(min(
        int(vmem_cap * 0.9),
        max(32 << 20,
            _tile_footprint_bytes(TB, Np, E, A, NC, enc_isz, out_isz) + (8 << 20))))

    # --- pad batch to a multiple of TB (padded rows are benign, sliced off) ---
    pad_b = (-B) % TB
    if pad_b:
        enc = jnp.pad(enc, ((0, pad_b), (0, 0), (0, 0)))
        att2 = jnp.pad(att2, ((0, pad_b), (0, 0)))
    Bp = B + pad_b
    grid = (Bp // TB,)

    flops = 2 * Bp * Np * E * A + 2 * Bp * Np * A + 2 * Bp * Np * E
    bytes_accessed = (Bp * Np * E * enc_isz + Bp * A * 4 + E * A * enc_isz
                      + A * 4 + 4 + (Bp * E + Bp * Np) * out_isz)

    kernel = functools.partial(bahdanau_kernel, n_valid=N, nc=NC)

    awe, alpha = pl.pallas_call(
        kernel,
        out_shape=(jax.ShapeDtypeStruct((Bp, E), out_dtype),
                   jax.ShapeDtypeStruct((Bp, Np), out_dtype)),
        grid=grid,
        in_specs=[
            pl.BlockSpec((TB, Np, E), lambda b: (b, 0, 0)),      # encoder tile
            pl.BlockSpec((TB, A), lambda b: (b, 0)),             # hoisted att2 tile
            _resident_spec((E, A), single_buffer_weights),       # we^T (resident)
            _resident_spec((1, A), single_buffer_weights),       # wf   (resident)
            pl.BlockSpec(memory_space=pltpu.MemorySpace.SMEM),   # bf scalar
        ],
        out_specs=(
            pl.BlockSpec((TB, E), lambda b: (b, 0)),
            pl.BlockSpec((TB, Np), lambda b: (b, 0)),
        ),
        scratch_shapes=[pltpu.VMEM((TB, Np), jnp.float32)],      # e scratch
        compiler_params=pltpu.CompilerParams(
            dimension_semantics=("parallel",),
            vmem_limit_bytes=vmem_limit),
        cost_estimate=pl.CostEstimate(
            flops=flops, transcendentals=Bp * Np, bytes_accessed=bytes_accessed),
    )(enc, att2, we_t, wf, bf)

    if pad_b:
        awe = awe[:B]
        alpha = alpha[:B]
    if Np != N:
        alpha = alpha[:, :N]
    return awe, alpha


# ----------------------------------------------------------------------------
# Pure-JAX reference (matches the PyTorch module in f32)
# ----------------------------------------------------------------------------
def reference(encoder_out, decoder_hidden, params):
    att1 = jnp.einsum('bne,ae->bna', encoder_out, params['we']) + params['be'][0]
    att2 = decoder_hidden @ params['wd'].T + params['bd'][0]
    comb = jax.nn.relu(att1 + att2[:, None, :])
    e = jnp.einsum('bna,a->bn', comb, params['wf'][0]) + params['bf'][0, 0]
    alpha = jax.nn.softmax(e, axis=1)
    awe = jnp.sum(encoder_out * alpha[:, :, None], axis=1)
    return awe, alpha


if __name__ == "__main__":
    # Small shapes consistent with the module (scaled down from 2048/512/512).
    B, N = 16, 8
    encoder_dim, decoder_dim, attn_dim = 256, 128, 128

    key = jax.random.PRNGKey(0)
    k = jax.random.split(key, 8)

    encoder_out = jax.random.normal(k[0], (B, N, encoder_dim), jnp.float32)
    decoder_hidden = jax.random.normal(k[1], (B, decoder_dim), jnp.float32)

    # Deterministic parameter init (PyTorch nn.Linear layout: (out, in)).
    params = {
        'we': jax.random.normal(k[2], (attn_dim, encoder_dim), jnp.float32)
              / jnp.sqrt(encoder_dim),
        'be': jax.random.normal(k[3], (1, attn_dim), jnp.float32) * 0.01,
        'wd': jax.random.normal(k[4], (attn_dim, decoder_dim), jnp.float32)
              / jnp.sqrt(decoder_dim),
        'bd': jax.random.normal(k[5], (1, attn_dim), jnp.float32) * 0.01,
        'wf': jax.random.normal(k[6], (1, attn_dim), jnp.float32)
              / jnp.sqrt(attn_dim),
        'bf': jax.random.normal(k[7], (1, 1), jnp.float32) * 0.01,
    }

    awe_ref, alpha_ref = reference(encoder_out, decoder_hidden, params)

    def run(use_bf16):
        # Fall back to default double-buffered weight specs if this JAX build
        # rejects pipeline_mode=pl.Buffered(1) (optimization-only feature).
        for sbw in (True, False):
            fn = jax.jit(functools.partial(bahdanau_attention,
                                           use_bf16=use_bf16,
                                           single_buffer_weights=sbw))
            try:
                return jax.block_until_ready(
                    fn(encoder_out, decoder_hidden, params))
            except Exception:
                if not sbw:
                    raise

    # --- exact-precision path: f32 streams + f32 MXU matmuls -----------------
    awe, alpha = run(use_bf16=False)
    assert awe.shape == (B, encoder_dim) and alpha.shape == (B, N)
    assert jnp.allclose(awe, awe_ref, atol=5e-3, rtol=5e-3)
    assert jnp.allclose(alpha, alpha_ref, atol=5e-3, rtol=5e-3)
    assert jnp.allclose(jnp.sum(alpha, axis=1), 1.0, atol=1e-2)

    # --- bf16-stream path: halved encoder HBM bytes, native-MXU dtype --------
    awe16, alpha16 = run(use_bf16=True)
    assert awe16.shape == (B, encoder_dim) and alpha16.shape == (B, N)
    assert awe16.dtype == encoder_out.dtype
    assert jnp.allclose(awe16, awe_ref, atol=6e-2, rtol=6e-2)
    assert jnp.allclose(alpha16, alpha_ref, atol=3e-2, rtol=3e-2)
    assert jnp.allclose(jnp.sum(alpha16, axis=1), 1.0, atol=1e-2)

    print("KERNEL_OK")
</pallas_src>

<mosaic_0001>
module attributes {stable_mosaic.version = 11 : i64} {
  func.func @bahdanau_kernel(%arg0: i32, %arg1: memref<8x128x256xf32, #tpu.memory_space<vmem>>, %arg2: memref<8x128xf32, #tpu.memory_space<vmem>>, %arg3: memref<256x128xf32, #tpu.memory_space<vmem>>, %arg4: memref<1x128xf32, #tpu.memory_space<vmem>>, %arg5: memref<1x1xf32, #tpu.memory_space<smem>>, %arg6: memref<8x256xf32, #tpu.memory_space<vmem>>, %arg7: memref<8x128xf32, #tpu.memory_space<vmem>>, %arg8: memref<8x128xf32, #tpu.memory_space<vmem>>) attributes {dimension_semantics = [#tpu.dimension_semantics<parallel>], iteration_bounds = array<i64: 2>, scalar_prefetch = 0 : i64, scratch_operands = 1 : i64, tpu.core_type = #tpu.core_type<tc>, window_params = [{transform_indices = @transform_0, window_bounds = array<i64: 8, 128, 256>}, {transform_indices = @transform_1, window_bounds = array<i64: 8, 128>}, {pipeline_mode = #tpu.pipeline_mode<synchronous>, transform_indices = @transform_2, window_bounds = array<i64: 256, 128>}, {pipeline_mode = #tpu.pipeline_mode<synchronous>, transform_indices = @transform_3, window_bounds = array<i64: 1, 128>}, {transform_indices = @transform_4, window_bounds = array<i64: 1, 1>}, {transform_indices = @transform_5, window_bounds = array<i64: 8, 256>}, {transform_indices = @transform_6, window_bounds = array<i64: 8, 128>}]} {
    %c0 = arith.constant 0 : index
    %c0_0 = arith.constant 0 : index
    %0 = vector.load %arg2[%c0, %c0_0] : memref<8x128xf32, #tpu.memory_space<vmem>>, vector<8x128xf32>
    %c0_1 = arith.constant 0 : index
    %c0_2 = arith.constant 0 : index
    %1 = vector.load %arg4[%c0_1, %c0_2] : memref<1x128xf32, #tpu.memory_space<vmem>>, vector<1x128xf32>
    %2 = vector.shape_cast %1 : vector<1x128xf32> to vector<128xf32>
    %c0_3 = arith.constant 0 : index
    %c0_4 = arith.constant 0 : index
    %3 = memref.load %arg5[%c0_3, %c0_4] : memref<1x1xf32, #tpu.memory_space<smem>>
    %c0_5 = arith.constant 0 : index
    %c0_6 = arith.constant 0 : index
    %c0_7 = arith.constant 0 : index
    %4 = vector.load %arg1[%c0_5, %c0_6, %c0_7] : memref<8x128x256xf32, #tpu.memory_space<vmem>>, vector<8x128x256xf32>
    %5 = vector.shape_cast %4 : vector<8x128x256xf32> to vector<1024x256xf32>
    %c0_8 = arith.constant 0 : index
    %c0_9 = arith.constant 0 : index
    %6 = vector.load %arg3[%c0_8, %c0_9] : memref<256x128xf32, #tpu.memory_space<vmem>>, vector<256x128xf32>
    %cst = arith.constant dense<0.000000e+00> : vector<1024x128xf32>
    %7 = tpu.matmul %5, %6, %cst {dimension_numbers = #tpu.dot_dimension_numbers<[1], [0], [0], [1], [0, 0, 1, 1], [], []>} : vector<1024x256xf32>, vector<256x128xf32>, vector<1024x128xf32> -> vector<1024x128xf32>
    %8 = vector.shape_cast %7 : vector<1024x128xf32> to vector<8x128x128xf32>
    %9 = vector.shape_cast %0 : vector<8x128xf32> to vector<8x1x128xf32>
    %10 = vector.broadcast %9 : vector<8x1x128xf32> to vector<8x128x128xf32>
    %11 = arith.addf %8, %10 : vector<8x128x128xf32>
    %cst_10 = arith.constant 0.000000e+00 : f32
    %12 = vector.broadcast %cst_10 : f32 to vector<8x128x128xf32>
    %13 = arith.maximumf %11, %12 : vector<8x128x128xf32>
    %14 = vector.shape_cast %2 : vector<128xf32> to vector<1x1x128xf32>
    %15 = vector.broadcast %14 : vector<1x1x128xf32> to vector<8x128x128xf32>
    %16 = arith.mulf %13, %15 : vector<8x128x128xf32>
    %cst_11 = arith.constant dense<0.000000e+00> : vector<8x128xf32>
    %17 = vector.multi_reduction <add>, %16, %cst_11 [2] : vector<8x128x128xf32> to vector<8x128xf32>
    %18 = vector.broadcast %3 : f32 to vector<8x128xf32>
    %19 = arith.addf %17, %18 : vector<8x128xf32>
    %c0_12 = arith.constant 0 : index
    %c0_13 = arith.constant 0 : index
    %20 = vector.load %arg8[%c0_12, %c0_13] : memref<8x128xf32, #tpu.memory_space<vmem>>, vector<8x128xf32>
    tpu.vector_store %arg8[%c0_12, %c0_13], %19 {strides = array<i32>} : memref<8x128xf32, #tpu.memory_space<vmem>>, vector<8x128xf32>,
    %c0_14 = arith.constant 0 : index
    %c0_15 = arith.constant 0 : index
    %21 = vector.load %arg8[%c0_14, %c0_15] : memref<8x128xf32, #tpu.memory_space<vmem>>, vector<8x128xf32>
    %22 = tpu.iota {dimensions = array<i32: 1>} : vector<8x128xi32>
    %c8_i32 = arith.constant 8 : i32
    %23 = vector.broadcast %c8_i32 : i32 to vector<8x128xi32>
    %24 = arith.cmpi slt, %22, %23 : vector<8x128xi32>
    %cst_16 = arith.constant -1.000000e+30 : f32
    %25 = vector.broadcast %cst_16 : f32 to vector<8x128xf32>
    %26 = arith.select %24, %21, %25 : vector<8x128xi1>, vector<8x128xf32>
    %cst_17 = arith.constant dense<0xFF800000> : vector<8xf32>
    %27 = vector.multi_reduction <maximumf>, %26, %cst_17 [1] : vector<8x128xf32> to vector<8xf32>
    %28 = vector.shape_cast %27 : vector<8xf32> to vector<8x1xf32>
    %29 = vector.broadcast %28 : vector<8x1xf32> to vector<8x128xf32>
    %30 = arith.subf %26, %29 : vector<8x128xf32>
    %31 = math.exp %30 : vector<8x128xf32>
    %cst_18 = arith.constant dense<0.000000e+00> : vector<8xf32>
    %32 = vector.multi_reduction <add>, %31, %cst_18 [1] : vector<8x128xf32> to vector<8xf32>
    %33 = vector.shape_cast %32 : vector<8xf32> to vector<8x1xf32>
    %34 = tpu.reciprocal %33 {approx = true} : vector<8x1xf32> -> vector<8x1xf32>
    %35 = vector.broadcast %34 : vector<8x1xf32> to vector<8x128xf32>
    %36 = arith.mulf %31, %35 : vector<8x128xf32>
    %cst_19 = arith.constant 0.000000e+00 : f32
    %37 = vector.broadcast %cst_19 : f32 to vector<8x1x256xf32>
    %38 = vector.shape_cast %36 : vector<8x128xf32> to vector<8x1x128xf32>
    %c0_20 = arith.constant 0 : index
    %c0_21 = arith.constant 0 : index
    %c0_22 = arith.constant 0 : index
    %39 = vector.load %arg1[%c0_20, %c0_21, %c0_22] : memref<8x128x256xf32, #tpu.memory_space<vmem>>, vector<8x128x256xf32>
    %cst_23 = arith.constant dense<0.000000e+00> : vector<8x1x256xf32>
    %40 = tpu.matmul %38, %39, %cst_23 {dimension_numbers = #tpu.dot_dimension_numbers<[2], [1], [1], [2], [0, 0, 0, 1, 1, 2], [0], [0]>} : vector<8x1x128xf32>, vector<8x128x256xf32>, vector<8x1x256xf32> -> vector<8x1x256xf32>
    %41 = arith.addf %37, %40 : vector<8x1x256xf32>
    %42 = vector.shape_cast %41 : vector<8x1x256xf32> to vector<8x256xf32>
    %c0_24 = arith.constant 0 : index
    %c0_25 = arith.constant 0 : index
    %43 = vector.load %arg6[%c0_24, %c0_25] : memref<8x256xf32, #tpu.memory_space<vmem>>, vector<8x256xf32>
    tpu.vector_store %arg6[%c0_24, %c0_25], %42 {strides = array<i32>} : memref<8x256xf32, #tpu.memory_space<vmem>>, vector<8x256xf32>,
    %c0_26 = arith.constant 0 : index
    %c0_27 = arith.constant 0 : index
    %44 = vector.load %arg7[%c0_26, %c0_27] : memref<8x128xf32, #tpu.memory_space<vmem>>, vector<8x128xf32>
    tpu.vector_store %arg7[%c0_26, %c0_27], %36 {strides = array<i32>} : memref<8x128xf32, #tpu.memory_space<vmem>>, vector<8x128xf32>,
    return
  }
  func.func @transform_0(%arg0: i32) -> (i32, i32, i32) {
    %c0_i32 = arith.constant 0 : i32
    %c0_i32_0 = arith.constant 0 : i32
    %c0_i32_1 = arith.constant 0 : i32
    return %arg0, %c0_i32, %c0_i32_0 : i32, i32, i32
  }
  func.func @transform_1(%arg0: i32) -> (i32, i32) {
    %c0_i32 = arith.constant 0 : i32
    %c0_i32_0 = arith.constant 0 : i32
    return %arg0, %c0_i32 : i32, i32
  }
  func.func @transform_2(%arg0: i32) -> (i32, i32) {
    %c0_i32 = arith.constant 0 : i32
    %c0_i32_0 = arith.constant 0 : i32
    %c0_i32_1 = arith.constant 0 : i32
    return %c0_i32, %c0_i32_0 : i32, i32
  }
  func.func @transform_3(%arg0: i32) -> (i32, i32) {
    %c0_i32 = arith.constant 0 : i32
    %c0_i32_0 = arith.constant 0 : i32
    %c0_i32_1 = arith.constant 0 : i32
    return %c0_i32, %c0_i32_0 : i32, i32
  }
  func.func @transform_4(%arg0: i32) -> (i32, i32) {
    %c0_i32 = arith.constant 0 : i32
    %c0_i32_0 = arith.constant 0 : i32
    %c0_i32_1 = arith.constant 0 : i32
    return %c0_i32, %c0_i32_0 : i32, i32
  }
  func.func @transform_5(%arg0: i32) -> (i32, i32) {
    %c0_i32 = arith.constant 0 : i32
    %c0_i32_0 = arith.constant 0 : i32
    return %arg0, %c0_i32 : i32, i32
  }
  func.func @transform_6(%arg0: i32) -> (i32, i32) {
    %c0_i32 = arith.constant 0 : i32
    %c0_i32_0 = arith.constant 0 : i32
    return %arg0, %c0_i32 : i32, i32
  }
}

module attributes {stable_mosaic.version = 11 : i64} {
  func.func @bahdanau_kernel(%arg0: i32, %arg1: memref<8x128x256xf32, #tpu.memory_space<vmem>>, %arg2: memref<8x128xf32, #tpu.memory_space<vmem>>, %arg3: memref<256x128xf32, #tpu.memory_space<vmem>>, %arg4: memref<1x128xf32, #tpu.memory_space<vmem>>, %arg5: memref<1x1xf32, #tpu.memory_space<smem>>, %arg6: memref<8x256xf32, #tpu.memory_space<vmem>>, %arg7: memref<8x128xf32, #tpu.memory_space<vmem>>, %arg8: memref<8x128xf32, #tpu.memory_space<vmem>>) attributes {dimension_semantics = [#tpu.dimension_semantics<parallel>], iteration_bounds = array<i64: 2>, scalar_prefetch = 0 : i64, scratch_operands = 1 : i64, tpu.core_type = #tpu.core_type<tc>, window_params = [{transform_indices = @transform_0, window_bounds = array<i64: 8, 128, 256>}, {transform_indices = @transform_1, window_bounds = array<i64: 8, 128>}, {pipeline_mode = #tpu.pipeline_mode<synchronous>, transform_indices = @transform_2, window_bounds = array<i64: 256, 128>}, {pipeline_mode = #tpu.pipeline_mode<synchronous>, transform_indices = @transform_3, window_bounds = array<i64: 1, 128>}, {transform_indices = @transform_4, window_bounds = array<i64: 1, 1>}, {transform_indices = @transform_5, window_bounds = array<i64: 8, 256>}, {transform_indices = @transform_6, window_bounds = array<i64: 8, 128>}]} {
    %c0 = arith.constant 0 : index
    %c0_0 = arith.constant 0 : index
    %0 = vector.load %arg2[%c0, %c0_0] : memref<8x128xf32, #tpu.memory_space<vmem>>, vector<8x128xf32>
    %c0_1 = arith.constant 0 : index
    %c0_2 = arith.constant 0 : index
    %1 = vector.load %arg4[%c0_1, %c0_2] : memref<1x128xf32, #tpu.memory_space<vmem>>, vector<1x128xf32>
    %2 = vector.shape_cast %1 : vector<1x128xf32> to vector<128xf32>
    %c0_3 = arith.constant 0 : index
    %c0_4 = arith.constant 0 : index
    %3 = memref.load %arg5[%c0_3, %c0_4] : memref<1x1xf32, #tpu.memory_space<smem>>
    %c0_5 = arith.constant 0 : index
    %c0_6 = arith.constant 0 : index
    %c0_7 = arith.constant 0 : index
    %4 = vector.load %arg1[%c0_5, %c0_6, %c0_7] : memref<8x128x256xf32, #tpu.memory_space<vmem>>, vector<8x128x256xf32>
    %5 = vector.shape_cast %4 : vector<8x128x256xf32> to vector<1024x256xf32>
    %c0_8 = arith.constant 0 : index
    %c0_9 = arith.constant 0 : index
    %6 = vector.load %arg3[%c0_8, %c0_9] : memref<256x128xf32, #tpu.memory_space<vmem>>, vector<256x128xf32>
    %cst = arith.constant dense<0.000000e+00> : vector<1024x128xf32>
    %7 = tpu.matmul %5, %6, %cst {dimension_numbers = #tpu.dot_dimension_numbers<[1], [0], [0], [1], [0, 0, 1, 1], [], []>} : vector<1024x256xf32>, vector<256x128xf32>, vector<1024x128xf32> -> vector<1024x128xf32>
    %8 = vector.shape_cast %7 : vector<1024x128xf32> to vector<8x128x128xf32>
    %9 = vector.shape_cast %0 : vector<8x128xf32> to vector<8x1x128xf32>
    %10 = vector.broadcast %9 : vector<8x1x128xf32> to vector<8x128x128xf32>
    %11 = arith.addf %8, %10 : vector<8x128x128xf32>
    %cst_10 = arith.constant 0.000000e+00 : f32
    %12 = vector.broadcast %cst_10 : f32 to vector<8x128x128xf32>
    %13 = arith.maximumf %11, %12 : vector<8x128x128xf32>
    %14 = vector.shape_cast %2 : vector<128xf32> to vector<1x1x128xf32>
    %15 = vector.broadcast %14 : vector<1x1x128xf32> to vector<8x128x128xf32>
    %16 = arith.mulf %13, %15 : vector<8x128x128xf32>
    %cst_11 = arith.constant dense<0.000000e+00> : vector<8x128xf32>
    %17 = vector.multi_reduction <add>, %16, %cst_11 [2] : vector<8x128x128xf32> to vector<8x128xf32>
    %18 = vector.broadcast %3 : f32 to vector<8x128xf32>
    %19 = arith.addf %17, %18 : vector<8x128xf32>
    %c0_12 = arith.constant 0 : index
    %c0_13 = arith.constant 0 : index
    %20 = vector.load %arg8[%c0_12, %c0_13] : memref<8x128xf32, #tpu.memory_space<vmem>>, vector<8x128xf32>
    tpu.vector_store %arg8[%c0_12, %c0_13], %19 {strides = array<i32>} : memref<8x128xf32, #tpu.memory_space<vmem>>, vector<8x128xf32>,
    %c0_14 = arith.constant 0 : index
    %c0_15 = arith.constant 0 : index
    %21 = vector.load %arg8[%c0_14, %c0_15] : memref<8x128xf32, #tpu.memory_space<vmem>>, vector<8x128xf32>
    %22 = tpu.iota {dimensions = array<i32: 1>} : vector<8x128xi32>
    %c8_i32 = arith.constant 8 : i32
    %23 = vector.broadcast %c8_i32 : i32 to vector<8x128xi32>
    %24 = arith.cmpi slt, %22, %23 : vector<8x128xi32>
    %cst_16 = arith.constant -1.000000e+30 : f32
    %25 = vector.broadcast %cst_16 : f32 to vector<8x128xf32>
    %26 = arith.select %24, %21, %25 : vector<8x128xi1>, vector<8x128xf32>
    %cst_17 = arith.constant dense<0xFF800000> : vector<8xf32>
    %27 = vector.multi_reduction <maximumf>, %26, %cst_17 [1] : vector<8x128xf32> to vector<8xf32>
    %28 = vector.shape_cast %27 : vector<8xf32> to vector<8x1xf32>
    %29 = vector.broadcast %28 : vector<8x1xf32> to vector<8x128xf32>
    %30 = arith.subf %26, %29 : vector<8x128xf32>
    %31 = math.exp %30 : vector<8x128xf32>
    %cst_18 = arith.constant dense<0.000000e+00> : vector<8xf32>
    %32 = vector.multi_reduction <add>, %31, %cst_18 [1] : vector<8x128xf32> to vector<8xf32>
    %33 = vector.shape_cast %32 : vector<8xf32> to vector<8x1xf32>
    %34 = tpu.reciprocal %33 {approx = true} : vector<8x1xf32> -> vector<8x1xf32>
    %35 = vector.broadcast %34 : vector<8x1xf32> to vector<8x128xf32>
    %36 = arith.mulf %31, %35 : vector<8x128xf32>
    %cst_19 = arith.constant 0.000000e+00 : f32
    %37 = vector.broadcast %cst_19 : f32 to vector<8x1x256xf32>
    %38 = vector.shape_cast %36 : vector<8x128xf32> to vector<8x1x128xf32>
    %c0_20 = arith.constant 0 : index
    %c0_21 = arith.constant 0 : index
    %c0_22 = arith.constant 0 : index
    %39 = vector.load %arg1[%c0_20, %c0_21, %c0_22] : memref<8x128x256xf32, #tpu.memory_space<vmem>>, vector<8x128x256xf32>
    %cst_23 = arith.constant dense<0.000000e+00> : vector<8x1x256xf32>
    %40 = tpu.matmul %38, %39, %cst_23 {dimension_numbers = #tpu.dot_dimension_numbers<[2], [1], [1], [2], [0, 0, 0, 1, 1, 2], [0], [0]>} : vector<8x1x128xf32>, vector<8x128x256xf32>, vector<8x1x256xf32> -> vector<8x1x256xf32>
    %41 = arith.addf %37, %40 : vector<8x1x256xf32>
    %42 = vector.shape_cast %41 : vector<8x1x256xf32> to vector<8x256xf32>
    %c0_24 = arith.constant 0 : index
    %c0_25 = arith.constant 0 : index
    %43 = vector.load %arg6[%c0_24, %c0_25] : memref<8x256xf32, #tpu.memory_space<vmem>>, vector<8x256xf32>
    tpu.vector_store %arg6[%c0_24, %c0_25], %42 {strides = array<i32>} : memref<8x256xf32, #tpu.memory_space<vmem>>, vector<8x256xf32>,
    %c0_26 = arith.constant 0 : index
    %c0_27 = arith.constant 0 : index
    %44 = vector.load %arg7[%c0_26, %c0_27] : memref<8x128xf32, #tpu.memory_space<vmem>>, vector<8x128xf32>
    tpu.vector_store %arg7[%c0_26, %c0_27], %36 {strides = array<i32>} : memref<8x128xf32, #tpu.memory_space<vmem>>, vector<8x128xf32>,
    return
  }
  func.func @transform_0(%arg0: i32) -> (i32, i32, i32) {
    %c0_i32 = arith.constant 0 : i32
    %c0_i32_0 = arith.constant 0 : i32
    %c0_i32_1 = arith.constant 0 : i32
    return %arg0, %c0_i32, %c0_i32_0 : i32, i32, i32
  }
  func.func @transform_1(%arg0: i32) -> (i32, i32) {
    %c0_i32 = arith.constant 0 : i32
    %c0_i32_0 = arith.constant 0 : i32
    return %arg0, %c0_i32 : i32, i32
  }
  func.func @transform_2(%arg0: i32) -> (i32, i32) {
    %c0_i32 = arith.constant 0 : i32
    %c0_i32_0 = arith.constant 0 : i32
    %c0_i32_1 = arith.constant 0 : i32
    return %c0_i32, %c0_i32_0 : i32, i32
  }
  func.func @transform_3(%arg0: i32) -> (i32, i32) {
    %c0_i32 = arith.constant 0 : i32
    %c0_i32_0 = arith.constant 0 : i32
    %c0_i32_1 = arith.constant 0 : i32
    return %c0_i32, %c0_i32_0 : i32, i32
  }
  func.func @transform_4(%arg0: i32) -> (i32, i32) {
    %c0_i32 = arith.constant 0 : i32
    %c0_i32_0 = arith.constant 0 : i32
    %c0_i32_1 = arith.constant 0 : i32
    return %c0_i32, %c0_i32_0 : i32, i32
  }
  func.func @transform_5(%arg0: i32) -> (i32, i32) {
    %c0_i32 = arith.constant 0 : i32
    %c0_i32_0 = arith.constant 0 : i32
    return %arg0, %c0_i32 : i32, i32
  }
  func.func @transform_6(%arg0: i32) -> (i32, i32) {
    %c0_i32 = arith.constant 0 : i32
    %c0_i32_0 = arith.constant 0 : i32
    return %arg0, %c0_i32 : i32, i32
  }
}

</mosaic_0001>

<llo_original>
// kernel: bahdanau_attention.1
$region0: #{bahdanau_attention.1}
  #allocation0 [shape = 'u32[]', space=smem, size = 0x4, offset = 0x4, fixed_abs, tag = 'smem constant byte address 0x4 - core index']
  #allocation1 [shape = 'u32[144,128]{1,0:T(1,128)}', space=vmem, size = 0x12000, scoped, tag = 'internal scratch']
  #allocation2 [shape = 'f32[8,128]{1,0:T(8,128)}', space=vmem, size = 0x1000, scoped, tag = 'scratch operand']
  #allocation3 [shape = 'f32[1,1]{1,0:T(1,128)S(6)}', space=smem, size = 0x200, scoped, tag = 'scoped memory for bahdanau_attention.1']
  %s0 = inlined_call_operand.vmem [shape: f32[16,128,256], index: 0, kind: input, shape index: {}]
  %s1 = inlined_call_operand.vmem [shape: f32[16,128], index: 1, kind: input, shape index: {}]
  %s2 = inlined_call_operand.vmem [shape: f32[256,128], index: 2, kind: input, shape index: {}]
  %s3 = inlined_call_operand.vmem [shape: f32[1,128], index: 3, kind: input, shape index: {}]
  %s4 = inlined_call_operand.<no memory space> [shape: f32[1,1], index: 4, kind: input, shape index: {}]
  %s5 = inlined_call_operand.hbm [shape: f32[16,256], index: 5, kind: output, shape index: {0}]
  %s6 = inlined_call_operand.vmem [shape: f32[16,128], index: 6, kind: output, shape index: {1}]
  %7 = xla_tuple %s5, %s6
  %s8 = sld [smem:[#allocation0]]
  $region61: #{bahdanau_attention.1} parent=0
    _
  %s10 = ssub.s32 1, %s8
  %s11 = scalar_select 0, %s10, %s8
  %12 = sst [smem:[#allocation3]] %s4
  $region1: #{bahdanau_attention.1} parent=0
    #allocation4 [shape = 'u8[16384]{0}', space=vmem, size = 0x4000, scoped, tag = 'output window, operand 0']
    #allocation5 [shape = 's32[2]{0}', space=sflag, size = 0x8, scoped, tag = 'scoped memory for bahdanau_attention.1']
    %13 = vsyncpa [#allocation5], 0
    %s14 = scalar_lea.sflag [#allocation5], 1
    %15 = vsyncpa %s14, 0
    loop: start=0, step=1, limit=4
    $region2: #{bahdanau_attention.1} parent=1 // loop_pre_header
      _
    $region3: #{bahdanau_attention.1} parent=1 // loop_header
      %s17 = sphi 0, %s21
      %p18 = scmp.ge.s32.totalorder %s17, 4
      %s27 = sphi 0, %s29
      %s30 = sphi 0, %s27
      %s31 = sphi 0, %s30
      %s47 = sphi 0, %s31
      %s53 = sphi 0, %s55
      %s56 = sphi 0, %s53
      %s57 = sphi 0, %s56
      %s73 = sphi 0, %s57
      %s77 = sphi 0, %s77
      %s79 = sphi 0, %s77
      %s80 = sphi 0, %s79
      %s94 = sphi 0, %s80
      %s98 = sphi 0, %s98
      %s100 = sphi 0, %s98
      %s101 = sphi 0, %s100
      %s115 = sphi 0, %s101
      %s119 = sphi 0, %s119
      %s121 = sphi 0, %s119
      %s122 = sphi 0, %s121
      %s136 = sphi 0, %s122
      %s142 = sphi 0, %s144
      %s145 = sphi 0, %s142
      %s146 = sphi 0, %s145
      %s162 = sphi 0, %s146
      %s168 = sphi 0, %s170
      %s171 = sphi 0, %s168
      %s172 = sphi 0, %s171
      %s188 = sphi 0, %s172
    $region4: #{bahdanau_attention.1} parent=1 // loop_header_branch
      %20 = sbr.rel (%p18) target = $region8
    $region5: #{bahdanau_attention.1} parent=1 // loop_body
      %s22 = ssub.s32 %s17, 1
      %s23 = ssub.s32 %s17, 2
      %s24 = sadd.s32 %s17, 1
      %s25 = ssub.s32 %s17, %s24
      %p26 = scmp.eq.s32.totalorder %s25, 0
      %s28 = sadd.s32 %s27, 1
      %s29 = scalar_select %p26, %s27, %s28
      %p32 = pneg %p26
      %p33 = scmp.eq.s32.totalorder %s17, 1
      %p34 = por %p32, %p33
      %p35 = scmp.ne.s32.totalorder %s27, %s30
      %p36 = scmp.eq.s32.totalorder %s17, 0
      %p37 = por %p35, %p36
      %p38 = scmp.ne.s32.totalorder %s27, %s30
      %p39 = scmp.eq.s32.totalorder %s22, 1
      %p40 = por %p38, %p39
      %p41 = scmp.ne.s32.totalorder %s30, %s31
      %p42 = scmp.eq.s32.totalorder %s22, 0
      %p43 = por %p41, %p42
      %p44 = scmp.ne.s32.totalorder %s30, %s31
      %p45 = scmp.eq.s32.totalorder %s23, 1
      %p46 = por %p44, %p45
      %p48 = scmp.ne.s32.totalorder %s31, %s47
      %p49 = scmp.eq.s32.totalorder %s23, 0
      %p50 = por %p48, %p49
      %s51 = ssub.s32 %s17, %s24
      %p52 = scmp.eq.s32.totalorder %s51, 0
      %s54 = sadd.s32 %s53, 1
      %s55 = scalar_select %p52, %s53, %s54
      %p58 = pneg %p52
      %p59 = scmp.eq.s32.totalorder %s17, 1
      %p60 = por %p58, %p59
      %p61 = scmp.ne.s32.totalorder %s53, %s56
      %p62 = scmp.eq.s32.totalorder %s17, 0
      %p63 = por %p61, %p62
      %p64 = scmp.ne.s32.totalorder %s53, %s56
      %p65 = scmp.eq.s32.totalorder %s22, 1
      %p66 = por %p64, %p65
      %p67 = scmp.ne.s32.totalorder %s56, %s57
      %p68 = scmp.eq.s32.totalorder %s22, 0
      %p69 = por %p67, %p68
      %p70 = scmp.ne.s32.totalorder %s56, %s57
      %p71 = scmp.eq.s32.totalorder %s23, 1
      %p72 = por %p70, %p71
      %p74 = scmp.ne.s32.totalorder %s57, %s73
      %p75 = scmp.eq.s32.totalorder %s23, 0
      %p76 = por %p74, %p75
      %s78 = sadd.s32 %s77, 1
      %p81 = scmp.eq.s32.totalorder %s17, 1
      %p82 = scmp.ne.s32.totalorder %s77, %s79
      %p83 = scmp.eq.s32.totalorder %s17, 0
      %p84 = por %p82, %p83
      %p85 = scmp.ne.s32.totalorder %s77, %s79
      %p86 = scmp.eq.s32.totalorder %s22, 1
      %p87 = por %p85, %p86
      %p88 = scmp.ne.s32.totalorder %s79, %s80
      %p89 = scmp.eq.s32.totalorder %s22, 0
      %p90 = por %p88, %p89
      %p91 = scmp.ne.s32.totalorder %s79, %s80
      %p92 = scmp.eq.s32.totalorder %s23, 1
      %p93 = por %p91, %p92
      %p95 = scmp.ne.s32.totalorder %s80, %s94
      %p96 = scmp.eq.s32.totalorder %s23, 0
      %p97 = por %p95, %p96
      %s99 = sadd.s32 %s98, 1
      %p102 = scmp.eq.s32.totalorder %s17, 1
      %p103 = scmp.ne.s32.totalorder %s98, %s100
      %p104 = scmp.eq.s32.totalorder %s17, 0
      %p105 = por %p103, %p104
      %p106 = scmp.ne.s32.totalorder %s98, %s100
      %p107 = scmp.eq.s32.totalorder %s22, 1
      %p108 = por %p106, %p107
      %p109 = scmp.ne.s32.totalorder %s100, %s101
      %p110 = scmp.eq.s32.totalorder %s22, 0
      %p111 = por %p109, %p110
      %p112 = scmp.ne.s32.totalorder %s100, %s101
      %p113 = scmp.eq.s32.totalorder %s23, 1
      %p114 = por %p112, %p113
      %p116 = scmp.ne.s32.totalorder %s101, %s115
      %p117 = scmp.eq.s32.totalorder %s23, 0
      %p118 = por %p116, %p117
      %s120 = sadd.s32 %s119, 1
      %p123 = scmp.eq.s32.totalorder %s17, 1
      %p124 = scmp.ne.s32.totalorder %s119, %s121
      %p125 = scmp.eq.s32.totalorder %s17, 0
      %p126 = por %p124, %p125
      %p127 = scmp.ne.s32.totalorder %s119, %s121
      %p128 = scmp.eq.s32.totalorder %s22, 1
      %p129 = por %p127, %p128
      %p130 = scmp.ne.s32.totalorder %s121, %s122
      %p131 = scmp.eq.s32.totalorder %s22, 0
      %p132 = por %p130, %p131
      %p133 = scmp.ne.s32.totalorder %s121, %s122
      %p134 = scmp.eq.s32.totalorder %s23, 1
      %p135 = por %p133, %p134
      %p137 = scmp.ne.s32.totalorder %s122, %s136
      %p138 = scmp.eq.s32.totalorder %s23, 0
      %p139 = por %p137, %p138
      %s140 = ssub.s32 %s17, %s24
      %p141 = scmp.eq.s32.totalorder %s140, 0
      %s143 = sadd.s32 %s142, 1
      %s144 = scalar_select %p141, %s142, %s143
      %p147 = pneg %p141
      %p148 = scmp.eq.s32.totalorder %s17, 1
      %p149 = por %p147, %p148
      %p150 = scmp.ne.s32.totalorder %s142, %s145
      %p151 = scmp.eq.s32.totalorder %s17, 0
      %p152 = por %p150, %p151
      %p153 = scmp.ne.s32.totalorder %s142, %s145
      %p154 = scmp.eq.s32.totalorder %s22, 1
      %p155 = por %p153, %p154
      %p156 = scmp.ne.s32.totalorder %s145, %s146
      %p157 = scmp.eq.s32.totalorder %s22, 0
      %p158 = por %p156, %p157
      %p159 = scmp.ne.s32.totalorder %s145, %s146
      %p160 = scmp.eq.s32.totalorder %s23, 1
      %p161 = por %p159, %p160
      %p163 = scmp.ne.s32.totalorder %s146, %s162
      %p164 = scmp.eq.s32.totalorder %s23, 0
      %p165 = por %p163, %p164
      %s166 = ssub.s32 %s17, %s24
      %p167 = scmp.eq.s32.totalorder %s166, 0
      %s169 = sadd.s32 %s168, 1
      %s170 = scalar_select %p167, %s168, %s169
      %p173 = pneg %p167
      %p174 = scmp.eq.s32.totalorder %s17, 1
      %p175 = por %p173, %p174
      %p176 = scmp.ne.s32.totalorder %s168, %s171
      %p177 = scmp.eq.s32.totalorder %s17, 0
      %p178 = por %p176, %p177
      %p179 = scmp.ne.s32.totalorder %s168, %s171
      %p180 = scmp.eq.s32.totalorder %s22, 1
      %p181 = por %p179, %p180
      %p182 = scmp.ne.s32.totalorder %s171, %s172
      %p183 = scmp.eq.s32.totalorder %s22, 0
      %p184 = por %p182, %p183
      %p185 = scmp.ne.s32.totalorder %s171, %s172
      %p186 = scmp.eq.s32.totalorder %s23, 1
      %p187 = por %p185, %p186
      %p189 = scmp.ne.s32.totalorder %s172, %s188
      %p190 = scmp.eq.s32.totalorder %s23, 0
      %p191 = por %p189, %p190
      %p192 = scmp.le.s32.totalorder 1, %s17
      %p193 = scmp.lt.s32.totalorder %s17, 3
      %p194 = pnand %p192, %p193
      %p195 = pneg %p194
      // Predicated region
      $region9: #{bahdanau_attention.1} parent=5 // pred_check
        _
      $region10: #{bahdanau_attention.1} parent=5 // pred_check_branch
        %197 = sbr.rel (%p194) target = $region12
      $region11: #{bahdanau_attention.1} parent=5 // pred_region
        %s198 = ssub.s32 %s17, 1
        // Predicated region
        $region13: #{bahdanau_attention.1} parent=11 // pred_check
          %p199 = pneg %p90
        $region14: #{bahdanau_attention.1} parent=11 // pred_check_branch
          %201 = sbr.rel (%p199) target = $region16
        $region15: #{bahdanau_attention.1} parent=11 // pred_region
          _
        $region16: #{bahdanau_attention.1} parent=11 // pred_fallthru
          _
        // Predicated region
        $region17: #{bahdanau_attention.1} parent=11 // pred_check
          %p202 = pneg %p111
        $region18: #{bahdanau_attention.1} parent=11 // pred_check_branch
          %204 = sbr.rel (%p202) target = $region20
        $region19: #{bahdanau_attention.1} parent=11 // pred_region
          _
        $region20: #{bahdanau_attention.1} parent=11 // pred_fallthru
          _
        // Predicated region
        $region21: #{bahdanau_attention.1} parent=11 // pred_check
          %p205 = pneg %p132
        $region22: #{bahdanau_attention.1} parent=11 // pred_check_branch
          %207 = sbr.rel (%p205) target = $region24
        $region23: #{bahdanau_attention.1} parent=11 // pred_region
          _
        $region24: #{bahdanau_attention.1} parent=11 // pred_fallthru
          _
      $region12: #{bahdanau_attention.1} parent=5 // pred_fallthru
        _
      %p208 = scmp.lt.s32.totalorder %s17, 2
      // Predicated region
      $region25: #{bahdanau_attention.1} parent=5 // pred_check
        %p209 = pneg %p208
      $region26: #{bahdanau_attention.1} parent=5 // pred_check_branch
        %211 = sbr.rel (%p209) target = $region28
      $region27: #{bahdanau_attention.1} parent=5 // pred_region
        // Predicated region
        $region29: #{bahdanau_attention.1} parent=27 // pred_check
          %p212 = pneg %p37
        $region30: #{bahdanau_attention.1} parent=27 // pred_check_branch
          %214 = sbr.rel (%p212) target = $region32
        $region31: #{bahdanau_attention.1} parent=27 // pred_region
          %s215 = smul.u32 8, %s17
          %p216 = scmp.lt.s32.totalorder %s215, 15
          %s217 = scalar_select %p216, %s215, 15
          %s218 = smul.addr %s217, 32
          %s219 = smul.addr %s218, 8
          %s220 = scalar_lea.vmem %s0, %s219
          %s221 = smul.u32 8, %s17
        $region32: #{bahdanau_attention.1} parent=27 // pred_fallthru
          _
        // Predicated region
        $region33: #{bahdanau_attention.1} parent=27 // pred_check
          %p222 = pneg %p63
        $region34: #{bahdanau_attention.1} parent=27 // pred_check_branch
          %224 = sbr.rel (%p222) target = $region36
        $region35: #{bahdanau_attention.1} parent=27 // pred_region
          %p225 = scmp.lt.s32.totalorder %s17, 1
          %s226 = scalar_select %p225, %s17, 1
          %s227 = smul.addr %s226, 8
          %s228 = scalar_lea.vmem %s1, %s227
        $region36: #{bahdanau_attention.1} parent=27 // pred_fallthru
          _
      $region28: #{bahdanau_attention.1} parent=5 // pred_fallthru
        _
      %p229 = scmp.le.s32.totalorder 1, %s17
      %p230 = scmp.lt.s32.totalorder %s17, 3
      %p231 = pnand %p229, %p230
      %p232 = pneg %p231
      // Predicated region
      $region37: #{bahdanau_attention.1} parent=5 // pred_check
        _
      $region38: #{bahdanau_attention.1} parent=5 // pred_check_branch
        %234 = sbr.rel (%p231) target = $region40
      $region39: #{bahdanau_attention.1} parent=5 // pred_region
        %s235 = ssub.s32 %s17, 1
        %s236 = smul.u32 8, %s22
        %p237 = scmp.lt.s32.totalorder %s236, 15
        %s238 = scalar_select %p237, %s236, 15
        %s239 = smul.addr %s238, 32
        %s240 = smul.addr %s239, 8
        %s241 = scalar_lea.vmem %s0, %s240
        %p242 = pneg %p43
        %p243 = pneg %p40
        %p244 = scmp.lt.s32.totalorder %s22, 1
        %s245 = scalar_select %p244, %s22, 1
        %s246 = smul.addr %s245, 8
        %s247 = scalar_lea.vmem %s1, %s246
        %p248 = pneg %p69
        %p249 = pneg %p66
        %p250 = pneg %p90
        %p251 = pneg %p87
        %p252 = pneg %p111
        %p253 = pneg %p108
        %p254 = pneg %p132
        %p255 = pneg %p129
        %p256 = pneg %p158
        %p257 = pneg %p155
        %s258 = sand.u32 %s145, 1
        %s259 = scalar_lea.sflag [#allocation5], %s258
        %s260 = sand.u32 %s145, 1
        %s261 = smul.addr %s260, 16
        %s262 = scalar_lea.vmem [#allocation4], %s261
        %p263 = pneg %p184
        %p264 = pneg %p181
        %p265 = scmp.lt.s32.totalorder %s22, 1
        %s266 = scalar_select %p265, %s22, 1
        %s267 = smul.addr %s266, 8
        %s268 = scalar_lea.vmem %s6, %s267
        %s269 = smul.u32 8, %s22
        %p270 = scmp.lt.s32.totalorder %s269, 15
        %s271 = scalar_select %p270, %s269, 15
        %s272 = smul.addr %s271, 32
        %s273 = smul.addr %s272, 8
        %s274 = scalar_lea.vmem %s0, %s273
        %s275 = smul.u32 8, %s22
        %p276 = scmp.lt.s32.totalorder %s22, 1
        %s277 = scalar_select %p276, %s22, 1
        %s278 = smul.addr %s277, 8
        %s279 = scalar_lea.vmem %s1, %s278
        %p280 = scmp.lt.s32.totalorder %s22, 1
        %s281 = scalar_select %p280, %s22, 1
        %s282 = smul.addr %s281, 8
        %s283 = scalar_lea.vmem %s6, %s282
        %v284 = vld [vmem:[%s279] sm:$0xff]
        %v285 = vld [vmem:[%s3] sm:$0x1]
        %s286 = sld [smem:[#allocation3]]
        %v287 = vld [vmem:[%s274] sm:$0xff]
        %v288 = vld [vmem:[%s274 + $0x8] sm:$0xff]
        %v289 = vld [vmem:[%s274 + $0x10] sm:$0xff]
        %v290 = vld [vmem:[%s274 + $0x18] sm:$0xff]
        %v291 = vld [vmem:[%s274 + $0x20] sm:$0xff]
        %v292 = vld [vmem:[%s274 + $0x28] sm:$0xff]
        %v293 = vld [vmem:[%s274 + $0x30] sm:$0xff]
        %v294 = vld [vmem:[%s274 + $0x38] sm:$0xff]
        %v295 = vld [vmem:[%s274 + $0x40] sm:$0xff]
        %v296 = vld [vmem:[%s274 + $0x48] sm:$0xff]
        %v297 = vld [vmem:[%s274 + $0x50] sm:$0xff]
        %v298 = vld [vmem:[%s274 + $0x58] sm:$0xff]
        %v299 = vld [vmem:[%s274 + $0x60] sm:$0xff]
        %v300 = vld [vmem:[%s274 + $0x68] sm:$0xff]
        %v301 = vld [vmem:[%s274 + $0x70] sm:$0xff]
        %v302 = vld [vmem:[%s274 + $0x78] sm:$0xff]
        %v303 = vld [vmem:[%s274 + $0x80] sm:$0xff]
        %v304 = vld [vmem:[%s274 + $0x88] sm:$0xff]
        %v305 = vld [vmem:[%s274 + $0x90] sm:$0xff]
        %v306 = vld [vmem:[%s274 + $0x98] sm:$0xff]
        %v307 = vld [vmem:[%s274 + $0xa0] sm:$0xff]
        %v308 = vld [vmem:[%s274 + $0xa8] sm:$0xff]
        %v309 = vld [vmem:[%s274 + $0xb0] sm:$0xff]
        %v310 = vld [vmem:[%s274 + $0xb8] sm:$0xff]
        %v311 = vld [vmem:[%s274 + $0xc0] sm:$0xff]
        %v312 = vld [vmem:[%s274 + $0xc8] sm:$0xff]
        %v313 = vld [vmem:[%s274 + $0xd0] sm:$0xff]
        %v314 = vld [vmem:[%s274 + $0xd8] sm:$0xff]
        %v315 = vld [vmem:[%s274 + $0xe0] sm:$0xff]
        %v316 = vld [vmem:[%s274 + $0xe8] sm:$0xff]
        %v317 = vld [vmem:[%s274 + $0xf0] sm:$0xff]
        %v318 = vld [vmem:[%s274 + $0xf8] sm:$0xff]
        %v319 = vld [vmem:[%s274 + $0x100] sm:$0xff]
        %v320 = vld [vmem:[%s274 + $0x108] sm:$0xff]
        %v321 = vld [vmem:[%s274 + $0x110] sm:$0xff]
        %v322 = vld [vmem:[%s274 + $0x118] sm:$0xff]
        %v323 = vld [vmem:[%s274 + $0x120] sm:$0xff]
        %v324 = vld [vmem:[%s274 + $0x128] sm:$0xff]
        %v325 = vld [vmem:[%s274 + $0x130] sm:$0xff]
        %v326 = vld [vmem:[%s274 + $0x138] sm:$0xff]
        %v327 = vld [vmem:[%s274 + $0x140] sm:$0xff]
        %v328 = vld [vmem:[%s274 + $0x148] sm:$0xff]
        %v329 = vld [vmem:[%s274 + $0x150] sm:$0xff]
        %v330 = vld [vmem:[%s274 + $0x158] sm:$0xff]
        %v331 = vld [vmem:[%s274 + $0x160] sm:$0xff]
        %v332 = vld [vmem:[%s274 + $0x168] sm:$0xff]
        %v333 = vld [vmem:[%s274 + $0x170] sm:$0xff]
        %v334 = vld [vmem:[%s274 + $0x178] sm:$0xff]
        %v335 = vld [vmem:[%s274 + $0x180] sm:$0xff]
        %v336 = vld [vmem:[%s274 + $0x188] sm:$0xff]
        %v337 = vld [vmem:[%s274 + $0x190] sm:$0xff]
        %v338 = vld [vmem:[%s274 + $0x198] sm:$0xff]
        %v339 = vld [vmem:[%s274 + $0x1a0] sm:$0xff]
        %v340 = vld [vmem:[%s274 + $0x1a8] sm:$0xff]
        %v341 = vld [vmem:[%s274 + $0x1b0] sm:$0xff]
        %v342 = vld [vmem:[%s274 + $0x1b8] sm:$0xff]
        %v343 = vld [vmem:[%s274 + $0x1c0] sm:$0xff]
        %v344 = vld [vmem:[%s274 + $0x1c8] sm:$0xff]
        %v345 = vld [vmem:[%s274 + $0x1d0] sm:$0xff]
        %v346 = vld [vmem:[%s274 + $0x1d8] sm:$0xff]
        %v347 = vld [vmem:[%s274 + $0x1e0] sm:$0xff]
        %v348 = vld [vmem:[%s274 + $0x1e8] sm:$0xff]
        %v349 = vld [vmem:[%s274 + $0x1f0] sm:$0xff]
        %v350 = vld [vmem:[%s274 + $0x1f8] sm:$0xff]
        %v351 = vld [vmem:[%s274 + $0x200] sm:$0xff]
        %v352 = vld [vmem:[%s274 + $0x208] sm:$0xff]
        %v353 = vld [vmem:[%s274 + $0x210] sm:$0xff]
        %v354 = vld [vmem:[%s274 + $0x218] sm:$0xff]
        %v355 = vld [vmem:[%s274 + $0x220] sm:$0xff]
        %v356 = vld [vmem:[%s274 + $0x228] sm:$0xff]
        %v357 = vld [vmem:[%s274 + $0x230] sm:$0xff]
        %v358 = vld [vmem:[%s274 + $0x238] sm:$0xff]
        %v359 = vld [vmem:[%s274 + $0x240] sm:$0xff]
        %v360 = vld [vmem:[%s274 + $0x248] sm:$0xff]
        %v361 = vld [vmem:[%s274 + $0x250] sm:$0xff]
        %v362 = vld [vmem:[%s274 + $0x258] sm:$0xff]
        %v363 = vld [vmem:[%s274 + $0x260] sm:$0xff]
        %v364 = vld [vmem:[%s274 + $0x268] sm:$0xff]
        %v365 = vld [vmem:[%s274 + $0x270] sm:$0xff]
        %v366 = vld [vmem:[%s274 + $0x278] sm:$0xff]
        %v367 = vld [vmem:[%s274 + $0x280] sm:$0xff]
        %v368 = vld [vmem:[%s274 + $0x288] sm:$0xff]
        %v369 = vld [vmem:[%s274 + $0x290] sm:$0xff]
        %v370 = vld [vmem:[%s274 + $0x298] sm:$0xff]
        %v371 = vld [vmem:[%s274 + $0x2a0] sm:$0xff]
        %v372 = vld [vmem:[%s274 + $0x2a8] sm:$0xff]
        %v373 = vld [vmem:[%s274 + $0x2b0] sm:$0xff]
        %v374 = vld [vmem:[%s274 + $0x2b8] sm:$0xff]
        %v375 = vld [vmem:[%s274 + $0x2c0] sm:$0xff]
        %v376 = vld [vmem:[%s274 + $0x2c8] sm:$0xff]
        %v377 = vld [vmem:[%s274 + $0x2d0] sm:$0xff]
        %v378 = vld [vmem:[%s274 + $0x2d8] sm:$0xff]
        %v379 = vld [vmem:[%s274 + $0x2e0] sm:$0xff]
        %v380 = vld [vmem:[%s274 + $0x2e8] sm:$0xff]
        %v381 = vld [vmem:[%s274 + $0x2f0] sm:$0xff]
        %v382 = vld [vmem:[%s274 + $0x2f8] sm:$0xff]
        %v383 = vld [vmem:[%s274 + $0x300] sm:$0xff]
        %v384 = vld [vmem:[%s274 + $0x308] sm:$0xff]
        %v385 = vld [vmem:[%s274 + $0x310] sm:$0xff]
        %v386 = vld [vmem:[%s274 + $0x318] sm:$0xff]
        %v387 = vld [vmem:[%s274 + $0x320] sm:$0xff]
        %v388 = vld [vmem:[%s274 + $0x328] sm:$0xff]
        %v389 = vld [vmem:[%s274 + $0x330] sm:$0xff]
        %v390 = vld [vmem:[%s274 + $0x338] sm:$0xff]
        %v391 = vld [vmem:[%s274 + $0x340] sm:$0xff]
        %v392 = vld [vmem:[%s274 + $0x348] sm:$0xff]
        %v393 = vld [vmem:[%s274 + $0x350] sm:$0xff]
        %v394 = vld [vmem:[%s274 + $0x358] sm:$0xff]
        %v395 = vld [vmem:[%s274 + $0x360] sm:$0xff]
        %v396 = vld [vmem:[%s274 + $0x368] sm:$0xff]
        %v397 = vld [vmem:[%s274 + $0x370] sm:$0xff]
        %v398 = vld [vmem:[%s274 + $0x378] sm:$0xff]
        %v399 = vld [vmem:[%s274 + $0x380] sm:$0xff]
        %v400 = vld [vmem:[%s274 + $0x388] sm:$0xff]
        %v401 = vld [vmem:[%s274 + $0x390] sm:$0xff]
        %v402 = vld [vmem:[%s274 + $0x398] sm:$0xff]
        %v403 = vld [vmem:[%s274 + $0x3a0] sm:$0xff]
        %v404 = vld [vmem:[%s274 + $0x3a8] sm:$0xff]
        %v405 = vld [vmem:[%s274 + $0x3b0] sm:$0xff]
        %v406 = vld [vmem:[%s274 + $0x3b8] sm:$0xff]
        %v407 = vld [vmem:[%s274 + $0x3c0] sm:$0xff]
        %v408 = vld [vmem:[%s274 + $0x3c8] sm:$0xff]
        %v409 = vld [vmem:[%s274 + $0x3d0] sm:$0xff]
        %v410 = vld [vmem:[%s274 + $0x3d8] sm:$0xff]
        %v411 = vld [vmem:[%s274 + $0x3e0] sm:$0xff]
        %v412 = vld [vmem:[%s274 + $0x3e8] sm:$0xff]
        %v413 = vld [vmem:[%s274 + $0x3f0] sm:$0xff]
        %v414 = vld [vmem:[%s274 + $0x3f8] sm:$0xff]
        %v415 = vld [vmem:[%s274 + $0x400] sm:$0xff]
        %v416 = vld [vmem:[%s274 + $0x408] sm:$0xff]
        %v417 = vld [vmem:[%s274 + $0x410] sm:$0xff]
        %v418 = vld [vmem:[%s274 + $0x418] sm:$0xff]
        %v419 = vld [vmem:[%s274 + $0x420] sm:$0xff]
        %v420 = vld [vmem:[%s274 + $0x428] sm:$0xff]
        %v421 = vld [vmem:[%s274 + $0x430] sm:$0xff]
        %v422 = vld [vmem:[%s274 + $0x438] sm:$0xff]
        %v423 = vld [vmem:[%s274 + $0x440] sm:$0xff]
        %v424 = vld [vmem:[%s274 + $0x448] sm:$0xff]
        %v425 = vld [vmem:[%s274 + $0x450] sm:$0xff]
        %v426 = vld [vmem:[%s274 + $0x458] sm:$0xff]
        %v427 = vld [vmem:[%s274 + $0x460] sm:$0xff]
        %v428 = vld [vmem:[%s274 + $0x468] sm:$0xff]
        %v429 = vld [vmem:[%s274 + $0x470] sm:$0xff]
        %v430 = vld [vmem:[%s274 + $0x478] sm:$0xff]
        %v431 = vld [vmem:[%s274 + $0x480] sm:$0xff]
        %v432 = vld [vmem:[%s274 + $0x488] sm:$0xff]
        %v433 = vld [vmem:[%s274 + $0x490] sm:$0xff]
        %v434 = vld [vmem:[%s274 + $0x498] sm:$0xff]
        %v435 = vld [vmem:[%s274 + $0x4a0] sm:$0xff]
        %v436 = vld [vmem:[%s274 + $0x4a8] sm:$0xff]
        %v437 = vld [vmem:[%s274 + $0x4b0] sm:$0xff]
        %v438 = vld [vmem:[%s274 + $0x4b8] sm:$0xff]
        %v439 = vld [vmem:[%s274 + $0x4c0] sm:$0xff]
        %v440 = vld [vmem:[%s274 + $0x4c8] sm:$0xff]
        %v441 = vld [vmem:[%s274 + $0x4d0] sm:$0xff]
        %v442 = vld [vmem:[%s274 + $0x4d8] sm:$0xff]
        %v443 = vld [vmem:[%s274 + $0x4e0] sm:$0xff]
        %v444 = vld [vmem:[%s274 + $0x4e8] sm:$0xff]
        %v445 = vld [vmem:[%s274 + $0x4f0] sm:$0xff]
        %v446 = vld [vmem:[%s274 + $0x4f8] sm:$0xff]
        %v447 = vld [vmem:[%s274 + $0x500] sm:$0xff]
        %v448 = vld [vmem:[%s274 + $0x508] sm:$0xff]
        %v449 = vld [vmem:[%s274 + $0x510] sm:$0xff]
        %v450 = vld [vmem:[%s274 + $0x518] sm:$0xff]
        %v451 = vld [vmem:[%s274 + $0x520] sm:$0xff]
        %v452 = vld [vmem:[%s274 + $0x528] sm:$0xff]
        %v453 = vld [vmem:[%s274 + $0x530] sm:$0xff]
        %v454 = vld [vmem:[%s274 + $0x538] sm:$0xff]
        %v455 = vld [vmem:[%s274 + $0x540] sm:$0xff]
        %v456 = vld [vmem:[%s274 + $0x548] sm:$0xff]
        %v457 = vld [vmem:[%s274 + $0x550] sm:$0xff]
        %v458 = vld [vmem:[%s274 + $0x558] sm:$0xff]
        %v459 = vld [vmem:[%s274 + $0x560] sm:$0xff]
        %v460 = vld [vmem:[%s274 + $0x568] sm:$0xff]
        %v461 = vld [vmem:[%s274 + $0x570] sm:$0xff]
        %v462 = vld [vmem:[%s274 + $0x578] sm:$0xff]
        %v463 = vld [vmem:[%s274 + $0x580] sm:$0xff]
        %v464 = vld [vmem:[%s274 + $0x588] sm:$0xff]
        %v465 = vld [vmem:[%s274 + $0x590] sm:$0xff]
        %v466 = vld [vmem:[%s274 + $0x598] sm:$0xff]
        %v467 = vld [vmem:[%s274 + $0x5a0] sm:$0xff]
        %v468 = vld [vmem:[%s274 + $0x5a8] sm:$0xff]
        %v469 = vld [vmem:[%s274 + $0x5b0] sm:$0xff]
        %v470 = vld [vmem:[%s274 + $0x5b8] sm:$0xff]
        %v471 = vld [vmem:[%s274 + $0x5c0] sm:$0xff]
        %v472 = vld [vmem:[%s274 + $0x5c8] sm:$0xff]
        %v473 = vld [vmem:[%s274 + $0x5d0] sm:$0xff]
        %v474 = vld [vmem:[%s274 + $0x5d8] sm:$0xff]
        %v475 = vld [vmem:[%s274 + $0x5e0] sm:$0xff]
        %v476 = vld [vmem:[%s274 + $0x5e8] sm:$0xff]
        %v477 = vld [vmem:[%s274 + $0x5f0] sm:$0xff]
        %v478 = vld [vmem:[%s274 + $0x5f8] sm:$0xff]
        %v479 = vld [vmem:[%s274 + $0x600] sm:$0xff]
        %v480 = vld [vmem:[%s274 + $0x608] sm:$0xff]
        %v481 = vld [vmem:[%s274 + $0x610] sm:$0xff]
        %v482 = vld [vmem:[%s274 + $0x618] sm:$0xff]
        %v483 = vld [vmem:[%s274 + $0x620] sm:$0xff]
        %v484 = vld [vmem:[%s274 + $0x628] sm:$0xff]
        %v485 = vld [vmem:[%s274 + $0x630] sm:$0xff]
        %v486 = vld [vmem:[%s274 + $0x638] sm:$0xff]
        %v487 = vld [vmem:[%s274 + $0x640] sm:$0xff]
        %v488 = vld [vmem:[%s274 + $0x648] sm:$0xff]
        %v489 = vld [vmem:[%s274 + $0x650] sm:$0xff]
        %v490 = vld [vmem:[%s274 + $0x658] sm:$0xff]
        %v491 = vld [vmem:[%s274 + $0x660] sm:$0xff]
        %v492 = vld [vmem:[%s274 + $0x668] sm:$0xff]
        %v493 = vld [vmem:[%s274 + $0x670] sm:$0xff]
        %v494 = vld [vmem:[%s274 + $0x678] sm:$0xff]
        %v495 = vld [vmem:[%s274 + $0x680] sm:$0xff]
        %v496 = vld [vmem:[%s274 + $0x688] sm:$0xff]
        %v497 = vld [vmem:[%s274 + $0x690] sm:$0xff]
        %v498 = vld [vmem:[%s274 + $0x698] sm:$0xff]
        %v499 = vld [vmem:[%s274 + $0x6a0] sm:$0xff]
        %v500 = vld [vmem:[%s274 + $0x6a8] sm:$0xff]
        %v501 = vld [vmem:[%s274 + $0x6b0] sm:$0xff]
        %v502 = vld [vmem:[%s274 + $0x6b8] sm:$0xff]
        %v503 = vld [vmem:[%s274 + $0x6c0] sm:$0xff]
        %v504 = vld [vmem:[%s274 + $0x6c8] sm:$0xff]
        %v505 = vld [vmem:[%s274 + $0x6d0] sm:$0xff]
        %v506 = vld [vmem:[%s274 + $0x6d8] sm:$0xff]
        %v507 = vld [vmem:[%s274 + $0x6e0] sm:$0xff]
        %v508 = vld [vmem:[%s274 + $0x6e8] sm:$0xff]
        %v509 = vld [vmem:[%s274 + $0x6f0] sm:$0xff]
        %v510 = vld [vmem:[%s274 + $0x6f8] sm:$0xff]
        %v511 = vld [vmem:[%s274 + $0x700] sm:$0xff]
        %v512 = vld [vmem:[%s274 + $0x708] sm:$0xff]
        %v513 = vld [vmem:[%s274 + $0x710] sm:$0xff]
        %v514 = vld [vmem:[%s274 + $0x718] sm:$0xff]
        %v515 = vld [vmem:[%s274 + $0x720] sm:$0xff]
        %v516 = vld [vmem:[%s274 + $0x728] sm:$0xff]
        %v517 = vld [vmem:[%s274 + $0x730] sm:$0xff]
        %v518 = vld [vmem:[%s274 + $0x738] sm:$0xff]
        %v519 = vld [vmem:[%s274 + $0x740] sm:$0xff]
        %v520 = vld [vmem:[%s274 + $0x748] sm:$0xff]
        %v521 = vld [vmem:[%s274 + $0x750] sm:$0xff]
        %v522 = vld [vmem:[%s274 + $0x758] sm:$0xff]
        %v523 = vld [vmem:[%s274 + $0x760] sm:$0xff]
        %v524 = vld [vmem:[%s274 + $0x768] sm:$0xff]
        %v525 = vld [vmem:[%s274 + $0x770] sm:$0xff]
        %v526 = vld [vmem:[%s274 + $0x778] sm:$0xff]
        %v527 = vld [vmem:[%s274 + $0x780] sm:$0xff]
        %v528 = vld [vmem:[%s274 + $0x788] sm:$0xff]
        %v529 = vld [vmem:[%s274 + $0x790] sm:$0xff]
        %v530 = vld [vmem:[%s274 + $0x798] sm:$0xff]
        %v531 = vld [vmem:[%s274 + $0x7a0] sm:$0xff]
        %v532 = vld [vmem:[%s274 + $0x7a8] sm:$0xff]
        %v533 = vld [vmem:[%s274 + $0x7b0] sm:$0xff]
        %v534 = vld [vmem:[%s274 + $0x7b8] sm:$0xff]
        %v535 = vld [vmem:[%s274 + $0x7c0] sm:$0xff]
        %v536 = vld [vmem:[%s274 + $0x7c8] sm:$0xff]
        %v537 = vld [vmem:[%s274 + $0x7d0] sm:$0xff]
        %v538 = vld [vmem:[%s274 + $0x7d8] sm:$0xff]
        %v539 = vld [vmem:[%s274 + $0x7e0] sm:$0xff]
        %v540 = vld [vmem:[%s274 + $0x7e8] sm:$0xff]
        %v541 = vld [vmem:[%s274 + $0x7f0] sm:$0xff]
        %v542 = vld [vmem:[%s274 + $0x7f8] sm:$0xff]
        %v543 = vld [vmem:[%s2] sm:$0xff]
        %v544 = vld [vmem:[%s2 + $0x8] sm:$0xff]
        %v545 = vld [vmem:[%s2 + $0x10] sm:$0xff]
        %v546 = vld [vmem:[%s2 + $0x18] sm:$0xff]
        %v547 = vld [vmem:[%s2 + $0x20] sm:$0xff]
        %v548 = vld [vmem:[%s2 + $0x28] sm:$0xff]
        %v549 = vld [vmem:[%s2 + $0x30] sm:$0xff]
        %v550 = vld [vmem:[%s2 + $0x38] sm:$0xff]
        %v551 = vld [vmem:[%s2 + $0x40] sm:$0xff]
        %v552 = vld [vmem:[%s2 + $0x48] sm:$0xff]
        %v553 = vld [vmem:[%s2 + $0x50] sm:$0xff]
        %v554 = vld [vmem:[%s2 + $0x58] sm:$0xff]
        %v555 = vld [vmem:[%s2 + $0x60] sm:$0xff]
        %v556 = vld [vmem:[%s2 + $0x68] sm:$0xff]
        %v557 = vld [vmem:[%s2 + $0x70] sm:$0xff]
        %v558 = vld [vmem:[%s2 + $0x78] sm:$0xff]
        %v559 = vld [vmem:[%s2 + $0x80] sm:$0xff]
        %v560 = vld [vmem:[%s2 + $0x88] sm:$0xff]
        %v561 = vld [vmem:[%s2 + $0x90] sm:$0xff]
        %v562 = vld [vmem:[%s2 + $0x98] sm:$0xff]
        %v563 = vld [vmem:[%s2 + $0xa0] sm:$0xff]
        %v564 = vld [vmem:[%s2 + $0xa8] sm:$0xff]
        %v565 = vld [vmem:[%s2 + $0xb0] sm:$0xff]
        %v566 = vld [vmem:[%s2 + $0xb8] sm:$0xff]
        %v567 = vld [vmem:[%s2 + $0xc0] sm:$0xff]
        %v568 = vld [vmem:[%s2 + $0xc8] sm:$0xff]
        %v569 = vld [vmem:[%s2 + $0xd0] sm:$0xff]
        %v570 = vld [vmem:[%s2 + $0xd8] sm:$0xff]
        %v571 = vld [vmem:[%s2 + $0xe0] sm:$0xff]
        %v572 = vld [vmem:[%s2 + $0xe8] sm:$0xff]
        %v573 = vld [vmem:[%s2 + $0xf0] sm:$0xff]
        %v574 = vld [vmem:[%s2 + $0xf8] sm:$0xff]
        %575 = vmatprep.subr.mxu0 0.0
        %576 = vmatpush1.msra.mxu0 %v543
        %577 = vmatprep.subr.mxu0 0.0
        %578 = vmatpush1.msra.mxu0 %v544
        %579 = vmatprep.subr.mxu0 0.0
        %580 = vmatpush1.msra.mxu0 %v545
        %581 = vmatprep.subr.mxu0 0.0
        %582 = vmatpush1.msra.mxu0 %v546
        %583 = vmatprep.subr.mxu0 0.0
        %584 = vmatpush1.msra.mxu0 %v547
        %585 = vmatprep.subr.mxu0 0.0
        %586 = vmatpush1.msra.mxu0 %v548
        %587 = vmatprep.subr.mxu0 0.0
        %588 = vmatpush1.msra.mxu0 %v549
        %589 = vmatprep.subr.mxu0 0.0
        %590 = vmatpush1.msra.mxu0 %v550
        %591 = vmatprep.subr.mxu0 0.0
        %592 = vmatpush1.msra.mxu0 %v551
        %593 = vmatprep.subr.mxu0 0.0
        %594 = vmatpush1.msra.mxu0 %v552
        %595 = vmatprep.subr.mxu0 0.0
        %596 = vmatpush1.msra.mxu0 %v553
        %597 = vmatprep.subr.mxu0 0.0
        %598 = vmatpush1.msra.mxu0 %v554
        %599 = vmatprep.subr.mxu0 0.0
        %600 = vmatpush1.msra.mxu0 %v555
        %601 = vmatprep.subr.mxu0 0.0
        %602 = vmatpush1.msra.mxu0 %v556
        %603 = vmatprep.subr.mxu0 0.0
        %604 = vmatpush1.msra.mxu0 %v557
        %605 = vmatprep.subr.mxu0 0.0
        %606 = vmatpush1.msra.mxu0 %v558
        %607 = vmatprep.subr.mxu0 0.0
        %608 = vmatpush1.msra.mxu0 %v559
        %609 = vmatprep.subr.mxu0 0.0
        %610 = vmatpush1.msra.mxu0 %v560
        %611 = vmatprep.subr.mxu0 0.0
        %612 = vmatpush1.msra.mxu0 %v561
        %613 = vmatprep.subr.mxu0 0.0
        %614 = vmatpush1.msra.mxu0 %v562
        %615 = vmatprep.subr.mxu0 0.0
        %616 = vmatpush1.msra.mxu0 %v563
        %617 = vmatprep.subr.mxu0 0.0
        %618 = vmatpush1.msra.mxu0 %v564
        %619 = vmatprep.subr.mxu0 0.0
        %620 = vmatpush1.msra.mxu0 %v565
        %621 = vmatprep.subr.mxu0 0.0
        %622 = vmatpush1.msra.mxu0 %v566
        %623 = vmatprep.subr.mxu0 0.0
        %624 = vmatpush1.msra.mxu0 %v567
        %625 = vmatprep.subr.mxu0 0.0
        %626 = vmatpush1.msra.mxu0 %v568
        %627 = vmatprep.subr.mxu0 0.0
        %628 = vmatpush1.msra.mxu0 %v569
        %629 = vmatprep.subr.mxu0 0.0
        %630 = vmatpush1.msra.mxu0 %v570
        %631 = vmatprep.subr.mxu0 0.0
        %632 = vmatpush1.msra.mxu0 %v571
        %633 = vmatprep.subr.mxu0 0.0
        %634 = vmatpush1.msra.mxu0 %v572
        %635 = vmatprep.subr.mxu0 0.0
        %636 = vmatpush1.msra.mxu0 %v573
        %637 = vmatprep.subr.mxu0 0.0
        %638 = vmatpush1.msra.mxu0 %v574
        %639 = vmatprep.mubr.f32.mxu0 %v288
        %640 = vmatmul.mubr.f32.gmra.mrb[0].mxu0 %v287
        %v641 = vpop.f32.mrb[0].mxu0
        %v642 = vadd.f32 0.0, %v641
        %v643 = vpop.f32.mrb[0].mxu0
        %644 = vmatprep.mubr.f32.mxu0 %v290
        %645 = vmatmul.mubr.f32.gmra.mrb[0].mxu0 %v289
        %v646 = vpop.f32.mrb[0].mxu0
        %v647 = vadd.f32 0.0, %v646
        %v648 = vpop.f32.mrb[0].mxu0
        %649 = vmatprep.mubr.f32.mxu0 %v292
        %650 = vmatmul.mubr.f32.gmra.mrb[0].mxu0 %v291
        %v651 = vpop.f32.mrb[0].mxu0
        %v652 = vadd.f32 0.0, %v651
        %v653 = vpop.f32.mrb[0].mxu0
        %654 = vmatprep.mubr.f32.mxu0 %v294
        %655 = vmatmul.mubr.f32.gmra.mrb[0].mxu0 %v293
        %v656 = vpop.f32.mrb[0].mxu0
        %v657 = vadd.f32 0.0, %v656
        %v658 = vpop.f32.mrb[0].mxu0
        %659 = vmatprep.mubr.f32.mxu0 %v296
        %660 = vmatmul.mubr.f32.gmra.mrb[0].mxu0 %v295
        %v661 = vpop.f32.mrb[0].mxu0
        %v662 = vadd.f32 0.0, %v661
        %v663 = vpop.f32.mrb[0].mxu0
        %664 = vmatprep.mubr.f32.mxu0 %v298
        %665 = vmatmul.mubr.f32.gmra.mrb[0].mxu0 %v297
        %v666 = vpop.f32.mrb[0].mxu0
        %v667 = vadd.f32 0.0, %v666
        %v668 = vpop.f32.mrb[0].mxu0
        %669 = vmatprep.mubr.f32.mxu0 %v300
        %670 = vmatmul.mubr.f32.gmra.mrb[0].mxu0 %v299
        %v671 = vpop.f32.mrb[0].mxu0
        %v672 = vadd.f32 0.0, %v671
        %v673 = vpop.f32.mrb[0].mxu0
        %674 = vmatprep.mubr.f32.mxu0 %v302
        %675 = vmatmul.mubr.f32.gmra.mrb[0].mxu0 %v301
        %v676 = vpop.f32.mrb[0].mxu0
        %v677 = vadd.f32 0.0, %v676
        %v678 = vpop.f32.mrb[0].mxu0
        %679 = vmatprep.mubr.f32.mxu0 %v304
        %680 = vmatmul.mubr.f32.gmra.mrb[0].mxu0 %v303
        %v681 = vpop.f32.mrb[0].mxu0
        %v682 = vadd.f32 0.0, %v681
        %v683 = vpop.f32.mrb[0].mxu0
        %684 = vmatprep.mubr.f32.mxu0 %v306
        %685 = vmatmul.mubr.f32.gmra.mrb[0].mxu0 %v305
        %v686 = vpop.f32.mrb[0].mxu0
        %v687 = vadd.f32 0.0, %v686
        %v688 = vpop.f32.mrb[0].mxu0
        %689 = vmatprep.mubr.f32.mxu0 %v308
        %690 = vmatmul.mubr.f32.gmra.mrb[0].mxu0 %v307
        %v691 = vpop.f32.mrb[0].mxu0
        %v692 = vadd.f32 0.0, %v691
        %v693 = vpop.f32.mrb[0].mxu0
        %694 = vmatprep.mubr.f32.mxu0 %v310
        %695 = vmatmul.mubr.f32.gmra.mrb[0].mxu0 %v309
        %v696 = vpop.f32.mrb[0].mxu0
        %v697 = vadd.f32 0.0, %v696
        %v698 = vpop.f32.mrb[0].mxu0
        %699 = vmatprep.mubr.f32.mxu0 %v312
        %700 = vmatmul.mubr.f32.gmra.mrb[0].mxu0 %v311
        %v701 = vpop.f32.mrb[0].mxu0
        %v702 = vadd.f32 0.0, %v701
        %v703 = vpop.f32.mrb[0].mxu0
        %704 = vmatprep.mubr.f32.mxu0 %v314
        %705 = vmatmul.mubr.f32.gmra.mrb[0].mxu0 %v313
        %v706 = vpop.f32.mrb[0].mxu0
        %v707 = vadd.f32 0.0, %v706
        %v708 = vpop.f32.mrb[0].mxu0
        %709 = vmatprep.mubr.f32.mxu0 %v316
        %710 = vmatmul.mubr.f32.gmra.mrb[0].mxu0 %v315
        %v711 = vpop.f32.mrb[0].mxu0
        %v712 = vadd.f32 0.0, %v711
        %v713 = vpop.f32.mrb[0].mxu0
        %714 = vmatprep.mubr.f32.mxu0 %v318
        %715 = vmatmul.mubr.f32.gmra.mrb[0].mxu0 %v317
        %v716 = vpop.f32.mrb[0].mxu0
        %v717 = vadd.f32 0.0, %v716
        %v718 = vpop.f32.mrb[0].mxu0
        %719 = vmatprep.mubr.f32.mxu0 %v320
        %720 = vmatmul.mubr.f32.gmra.mrb[0].mxu0 %v319
        %v721 = vpop.f32.mrb[0].mxu0
        %v722 = vadd.f32 0.0, %v721
        %v723 = vpop.f32.mrb[0].mxu0
        %724 = vmatprep.mubr.f32.mxu0 %v322
        %725 = vmatmul.mubr.f32.gmra.mrb[0].mxu0 %v321
        %v726 = vpop.f32.mrb[0].mxu0
        %v727 = vadd.f32 0.0, %v726
        %v728 = vpop.f32.mrb[0].mxu0
        %729 = vmatprep.mubr.f32.mxu0 %v324
        %730 = vmatmul.mubr.f32.gmra.mrb[0].mxu0 %v323
        %v731 = vpop.f32.mrb[0].mxu0
        %v732 = vadd.f32 0.0, %v731
        %v733 = vpop.f32.mrb[0].mxu0
        %734 = vmatprep.mubr.f32.mxu0 %v326
        %735 = vmatmul.mubr.f32.gmra.mrb[0].mxu0 %v325
        %v736 = vpop.f32.mrb[0].mxu0
        %v737 = vadd.f32 0.0, %v736
        %v738 = vpop.f32.mrb[0].mxu0
        %739 = vmatprep.mubr.f32.mxu0 %v328
        %740 = vmatmul.mubr.f32.gmra.mrb[0].mxu0 %v327
        %v741 = vpop.f32.mrb[0].mxu0
        %v742 = vadd.f32 0.0, %v741
        %v743 = vpop.f32.mrb[0].mxu0
        %744 = vmatprep.mubr.f32.mxu0 %v330
        %745 = vmatmul.mubr.f32.gmra.mrb[0].mxu0 %v329
        %v746 = vpop.f32.mrb[0].mxu0
        %v747 = vadd.f32 0.0, %v746
        %v748 = vpop.f32.mrb[0].mxu0
        %749 = vmatprep.mubr.f32.mxu0 %v332
        %750 = vmatmul.mubr.f32.gmra.mrb[0].mxu0 %v331
        %v751 = vpop.f32.mrb[0].mxu0
        %v752 = vadd.f32 0.0, %v751
        %v753 = vpop.f32.mrb[0].mxu0
        %754 = vmatprep.mubr.f32.mxu0 %v334
        %755 = vmatmul.mubr.f32.gmra.mrb[0].mxu0 %v333
        %v756 = vpop.f32.mrb[0].mxu0
        %v757 = vadd.f32 0.0, %v756
        %v758 = vpop.f32.mrb[0].mxu0
        %759 = vmatprep.mubr.f32.mxu0 %v336
        %760 = vmatmul.mubr.f32.gmra.mrb[0].mxu0 %v335
        %v761 = vpop.f32.mrb[0].mxu0
        %v762 = vadd.f32 0.0, %v761
        %v763 = vpop.f32.mrb[0].mxu0
        %764 = vmatprep.mubr.f32.mxu0 %v338
        %765 = vmatmul.mubr.f32.gmra.mrb[0].mxu0 %v337
        %v766 = vpop.f32.mrb[0].mxu0
        %v767 = vadd.f32 0.0, %v766
        %v768 = vpop.f32.mrb[0].mxu0
        %769 = vmatprep.mubr.f32.mxu0 %v340
        %770 = vmatmul.mubr.f32.gmra.mrb[0].mxu0 %v339
        %v771 = vpop.f32.mrb[0].mxu0
        %v772 = vadd.f32 0.0, %v771
        %v773 = vpop.f32.mrb[0].mxu0
        %774 = vmatprep.mubr.f32.mxu0 %v342
        %775 = vmatmul.mubr.f32.gmra.mrb[0].mxu0 %v341
        %v776 = vpop.f32.mrb[0].mxu0
        %v777 = vadd.f32 0.0, %v776
        %v778 = vpop.f32.mrb[0].mxu0
        %779 = vmatprep.mubr.f32.mxu0 %v344
        %780 = vmatmul.mubr.f32.gmra.mrb[0].mxu0 %v343
        %v781 = vpop.f32.mrb[0].mxu0
        %v782 = vadd.f32 0.0, %v781
        %v783 = vpop.f32.mrb[0].mxu0
        %784 = vmatprep.mubr.f32.mxu0 %v346
        %785 = vmatmul.mubr.f32.gmra.mrb[0].mxu0 %v345
        %v786 = vpop.f32.mrb[0].mxu0
        %v787 = vadd.f32 0.0, %v786
        %v788 = vpop.f32.mrb[0].mxu0
        %789 = vmatprep.mubr.f32.mxu0 %v348
        %790 = vmatmul.mubr.f32.gmra.mrb[0].mxu0 %v347
        %v791 = vpop.f32.mrb[0].mxu0
        %v792 = vadd.f32 0.0, %v791
        %v793 = vpop.f32.mrb[0].mxu0
        %794 = vmatprep.mubr.f32.mxu0 %v350
        %795 = vmatmul.mubr.f32.gmra.mrb[0].mxu0 %v349
        %v796 = vpop.f32.mrb[0].mxu0
        %v797 = vadd.f32 0.0, %v796
        %v798 = vpop.f32.mrb[0].mxu0
        %799 = vmatprep.mubr.f32.mxu0 %v352
        %800 = vmatmul.mubr.f32.gmra.mrb[0].mxu0 %v351
        %v801 = vpop.f32.mrb[0].mxu0
        %v802 = vadd.f32 0.0, %v801
        %v803 = vpop.f32.mrb[0].mxu0
        %804 = vmatprep.mubr.f32.mxu0 %v354
        %805 = vmatmul.mubr.f32.gmra.mrb[0].mxu0 %v353
        %v806 = vpop.f32.mrb[0].mxu0
        %v807 = vadd.f32 0.0, %v806
        %v808 = vpop.f32.mrb[0].mxu0
        %809 = vmatprep.mubr.f32.mxu0 %v356
        %810 = vmatmul.mubr.f32.gmra.mrb[0].mxu0 %v355
        %v811 = vpop.f32.mrb[0].mxu0
        %v812 = vadd.f32 0.0, %v811
        %v813 = vpop.f32.mrb[0].mxu0
        %814 = vmatprep.mubr.f32.mxu0 %v358
        %815 = vmatmul.mubr.f32.gmra.mrb[0].mxu0 %v357
        %v816 = vpop.f32.mrb[0].mxu0
        %v817 = vadd.f32 0.0, %v816
        %v818 = vpop.f32.mrb[0].mxu0
        %819 = vmatprep.mubr.f32.mxu0 %v360
        %820 = vmatmul.mubr.f32.gmra.mrb[0].mxu0 %v359
        %v821 = vpop.f32.mrb[0].mxu0
        %v822 = vadd.f32 0.0, %v821
        %v823 = vpop.f32.mrb[0].mxu0
        %824 = vmatprep.mubr.f32.mxu0 %v362
        %825 = vmatmul.mubr.f32.gmra.mrb[0].mxu0 %v361
        %v826 = vpop.f32.mrb[0].mxu0
        %v827 = vadd.f32 0.0, %v826
        %v828 = vpop.f32.mrb[0].mxu0
        %829 = vmatprep.mubr.f32.mxu0 %v364
        %830 = vmatmul.mubr.f32.gmra.mrb[0].mxu0 %v363
        %v831 = vpop.f32.mrb[0].mxu0
        %v832 = vadd.f32 0.0, %v831
        %v833 = vpop.f32.mrb[0].mxu0
        %834 = vmatprep.mubr.f32.mxu0 %v366
        %835 = vmatmul.mubr.f32.gmra.mrb[0].mxu0 %v365
        %v836 = vpop.f32.mrb[0].mxu0
        %v837 = vadd.f32 0.0, %v836
        %v838 = vpop.f32.mrb[0].mxu0
        %839 = vmatprep.mubr.f32.mxu0 %v368
        %840 = vmatmul.mubr.f32.gmra.mrb[0].mxu0 %v367
        %v841 = vpop.f32.mrb[0].mxu0
        %v842 = vadd.f32 0.0, %v841
        %v843 = vpop.f32.mrb[0].mxu0
        %844 = vmatprep.mubr.f32.mxu0 %v370
        %845 = vmatmul.mubr.f32.gmra.mrb[0].mxu0 %v369
        %v846 = vpop.f32.mrb[0].mxu0
        %v847 = vadd.f32 0.0, %v846
        %v848 = vpop.f32.mrb[0].mxu0
        %849 = vmatprep.mubr.f32.mxu0 %v372
        %850 = vmatmul.mubr.f32.gmra.mrb[0].mxu0 %v371
        %v851 = vpop.f32.mrb[0].mxu0
        %v852 = vadd.f32 0.0, %v851
        %v853 = vpop.f32.mrb[0].mxu0
        %854 = vmatprep.mubr.f32.mxu0 %v374
        %855 = vmatmul.mubr.f32.gmra.mrb[0].mxu0 %v373
        %v856 = vpop.f32.mrb[0].mxu0
        %v857 = vadd.f32 0.0, %v856
        %v858 = vpop.f32.mrb[0].mxu0
        %859 = vmatprep.mubr.f32.mxu0 %v376
        %860 = vmatmul.mubr.f32.gmra.mrb[0].mxu0 %v375
        %v861 = vpop.f32.mrb[0].mxu0
        %v862 = vadd.f32 0.0, %v861
        %v863 = vpop.f32.mrb[0].mxu0
        %864 = vmatprep.mubr.f32.mxu0 %v378
        %865 = vmatmul.mubr.f32.gmra.mrb[0].mxu0 %v377
        %v866 = vpop.f32.mrb[0].mxu0
        %v867 = vadd.f32 0.0, %v866
        %v868 = vpop.f32.mrb[0].mxu0
        %869 = vmatprep.mubr.f32.mxu0 %v380
        %870 = vmatmul.mubr.f32.gmra.mrb[0].mxu0 %v379
        %v871 = vpop.f32.mrb[0].mxu0
        %v872 = vadd.f32 0.0, %v871
        %v873 = vpop.f32.mrb[0].mxu0
        %874 = vmatprep.mubr.f32.mxu0 %v382
        %875 = vmatmul.mubr.f32.gmra.mrb[0].mxu0 %v381
        %v876 = vpop.f32.mrb[0].mxu0
        %v877 = vadd.f32 0.0, %v876
        %v878 = vpop.f32.mrb[0].mxu0
        %879 = vmatprep.mubr.f32.mxu0 %v384
        %880 = vmatmul.mubr.f32.gmra.mrb[0].mxu0 %v383
        %v881 = vpop.f32.mrb[0].mxu0
        %v882 = vadd.f32 0.0, %v881
        %v883 = vpop.f32.mrb[0].mxu0
        %884 = vmatprep.mubr.f32.mxu0 %v386
        %885 = vmatmul.mubr.f32.gmra.mrb[0].mxu0 %v385
        %v886 = vpop.f32.mrb[0].mxu0
        %v887 = vadd.f32 0.0, %v886
        %v888 = vpop.f32.mrb[0].mxu0
        %889 = vmatprep.mubr.f32.mxu0 %v388
        %890 = vmatmul.mubr.f32.gmra.mrb[0].mxu0 %v387
        %v891 = vpop.f32.mrb[0].mxu0
        %v892 = vadd.f32 0.0, %v891
        %v893 = vpop.f32.mrb[0].mxu0
        %894 = vmatprep.mubr.f32.mxu0 %v390
        %895 = vmatmul.mubr.f32.gmra.mrb[0].mxu0 %v389
        %v896 = vpop.f32.mrb[0].mxu0
        %v897 = vadd.f32 0.0, %v896
        %v898 = vpop.f32.mrb[0].mxu0
        %899 = vmatprep.mubr.f32.mxu0 %v392
        %900 = vmatmul.mubr.f32.gmra.mrb[0].mxu0 %v391
        %v901 = vpop.f32.mrb[0].mxu0
        %v902 = vadd.f32 0.0, %v901
        %v903 = vpop.f32.mrb[0].mxu0
        %904 = vmatprep.mubr.f32.mxu0 %v394
        %905 = vmatmul.mubr.f32.gmra.mrb[0].mxu0 %v393
        %v906 = vpop.f32.mrb[0].mxu0
        %v907 = vadd.f32 0.0, %v906
        %v908 = vpop.f32.mrb[0].mxu0
        %909 = vmatprep.mubr.f32.mxu0 %v396
        %910 = vmatmul.mubr.f32.gmra.mrb[0].mxu0 %v395
        %v911 = vpop.f32.mrb[0].mxu0
        %v912 = vadd.f32 0.0, %v911
        %v913 = vpop.f32.mrb[0].mxu0
        %914 = vmatprep.mubr.f32.mxu0 %v398
        %915 = vmatmul.mubr.f32.gmra.mrb[0].mxu0 %v397
        %v916 = vpop.f32.mrb[0].mxu0
        %v917 = vadd.f32 0.0, %v916
        %v918 = vpop.f32.mrb[0].mxu0
        %919 = vmatprep.mubr.f32.mxu0 %v400
        %920 = vmatmul.mubr.f32.gmra.mrb[0].mxu0 %v399
        %v921 = vpop.f32.mrb[0].mxu0
        %v922 = vadd.f32 0.0, %v921
        %v923 = vpop.f32.mrb[0].mxu0
        %924 = vmatprep.mubr.f32.mxu0 %v402
        %925 = vmatmul.mubr.f32.gmra.mrb[0].mxu0 %v401
        %v926 = vpop.f32.mrb[0].mxu0
        %v927 = vadd.f32 0.0, %v926
        %v928 = vpop.f32.mrb[0].mxu0
        %929 = vmatprep.mubr.f32.mxu0 %v404
        %930 = vmatmul.mubr.f32.gmra.mrb[0].mxu0 %v403
        %v931 = vpop.f32.mrb[0].mxu0
        %v932 = vadd.f32 0.0, %v931
        %v933 = vpop.f32.mrb[0].mxu0
        %934 = vmatprep.mubr.f32.mxu0 %v406
        %935 = vmatmul.mubr.f32.gmra.mrb[0].mxu0 %v405
        %v936 = vpop.f32.mrb[0].mxu0
        %v937 = vadd.f32 0.0, %v936
        %v938 = vpop.f32.mrb[0].mxu0
        %939 = vmatprep.mubr.f32.mxu0 %v408
        %940 = vmatmul.mubr.f32.gmra.mrb[0].mxu0 %v407
        %v941 = vpop.f32.mrb[0].mxu0
        %v942 = vadd.f32 0.0, %v941
        %v943 = vpop.f32.mrb[0].mxu0
        %944 = vmatprep.mubr.f32.mxu0 %v410
        %945 = vmatmul.mubr.f32.gmra.mrb[0].mxu0 %v409
        %v946 = vpop.f32.mrb[0].mxu0
        %v947 = vadd.f32 0.0, %v946
        %v948 = vpop.f32.mrb[0].mxu0
        %949 = vmatprep.mubr.f32.mxu0 %v412
        %950 = vmatmul.mubr.f32.gmra.mrb[0].mxu0 %v411
        %v951 = vpop.f32.mrb[0].mxu0
        %v952 = vadd.f32 0.0, %v951
        %v953 = vpop.f32.mrb[0].mxu0
        %954 = vmatprep.mubr.f32.mxu0 %v414
        %955 = vmatmul.mubr.f32.gmra.mrb[0].mxu0 %v413
        %v956 = vpop.f32.mrb[0].mxu0
        %v957 = vadd.f32 0.0, %v956
        %v958 = vpop.f32.mrb[0].mxu0
        %959 = vmatprep.mubr.f32.mxu0 %v416
        %960 = vmatmul.mubr.f32.gmra.mrb[0].mxu0 %v415
        %v961 = vpop.f32.mrb[0].mxu0
        %v962 = vadd.f32 0.0, %v961
        %v963 = vpop.f32.mrb[0].mxu0
        %964 = vmatprep.mubr.f32.mxu0 %v418
        %965 = vmatmul.mubr.f32.gmra.mrb[0].mxu0 %v417
        %v966 = vpop.f32.mrb[0].mxu0
        %v967 = vadd.f32 0.0, %v966
        %v968 = vpop.f32.mrb[0].mxu0
        %969 = vmatprep.mubr.f32.mxu0 %v420
        %970 = vmatmul.mubr.f32.gmra.mrb[0].mxu0 %v419
        %v971 = vpop.f32.mrb[0].mxu0
        %v972 = vadd.f32 0.0, %v971
        %v973 = vpop.f32.mrb[0].mxu0
        %974 = vmatprep.mubr.f32.mxu0 %v422
        %975 = vmatmul.mubr.f32.gmra.mrb[0].mxu0 %v421
        %v976 = vpop.f32.mrb[0].mxu0
        %v977 = vadd.f32 0.0, %v976
        %v978 = vpop.f32.mrb[0].mxu0
        %979 = vmatprep.mubr.f32.mxu0 %v424
        %980 = vmatmul.mubr.f32.gmra.mrb[0].mxu0 %v423
        %v981 = vpop.f32.mrb[0].mxu0
        %v982 = vadd.f32 0.0, %v981
        %v983 = vpop.f32.mrb[0].mxu0
        %984 = vmatprep.mubr.f32.mxu0 %v426
        %985 = vmatmul.mubr.f32.gmra.mrb[0].mxu0 %v425
        %v986 = vpop.f32.mrb[0].mxu0
        %v987 = vadd.f32 0.0, %v986
        %v988 = vpop.f32.mrb[0].mxu0
        %989 = vmatprep.mubr.f32.mxu0 %v428
        %990 = vmatmul.mubr.f32.gmra.mrb[0].mxu0 %v427
        %v991 = vpop.f32.mrb[0].mxu0
        %v992 = vadd.f32 0.0, %v991
        %v993 = vpop.f32.mrb[0].mxu0
        %994 = vmatprep.mubr.f32.mxu0 %v430
        %995 = vmatmul.mubr.f32.gmra.mrb[0].mxu0 %v429
        %v996 = vpop.f32.mrb[0].mxu0
        %v997 = vadd.f32 0.0, %v996
        %v998 = vpop.f32.mrb[0].mxu0
        %999 = vmatprep.mubr.f32.mxu0 %v432
        %1000 = vmatmul.mubr.f32.gmra.mrb[0].mxu0 %v431
        %v1001 = vpop.f32.mrb[0].mxu0
        %v1002 = vadd.f32 0.0, %v1001
        %v1003 = vpop.f32.mrb[0].mxu0
        %1004 = vmatprep.mubr.f32.mxu0 %v434
        %1005 = vmatmul.mubr.f32.gmra.mrb[0].mxu0 %v433
        %v1006 = vpop.f32.mrb[0].mxu0
        %v1007 = vadd.f32 0.0, %v1006
        %v1008 = vpop.f32.mrb[0].mxu0
        %1009 = vmatprep.mubr.f32.mxu0 %v436
        %1010 = vmatmul.mubr.f32.gmra.mrb[0].mxu0 %v435
        %v1011 = vpop.f32.mrb[0].mxu0
        %v1012 = vadd.f32 0.0, %v1011
        %v1013 = vpop.f32.mrb[0].mxu0
        %1014 = vmatprep.mubr.f32.mxu0 %v438
        %1015 = vmatmul.mubr.f32.gmra.mrb[0].mxu0 %v437
        %v1016 = vpop.f32.mrb[0].mxu0
        %v1017 = vadd.f32 0.0, %v1016
        %v1018 = vpop.f32.mrb[0].mxu0
        %1019 = vmatprep.mubr.f32.mxu0 %v440
        %1020 = vmatmul.mubr.f32.gmra.mrb[0].mxu0 %v439
        %v1021 = vpop.f32.mrb[0].mxu0
        %v1022 = vadd.f32 0.0, %v1021
        %v1023 = vpop.f32.mrb[0].mxu0
        %1024 = vmatprep.mubr.f32.mxu0 %v442
        %1025 = vmatmul.mubr.f32.gmra.mrb[0].mxu0 %v441
        %v1026 = vpop.f32.mrb[0].mxu0
        %v1027 = vadd.f32 0.0, %v1026
        %v1028 = vpop.f32.mrb[0].mxu0
        %1029 = vmatprep.mubr.f32.mxu0 %v444
        %1030 = vmatmul.mubr.f32.gmra.mrb[0].mxu0 %v443
        %v1031 = vpop.f32.mrb[0].mxu0
        %v1032 = vadd.f32 0.0, %v1031
        %v1033 = vpop.f32.mrb[0].mxu0
        %1034 = vmatprep.mubr.f32.mxu0 %v446
        %1035 = vmatmul.mubr.f32.gmra.mrb[0].mxu0 %v445
        %v1036 = vpop.f32.mrb[0].mxu0
        %v1037 = vadd.f32 0.0, %v1036
        %v1038 = vpop.f32.mrb[0].mxu0
        %1039 = vmatprep.mubr.f32.mxu0 %v448
        %1040 = vmatmul.mubr.f32.gmra.mrb[0].mxu0 %v447
        %v1041 = vpop.f32.mrb[0].mxu0
        %v1042 = vadd.f32 0.0, %v1041
        %v1043 = vpop.f32.mrb[0].mxu0
        %1044 = vmatprep.mubr.f32.mxu0 %v450
        %1045 = vmatmul.mubr.f32.gmra.mrb[0].mxu0 %v449
        %v1046 = vpop.f32.mrb[0].mxu0
        %v1047 = vadd.f32 0.0, %v1046
        %v1048 = vpop.f32.mrb[0].mxu0
        %1049 = vmatprep.mubr.f32.mxu0 %v452
        %1050 = vmatmul.mubr.f32.gmra.mrb[0].mxu0 %v451
        %v1051 = vpop.f32.mrb[0].mxu0
        %v1052 = vadd.f32 0.0, %v1051
        %v1053 = vpop.f32.mrb[0].mxu0
        %1054 = vmatprep.mubr.f32.mxu0 %v454
        %1055 = vmatmul.mubr.f32.gmra.mrb[0].mxu0 %v453
        %v1056 = vpop.f32.mrb[0].mxu0
        %v1057 = vadd.f32 0.0, %v1056
        %v1058 = vpop.f32.mrb[0].mxu0
        %1059 = vmatprep.mubr.f32.mxu0 %v456
        %1060 = vmatmul.mubr.f32.gmra.mrb[0].mxu0 %v455
        %v1061 = vpop.f32.mrb[0].mxu0
        %v1062 = vadd.f32 0.0, %v1061
        %v1063 = vpop.f32.mrb[0].mxu0
        %1064 = vmatprep.mubr.f32.mxu0 %v458
        %1065 = vmatmul.mubr.f32.gmra.mrb[0].mxu0 %v457
        %v1066 = vpop.f32.mrb[0].mxu0
        %v1067 = vadd.f32 0.0, %v1066
        %v1068 = vpop.f32.mrb[0].mxu0
        %1069 = vmatprep.mubr.f32.mxu0 %v460
        %1070 = vmatmul.mubr.f32.gmra.mrb[0].mxu0 %v459
        %v1071 = vpop.f32.mrb[0].mxu0
        %v1072 = vadd.f32 0.0, %v1071
        %v1073 = vpop.f32.mrb[0].mxu0
        %1074 = vmatprep.mubr.f32.mxu0 %v462
        %1075 = vmatmul.mubr.f32.gmra.mrb[0].mxu0 %v461
        %v1076 = vpop.f32.mrb[0].mxu0
        %v1077 = vadd.f32 0.0, %v1076
        %v1078 = vpop.f32.mrb[0].mxu0
        %1079 = vmatprep.mubr.f32.mxu0 %v464
        %1080 = vmatmul.mubr.f32.gmra.mrb[0].mxu0 %v463
        %v1081 = vpop.f32.mrb[0].mxu0
        %v1082 = vadd.f32 0.0, %v1081
        %v1083 = vpop.f32.mrb[0].mxu0
        %1084 = vmatprep.mubr.f32.mxu0 %v466
        %1085 = vmatmul.mubr.f32.gmra.mrb[0].mxu0 %v465
        %v1086 = vpop.f32.mrb[0].mxu0
        %v1087 = vadd.f32 0.0, %v1086
        %v1088 = vpop.f32.mrb[0].mxu0
        %1089 = vmatprep.mubr.f32.mxu0 %v468
        %1090 = vmatmul.mubr.f32.gmra.mrb[0].mxu0 %v467
        %v1091 = vpop.f32.mrb[0].mxu0
        %v1092 = vadd.f32 0.0, %v1091
        %v1093 = vpop.f32.mrb[0].mxu0
        %1094 = vmatprep.mubr.f32.mxu0 %v470
        %1095 = vmatmul.mubr.f32.gmra.mrb[0].mxu0 %v469
        %v1096 = vpop.f32.mrb[0].mxu0
        %v1097 = vadd.f32 0.0, %v1096
        %v1098 = vpop.f32.mrb[0].mxu0
        %1099 = vmatprep.mubr.f32.mxu0 %v472
        %1100 = vmatmul.mubr.f32.gmra.mrb[0].mxu0 %v471
        %v1101 = vpop.f32.mrb[0].mxu0
        %v1102 = vadd.f32 0.0, %v1101
        %v1103 = vpop.f32.mrb[0].mxu0
        %1104 = vmatprep.mubr.f32.mxu0 %v474
        %1105 = vmatmul.mubr.f32.gmra.mrb[0].mxu0 %v473
        %v1106 = vpop.f32.mrb[0].mxu0
        %v1107 = vadd.f32 0.0, %v1106
        %v1108 = vpop.f32.mrb[0].mxu0
        %1109 = vmatprep.mubr.f32.mxu0 %v476
        %1110 = vmatmul.mubr.f32.gmra.mrb[0].mxu0 %v475
        %v1111 = vpop.f32.mrb[0].mxu0
        %v1112 = vadd.f32 0.0, %v1111
        %v1113 = vpop.f32.mrb[0].mxu0
        %1114 = vmatprep.mubr.f32.mxu0 %v478
        %1115 = vmatmul.mubr.f32.gmra.mrb[0].mxu0 %v477
        %v1116 = vpop.f32.mrb[0].mxu0
        %v1117 = vadd.f32 0.0, %v1116
        %v1118 = vpop.f32.mrb[0].mxu0
        %1119 = vmatprep.mubr.f32.mxu0 %v480
        %1120 = vmatmul.mubr.f32.gmra.mrb[0].mxu0 %v479
        %v1121 = vpop.f32.mrb[0].mxu0
        %v1122 = vadd.f32 0.0, %v1121
        %v1123 = vpop.f32.mrb[0].mxu0
        %1124 = vmatprep.mubr.f32.mxu0 %v482
        %1125 = vmatmul.mubr.f32.gmra.mrb[0].mxu0 %v481
        %v1126 = vpop.f32.mrb[0].mxu0
        %v1127 = vadd.f32 0.0, %v1126
        %v1128 = vpop.f32.mrb[0].mxu0
        %1129 = vmatprep.mubr.f32.mxu0 %v484
        %1130 = vmatmul.mubr.f32.gmra.mrb[0].mxu0 %v483
        %v1131 = vpop.f32.mrb[0].mxu0
        %v1132 = vadd.f32 0.0, %v1131
        %v1133 = vpop.f32.mrb[0].mxu0
        %1134 = vmatprep.mubr.f32.mxu0 %v486
        %1135 = vmatmul.mubr.f32.gmra.mrb[0].mxu0 %v485
        %v1136 = vpop.f32.mrb[0].mxu0
        %v1137 = vadd.f32 0.0, %v1136
        %v1138 = vpop.f32.mrb[0].mxu0
        %1139 = vmatprep.mubr.f32.mxu0 %v488
        %1140 = vmatmul.mubr.f32.gmra.mrb[0].mxu0 %v487
        %v1141 = vpop.f32.mrb[0].mxu0
        %v1142 = vadd.f32 0.0, %v1141
        %v1143 = vpop.f32.mrb[0].mxu0
        %1144 = vmatprep.mubr.f32.mxu0 %v490
        %1145 = vmatmul.mubr.f32.gmra.mrb[0].mxu0 %v489
        %v1146 = vpop.f32.mrb[0].mxu0
        %v1147 = vadd.f32 0.0, %v1146
        %v1148 = vpop.f32.mrb[0].mxu0
        %1149 = vmatprep.mubr.f32.mxu0 %v492
        %1150 = vmatmul.mubr.f32.gmra.mrb[0].mxu0 %v491
        %v1151 = vpop.f32.mrb[0].mxu0
        %v1152 = vadd.f32 0.0, %v1151
        %v1153 = vpop.f32.mrb[0].mxu0
        %1154 = vmatprep.mubr.f32.mxu0 %v494
        %1155 = vmatmul.mubr.f32.gmra.mrb[0].mxu0 %v493
        %v1156 = vpop.f32.mrb[0].mxu0
        %v1157 = vadd.f32 0.0, %v1156
        %v1158 = vpop.f32.mrb[0].mxu0
        %1159 = vmatprep.mubr.f32.mxu0 %v496
        %1160 = vmatmul.mubr.f32.gmra.mrb[0].mxu0 %v495
        %v1161 = vpop.f32.mrb[0].mxu0
        %v1162 = vadd.f32 0.0, %v1161
        %v1163 = vpop.f32.mrb[0].mxu0
        %1164 = vmatprep.mubr.f32.mxu0 %v498
        %1165 = vmatmul.mubr.f32.gmra.mrb[0].mxu0 %v497
        %v1166 = vpop.f32.mrb[0].mxu0
        %v1167 = vadd.f32 0.0, %v1166
        %v1168 = vpop.f32.mrb[0].mxu0
        %1169 = vmatprep.mubr.f32.mxu0 %v500
        %1170 = vmatmul.mubr.f32.gmra.mrb[0].mxu0 %v499
        %v1171 = vpop.f32.mrb[0].mxu0
        %v1172 = vadd.f32 0.0, %v1171
        %v1173 = vpop.f32.mrb[0].mxu0
        %1174 = vmatprep.mubr.f32.mxu0 %v502
        %1175 = vmatmul.mubr.f32.gmra.mrb[0].mxu0 %v501
        %v1176 = vpop.f32.mrb[0].mxu0
        %v1177 = vadd.f32 0.0, %v1176
        %v1178 = vpop.f32.mrb[0].mxu0
        %1179 = vmatprep.mubr.f32.mxu0 %v504
        %1180 = vmatmul.mubr.f32.gmra.mrb[0].mxu0 %v503
        %v1181 = vpop.f32.mrb[0].mxu0
        %v1182 = vadd.f32 0.0, %v1181
        %v1183 = vpop.f32.mrb[0].mxu0
        %1184 = vmatprep.mubr.f32.mxu0 %v506
        %1185 = vmatmul.mubr.f32.gmra.mrb[0].mxu0 %v505
        %v1186 = vpop.f32.mrb[0].mxu0
        %v1187 = vadd.f32 0.0, %v1186
        %v1188 = vpop.f32.mrb[0].mxu0
        %1189 = vmatprep.mubr.f32.mxu0 %v508
        %1190 = vmatmul.mubr.f32.gmra.mrb[0].mxu0 %v507
        %v1191 = vpop.f32.mrb[0].mxu0
        %v1192 = vadd.f32 0.0, %v1191
        %v1193 = vpop.f32.mrb[0].mxu0
        %1194 = vmatprep.mubr.f32.mxu0 %v510
        %1195 = vmatmul.mubr.f32.gmra.mrb[0].mxu0 %v509
        %v1196 = vpop.f32.mrb[0].mxu0
        %v1197 = vadd.f32 0.0, %v1196
        %v1198 = vpop.f32.mrb[0].mxu0
        %1199 = vmatprep.mubr.f32.mxu0 %v512
        %1200 = vmatmul.mubr.f32.gmra.mrb[0].mxu0 %v511
        %v1201 = vpop.f32.mrb[0].mxu0
        %v1202 = vadd.f32 0.0, %v1201
        %v1203 = vpop.f32.mrb[0].mxu0
        %1204 = vmatprep.mubr.f32.mxu0 %v514
        %1205 = vmatmul.mubr.f32.gmra.mrb[0].mxu0 %v513
        %v1206 = vpop.f32.mrb[0].mxu0
        %v1207 = vadd.f32 0.0, %v1206
        %v1208 = vpop.f32.mrb[0].mxu0
        %1209 = vmatprep.mubr.f32.mxu0 %v516
        %1210 = vmatmul.mubr.f32.gmra.mrb[0].mxu0 %v515
        %v1211 = vpop.f32.mrb[0].mxu0
        %v1212 = vadd.f32 0.0, %v1211
        %v1213 = vpop.f32.mrb[0].mxu0
        %1214 = vmatprep.mubr.f32.mxu0 %v518
        %1215 = vmatmul.mubr.f32.gmra.mrb[0].mxu0 %v517
        %v1216 = vpop.f32.mrb[0].mxu0
        %v1217 = vadd.f32 0.0, %v1216
        %v1218 = vpop.f32.mrb[0].mxu0
        %1219 = vmatprep.mubr.f32.mxu0 %v520
        %1220 = vmatmul.mubr.f32.gmra.mrb[0].mxu0 %v519
        %v1221 = vpop.f32.mrb[0].mxu0
        %v1222 = vadd.f32 0.0, %v1221
        %v1223 = vpop.f32.mrb[0].mxu0
        %1224 = vmatprep.mubr.f32.mxu0 %v522
        %1225 = vmatmul.mubr.f32.gmra.mrb[0].mxu0 %v521
        %v1226 = vpop.f32.mrb[0].mxu0
        %v1227 = vadd.f32 0.0, %v1226
        %v1228 = vpop.f32.mrb[0].mxu0
        %1229 = vmatprep.mubr.f32.mxu0 %v524
        %1230 = vmatmul.mubr.f32.gmra.mrb[0].mxu0 %v523
        %v1231 = vpop.f32.mrb[0].mxu0
        %v1232 = vadd.f32 0.0, %v1231
        %v1233 = vpop.f32.mrb[0].mxu0
        %1234 = vmatprep.mubr.f32.mxu0 %v526
        %1235 = vmatmul.mubr.f32.gmra.mrb[0].mxu0 %v525
        %v1236 = vpop.f32.mrb[0].mxu0
        %v1237 = vadd.f32 0.0, %v1236
        %v1238 = vpop.f32.mrb[0].mxu0
        %1239 = vmatprep.mubr.f32.mxu0 %v528
        %1240 = vmatmul.mubr.f32.gmra.mrb[0].mxu0 %v527
        %v1241 = vpop.f32.mrb[0].mxu0
        %v1242 = vadd.f32 0.0, %v1241
        %v1243 = vpop.f32.mrb[0].mxu0
        %1244 = vmatprep.mubr.f32.mxu0 %v530
        %1245 = vmatmul.mubr.f32.gmra.mrb[0].mxu0 %v529
        %v1246 = vpop.f32.mrb[0].mxu0
        %v1247 = vadd.f32 0.0, %v1246
        %v1248 = vpop.f32.mrb[0].mxu0
        %1249 = vmatprep.mubr.f32.mxu0 %v532
        %1250 = vmatmul.mubr.f32.gmra.mrb[0].mxu0 %v531
        %v1251 = vpop.f32.mrb[0].mxu0
        %v1252 = vadd.f32 0.0, %v1251
        %v1253 = vpop.f32.mrb[0].mxu0
        %1254 = vmatprep.mubr.f32.mxu0 %v534
        %1255 = vmatmul.mubr.f32.gmra.mrb[0].mxu0 %v533
        %v1256 = vpop.f32.mrb[0].mxu0
        %v1257 = vadd.f32 0.0, %v1256
        %v1258 = vpop.f32.mrb[0].mxu0
        %1259 = vmatprep.mubr.f32.mxu0 %v536
        %1260 = vmatmul.mubr.f32.gmra.mrb[0].mxu0 %v535
        %v1261 = vpop.f32.mrb[0].mxu0
        %v1262 = vadd.f32 0.0, %v1261
        %v1263 = vpop.f32.mrb[0].mxu0
        %1264 = vmatprep.mubr.f32.mxu0 %v538
        %1265 = vmatmul.mubr.f32.gmra.mrb[0].mxu0 %v537
        %v1266 = vpop.f32.mrb[0].mxu0
        %v1267 = vadd.f32 0.0, %v1266
        %v1268 = vpop.f32.mrb[0].mxu0
        %1269 = vmatprep.mubr.f32.mxu0 %v540
        %1270 = vmatmul.mubr.f32.gmra.mrb[0].mxu0 %v539
        %v1271 = vpop.f32.mrb[0].mxu0
        %v1272 = vadd.f32 0.0, %v1271
        %v1273 = vpop.f32.mrb[0].mxu0
        %1274 = vmatprep.mubr.f32.mxu0 %v542
        %1275 = vmatmul.mubr.f32.gmra.mrb[0].mxu0 %v541
        %v1276 = vpop.f32.mrb[0].mxu0
        %v1277 = vadd.f32 0.0, %v1276
        %v1278 = vpop.f32.mrb[0].mxu0
        %1279 = vdwg.mxu0
        %v1281 = vcombine.high %v284, %v284
        %v1283 = vunpack.c.l.s4 1966171168
        %v1284 = vunpack.c.0.s8 %v1283
        %v1285 = vlaneseq
        %v1286 = vshrl.u32 %v1285, 7
        %v1287 = vsub.s32 %v1284, %v1286
        %v1288 = vrot.slane %v284, %v1287
        %v1290 = vunpack.c.l.s4 1966171168
        %v1291 = vunpack.c.0.s8 %v1290
        %v1292 = vlaneseq
        %v1293 = vshrl.u32 %v1292, 7
        %v1294 = vsub.s32 %v1291, %v1293
        %v1295 = vrot.slane %v1281, %v1294
        %v1296 = vcombine.high %v1288, %v1288
        %v1297 = vcombine.high %v1295, %v1295
        %v1299 = vunpack.c.l.s4 1966171168
        %v1300 = vunpack.c.0.s8 %v1299
        %v1301 = vlaneseq
        %v1302 = vshrl.u32 %v1301, 7
        %v1303 = vsub.s32 %v1300, %v1302
        %v1304 = vrot.slane %v1288, %v1303
        %v1306 = vunpack.c.l.s4 1966171168
        %v1307 = vunpack.c.0.s8 %v1306
        %v1308 = vlaneseq
        %v1309 = vshrl.u32 %v1308, 7
        %v1310 = vsub.s32 %v1307, %v1309
        %v1311 = vrot.slane %v1295, %v1310
        %v1313 = vunpack.c.l.s4 1966171168
        %v1314 = vunpack.c.0.s8 %v1313
        %v1315 = vlaneseq
        %v1316 = vshrl.u32 %v1315, 7
        %v1317 = vsub.s32 %v1314, %v1316
        %v1318 = vrot.slane %v1296, %v1317
        %v1320 = vunpack.c.l.s4 1966171168
        %v1321 = vunpack.c.0.s8 %v1320
        %v1322 = vlaneseq
        %v1323 = vshrl.u32 %v1322, 7
        %v1324 = vsub.s32 %v1321, %v1323
        %v1325 = vrot.slane %v1297, %v1324
        %v1326 = vcombine.high %v1304, %v1304
        %v1327 = vcombine.high %v1311, %v1311
        %v1328 = vcombine.high %v1318, %v1318
        %v1329 = vcombine.high %v1325, %v1325
        %v1330 = vlaneseq
        %v1331 = vshrl.u32 %v1330, 7
        %v1332 = vsub.s32 0, %v1331
        %v1333 = vrot.slane %v1304, %v1332
        %v1334 = vlaneseq
        %v1335 = vshrl.u32 %v1334, 7
        %v1336 = vsub.s32 0, %v1335
        %v1337 = vrot.slane %v1318, %v1336
        %v1338 = vlaneseq
        %v1339 = vshrl.u32 %v1338, 7
        %v1340 = vsub.s32 0, %v1339
        %v1341 = vrot.slane %v1326, %v1340
        %v1342 = vlaneseq
        %v1343 = vshrl.u32 %v1342, 7
        %v1344 = vsub.s32 0, %v1343
        %v1345 = vrot.slane %v1328, %v1344
        %v1346 = vlaneseq
        %v1347 = vshrl.u32 %v1346, 7
        %v1348 = vsub.s32 0, %v1347
        %v1349 = vrot.slane %v1311, %v1348
        %v1350 = vlaneseq
        %v1351 = vshrl.u32 %v1350, 7
        %v1352 = vsub.s32 0, %v1351
        %v1353 = vrot.slane %v1325, %v1352
        %v1354 = vlaneseq
        %v1355 = vshrl.u32 %v1354, 7
        %v1356 = vsub.s32 0, %v1355
        %v1357 = vrot.slane %v1327, %v1356
        %v1358 = vlaneseq
        %v1359 = vshrl.u32 %v1358, 7
        %v1360 = vsub.s32 0, %v1359
        %v1361 = vrot.slane %v1329, %v1360
        %v1370 = vadd.f32 %v642, %v1333
        %v1371 = vadd.f32 %v647, %v1333
        %v1372 = vadd.f32 %v652, %v1333
        %v1373 = vadd.f32 %v657, %v1333
        %v1374 = vadd.f32 %v662, %v1333
        %v1375 = vadd.f32 %v667, %v1333
        %v1376 = vadd.f32 %v672, %v1333
        %v1377 = vadd.f32 %v677, %v1333
        %v1378 = vadd.f32 %v682, %v1333
        %v1379 = vadd.f32 %v687, %v1333
        %v1380 = vadd.f32 %v692, %v1333
        %v1381 = vadd.f32 %v697, %v1333
        %v1382 = vadd.f32 %v702, %v1333
        %v1383 = vadd.f32 %v707, %v1333
        %v1384 = vadd.f32 %v712, %v1333
        %v1385 = vadd.f32 %v717, %v1333
        %v1386 = vadd.f32 %v722, %v1337
        %v1387 = vadd.f32 %v727, %v1337
        %v1388 = vadd.f32 %v732, %v1337
        %v1389 = vadd.f32 %v737, %v1337
        %v1390 = vadd.f32 %v742, %v1337
        %v1391 = vadd.f32 %v747, %v1337
        %v1392 = vadd.f32 %v752, %v1337
        %v1393 = vadd.f32 %v757, %v1337
        %v1394 = vadd.f32 %v762, %v1337
        %v1395 = vadd.f32 %v767, %v1337
        %v1396 = vadd.f32 %v772, %v1337
        %v1397 = vadd.f32 %v777, %v1337
        %v1398 = vadd.f32 %v782, %v1337
        %v1399 = vadd.f32 %v787, %v1337
        %v1400 = vadd.f32 %v792, %v1337
        %v1401 = vadd.f32 %v797, %v1337
        %v1402 = vadd.f32 %v802, %v1341
        %v1403 = vadd.f32 %v807, %v1341
        %v1404 = vadd.f32 %v812, %v1341
        %v1405 = vadd.f32 %v817, %v1341
        %v1406 = vadd.f32 %v822, %v1341
        %v1407 = vadd.f32 %v827, %v1341
        %v1408 = vadd.f32 %v832, %v1341
        %v1409 = vadd.f32 %v837, %v1341
        %v1410 = vadd.f32 %v842, %v1341
        %v1411 = vadd.f32 %v847, %v1341
        %v1412 = vadd.f32 %v852, %v1341
        %v1413 = vadd.f32 %v857, %v1341
        %v1414 = vadd.f32 %v862, %v1341
        %v1415 = vadd.f32 %v867, %v1341
        %v1416 = vadd.f32 %v872, %v1341
        %v1417 = vadd.f32 %v877, %v1341
        %v1418 = vadd.f32 %v882, %v1345
        %v1419 = vadd.f32 %v887, %v1345
        %v1420 = vadd.f32 %v892, %v1345
        %v1421 = vadd.f32 %v897, %v1345
        %v1422 = vadd.f32 %v902, %v1345
        %v1423 = vadd.f32 %v907, %v1345
        %v1424 = vadd.f32 %v912, %v1345
        %v1425 = vadd.f32 %v917, %v1345
        %v1426 = vadd.f32 %v922, %v1345
        %v1427 = vadd.f32 %v927, %v1345
        %v1428 = vadd.f32 %v932, %v1345
        %v1429 = vadd.f32 %v937, %v1345
        %v1430 = vadd.f32 %v942, %v1345
        %v1431 = vadd.f32 %v947, %v1345
        %v1432 = vadd.f32 %v952, %v1345
        %v1433 = vadd.f32 %v957, %v1345
        %v1434 = vadd.f32 %v962, %v1349
        %v1435 = vadd.f32 %v967, %v1349
        %v1436 = vadd.f32 %v972, %v1349
        %v1437 = vadd.f32 %v977, %v1349
        %v1438 = vadd.f32 %v982, %v1349
        %v1439 = vadd.f32 %v987, %v1349
        %v1440 = vadd.f32 %v992, %v1349
        %v1441 = vadd.f32 %v997, %v1349
        %v1442 = vadd.f32 %v1002, %v1349
        %v1443 = vadd.f32 %v1007, %v1349
        %v1444 = vadd.f32 %v1012, %v1349
        %v1445 = vadd.f32 %v1017, %v1349
        %v1446 = vadd.f32 %v1022, %v1349
        %v1447 = vadd.f32 %v1027, %v1349
        %v1448 = vadd.f32 %v1032, %v1349
        %v1449 = vadd.f32 %v1037, %v1349
        %v1450 = vadd.f32 %v1042, %v1353
        %v1451 = vadd.f32 %v1047, %v1353
        %v1452 = vadd.f32 %v1052, %v1353
        %v1453 = vadd.f32 %v1057, %v1353
        %v1454 = vadd.f32 %v1062, %v1353
        %v1455 = vadd.f32 %v1067, %v1353
        %v1456 = vadd.f32 %v1072, %v1353
        %v1457 = vadd.f32 %v1077, %v1353
        %v1458 = vadd.f32 %v1082, %v1353
        %v1459 = vadd.f32 %v1087, %v1353
        %v1460 = vadd.f32 %v1092, %v1353
        %v1461 = vadd.f32 %v1097, %v1353
        %v1462 = vadd.f32 %v1102, %v1353
        %v1463 = vadd.f32 %v1107, %v1353
        %v1464 = vadd.f32 %v1112, %v1353
        %v1465 = vadd.f32 %v1117, %v1353
        %v1466 = vadd.f32 %v1122, %v1357
        %v1467 = vadd.f32 %v1127, %v1357
        %v1468 = vadd.f32 %v1132, %v1357
        %v1469 = vadd.f32 %v1137, %v1357
        %v1470 = vadd.f32 %v1142, %v1357
        %v1471 = vadd.f32 %v1147, %v1357
        %v1472 = vadd.f32 %v1152, %v1357
        %v1473 = vadd.f32 %v1157, %v1357
        %v1474 = vadd.f32 %v1162, %v1357
        %v1475 = vadd.f32 %v1167, %v1357
        %v1476 = vadd.f32 %v1172, %v1357
        %v1477 = vadd.f32 %v1177, %v1357
        %v1478 = vadd.f32 %v1182, %v1357
        %v1479 = vadd.f32 %v1187, %v1357
        %v1480 = vadd.f32 %v1192, %v1357
        %v1481 = vadd.f32 %v1197, %v1357
        %v1482 = vadd.f32 %v1202, %v1361
        %v1483 = vadd.f32 %v1207, %v1361
        %v1484 = vadd.f32 %v1212, %v1361
        %v1485 = vadd.f32 %v1217, %v1361
        %v1486 = vadd.f32 %v1222, %v1361
        %v1487 = vadd.f32 %v1227, %v1361
        %v1488 = vadd.f32 %v1232, %v1361
        %v1489 = vadd.f32 %v1237, %v1361
        %v1490 = vadd.f32 %v1242, %v1361
        %v1491 = vadd.f32 %v1247, %v1361
        %v1492 = vadd.f32 %v1252, %v1361
        %v1493 = vadd.f32 %v1257, %v1361
        %v1494 = vadd.f32 %v1262, %v1361
        %v1495 = vadd.f32 %v1267, %v1361
        %v1496 = vadd.f32 %v1272, %v1361
        %v1497 = vadd.f32 %v1277, %v1361
        %v1498 = vmax.f32 %v1370, 0.0
        %v1499 = vmax.f32 %v1371, 0.0
        %v1500 = vmax.f32 %v1372, 0.0
        %v1501 = vmax.f32 %v1373, 0.0
        %v1502 = vmax.f32 %v1374, 0.0
        %v1503 = vmax.f32 %v1375, 0.0
        %v1504 = vmax.f32 %v1376, 0.0
        %v1505 = vmax.f32 %v1377, 0.0
        %v1506 = vmax.f32 %v1378, 0.0
        %v1507 = vmax.f32 %v1379, 0.0
        %v1508 = vmax.f32 %v1380, 0.0
        %v1509 = vmax.f32 %v1381, 0.0
        %v1510 = vmax.f32 %v1382, 0.0
        %v1511 = vmax.f32 %v1383, 0.0
        %v1512 = vmax.f32 %v1384, 0.0
        %v1513 = vmax.f32 %v1385, 0.0
        %v1514 = vmax.f32 %v1386, 0.0
        %v1515 = vmax.f32 %v1387, 0.0
        %v1516 = vmax.f32 %v1388, 0.0
        %v1517 = vmax.f32 %v1389, 0.0
        %v1518 = vmax.f32 %v1390, 0.0
        %v1519 = vmax.f32 %v1391, 0.0
        %v1520 = vmax.f32 %v1392, 0.0
        %v1521 = vmax.f32 %v1393, 0.0
        %v1522 = vmax.f32 %v1394, 0.0
        %v1523 = vmax.f32 %v1395, 0.0
        %v1524 = vmax.f32 %v1396, 0.0
        %v1525 = vmax.f32 %v1397, 0.0
        %v1526 = vmax.f32 %v1398, 0.0
        %v1527 = vmax.f32 %v1399, 0.0
        %v1528 = vmax.f32 %v1400, 0.0
        %v1529 = vmax.f32 %v1401, 0.0
        %v1530 = vmax.f32 %v1402, 0.0
        %v1531 = vmax.f32 %v1403, 0.0
        %v1532 = vmax.f32 %v1404, 0.0
        %v1533 = vmax.f32 %v1405, 0.0
        %v1534 = vmax.f32 %v1406, 0.0
        %v1535 = vmax.f32 %v1407, 0.0
        %v1536 = vmax.f32 %v1408, 0.0
        %v1537 = vmax.f32 %v1409, 0.0
        %v1538 = vmax.f32 %v1410, 0.0
        %v1539 = vmax.f32 %v1411, 0.0
        %v1540 = vmax.f32 %v1412, 0.0
        %v1541 = vmax.f32 %v1413, 0.0
        %v1542 = vmax.f32 %v1414, 0.0
        %v1543 = vmax.f32 %v1415, 0.0
        %v1544 = vmax.f32 %v1416, 0.0
        %v1545 = vmax.f32 %v1417, 0.0
        %v1546 = vmax.f32 %v1418, 0.0
        %v1547 = vmax.f32 %v1419, 0.0
        %v1548 = vmax.f32 %v1420, 0.0
        %v1549 = vmax.f32 %v1421, 0.0
        %v1550 = vmax.f32 %v1422, 0.0
        %v1551 = vmax.f32 %v1423, 0.0
        %v1552 = vmax.f32 %v1424, 0.0
        %v1553 = vmax.f32 %v1425, 0.0
        %v1554 = vmax.f32 %v1426, 0.0
        %v1555 = vmax.f32 %v1427, 0.0
        %v1556 = vmax.f32 %v1428, 0.0
        %v1557 = vmax.f32 %v1429, 0.0
        %v1558 = vmax.f32 %v1430, 0.0
        %v1559 = vmax.f32 %v1431, 0.0
        %v1560 = vmax.f32 %v1432, 0.0
        %v1561 = vmax.f32 %v1433, 0.0
        %v1562 = vmax.f32 %v1434, 0.0
        %v1563 = vmax.f32 %v1435, 0.0
        %v1564 = vmax.f32 %v1436, 0.0
        %v1565 = vmax.f32 %v1437, 0.0
        %v1566 = vmax.f32 %v1438, 0.0
        %v1567 = vmax.f32 %v1439, 0.0
        %v1568 = vmax.f32 %v1440, 0.0
        %v1569 = vmax.f32 %v1441, 0.0
        %v1570 = vmax.f32 %v1442, 0.0
        %v1571 = vmax.f32 %v1443, 0.0
        %v1572 = vmax.f32 %v1444, 0.0
        %v1573 = vmax.f32 %v1445, 0.0
        %v1574 = vmax.f32 %v1446, 0.0
        %v1575 = vmax.f32 %v1447, 0.0
        %v1576 = vmax.f32 %v1448, 0.0
        %v1577 = vmax.f32 %v1449, 0.0
        %v1578 = vmax.f32 %v1450, 0.0
        %v1579 = vmax.f32 %v1451, 0.0
        %v1580 = vmax.f32 %v1452, 0.0
        %v1581 = vmax.f32 %v1453, 0.0
        %v1582 = vmax.f32 %v1454, 0.0
        %v1583 = vmax.f32 %v1455, 0.0
        %v1584 = vmax.f32 %v1456, 0.0
        %v1585 = vmax.f32 %v1457, 0.0
        %v1586 = vmax.f32 %v1458, 0.0
        %v1587 = vmax.f32 %v1459, 0.0
        %v1588 = vmax.f32 %v1460, 0.0
        %v1589 = vmax.f32 %v1461, 0.0
        %v1590 = vmax.f32 %v1462, 0.0
        %v1591 = vmax.f32 %v1463, 0.0
        %v1592 = vmax.f32 %v1464, 0.0
        %v1593 = vmax.f32 %v1465, 0.0
        %v1594 = vmax.f32 %v1466, 0.0
        %v1595 = vmax.f32 %v1467, 0.0
        %v1596 = vmax.f32 %v1468, 0.0
        %v1597 = vmax.f32 %v1469, 0.0
        %v1598 = vmax.f32 %v1470, 0.0
        %v1599 = vmax.f32 %v1471, 0.0
        %v1600 = vmax.f32 %v1472, 0.0
        %v1601 = vmax.f32 %v1473, 0.0
        %v1602 = vmax.f32 %v1474, 0.0
        %v1603 = vmax.f32 %v1475, 0.0
        %v1604 = vmax.f32 %v1476, 0.0
        %v1605 = vmax.f32 %v1477, 0.0
        %v1606 = vmax.f32 %v1478, 0.0
        %v1607 = vmax.f32 %v1479, 0.0
        %v1608 = vmax.f32 %v1480, 0.0
        %v1609 = vmax.f32 %v1481, 0.0
        %v1610 = vmax.f32 %v1482, 0.0
        %v1611 = vmax.f32 %v1483, 0.0
        %v1612 = vmax.f32 %v1484, 0.0
        %v1613 = vmax.f32 %v1485, 0.0
        %v1614 = vmax.f32 %v1486, 0.0
        %v1615 = vmax.f32 %v1487, 0.0
        %v1616 = vmax.f32 %v1488, 0.0
        %v1617 = vmax.f32 %v1489, 0.0
        %v1618 = vmax.f32 %v1490, 0.0
        %v1619 = vmax.f32 %v1491, 0.0
        %v1620 = vmax.f32 %v1492, 0.0
        %v1621 = vmax.f32 %v1493, 0.0
        %v1622 = vmax.f32 %v1494, 0.0
        %v1623 = vmax.f32 %v1495, 0.0
        %v1624 = vmax.f32 %v1496, 0.0
        %v1625 = vmax.f32 %v1497, 0.0
        %v1627 = vlaneseq
        %v1628 = vshrl.u32 %v1627, 7
        %v1629 = vsub.s32 0, %v1628
        %v1630 = vrot.slane %v285, %v1629
        %v1632 = vmul.f32 %v1498, %v1630
        %v1633 = vmul.f32 %v1499, %v1630
        %v1634 = vmul.f32 %v1500, %v1630
        %v1635 = vmul.f32 %v1501, %v1630
        %v1636 = vmul.f32 %v1502, %v1630
        %v1637 = vmul.f32 %v1503, %v1630
        %v1638 = vmul.f32 %v1504, %v1630
        %v1639 = vmul.f32 %v1505, %v1630
        %v1640 = vmul.f32 %v1506, %v1630
        %v1641 = vmul.f32 %v1507, %v1630
        %v1642 = vmul.f32 %v1508, %v1630
        %v1643 = vmul.f32 %v1509, %v1630
        %v1644 = vmul.f32 %v1510, %v1630
        %v1645 = vmul.f32 %v1511, %v1630
        %v1646 = vmul.f32 %v1512, %v1630
        %v1647 = vmul.f32 %v1513, %v1630
        %v1648 = vmul.f32 %v1514, %v1630
        %v1649 = vmul.f32 %v1515, %v1630
        %v1650 = vmul.f32 %v1516, %v1630
        %v1651 = vmul.f32 %v1517, %v1630
        %v1652 = vmul.f32 %v1518, %v1630
        %v1653 = vmul.f32 %v1519, %v1630
        %v1654 = vmul.f32 %v1520, %v1630
        %v1655 = vmul.f32 %v1521, %v1630
        %v1656 = vmul.f32 %v1522, %v1630
        %v1657 = vmul.f32 %v1523, %v1630
        %v1658 = vmul.f32 %v1524, %v1630
        %v1659 = vmul.f32 %v1525, %v1630
        %v1660 = vmul.f32 %v1526, %v1630
        %v1661 = vmul.f32 %v1527, %v1630
        %v1662 = vmul.f32 %v1528, %v1630
        %v1663 = vmul.f32 %v1529, %v1630
        %v1664 = vmul.f32 %v1530, %v1630
        %v1665 = vmul.f32 %v1531, %v1630
        %v1666 = vmul.f32 %v1532, %v1630
        %v1667 = vmul.f32 %v1533, %v1630
        %v1668 = vmul.f32 %v1534, %v1630
        %v1669 = vmul.f32 %v1535, %v1630
        %v1670 = vmul.f32 %v1536, %v1630
        %v1671 = vmul.f32 %v1537, %v1630
        %v1672 = vmul.f32 %v1538, %v1630
        %v1673 = vmul.f32 %v1539, %v1630
        %v1674 = vmul.f32 %v1540, %v1630
        %v1675 = vmul.f32 %v1541, %v1630
        %v1676 = vmul.f32 %v1542, %v1630
        %v1677 = vmul.f32 %v1543, %v1630
        %v1678 = vmul.f32 %v1544, %v1630
        %v1679 = vmul.f32 %v1545, %v1630
        %v1680 = vmul.f32 %v1546, %v1630
        %v1681 = vmul.f32 %v1547, %v1630
        %v1682 = vmul.f32 %v1548, %v1630
        %v1683 = vmul.f32 %v1549, %v1630
        %v1684 = vmul.f32 %v1550, %v1630
        %v1685 = vmul.f32 %v1551, %v1630
        %v1686 = vmul.f32 %v1552, %v1630
        %v1687 = vmul.f32 %v1553, %v1630
        %v1688 = vmul.f32 %v1554, %v1630
        %v1689 = vmul.f32 %v1555, %v1630
        %v1690 = vmul.f32 %v1556, %v1630
        %v1691 = vmul.f32 %v1557, %v1630
        %v1692 = vmul.f32 %v1558, %v1630
        %v1693 = vmul.f32 %v1559, %v1630
        %v1694 = vmul.f32 %v1560, %v1630
        %v1695 = vmul.f32 %v1561, %v1630
        %v1696 = vmul.f32 %v1562, %v1630
        %v1697 = vmul.f32 %v1563, %v1630
        %v1698 = vmul.f32 %v1564, %v1630
        %v1699 = vmul.f32 %v1565, %v1630
        %v1700 = vmul.f32 %v1566, %v1630
        %v1701 = vmul.f32 %v1567, %v1630
        %v1702 = vmul.f32 %v1568, %v1630
        %v1703 = vmul.f32 %v1569, %v1630
        %v1704 = vmul.f32 %v1570, %v1630
        %v1705 = vmul.f32 %v1571, %v1630
        %v1706 = vmul.f32 %v1572, %v1630
        %v1707 = vmul.f32 %v1573, %v1630
        %v1708 = vmul.f32 %v1574, %v1630
        %v1709 = vmul.f32 %v1575, %v1630
        %v1710 = vmul.f32 %v1576, %v1630
        %v1711 = vmul.f32 %v1577, %v1630
        %v1712 = vmul.f32 %v1578, %v1630
        %v1713 = vmul.f32 %v1579, %v1630
        %v1714 = vmul.f32 %v1580, %v1630
        %v1715 = vmul.f32 %v1581, %v1630
        %v1716 = vmul.f32 %v1582, %v1630
        %v1717 = vmul.f32 %v1583, %v1630
        %v1718 = vmul.f32 %v1584, %v1630
        %v1719 = vmul.f32 %v1585, %v1630
        %v1720 = vmul.f32 %v1586, %v1630
        %v1721 = vmul.f32 %v1587, %v1630
        %v1722 = vmul.f32 %v1588, %v1630
        %v1723 = vmul.f32 %v1589, %v1630
        %v1724 = vmul.f32 %v1590, %v1630
        %v1725 = vmul.f32 %v1591, %v1630
        %v1726 = vmul.f32 %v1592, %v1630
        %v1727 = vmul.f32 %v1593, %v1630
        %v1728 = vmul.f32 %v1594, %v1630
        %v1729 = vmul.f32 %v1595, %v1630
        %v1730 = vmul.f32 %v1596, %v1630
        %v1731 = vmul.f32 %v1597, %v1630
        %v1732 = vmul.f32 %v1598, %v1630
        %v1733 = vmul.f32 %v1599, %v1630
        %v1734 = vmul.f32 %v1600, %v1630
        %v1735 = vmul.f32 %v1601, %v1630
        %v1736 = vmul.f32 %v1602, %v1630
        %v1737 = vmul.f32 %v1603, %v1630
        %v1738 = vmul.f32 %v1604, %v1630
        %v1739 = vmul.f32 %v1605, %v1630
        %v1740 = vmul.f32 %v1606, %v1630
        %v1741 = vmul.f32 %v1607, %v1630
        %v1742 = vmul.f32 %v1608, %v1630
        %v1743 = vmul.f32 %v1609, %v1630
        %v1744 = vmul.f32 %v1610, %v1630
        %v1745 = vmul.f32 %v1611, %v1630
        %v1746 = vmul.f32 %v1612, %v1630
        %v1747 = vmul.f32 %v1613, %v1630
        %v1748 = vmul.f32 %v1614, %v1630
        %v1749 = vmul.f32 %v1615, %v1630
        %v1750 = vmul.f32 %v1616, %v1630
        %v1751 = vmul.f32 %v1617, %v1630
        %v1752 = vmul.f32 %v1618, %v1630
        %v1753 = vmul.f32 %v1619, %v1630
        %v1754 = vmul.f32 %v1620, %v1630
        %v1755 = vmul.f32 %v1621, %v1630
        %v1756 = vmul.f32 %v1622, %v1630
        %v1757 = vmul.f32 %v1623, %v1630
        %v1758 = vmul.f32 %v1624, %v1630
        %v1759 = vmul.f32 %v1625, %v1630
        %1760 = vadd.xlane.f32.xlu0 %v1632
        %v1761 = vpop.xlane.xlu0 %1760
        %1762 = vadd.xlane.f32.xlu0 %v1633
        %v1763 = vpop.xlane.xlu0 %1762
        %1764 = vadd.xlane.f32.xlu0 %v1634
        %v1765 = vpop.xlane.xlu0 %1764
        %1766 = vadd.xlane.f32.xlu0 %v1635
        %v1767 = vpop.xlane.xlu0 %1766
        %1768 = vadd.xlane.f32.xlu0 %v1636
        %v1769 = vpop.xlane.xlu0 %1768
        %1770 = vadd.xlane.f32.xlu0 %v1637
        %v1771 = vpop.xlane.xlu0 %1770
        %1772 = vadd.xlane.f32.xlu0 %v1638
        %v1773 = vpop.xlane.xlu0 %1772
        %1774 = vadd.xlane.f32.xlu0 %v1639
        %v1775 = vpop.xlane.xlu0 %1774
        %1776 = vadd.xlane.f32.xlu0 %v1640
        %v1777 = vpop.xlane.xlu0 %1776
        %1778 = vadd.xlane.f32.xlu0 %v1641
        %v1779 = vpop.xlane.xlu0 %1778
        %1780 = vadd.xlane.f32.xlu0 %v1642
        %v1781 = vpop.xlane.xlu0 %1780
        %1782 = vadd.xlane.f32.xlu0 %v1643
        %v1783 = vpop.xlane.xlu0 %1782
        %1784 = vadd.xlane.f32.xlu0 %v1644
        %v1785 = vpop.xlane.xlu0 %1784
        %1786 = vadd.xlane.f32.xlu0 %v1645
        %v1787 = vpop.xlane.xlu0 %1786
        %1788 = vadd.xlane.f32.xlu0 %v1646
        %v1789 = vpop.xlane.xlu0 %1788
        %1790 = vadd.xlane.f32.xlu0 %v1647
        %v1791 = vpop.xlane.xlu0 %1790
        %1792 = vadd.xlane.f32.xlu0 %v1648
        %v1793 = vpop.xlane.xlu0 %1792
        %1794 = vadd.xlane.f32.xlu0 %v1649
        %v1795 = vpop.xlane.xlu0 %1794
        %1796 = vadd.xlane.f32.xlu0 %v1650
        %v1797 = vpop.xlane.xlu0 %1796
        %1798 = vadd.xlane.f32.xlu0 %v1651
        %v1799 = vpop.xlane.xlu0 %1798
        %1800 = vadd.xlane.f32.xlu0 %v1652
        %v1801 = vpop.xlane.xlu0 %1800
        %1802 = vadd.xlane.f32.xlu0 %v1653
        %v1803 = vpop.xlane.xlu0 %1802
        %1804 = vadd.xlane.f32.xlu0 %v1654
        %v1805 = vpop.xlane.xlu0 %1804
        %1806 = vadd.xlane.f32.xlu0 %v1655
        %v1807 = vpop.xlane.xlu0 %1806
        %1808 = vadd.xlane.f32.xlu0 %v1656
        %v1809 = vpop.xlane.xlu0 %1808
        %1810 = vadd.xlane.f32.xlu0 %v1657
        %v1811 = vpop.xlane.xlu0 %1810
        %1812 = vadd.xlane.f32.xlu0 %v1658
        %v1813 = vpop.xlane.xlu0 %1812
        %1814 = vadd.xlane.f32.xlu0 %v1659
        %v1815 = vpop.xlane.xlu0 %1814
        %1816 = vadd.xlane.f32.xlu0 %v1660
        %v1817 = vpop.xlane.xlu0 %1816
        %1818 = vadd.xlane.f32.xlu0 %v1661
        %v1819 = vpop.xlane.xlu0 %1818
        %1820 = vadd.xlane.f32.xlu0 %v1662
        %v1821 = vpop.xlane.xlu0 %1820
        %1822 = vadd.xlane.f32.xlu0 %v1663
        %v1823 = vpop.xlane.xlu0 %1822
        %1824 = vadd.xlane.f32.xlu0 %v1664
        %v1825 = vpop.xlane.xlu0 %1824
        %1826 = vadd.xlane.f32.xlu0 %v1665
        %v1827 = vpop.xlane.xlu0 %1826
        %1828 = vadd.xlane.f32.xlu0 %v1666
        %v1829 = vpop.xlane.xlu0 %1828
        %1830 = vadd.xlane.f32.xlu0 %v1667
        %v1831 = vpop.xlane.xlu0 %1830
        %1832 = vadd.xlane.f32.xlu0 %v1668
        %v1833 = vpop.xlane.xlu0 %1832
        %1834 = vadd.xlane.f32.xlu0 %v1669
        %v1835 = vpop.xlane.xlu0 %1834
        %1836 = vadd.xlane.f32.xlu0 %v1670
        %v1837 = vpop.xlane.xlu0 %1836
        %1838 = vadd.xlane.f32.xlu0 %v1671
        %v1839 = vpop.xlane.xlu0 %1838
        %1840 = vadd.xlane.f32.xlu0 %v1672
        %v1841 = vpop.xlane.xlu0 %1840
        %1842 = vadd.xlane.f32.xlu0 %v1673
        %v1843 = vpop.xlane.xlu0 %1842
        %1844 = vadd.xlane.f32.xlu0 %v1674
        %v1845 = vpop.xlane.xlu0 %1844
        %1846 = vadd.xlane.f32.xlu0 %v1675
        %v1847 = vpop.xlane.xlu0 %1846
        %1848 = vadd.xlane.f32.xlu0 %v1676
        %v1849 = vpop.xlane.xlu0 %1848
        %1850 = vadd.xlane.f32.xlu0 %v1677
        %v1851 = vpop.xlane.xlu0 %1850
        %1852 = vadd.xlane.f32.xlu0 %v1678
        %v1853 = vpop.xlane.xlu0 %1852
        %1854 = vadd.xlane.f32.xlu0 %v1679
        %v1855 = vpop.xlane.xlu0 %1854
        %1856 = vadd.xlane.f32.xlu0 %v1680
        %v1857 = vpop.xlane.xlu0 %1856
        %1858 = vadd.xlane.f32.xlu0 %v1681
        %v1859 = vpop.xlane.xlu0 %1858
        %1860 = vadd.xlane.f32.xlu0 %v1682
        %v1861 = vpop.xlane.xlu0 %1860
        %1862 = vadd.xlane.f32.xlu0 %v1683
        %v1863 = vpop.xlane.xlu0 %1862
        %1864 = vadd.xlane.f32.xlu0 %v1684
        %v1865 = vpop.xlane.xlu0 %1864
        %1866 = vadd.xlane.f32.xlu0 %v1685
        %v1867 = vpop.xlane.xlu0 %1866
        %1868 = vadd.xlane.f32.xlu0 %v1686
        %v1869 = vpop.xlane.xlu0 %1868
        %1870 = vadd.xlane.f32.xlu0 %v1687
        %v1871 = vpop.xlane.xlu0 %1870
        %1872 = vadd.xlane.f32.xlu0 %v1688
        %v1873 = vpop.xlane.xlu0 %1872
        %1874 = vadd.xlane.f32.xlu0 %v1689
        %v1875 = vpop.xlane.xlu0 %1874
        %1876 = vadd.xlane.f32.xlu0 %v1690
        %v1877 = vpop.xlane.xlu0 %1876
        %1878 = vadd.xlane.f32.xlu0 %v1691
        %v1879 = vpop.xlane.xlu0 %1878
        %1880 = vadd.xlane.f32.xlu0 %v1692
        %v1881 = vpop.xlane.xlu0 %1880
        %1882 = vadd.xlane.f32.xlu0 %v1693
        %v1883 = vpop.xlane.xlu0 %1882
        %1884 = vadd.xlane.f32.xlu0 %v1694
        %v1885 = vpop.xlane.xlu0 %1884
        %1886 = vadd.xlane.f32.xlu0 %v1695
        %v1887 = vpop.xlane.xlu0 %1886
        %1888 = vadd.xlane.f32.xlu0 %v1696
        %v1889 = vpop.xlane.xlu0 %1888
        %1890 = vadd.xlane.f32.xlu0 %v1697
        %v1891 = vpop.xlane.xlu0 %1890
        %1892 = vadd.xlane.f32.xlu0 %v1698
        %v1893 = vpop.xlane.xlu0 %1892
        %1894 = vadd.xlane.f32.xlu0 %v1699
        %v1895 = vpop.xlane.xlu0 %1894
        %1896 = vadd.xlane.f32.xlu0 %v1700
        %v1897 = vpop.xlane.xlu0 %1896
        %1898 = vadd.xlane.f32.xlu0 %v1701
        %v1899 = vpop.xlane.xlu0 %1898
        %1900 = vadd.xlane.f32.xlu0 %v1702
        %v1901 = vpop.xlane.xlu0 %1900
        %1902 = vadd.xlane.f32.xlu0 %v1703
        %v1903 = vpop.xlane.xlu0 %1902
        %1904 = vadd.xlane.f32.xlu0 %v1704
        %v1905 = vpop.xlane.xlu0 %1904
        %1906 = vadd.xlane.f32.xlu0 %v1705
        %v1907 = vpop.xlane.xlu0 %1906
        %1908 = vadd.xlane.f32.xlu0 %v1706
        %v1909 = vpop.xlane.xlu0 %1908
        %1910 = vadd.xlane.f32.xlu0 %v1707
        %v1911 = vpop.xlane.xlu0 %1910
        %1912 = vadd.xlane.f32.xlu0 %v1708
        %v1913 = vpop.xlane.xlu0 %1912
        %1914 = vadd.xlane.f32.xlu0 %v1709
        %v1915 = vpop.xlane.xlu0 %1914
        %1916 = vadd.xlane.f32.xlu0 %v1710
        %v1917 = vpop.xlane.xlu0 %1916
        %1918 = vadd.xlane.f32.xlu0 %v1711
        %v1919 = vpop.xlane.xlu0 %1918
        %1920 = vadd.xlane.f32.xlu0 %v1712
        %v1921 = vpop.xlane.xlu0 %1920
        %1922 = vadd.xlane.f32.xlu0 %v1713
        %v1923 = vpop.xlane.xlu0 %1922
        %1924 = vadd.xlane.f32.xlu0 %v1714
        %v1925 = vpop.xlane.xlu0 %1924
        %1926 = vadd.xlane.f32.xlu0 %v1715
        %v1927 = vpop.xlane.xlu0 %1926
        %1928 = vadd.xlane.f32.xlu0 %v1716
        %v1929 = vpop.xlane.xlu0 %1928
        %1930 = vadd.xlane.f32.xlu0 %v1717
        %v1931 = vpop.xlane.xlu0 %1930
        %1932 = vadd.xlane.f32.xlu0 %v1718
        %v1933 = vpop.xlane.xlu0 %1932
        %1934 = vadd.xlane.f32.xlu0 %v1719
        %v1935 = vpop.xlane.xlu0 %1934
        %1936 = vadd.xlane.f32.xlu0 %v1720
        %v1937 = vpop.xlane.xlu0 %1936
        %1938 = vadd.xlane.f32.xlu0 %v1721
        %v1939 = vpop.xlane.xlu0 %1938
        %1940 = vadd.xlane.f32.xlu0 %v1722
        %v1941 = vpop.xlane.xlu0 %1940
        %1942 = vadd.xlane.f32.xlu0 %v1723
        %v1943 = vpop.xlane.xlu0 %1942
        %1944 = vadd.xlane.f32.xlu0 %v1724
        %v1945 = vpop.xlane.xlu0 %1944
        %1946 = vadd.xlane.f32.xlu0 %v1725
        %v1947 = vpop.xlane.xlu0 %1946
        %1948 = vadd.xlane.f32.xlu0 %v1726
        %v1949 = vpop.xlane.xlu0 %1948
        %1950 = vadd.xlane.f32.xlu0 %v1727
        %v1951 = vpop.xlane.xlu0 %1950
        %1952 = vadd.xlane.f32.xlu0 %v1728
        %v1953 = vpop.xlane.xlu0 %1952
        %1954 = vadd.xlane.f32.xlu0 %v1729
        %v1955 = vpop.xlane.xlu0 %1954
        %1956 = vadd.xlane.f32.xlu0 %v1730
        %v1957 = vpop.xlane.xlu0 %1956
        %1958 = vadd.xlane.f32.xlu0 %v1731
        %v1959 = vpop.xlane.xlu0 %1958
        %1960 = vadd.xlane.f32.xlu0 %v1732
        %v1961 = vpop.xlane.xlu0 %1960
        %1962 = vadd.xlane.f32.xlu0 %v1733
        %v1963 = vpop.xlane.xlu0 %1962
        %1964 = vadd.xlane.f32.xlu0 %v1734
        %v1965 = vpop.xlane.xlu0 %1964
        %1966 = vadd.xlane.f32.xlu0 %v1735
        %v1967 = vpop.xlane.xlu0 %1966
        %1968 = vadd.xlane.f32.xlu0 %v1736
        %v1969 = vpop.xlane.xlu0 %1968
        %1970 = vadd.xlane.f32.xlu0 %v1737
        %v1971 = vpop.xlane.xlu0 %1970
        %1972 = vadd.xlane.f32.xlu0 %v1738
        %v1973 = vpop.xlane.xlu0 %1972
        %1974 = vadd.xlane.f32.xlu0 %v1739
        %v1975 = vpop.xlane.xlu0 %1974
        %1976 = vadd.xlane.f32.xlu0 %v1740
        %v1977 = vpop.xlane.xlu0 %1976
        %1978 = vadd.xlane.f32.xlu0 %v1741
        %v1979 = vpop.xlane.xlu0 %1978
        %1980 = vadd.xlane.f32.xlu0 %v1742
        %v1981 = vpop.xlane.xlu0 %1980
        %1982 = vadd.xlane.f32.xlu0 %v1743
        %v1983 = vpop.xlane.xlu0 %1982
        %1984 = vadd.xlane.f32.xlu0 %v1744
        %v1985 = vpop.xlane.xlu0 %1984
        %1986 = vadd.xlane.f32.xlu0 %v1745
        %v1987 = vpop.xlane.xlu0 %1986
        %1988 = vadd.xlane.f32.xlu0 %v1746
        %v1989 = vpop.xlane.xlu0 %1988
        %1990 = vadd.xlane.f32.xlu0 %v1747
        %v1991 = vpop.xlane.xlu0 %1990
        %1992 = vadd.xlane.f32.xlu0 %v1748
        %v1993 = vpop.xlane.xlu0 %1992
        %1994 = vadd.xlane.f32.xlu0 %v1749
        %v1995 = vpop.xlane.xlu0 %1994
        %1996 = vadd.xlane.f32.xlu0 %v1750
        %v1997 = vpop.xlane.xlu0 %1996
        %1998 = vadd.xlane.f32.xlu0 %v1751
        %v1999 = vpop.xlane.xlu0 %1998
        %2000 = vadd.xlane.f32.xlu0 %v1752
        %v2001 = vpop.xlane.xlu0 %2000
        %2002 = vadd.xlane.f32.xlu0 %v1753
        %v2003 = vpop.xlane.xlu0 %2002
        %2004 = vadd.xlane.f32.xlu0 %v1754
        %v2005 = vpop.xlane.xlu0 %2004
        %2006 = vadd.xlane.f32.xlu0 %v1755
        %v2007 = vpop.xlane.xlu0 %2006
        %2008 = vadd.xlane.f32.xlu0 %v1756
        %v2009 = vpop.xlane.xlu0 %2008
        %2010 = vadd.xlane.f32.xlu0 %v1757
        %v2011 = vpop.xlane.xlu0 %2010
        %2012 = vadd.xlane.f32.xlu0 %v1758
        %v2013 = vpop.xlane.xlu0 %2012
        %2014 = vadd.xlane.f32.xlu0 %v1759
        %v2015 = vpop.xlane.xlu0 %2014
        %v2016 = vstv %s286
        %v2017 = vadd.f32 %v1761, %v2016
        %v2018 = vadd.f32 %v1763, %v2016
        %v2019 = vadd.f32 %v1765, %v2016
        %v2020 = vadd.f32 %v1767, %v2016
        %v2021 = vadd.f32 %v1769, %v2016
        %v2022 = vadd.f32 %v1771, %v2016
        %v2023 = vadd.f32 %v1773, %v2016
        %v2024 = vadd.f32 %v1775, %v2016
        %v2025 = vadd.f32 %v1777, %v2016
        %v2026 = vadd.f32 %v1779, %v2016
        %v2027 = vadd.f32 %v1781, %v2016
        %v2028 = vadd.f32 %v1783, %v2016
        %v2029 = vadd.f32 %v1785, %v2016
        %v2030 = vadd.f32 %v1787, %v2016
        %v2031 = vadd.f32 %v1789, %v2016
        %v2032 = vadd.f32 %v1791, %v2016
        %v2033 = vadd.f32 %v1793, %v2016
        %v2034 = vadd.f32 %v1795, %v2016
        %v2035 = vadd.f32 %v1797, %v2016
        %v2036 = vadd.f32 %v1799, %v2016
        %v2037 = vadd.f32 %v1801, %v2016
        %v2038 = vadd.f32 %v1803, %v2016
        %v2039 = vadd.f32 %v1805, %v2016
        %v2040 = vadd.f32 %v1807, %v2016
        %v2041 = vadd.f32 %v1809, %v2016
        %v2042 = vadd.f32 %v1811, %v2016
        %v2043 = vadd.f32 %v1813, %v2016
        %v2044 = vadd.f32 %v1815, %v2016
        %v2045 = vadd.f32 %v1817, %v2016
        %v2046 = vadd.f32 %v1819, %v2016
        %v2047 = vadd.f32 %v1821, %v2016
        %v2048 = vadd.f32 %v1823, %v2016
        %v2049 = vadd.f32 %v1825, %v2016
        %v2050 = vadd.f32 %v1827, %v2016
        %v2051 = vadd.f32 %v1829, %v2016
        %v2052 = vadd.f32 %v1831, %v2016
        %v2053 = vadd.f32 %v1833, %v2016
        %v2054 = vadd.f32 %v1835, %v2016
        %v2055 = vadd.f32 %v1837, %v2016
        %v2056 = vadd.f32 %v1839, %v2016
        %v2057 = vadd.f32 %v1841, %v2016
        %v2058 = vadd.f32 %v1843, %v2016
        %v2059 = vadd.f32 %v1845, %v2016
        %v2060 = vadd.f32 %v1847, %v2016
        %v2061 = vadd.f32 %v1849, %v2016
        %v2062 = vadd.f32 %v1851, %v2016
        %v2063 = vadd.f32 %v1853, %v2016
        %v2064 = vadd.f32 %v1855, %v2016
        %v2065 = vadd.f32 %v1857, %v2016
        %v2066 = vadd.f32 %v1859, %v2016
        %v2067 = vadd.f32 %v1861, %v2016
        %v2068 = vadd.f32 %v1863, %v2016
        %v2069 = vadd.f32 %v1865, %v2016
        %v2070 = vadd.f32 %v1867, %v2016
        %v2071 = vadd.f32 %v1869, %v2016
        %v2072 = vadd.f32 %v1871, %v2016
        %v2073 = vadd.f32 %v1873, %v2016
        %v2074 = vadd.f32 %v1875, %v2016
        %v2075 = vadd.f32 %v1877, %v2016
        %v2076 = vadd.f32 %v1879, %v2016
        %v2077 = vadd.f32 %v1881, %v2016
        %v2078 = vadd.f32 %v1883, %v2016
        %v2079 = vadd.f32 %v1885, %v2016
        %v2080 = vadd.f32 %v1887, %v2016
        %v2081 = vadd.f32 %v1889, %v2016
        %v2082 = vadd.f32 %v1891, %v2016
        %v2083 = vadd.f32 %v1893, %v2016
        %v2084 = vadd.f32 %v1895, %v2016
        %v2085 = vadd.f32 %v1897, %v2016
        %v2086 = vadd.f32 %v1899, %v2016
        %v2087 = vadd.f32 %v1901, %v2016
        %v2088 = vadd.f32 %v1903, %v2016
        %v2089 = vadd.f32 %v1905, %v2016
        %v2090 = vadd.f32 %v1907, %v2016
        %v2091 = vadd.f32 %v1909, %v2016
        %v2092 = vadd.f32 %v1911, %v2016
        %v2093 = vadd.f32 %v1913, %v2016
        %v2094 = vadd.f32 %v1915, %v2016
        %v2095 = vadd.f32 %v1917, %v2016
        %v2096 = vadd.f32 %v1919, %v2016
        %v2097 = vadd.f32 %v1921, %v2016
        %v2098 = vadd.f32 %v1923, %v2016
        %v2099 = vadd.f32 %v1925, %v2016
        %v2100 = vadd.f32 %v1927, %v2016
        %v2101 = vadd.f32 %v1929, %v2016
        %v2102 = vadd.f32 %v1931, %v2016
        %v2103 = vadd.f32 %v1933, %v2016
        %v2104 = vadd.f32 %v1935, %v2016
        %v2105 = vadd.f32 %v1937, %v2016
        %v2106 = vadd.f32 %v1939, %v2016
        %v2107 = vadd.f32 %v1941, %v2016
        %v2108 = vadd.f32 %v1943, %v2016
        %v2109 = vadd.f32 %v1945, %v2016
        %v2110 = vadd.f32 %v1947, %v2016
        %v2111 = vadd.f32 %v1949, %v2016
        %v2112 = vadd.f32 %v1951, %v2016
        %v2113 = vadd.f32 %v1953, %v2016
        %v2114 = vadd.f32 %v1955, %v2016
        %v2115 = vadd.f32 %v1957, %v2016
        %v2116 = vadd.f32 %v1959, %v2016
        %v2117 = vadd.f32 %v1961, %v2016
        %v2118 = vadd.f32 %v1963, %v2016
        %v2119 = vadd.f32 %v1965, %v2016
        %v2120 = vadd.f32 %v1967, %v2016
        %v2121 = vadd.f32 %v1969, %v2016
        %v2122 = vadd.f32 %v1971, %v2016
        %v2123 = vadd.f32 %v1973, %v2016
        %v2124 = vadd.f32 %v1975, %v2016
        %v2125 = vadd.f32 %v1977, %v2016
        %v2126 = vadd.f32 %v1979, %v2016
        %v2127 = vadd.f32 %v1981, %v2016
        %v2128 = vadd.f32 %v1983, %v2016
        %v2129 = vadd.f32 %v1985, %v2016
        %v2130 = vadd.f32 %v1987, %v2016
        %v2131 = vadd.f32 %v1989, %v2016
        %v2132 = vadd.f32 %v1991, %v2016
        %v2133 = vadd.f32 %v1993, %v2016
        %v2134 = vadd.f32 %v1995, %v2016
        %v2135 = vadd.f32 %v1997, %v2016
        %v2136 = vadd.f32 %v1999, %v2016
        %v2137 = vadd.f32 %v2001, %v2016
        %v2138 = vadd.f32 %v2003, %v2016
        %v2139 = vadd.f32 %v2005, %v2016
        %v2140 = vadd.f32 %v2007, %v2016
        %v2141 = vadd.f32 %v2009, %v2016
        %v2142 = vadd.f32 %v2011, %v2016
        %v2143 = vadd.f32 %v2013, %v2016
        %v2144 = vadd.f32 %v2015, %v2016
        %v2273 = vlaneseq
        %v2274 = vand.u32 %v2273, 127
        %v2275 = vlaneseq
        %v2276 = vshrl.u32 %v2275, 7
        %v2277 = vsub.s32 %v2274, %v2276
        %v2278 = vrot.slane %v2017, %v2277
        %v2279 = vadd.s32 %v2274, 4294967288
        %v2280 = vlaneseq
        %v2281 = vshrl.u32 %v2280, 7
        %v2282 = vsub.s32 %v2279, %v2281
        %v2283 = vrot.slane %v2018, %v2282
        %vm2284 = vcmask 130112
        %v2285 = vsel %vm2284, %v2283, %v2278
        %v2286 = vadd.s32 %v2274, 4294967280
        %v2287 = vlaneseq
        %v2288 = vshrl.u32 %v2287, 7
        %v2289 = vsub.s32 %v2286, %v2288
        %v2290 = vrot.slane %v2019, %v2289
        %vm2291 = vcmask 195712
        %v2292 = vsel %vm2291, %v2290, %v2285
        %v2293 = vadd.s32 %v2274, 4294967272
        %v2294 = vlaneseq
        %v2295 = vshrl.u32 %v2294, 7
        %v2296 = vsub.s32 %v2293, %v2295
        %v2297 = vrot.slane %v2020, %v2296
        %vm2298 = vcmask 261312
        %v2299 = vsel %vm2298, %v2297, %v2292
        %v2300 = vadd.s32 %v2274, 4294967264
        %v2301 = vlaneseq
        %v2302 = vshrl.u32 %v2301, 7
        %v2303 = vsub.s32 %v2300, %v2302
        %v2304 = vrot.slane %v2021, %v2303
        %vm2305 = vcmask 326912
        %v2306 = vsel %vm2305, %v2304, %v2299
        %v2307 = vadd.s32 %v2274, 4294967256
        %v2308 = vlaneseq
        %v2309 = vshrl.u32 %v2308, 7
        %v2310 = vsub.s32 %v2307, %v2309
        %v2311 = vrot.slane %v2022, %v2310
        %vm2312 = vcmask 392512
        %v2313 = vsel %vm2312, %v2311, %v2306
        %v2314 = vadd.s32 %v2274, 4294967248
        %v2315 = vlaneseq
        %v2316 = vshrl.u32 %v2315, 7
        %v2317 = vsub.s32 %v2314, %v2316
        %v2318 = vrot.slane %v2023, %v2317
        %vm2319 = vcmask 458112
        %v2320 = vsel %vm2319, %v2318, %v2313
        %v2321 = vadd.s32 %v2274, 4294967240
        %v2322 = vlaneseq
        %v2323 = vshrl.u32 %v2322, 7
        %v2324 = vsub.s32 %v2321, %v2323
        %v2325 = vrot.slane %v2024, %v2324
        %vm2326 = vcmask 523712
        %v2327 = vsel %vm2326, %v2325, %v2320
        %v2328 = vadd.s32 %v2274, 4294967232
        %v2329 = vlaneseq
        %v2330 = vshrl.u32 %v2329, 7
        %v2331 = vsub.s32 %v2328, %v2330
        %v2332 = vrot.slane %v2025, %v2331
        %vm2333 = vcmask 589312
        %v2334 = vsel %vm2333, %v2332, %v2327
        %v2335 = vadd.s32 %v2274, 4294967224
        %v2336 = vlaneseq
        %v2337 = vshrl.u32 %v2336, 7
        %v2338 = vsub.s32 %v2335, %v2337
        %v2339 = vrot.slane %v2026, %v2338
        %vm2340 = vcmask 654912
        %v2341 = vsel %vm2340, %v2339, %v2334
        %v2342 = vadd.s32 %v2274, 4294967216
        %v2343 = vlaneseq
        %v2344 = vshrl.u32 %v2343, 7
        %v2345 = vsub.s32 %v2342, %v2344
        %v2346 = vrot.slane %v2027, %v2345
        %vm2347 = vcmask 720512
        %v2348 = vsel %vm2347, %v2346, %v2341
        %v2349 = vadd.s32 %v2274, 4294967208
        %v2350 = vlaneseq
        %v2351 = vshrl.u32 %v2350, 7
        %v2352 = vsub.s32 %v2349, %v2351
        %v2353 = vrot.slane %v2028, %v2352
        %vm2354 = vcmask 786112
        %v2355 = vsel %vm2354, %v2353, %v2348
        %v2356 = vadd.s32 %v2274, 4294967200
        %v2357 = vlaneseq
        %v2358 = vshrl.u32 %v2357, 7
        %v2359 = vsub.s32 %v2356, %v2358
        %v2360 = vrot.slane %v2029, %v2359
        %vm2361 = vcmask 851712
        %v2362 = vsel %vm2361, %v2360, %v2355
        %v2363 = vadd.s32 %v2274, 4294967192
        %v2364 = vlaneseq
        %v2365 = vshrl.u32 %v2364, 7
        %v2366 = vsub.s32 %v2363, %v2365
        %v2367 = vrot.slane %v2030, %v2366
        %vm2368 = vcmask 917312
        %v2369 = vsel %vm2368, %v2367, %v2362
        %v2370 = vadd.s32 %v2274, 4294967184
        %v2371 = vlaneseq
        %v2372 = vshrl.u32 %v2371, 7
        %v2373 = vsub.s32 %v2370, %v2372
        %v2374 = vrot.slane %v2031, %v2373
        %vm2375 = vcmask 982912
        %v2376 = vsel %vm2375, %v2374, %v2369
        %v2377 = vadd.s32 %v2274, 4294967176
        %v2378 = vlaneseq
        %v2379 = vshrl.u32 %v2378, 7
        %v2380 = vsub.s32 %v2377, %v2379
        %v2381 = vrot.slane %v2032, %v2380
        %vm2382 = vcmask 1048512
        %v2383 = vsel %vm2382, %v2381, %v2376
        %v2384 = vlaneseq
        %v2385 = vshrl.u32 %v2384, 7
        %v2386 = vsub.s32 %v2274, %v2385
        %v2387 = vrot.slane %v2033, %v2386
        %v2388 = vlaneseq
        %v2389 = vshrl.u32 %v2388, 7
        %v2390 = vsub.s32 %v2279, %v2389
        %v2391 = vrot.slane %v2034, %v2390
        %v2392 = vsel %vm2284, %v2391, %v2387
        %v2393 = vlaneseq
        %v2394 = vshrl.u32 %v2393, 7
        %v2395 = vsub.s32 %v2286, %v2394
        %v2396 = vrot.slane %v2035, %v2395
        %v2397 = vsel %vm2291, %v2396, %v2392
        %v2398 = vlaneseq
        %v2399 = vshrl.u32 %v2398, 7
        %v2400 = vsub.s32 %v2293, %v2399
        %v2401 = vrot.slane %v2036, %v2400
        %v2402 = vsel %vm2298, %v2401, %v2397
        %v2403 = vlaneseq
        %v2404 = vshrl.u32 %v2403, 7
        %v2405 = vsub.s32 %v2300, %v2404
        %v2406 = vrot.slane %v2037, %v2405
        %v2407 = vsel %vm2305, %v2406, %v2402
        %v2408 = vlaneseq
        %v2409 = vshrl.u32 %v2408, 7
        %v2410 = vsub.s32 %v2307, %v2409
        %v2411 = vrot.slane %v2038, %v2410
        %v2412 = vsel %vm2312, %v2411, %v2407
        %v2413 = vlaneseq
        %v2414 = vshrl.u32 %v2413, 7
        %v2415 = vsub.s32 %v2314, %v2414
        %v2416 = vrot.slane %v2039, %v2415
        %v2417 = vsel %vm2319, %v2416, %v2412
        %v2418 = vlaneseq
        %v2419 = vshrl.u32 %v2418, 7
        %v2420 = vsub.s32 %v2321, %v2419
        %v2421 = vrot.slane %v2040, %v2420
        %v2422 = vsel %vm2326, %v2421, %v2417
        %v2423 = vlaneseq
        %v2424 = vshrl.u32 %v2423, 7
        %v2425 = vsub.s32 %v2328, %v2424
        %v2426 = vrot.slane %v2041, %v2425
        %v2427 = vsel %vm2333, %v2426, %v2422
        %v2428 = vlaneseq
        %v2429 = vshrl.u32 %v2428, 7
        %v2430 = vsub.s32 %v2335, %v2429
        %v2431 = vrot.slane %v2042, %v2430
        %v2432 = vsel %vm2340, %v2431, %v2427
        %v2433 = vlaneseq
        %v2434 = vshrl.u32 %v2433, 7
        %v2435 = vsub.s32 %v2342, %v2434
        %v2436 = vrot.slane %v2043, %v2435
        %v2437 = vsel %vm2347, %v2436, %v2432
        %v2438 = vlaneseq
        %v2439 = vshrl.u32 %v2438, 7
        %v2440 = vsub.s32 %v2349, %v2439
        %v2441 = vrot.slane %v2044, %v2440
        %v2442 = vsel %vm2354, %v2441, %v2437
        %v2443 = vlaneseq
        %v2444 = vshrl.u32 %v2443, 7
        %v2445 = vsub.s32 %v2356, %v2444
        %v2446 = vrot.slane %v2045, %v2445
        %v2447 = vsel %vm2361, %v2446, %v2442
        %v2448 = vlaneseq
        %v2449 = vshrl.u32 %v2448, 7
        %v2450 = vsub.s32 %v2363, %v2449
        %v2451 = vrot.slane %v2046, %v2450
        %v2452 = vsel %vm2368, %v2451, %v2447
        %v2453 = vlaneseq
        %v2454 = vshrl.u32 %v2453, 7
        %v2455 = vsub.s32 %v2370, %v2454
        %v2456 = vrot.slane %v2047, %v2455
        %v2457 = vsel %vm2375, %v2456, %v2452
        %v2458 = vlaneseq
        %v2459 = vshrl.u32 %v2458, 7
        %v2460 = vsub.s32 %v2377, %v2459
        %v2461 = vrot.slane %v2048, %v2460
        %v2462 = vsel %vm2382, %v2461, %v2457
        %v2463 = vlaneseq
        %v2464 = vshrl.u32 %v2463, 7
        %v2465 = vsub.s32 %v2274, %v2464
        %v2466 = vrot.slane %v2049, %v2465
        %v2467 = vlaneseq
        %v2468 = vshrl.u32 %v2467, 7
        %v2469 = vsub.s32 %v2279, %v2468
        %v2470 = vrot.slane %v2050, %v2469
        %v2471 = vsel %vm2284, %v2470, %v2466
        %v2472 = vlaneseq
        %v2473 = vshrl.u32 %v2472, 7
        %v2474 = vsub.s32 %v2286, %v2473
        %v2475 = vrot.slane %v2051, %v2474
        %v2476 = vsel %vm2291, %v2475, %v2471
        %v2477 = vlaneseq
        %v2478 = vshrl.u32 %v2477, 7
        %v2479 = vsub.s32 %v2293, %v2478
        %v2480 = vrot.slane %v2052, %v2479
        %v2481 = vsel %vm2298, %v2480, %v2476
        %v2482 = vlaneseq
        %v2483 = vshrl.u32 %v2482, 7
        %v2484 = vsub.s32 %v2300, %v2483
        %v2485 = vrot.slane %v2053, %v2484
        %v2486 = vsel %vm2305, %v2485, %v2481
        %v2487 = vlaneseq
        %v2488 = vshrl.u32 %v2487, 7
        %v2489 = vsub.s32 %v2307, %v2488
        %v2490 = vrot.slane %v2054, %v2489
        %v2491 = vsel %vm2312, %v2490, %v2486
        %v2492 = vlaneseq
        %v2493 = vshrl.u32 %v2492, 7
        %v2494 = vsub.s32 %v2314, %v2493
        %v2495 = vrot.slane %v2055, %v2494
        %v2496 = vsel %vm2319, %v2495, %v2491
        %v2497 = vlaneseq
        %v2498 = vshrl.u32 %v2497, 7
        %v2499 = vsub.s32 %v2321, %v2498
        %v2500 = vrot.slane %v2056, %v2499
        %v2501 = vsel %vm2326, %v2500, %v2496
        %v2502 = vlaneseq
        %v2503 = vshrl.u32 %v2502, 7
        %v2504 = vsub.s32 %v2328, %v2503
        %v2505 = vrot.slane %v2057, %v2504
        %v2506 = vsel %vm2333, %v2505, %v2501
        %v2507 = vlaneseq
        %v2508 = vshrl.u32 %v2507, 7
        %v2509 = vsub.s32 %v2335, %v2508
        %v2510 = vrot.slane %v2058, %v2509
        %v2511 = vsel %vm2340, %v2510, %v2506
        %v2512 = vlaneseq
        %v2513 = vshrl.u32 %v2512, 7
        %v2514 = vsub.s32 %v2342, %v2513
        %v2515 = vrot.slane %v2059, %v2514
        %v2516 = vsel %vm2347, %v2515, %v2511
        %v2517 = vlaneseq
        %v2518 = vshrl.u32 %v2517, 7
        %v2519 = vsub.s32 %v2349, %v2518
        %v2520 = vrot.slane %v2060, %v2519
        %v2521 = vsel %vm2354, %v2520, %v2516
        %v2522 = vlaneseq
        %v2523 = vshrl.u32 %v2522, 7
        %v2524 = vsub.s32 %v2356, %v2523
        %v2525 = vrot.slane %v2061, %v2524
        %v2526 = vsel %vm2361, %v2525, %v2521
        %v2527 = vlaneseq
        %v2528 = vshrl.u32 %v2527, 7
        %v2529 = vsub.s32 %v2363, %v2528
        %v2530 = vrot.slane %v2062, %v2529
        %v2531 = vsel %vm2368, %v2530, %v2526
        %v2532 = vlaneseq
        %v2533 = vshrl.u32 %v2532, 7
        %v2534 = vsub.s32 %v2370, %v2533
        %v2535 = vrot.slane %v2063, %v2534
        %v2536 = vsel %vm2375, %v2535, %v2531
        %v2537 = vlaneseq
        %v2538 = vshrl.u32 %v2537, 7
        %v2539 = vsub.s32 %v2377, %v2538
        %v2540 = vrot.slane %v2064, %v2539
        %v2541 = vsel %vm2382, %v2540, %v2536
        %v2542 = vlaneseq
        %v2543 = vshrl.u32 %v2542, 7
        %v2544 = vsub.s32 %v2274, %v2543
        %v2545 = vrot.slane %v2065, %v2544
        %v2546 = vlaneseq
        %v2547 = vshrl.u32 %v2546, 7
        %v2548 = vsub.s32 %v2279, %v2547
        %v2549 = vrot.slane %v2066, %v2548
        %v2550 = vsel %vm2284, %v2549, %v2545
        %v2551 = vlaneseq
        %v2552 = vshrl.u32 %v2551, 7
        %v2553 = vsub.s32 %v2286, %v2552
        %v2554 = vrot.slane %v2067, %v2553
        %v2555 = vsel %vm2291, %v2554, %v2550
        %v2556 = vlaneseq
        %v2557 = vshrl.u32 %v2556, 7
        %v2558 = vsub.s32 %v2293, %v2557
        %v2559 = vrot.slane %v2068, %v2558
        %v2560 = vsel %vm2298, %v2559, %v2555
        %v2561 = vlaneseq
        %v2562 = vshrl.u32 %v2561, 7
        %v2563 = vsub.s32 %v2300, %v2562
        %v2564 = vrot.slane %v2069, %v2563
        %v2565 = vsel %vm2305, %v2564, %v2560
        %v2566 = vlaneseq
        %v2567 = vshrl.u32 %v2566, 7
        %v2568 = vsub.s32 %v2307, %v2567
        %v2569 = vrot.slane %v2070, %v2568
        %v2570 = vsel %vm2312, %v2569, %v2565
        %v2571 = vlaneseq
        %v2572 = vshrl.u32 %v2571, 7
        %v2573 = vsub.s32 %v2314, %v2572
        %v2574 = vrot.slane %v2071, %v2573
        %v2575 = vsel %vm2319, %v2574, %v2570
        %v2576 = vlaneseq
        %v2577 = vshrl.u32 %v2576, 7
        %v2578 = vsub.s32 %v2321, %v2577
        %v2579 = vrot.slane %v2072, %v2578
        %v2580 = vsel %vm2326, %v2579, %v2575
        %v2581 = vlaneseq
        %v2582 = vshrl.u32 %v2581, 7
        %v2583 = vsub.s32 %v2328, %v2582
        %v2584 = vrot.slane %v2073, %v2583
        %v2585 = vsel %vm2333, %v2584, %v2580
        %v2586 = vlaneseq
        %v2587 = vshrl.u32 %v2586, 7
        %v2588 = vsub.s32 %v2335, %v2587
        %v2589 = vrot.slane %v2074, %v2588
        %v2590 = vsel %vm2340, %v2589, %v2585
        %v2591 = vlaneseq
        %v2592 = vshrl.u32 %v2591, 7
        %v2593 = vsub.s32 %v2342, %v2592
        %v2594 = vrot.slane %v2075, %v2593
        %v2595 = vsel %vm2347, %v2594, %v2590
        %v2596 = vlaneseq
        %v2597 = vshrl.u32 %v2596, 7
        %v2598 = vsub.s32 %v2349, %v2597
        %v2599 = vrot.slane %v2076, %v2598
        %v2600 = vsel %vm2354, %v2599, %v2595
        %v2601 = vlaneseq
        %v2602 = vshrl.u32 %v2601, 7
        %v2603 = vsub.s32 %v2356, %v2602
        %v2604 = vrot.slane %v2077, %v2603
        %v2605 = vsel %vm2361, %v2604, %v2600
        %v2606 = vlaneseq
        %v2607 = vshrl.u32 %v2606, 7
        %v2608 = vsub.s32 %v2363, %v2607
        %v2609 = vrot.slane %v2078, %v2608
        %v2610 = vsel %vm2368, %v2609, %v2605
        %v2611 = vlaneseq
        %v2612 = vshrl.u32 %v2611, 7
        %v2613 = vsub.s32 %v2370, %v2612
        %v2614 = vrot.slane %v2079, %v2613
        %v2615 = vsel %vm2375, %v2614, %v2610
        %v2616 = vlaneseq
        %v2617 = vshrl.u32 %v2616, 7
        %v2618 = vsub.s32 %v2377, %v2617
        %v2619 = vrot.slane %v2080, %v2618
        %v2620 = vsel %vm2382, %v2619, %v2615
        %v2621 = vlaneseq
        %v2622 = vshrl.u32 %v2621, 7
        %v2623 = vsub.s32 %v2274, %v2622
        %v2624 = vrot.slane %v2081, %v2623
        %v2625 = vlaneseq
        %v2626 = vshrl.u32 %v2625, 7
        %v2627 = vsub.s32 %v2279, %v2626
        %v2628 = vrot.slane %v2082, %v2627
        %v2629 = vsel %vm2284, %v2628, %v2624
        %v2630 = vlaneseq
        %v2631 = vshrl.u32 %v2630, 7
        %v2632 = vsub.s32 %v2286, %v2631
        %v2633 = vrot.slane %v2083, %v2632
        %v2634 = vsel %vm2291, %v2633, %v2629
        %v2635 = vlaneseq
        %v2636 = vshrl.u32 %v2635, 7
        %v2637 = vsub.s32 %v2293, %v2636
        %v2638 = vrot.slane %v2084, %v2637
        %v2639 = vsel %vm2298, %v2638, %v2634
        %v2640 = vlaneseq
        %v2641 = vshrl.u32 %v2640, 7
        %v2642 = vsub.s32 %v2300, %v2641
        %v2643 = vrot.slane %v2085, %v2642
        %v2644 = vsel %vm2305, %v2643, %v2639
        %v2645 = vlaneseq
        %v2646 = vshrl.u32 %v2645, 7
        %v2647 = vsub.s32 %v2307, %v2646
        %v2648 = vrot.slane %v2086, %v2647
        %v2649 = vsel %vm2312, %v2648, %v2644
        %v2650 = vlaneseq
        %v2651 = vshrl.u32 %v2650, 7
        %v2652 = vsub.s32 %v2314, %v2651
        %v2653 = vrot.slane %v2087, %v2652
        %v2654 = vsel %vm2319, %v2653, %v2649
        %v2655 = vlaneseq
        %v2656 = vshrl.u32 %v2655, 7
        %v2657 = vsub.s32 %v2321, %v2656
        %v2658 = vrot.slane %v2088, %v2657
        %v2659 = vsel %vm2326, %v2658, %v2654
        %v2660 = vlaneseq
        %v2661 = vshrl.u32 %v2660, 7
        %v2662 = vsub.s32 %v2328, %v2661
        %v2663 = vrot.slane %v2089, %v2662
        %v2664 = vsel %vm2333, %v2663, %v2659
        %v2665 = vlaneseq
        %v2666 = vshrl.u32 %v2665, 7
        %v2667 = vsub.s32 %v2335, %v2666
        %v2668 = vrot.slane %v2090, %v2667
        %v2669 = vsel %vm2340, %v2668, %v2664
        %v2670 = vlaneseq
        %v2671 = vshrl.u32 %v2670, 7
        %v2672 = vsub.s32 %v2342, %v2671
        %v2673 = vrot.slane %v2091, %v2672
        %v2674 = vsel %vm2347, %v2673, %v2669
        %v2675 = vlaneseq
        %v2676 = vshrl.u32 %v2675, 7
        %v2677 = vsub.s32 %v2349, %v2676
        %v2678 = vrot.slane %v2092, %v2677
        %v2679 = vsel %vm2354, %v2678, %v2674
        %v2680 = vlaneseq
        %v2681 = vshrl.u32 %v2680, 7
        %v2682 = vsub.s32 %v2356, %v2681
        %v2683 = vrot.slane %v2093, %v2682
        %v2684 = vsel %vm2361, %v2683, %v2679
        %v2685 = vlaneseq
        %v2686 = vshrl.u32 %v2685, 7
        %v2687 = vsub.s32 %v2363, %v2686
        %v2688 = vrot.slane %v2094, %v2687
        %v2689 = vsel %vm2368, %v2688, %v2684
        %v2690 = vlaneseq
        %v2691 = vshrl.u32 %v2690, 7
        %v2692 = vsub.s32 %v2370, %v2691
        %v2693 = vrot.slane %v2095, %v2692
        %v2694 = vsel %vm2375, %v2693, %v2689
        %v2695 = vlaneseq
        %v2696 = vshrl.u32 %v2695, 7
        %v2697 = vsub.s32 %v2377, %v2696
        %v2698 = vrot.slane %v2096, %v2697
        %v2699 = vsel %vm2382, %v2698, %v2694
        %v2700 = vlaneseq
        %v2701 = vshrl.u32 %v2700, 7
        %v2702 = vsub.s32 %v2274, %v2701
        %v2703 = vrot.slane %v2097, %v2702
        %v2704 = vlaneseq
        %v2705 = vshrl.u32 %v2704, 7
        %v2706 = vsub.s32 %v2279, %v2705
        %v2707 = vrot.slane %v2098, %v2706
        %v2708 = vsel %vm2284, %v2707, %v2703
        %v2709 = vlaneseq
        %v2710 = vshrl.u32 %v2709, 7
        %v2711 = vsub.s32 %v2286, %v2710
        %v2712 = vrot.slane %v2099, %v2711
        %v2713 = vsel %vm2291, %v2712, %v2708
        %v2714 = vlaneseq
        %v2715 = vshrl.u32 %v2714, 7
        %v2716 = vsub.s32 %v2293, %v2715
        %v2717 = vrot.slane %v2100, %v2716
        %v2718 = vsel %vm2298, %v2717, %v2713
        %v2719 = vlaneseq
        %v2720 = vshrl.u32 %v2719, 7
        %v2721 = vsub.s32 %v2300, %v2720
        %v2722 = vrot.slane %v2101, %v2721
        %v2723 = vsel %vm2305, %v2722, %v2718
        %v2724 = vlaneseq
        %v2725 = vshrl.u32 %v2724, 7
        %v2726 = vsub.s32 %v2307, %v2725
        %v2727 = vrot.slane %v2102, %v2726
        %v2728 = vsel %vm2312, %v2727, %v2723
        %v2729 = vlaneseq
        %v2730 = vshrl.u32 %v2729, 7
        %v2731 = vsub.s32 %v2314, %v2730
        %v2732 = vrot.slane %v2103, %v2731
        %v2733 = vsel %vm2319, %v2732, %v2728
        %v2734 = vlaneseq
        %v2735 = vshrl.u32 %v2734, 7
        %v2736 = vsub.s32 %v2321, %v2735
        %v2737 = vrot.slane %v2104, %v2736
        %v2738 = vsel %vm2326, %v2737, %v2733
        %v2739 = vlaneseq
        %v2740 = vshrl.u32 %v2739, 7
        %v2741 = vsub.s32 %v2328, %v2740
        %v2742 = vrot.slane %v2105, %v2741
        %v2743 = vsel %vm2333, %v2742, %v2738
        %v2744 = vlaneseq
        %v2745 = vshrl.u32 %v2744, 7
        %v2746 = vsub.s32 %v2335, %v2745
        %v2747 = vrot.slane %v2106, %v2746
        %v2748 = vsel %vm2340, %v2747, %v2743
        %v2749 = vlaneseq
        %v2750 = vshrl.u32 %v2749, 7
        %v2751 = vsub.s32 %v2342, %v2750
        %v2752 = vrot.slane %v2107, %v2751
        %v2753 = vsel %vm2347, %v2752, %v2748
        %v2754 = vlaneseq
        %v2755 = vshrl.u32 %v2754, 7
        %v2756 = vsub.s32 %v2349, %v2755
        %v2757 = vrot.slane %v2108, %v2756
        %v2758 = vsel %vm2354, %v2757, %v2753
        %v2759 = vlaneseq
        %v2760 = vshrl.u32 %v2759, 7
        %v2761 = vsub.s32 %v2356, %v2760
        %v2762 = vrot.slane %v2109, %v2761
        %v2763 = vsel %vm2361, %v2762, %v2758
        %v2764 = vlaneseq
        %v2765 = vshrl.u32 %v2764, 7
        %v2766 = vsub.s32 %v2363, %v2765
        %v2767 = vrot.slane %v2110, %v2766
        %v2768 = vsel %vm2368, %v2767, %v2763
        %v2769 = vlaneseq
        %v2770 = vshrl.u32 %v2769, 7
        %v2771 = vsub.s32 %v2370, %v2770
        %v2772 = vrot.slane %v2111, %v2771
        %v2773 = vsel %vm2375, %v2772, %v2768
        %v2774 = vlaneseq
        %v2775 = vshrl.u32 %v2774, 7
        %v2776 = vsub.s32 %v2377, %v2775
        %v2777 = vrot.slane %v2112, %v2776
        %v2778 = vsel %vm2382, %v2777, %v2773
        %v2779 = vlaneseq
        %v2780 = vshrl.u32 %v2779, 7
        %v2781 = vsub.s32 %v2274, %v2780
        %v2782 = vrot.slane %v2113, %v2781
        %v2783 = vlaneseq
        %v2784 = vshrl.u32 %v2783, 7
        %v2785 = vsub.s32 %v2279, %v2784
        %v2786 = vrot.slane %v2114, %v2785
        %v2787 = vsel %vm2284, %v2786, %v2782
        %v2788 = vlaneseq
        %v2789 = vshrl.u32 %v2788, 7
        %v2790 = vsub.s32 %v2286, %v2789
        %v2791 = vrot.slane %v2115, %v2790
        %v2792 = vsel %vm2291, %v2791, %v2787
        %v2793 = vlaneseq
        %v2794 = vshrl.u32 %v2793, 7
        %v2795 = vsub.s32 %v2293, %v2794
        %v2796 = vrot.slane %v2116, %v2795
        %v2797 = vsel %vm2298, %v2796, %v2792
        %v2798 = vlaneseq
        %v2799 = vshrl.u32 %v2798, 7
        %v2800 = vsub.s32 %v2300, %v2799
        %v2801 = vrot.slane %v2117, %v2800
        %v2802 = vsel %vm2305, %v2801, %v2797
        %v2803 = vlaneseq
        %v2804 = vshrl.u32 %v2803, 7
        %v2805 = vsub.s32 %v2307, %v2804
        %v2806 = vrot.slane %v2118, %v2805
        %v2807 = vsel %vm2312, %v2806, %v2802
        %v2808 = vlaneseq
        %v2809 = vshrl.u32 %v2808, 7
        %v2810 = vsub.s32 %v2314, %v2809
        %v2811 = vrot.slane %v2119, %v2810
        %v2812 = vsel %vm2319, %v2811, %v2807
        %v2813 = vlaneseq
        %v2814 = vshrl.u32 %v2813, 7
        %v2815 = vsub.s32 %v2321, %v2814
        %v2816 = vrot.slane %v2120, %v2815
        %v2817 = vsel %vm2326, %v2816, %v2812
        %v2818 = vlaneseq
        %v2819 = vshrl.u32 %v2818, 7
        %v2820 = vsub.s32 %v2328, %v2819
        %v2821 = vrot.slane %v2121, %v2820
        %v2822 = vsel %vm2333, %v2821, %v2817
        %v2823 = vlaneseq
        %v2824 = vshrl.u32 %v2823, 7
        %v2825 = vsub.s32 %v2335, %v2824
        %v2826 = vrot.slane %v2122, %v2825
        %v2827 = vsel %vm2340, %v2826, %v2822
        %v2828 = vlaneseq
        %v2829 = vshrl.u32 %v2828, 7
        %v2830 = vsub.s32 %v2342, %v2829
        %v2831 = vrot.slane %v2123, %v2830
        %v2832 = vsel %vm2347, %v2831, %v2827
        %v2833 = vlaneseq
        %v2834 = vshrl.u32 %v2833, 7
        %v2835 = vsub.s32 %v2349, %v2834
        %v2836 = vrot.slane %v2124, %v2835
        %v2837 = vsel %vm2354, %v2836, %v2832
        %v2838 = vlaneseq
        %v2839 = vshrl.u32 %v2838, 7
        %v2840 = vsub.s32 %v2356, %v2839
        %v2841 = vrot.slane %v2125, %v2840
        %v2842 = vsel %vm2361, %v2841, %v2837
        %v2843 = vlaneseq
        %v2844 = vshrl.u32 %v2843, 7
        %v2845 = vsub.s32 %v2363, %v2844
        %v2846 = vrot.slane %v2126, %v2845
        %v2847 = vsel %vm2368, %v2846, %v2842
        %v2848 = vlaneseq
        %v2849 = vshrl.u32 %v2848, 7
        %v2850 = vsub.s32 %v2370, %v2849
        %v2851 = vrot.slane %v2127, %v2850
        %v2852 = vsel %vm2375, %v2851, %v2847
        %v2853 = vlaneseq
        %v2854 = vshrl.u32 %v2853, 7
        %v2855 = vsub.s32 %v2377, %v2854
        %v2856 = vrot.slane %v2128, %v2855
        %v2857 = vsel %vm2382, %v2856, %v2852
        %v2858 = vlaneseq
        %v2859 = vshrl.u32 %v2858, 7
        %v2860 = vsub.s32 %v2274, %v2859
        %v2861 = vrot.slane %v2129, %v2860
        %v2862 = vlaneseq
        %v2863 = vshrl.u32 %v2862, 7
        %v2864 = vsub.s32 %v2279, %v2863
        %v2865 = vrot.slane %v2130, %v2864
        %v2866 = vsel %vm2284, %v2865, %v2861
        %v2867 = vlaneseq
        %v2868 = vshrl.u32 %v2867, 7
        %v2869 = vsub.s32 %v2286, %v2868
        %v2870 = vrot.slane %v2131, %v2869
        %v2871 = vsel %vm2291, %v2870, %v2866
        %v2872 = vlaneseq
        %v2873 = vshrl.u32 %v2872, 7
        %v2874 = vsub.s32 %v2293, %v2873
        %v2875 = vrot.slane %v2132, %v2874
        %v2876 = vsel %vm2298, %v2875, %v2871
        %v2877 = vlaneseq
        %v2878 = vshrl.u32 %v2877, 7
        %v2879 = vsub.s32 %v2300, %v2878
        %v2880 = vrot.slane %v2133, %v2879
        %v2881 = vsel %vm2305, %v2880, %v2876
        %v2882 = vlaneseq
        %v2883 = vshrl.u32 %v2882, 7
        %v2884 = vsub.s32 %v2307, %v2883
        %v2885 = vrot.slane %v2134, %v2884
        %v2886 = vsel %vm2312, %v2885, %v2881
        %v2887 = vlaneseq
        %v2888 = vshrl.u32 %v2887, 7
        %v2889 = vsub.s32 %v2314, %v2888
        %v2890 = vrot.slane %v2135, %v2889
        %v2891 = vsel %vm2319, %v2890, %v2886
        %v2892 = vlaneseq
        %v2893 = vshrl.u32 %v2892, 7
        %v2894 = vsub.s32 %v2321, %v2893
        %v2895 = vrot.slane %v2136, %v2894
        %v2896 = vsel %vm2326, %v2895, %v2891
        %v2897 = vlaneseq
        %v2898 = vshrl.u32 %v2897, 7
        %v2899 = vsub.s32 %v2328, %v2898
        %v2900 = vrot.slane %v2137, %v2899
        %v2901 = vsel %vm2333, %v2900, %v2896
        %v2902 = vlaneseq
        %v2903 = vshrl.u32 %v2902, 7
        %v2904 = vsub.s32 %v2335, %v2903
        %v2905 = vrot.slane %v2138, %v2904
        %v2906 = vsel %vm2340, %v2905, %v2901
        %v2907 = vlaneseq
        %v2908 = vshrl.u32 %v2907, 7
        %v2909 = vsub.s32 %v2342, %v2908
        %v2910 = vrot.slane %v2139, %v2909
        %v2911 = vsel %vm2347, %v2910, %v2906
        %v2912 = vlaneseq
        %v2913 = vshrl.u32 %v2912, 7
        %v2914 = vsub.s32 %v2349, %v2913
        %v2915 = vrot.slane %v2140, %v2914
        %v2916 = vsel %vm2354, %v2915, %v2911
        %v2917 = vlaneseq
        %v2918 = vshrl.u32 %v2917, 7
        %v2919 = vsub.s32 %v2356, %v2918
        %v2920 = vrot.slane %v2141, %v2919
        %v2921 = vsel %vm2361, %v2920, %v2916
        %v2922 = vlaneseq
        %v2923 = vshrl.u32 %v2922, 7
        %v2924 = vsub.s32 %v2363, %v2923
        %v2925 = vrot.slane %v2142, %v2924
        %v2926 = vsel %vm2368, %v2925, %v2921
        %v2927 = vlaneseq
        %v2928 = vshrl.u32 %v2927, 7
        %v2929 = vsub.s32 %v2370, %v2928
        %v2930 = vrot.slane %v2143, %v2929
        %v2931 = vsel %vm2375, %v2930, %v2926
        %v2932 = vlaneseq
        %v2933 = vshrl.u32 %v2932, 7
        %v2934 = vsub.s32 %v2377, %v2933
        %v2935 = vrot.slane %v2144, %v2934
        %v2936 = vsel %vm2382, %v2935, %v2931
        %vm2937 = vcmask 1041409
        %v2938 = vsel %vm2937, %v2462, %v2383
        %vm2939 = vcmask 1042434
        %v2940 = vsel %vm2939, %v2541, %v2938
        %vm2941 = vcmask 1043459
        %v2942 = vsel %vm2941, %v2620, %v2940
        %vm2943 = vcmask 1044484
        %v2944 = vsel %vm2943, %v2699, %v2942
        %vm2945 = vcmask 1045509
        %v2946 = vsel %vm2945, %v2778, %v2944
        %vm2947 = vcmask 1046534
        %v2948 = vsel %vm2947, %v2857, %v2946
        %vm2949 = vcmask 1047559
        %v2950 = vsel %vm2949, %v2936, %v2948
        %2952 = vst [vmem:[#allocation2] sm:$0xff] %v2950
        %v2953 = vld [vmem:[#allocation2] sm:$0xff]
        %vm2954 = vcmp.lt.s32.totalorder %v2274, 8
        %v2955 = vsel %vm2954, %v2953, -1e+30
        %2956 = vmax.xlane.f32.xlu0 %v2955
        %v2957 = vpop.xlane.xlu0 %2956
        %v2958 = vsub.f32 %v2955, %v2957
        %v2959 = vmul.f32 %v2958, 1.442695
        %v2960 = vpow.pop %v2959
        %2961 = vadd.xlane.f32.xlu0 %v2960
        %v2962 = vpop.xlane.xlu0 %2961
        %v2963 = vrcp.pop %v2962
        %v2964 = vmul.f32 %v2960, %v2963
        %v2966 = vcombine.high %v2964, %v2964
        %v2968 = vunpack.c.l.s4 1966171168
        %v2969 = vunpack.c.0.s8 %v2968
        %v2970 = vlaneseq
        %v2971 = vshrl.u32 %v2970, 7
        %v2972 = vsub.s32 %v2969, %v2971
        %v2973 = vrot.slane %v2964, %v2972
        %v2975 = vunpack.c.l.s4 1966171168
        %v2976 = vunpack.c.0.s8 %v2975
        %v2977 = vlaneseq
        %v2978 = vshrl.u32 %v2977, 7
        %v2979 = vsub.s32 %v2976, %v2978
        %v2980 = vrot.slane %v2966, %v2979
        %v2981 = vcombine.high %v2973, %v2973
        %v2982 = vcombine.high %v2980, %v2980
        %v2984 = vunpack.c.l.s4 1966171168
        %v2985 = vunpack.c.0.s8 %v2984
        %v2986 = vlaneseq
        %v2987 = vshrl.u32 %v2986, 7
        %v2988 = vsub.s32 %v2985, %v2987
        %v2989 = vrot.slane %v2973, %v2988
        %v2991 = vunpack.c.l.s4 1966171168
        %v2992 = vunpack.c.0.s8 %v2991
        %v2993 = vlaneseq
        %v2994 = vshrl.u32 %v2993, 7
        %v2995 = vsub.s32 %v2992, %v2994
        %v2996 = vrot.slane %v2980, %v2995
        %v2998 = vunpack.c.l.s4 1966171168
        %v2999 = vunpack.c.0.s8 %v2998
        %v3000 = vlaneseq
        %v3001 = vshrl.u32 %v3000, 7
        %v3002 = vsub.s32 %v2999, %v3001
        %v3003 = vrot.slane %v2981, %v3002
        %v3005 = vunpack.c.l.s4 1966171168
        %v3006 = vunpack.c.0.s8 %v3005
        %v3007 = vlaneseq
        %v3008 = vshrl.u32 %v3007, 7
        %v3009 = vsub.s32 %v3006, %v3008
        %v3010 = vrot.slane %v2982, %v3009
        %v3011 = vcombine.high %v2989, %v2989
        %v3012 = vcombine.high %v2996, %v2996
        %v3013 = vcombine.high %v3003, %v3003
        %v3014 = vcombine.high %v3010, %v3010
        %v3023 = vld [vmem:[%s274] sm:$0xff]
        %v3024 = vld [vmem:[%s274 + $0x8] sm:$0xff]
        %v3025 = vld [vmem:[%s274 + $0x10] sm:$0xff]
        %v3026 = vld [vmem:[%s274 + $0x18] sm:$0xff]
        %v3027 = vld [vmem:[%s274 + $0x20] sm:$0xff]
        %v3028 = vld [vmem:[%s274 + $0x28] sm:$0xff]
        %v3029 = vld [vmem:[%s274 + $0x30] sm:$0xff]
        %v3030 = vld [vmem:[%s274 + $0x38] sm:$0xff]
        %v3031 = vld [vmem:[%s274 + $0x40] sm:$0xff]
        %v3032 = vld [vmem:[%s274 + $0x48] sm:$0xff]
        %v3033 = vld [vmem:[%s274 + $0x50] sm:$0xff]
        %v3034 = vld [vmem:[%s274 + $0x58] sm:$0xff]
        %v3035 = vld [vmem:[%s274 + $0x60] sm:$0xff]
        %v3036 = vld [vmem:[%s274 + $0x68] sm:$0xff]
        %v3037 = vld [vmem:[%s274 + $0x70] sm:$0xff]
        %v3038 = vld [vmem:[%s274 + $0x78] sm:$0xff]
        %v3039 = vld [vmem:[%s274 + $0x80] sm:$0xff]
        %v3040 = vld [vmem:[%s274 + $0x88] sm:$0xff]
        %v3041 = vld [vmem:[%s274 + $0x90] sm:$0xff]
        %v3042 = vld [vmem:[%s274 + $0x98] sm:$0xff]
        %v3043 = vld [vmem:[%s274 + $0xa0] sm:$0xff]
        %v3044 = vld [vmem:[%s274 + $0xa8] sm:$0xff]
        %v3045 = vld [vmem:[%s274 + $0xb0] sm:$0xff]
        %v3046 = vld [vmem:[%s274 + $0xb8] sm:$0xff]
        %v3047 = vld [vmem:[%s274 + $0xc0] sm:$0xff]
        %v3048 = vld [vmem:[%s274 + $0xc8] sm:$0xff]
        %v3049 = vld [vmem:[%s274 + $0xd0] sm:$0xff]
        %v3050 = vld [vmem:[%s274 + $0xd8] sm:$0xff]
        %v3051 = vld [vmem:[%s274 + $0xe0] sm:$0xff]
        %v3052 = vld [vmem:[%s274 + $0xe8] sm:$0xff]
        %v3053 = vld [vmem:[%s274 + $0xf0] sm:$0xff]
        %v3054 = vld [vmem:[%s274 + $0xf8] sm:$0xff]
        %v3055 = vld [vmem:[%s274 + $0x100] sm:$0xff]
        %v3056 = vld [vmem:[%s274 + $0x108] sm:$0xff]
        %v3057 = vld [vmem:[%s274 + $0x110] sm:$0xff]
        %v3058 = vld [vmem:[%s274 + $0x118] sm:$0xff]
        %v3059 = vld [vmem:[%s274 + $0x120] sm:$0xff]
        %v3060 = vld [vmem:[%s274 + $0x128] sm:$0xff]
        %v3061 = vld [vmem:[%s274 + $0x130] sm:$0xff]
        %v3062 = vld [vmem:[%s274 + $0x138] sm:$0xff]
        %v3063 = vld [vmem:[%s274 + $0x140] sm:$0xff]
        %v3064 = vld [vmem:[%s274 + $0x148] sm:$0xff]
        %v3065 = vld [vmem:[%s274 + $0x150] sm:$0xff]
        %v3066 = vld [vmem:[%s274 + $0x158] sm:$0xff]
        %v3067 = vld [vmem:[%s274 + $0x160] sm:$0xff]
        %v3068 = vld [vmem:[%s274 + $0x168] sm:$0xff]
        %v3069 = vld [vmem:[%s274 + $0x170] sm:$0xff]
        %v3070 = vld [vmem:[%s274 + $0x178] sm:$0xff]
        %v3071 = vld [vmem:[%s274 + $0x180] sm:$0xff]
        %v3072 = vld [vmem:[%s274 + $0x188] sm:$0xff]
        %v3073 = vld [vmem:[%s274 + $0x190] sm:$0xff]
        %v3074 = vld [vmem:[%s274 + $0x198] sm:$0xff]
        %v3075 = vld [vmem:[%s274 + $0x1a0] sm:$0xff]
        %v3076 = vld [vmem:[%s274 + $0x1a8] sm:$0xff]
        %v3077 = vld [vmem:[%s274 + $0x1b0] sm:$0xff]
        %v3078 = vld [vmem:[%s274 + $0x1b8] sm:$0xff]
        %v3079 = vld [vmem:[%s274 + $0x1c0] sm:$0xff]
        %v3080 = vld [vmem:[%s274 + $0x1c8] sm:$0xff]
        %v3081 = vld [vmem:[%s274 + $0x1d0] sm:$0xff]
        %v3082 = vld [vmem:[%s274 + $0x1d8] sm:$0xff]
        %v3083 = vld [vmem:[%s274 + $0x1e0] sm:$0xff]
        %v3084 = vld [vmem:[%s274 + $0x1e8] sm:$0xff]
        %v3085 = vld [vmem:[%s274 + $0x1f0] sm:$0xff]
        %v3086 = vld [vmem:[%s274 + $0x1f8] sm:$0xff]
        %v3087 = vld [vmem:[%s274 + $0x200] sm:$0xff]
        %v3088 = vld [vmem:[%s274 + $0x208] sm:$0xff]
        %v3089 = vld [vmem:[%s274 + $0x210] sm:$0xff]
        %v3090 = vld [vmem:[%s274 + $0x218] sm:$0xff]
        %v3091 = vld [vmem:[%s274 + $0x220] sm:$0xff]
        %v3092 = vld [vmem:[%s274 + $0x228] sm:$0xff]
        %v3093 = vld [vmem:[%s274 + $0x230] sm:$0xff]
        %v3094 = vld [vmem:[%s274 + $0x238] sm:$0xff]
        %v3095 = vld [vmem:[%s274 + $0x240] sm:$0xff]
        %v3096 = vld [vmem:[%s274 + $0x248] sm:$0xff]
        %v3097 = vld [vmem:[%s274 + $0x250] sm:$0xff]
        %v3098 = vld [vmem:[%s274 + $0x258] sm:$0xff]
        %v3099 = vld [vmem:[%s274 + $0x260] sm:$0xff]
        %v3100 = vld [vmem:[%s274 + $0x268] sm:$0xff]
        %v3101 = vld [vmem:[%s274 + $0x270] sm:$0xff]
        %v3102 = vld [vmem:[%s274 + $0x278] sm:$0xff]
        %v3103 = vld [vmem:[%s274 + $0x280] sm:$0xff]
        %v3104 = vld [vmem:[%s274 + $0x288] sm:$0xff]
        %v3105 = vld [vmem:[%s274 + $0x290] sm:$0xff]
        %v3106 = vld [vmem:[%s274 + $0x298] sm:$0xff]
        %v3107 = vld [vmem:[%s274 + $0x2a0] sm:$0xff]
        %v3108 = vld [vmem:[%s274 + $0x2a8] sm:$0xff]
        %v3109 = vld [vmem:[%s274 + $0x2b0] sm:$0xff]
        %v3110 = vld [vmem:[%s274 + $0x2b8] sm:$0xff]
        %v3111 = vld [vmem:[%s274 + $0x2c0] sm:$0xff]
        %v3112 = vld [vmem:[%s274 + $0x2c8] sm:$0xff]
        %v3113 = vld [vmem:[%s274 + $0x2d0] sm:$0xff]
        %v3114 = vld [vmem:[%s274 + $0x2d8] sm:$0xff]
        %v3115 = vld [vmem:[%s274 + $0x2e0] sm:$0xff]
        %v3116 = vld [vmem:[%s274 + $0x2e8] sm:$0xff]
        %v3117 = vld [vmem:[%s274 + $0x2f0] sm:$0xff]
        %v3118 = vld [vmem:[%s274 + $0x2f8] sm:$0xff]
        %v3119 = vld [vmem:[%s274 + $0x300] sm:$0xff]
        %v3120 = vld [vmem:[%s274 + $0x308] sm:$0xff]
        %v3121 = vld [vmem:[%s274 + $0x310] sm:$0xff]
        %v3122 = vld [vmem:[%s274 + $0x318] sm:$0xff]
        %v3123 = vld [vmem:[%s274 + $0x320] sm:$0xff]
        %v3124 = vld [vmem:[%s274 + $0x328] sm:$0xff]
        %v3125 = vld [vmem:[%s274 + $0x330] sm:$0xff]
        %v3126 = vld [vmem:[%s274 + $0x338] sm:$0xff]
        %v3127 = vld [vmem:[%s274 + $0x340] sm:$0xff]
        %v3128 = vld [vmem:[%s274 + $0x348] sm:$0xff]
        %v3129 = vld [vmem:[%s274 + $0x350] sm:$0xff]
        %v3130 = vld [vmem:[%s274 + $0x358] sm:$0xff]
        %v3131 = vld [vmem:[%s274 + $0x360] sm:$0xff]
        %v3132 = vld [vmem:[%s274 + $0x368] sm:$0xff]
        %v3133 = vld [vmem:[%s274 + $0x370] sm:$0xff]
        %v3134 = vld [vmem:[%s274 + $0x378] sm:$0xff]
        %v3135 = vld [vmem:[%s274 + $0x380] sm:$0xff]
        %v3136 = vld [vmem:[%s274 + $0x388] sm:$0xff]
        %v3137 = vld [vmem:[%s274 + $0x390] sm:$0xff]
        %v3138 = vld [vmem:[%s274 + $0x398] sm:$0xff]
        %v3139 = vld [vmem:[%s274 + $0x3a0] sm:$0xff]
        %v3140 = vld [vmem:[%s274 + $0x3a8] sm:$0xff]
        %v3141 = vld [vmem:[%s274 + $0x3b0] sm:$0xff]
        %v3142 = vld [vmem:[%s274 + $0x3b8] sm:$0xff]
        %v3143 = vld [vmem:[%s274 + $0x3c0] sm:$0xff]
        %v3144 = vld [vmem:[%s274 + $0x3c8] sm:$0xff]
        %v3145 = vld [vmem:[%s274 + $0x3d0] sm:$0xff]
        %v3146 = vld [vmem:[%s274 + $0x3d8] sm:$0xff]
        %v3147 = vld [vmem:[%s274 + $0x3e0] sm:$0xff]
        %v3148 = vld [vmem:[%s274 + $0x3e8] sm:$0xff]
        %v3149 = vld [vmem:[%s274 + $0x3f0] sm:$0xff]
        %v3150 = vld [vmem:[%s274 + $0x3f8] sm:$0xff]
        %v3151 = vld [vmem:[%s274 + $0x400] sm:$0xff]
        %v3152 = vld [vmem:[%s274 + $0x408] sm:$0xff]
        %v3153 = vld [vmem:[%s274 + $0x410] sm:$0xff]
        %v3154 = vld [vmem:[%s274 + $0x418] sm:$0xff]
        %v3155 = vld [vmem:[%s274 + $0x420] sm:$0xff]
        %v3156 = vld [vmem:[%s274 + $0x428] sm:$0xff]
        %v3157 = vld [vmem:[%s274 + $0x430] sm:$0xff]
        %v3158 = vld [vmem:[%s274 + $0x438] sm:$0xff]
        %v3159 = vld [vmem:[%s274 + $0x440] sm:$0xff]
        %v3160 = vld [vmem:[%s274 + $0x448] sm:$0xff]
        %v3161 = vld [vmem:[%s274 + $0x450] sm:$0xff]
        %v3162 = vld [vmem:[%s274 + $0x458] sm:$0xff]
        %v3163 = vld [vmem:[%s274 + $0x460] sm:$0xff]
        %v3164 = vld [vmem:[%s274 + $0x468] sm:$0xff]
        %v3165 = vld [vmem:[%s274 + $0x470] sm:$0xff]
        %v3166 = vld [vmem:[%s274 + $0x478] sm:$0xff]
        %v3167 = vld [vmem:[%s274 + $0x480] sm:$0xff]
        %v3168 = vld [vmem:[%s274 + $0x488] sm:$0xff]
        %v3169 = vld [vmem:[%s274 + $0x490] sm:$0xff]
        %v3170 = vld [vmem:[%s274 + $0x498] sm:$0xff]
        %v3171 = vld [vmem:[%s274 + $0x4a0] sm:$0xff]
        %v3172 = vld [vmem:[%s274 + $0x4a8] sm:$0xff]
        %v3173 = vld [vmem:[%s274 + $0x4b0] sm:$0xff]
        %v3174 = vld [vmem:[%s274 + $0x4b8] sm:$0xff]
        %v3175 = vld [vmem:[%s274 + $0x4c0] sm:$0xff]
        %v3176 = vld [vmem:[%s274 + $0x4c8] sm:$0xff]
        %v3177 = vld [vmem:[%s274 + $0x4d0] sm:$0xff]
        %v3178 = vld [vmem:[%s274 + $0x4d8] sm:$0xff]
        %v3179 = vld [vmem:[%s274 + $0x4e0] sm:$0xff]
        %v3180 = vld [vmem:[%s274 + $0x4e8] sm:$0xff]
        %v3181 = vld [vmem:[%s274 + $0x4f0] sm:$0xff]
        %v3182 = vld [vmem:[%s274 + $0x4f8] sm:$0xff]
        %v3183 = vld [vmem:[%s274 + $0x500] sm:$0xff]
        %v3184 = vld [vmem:[%s274 + $0x508] sm:$0xff]
        %v3185 = vld [vmem:[%s274 + $0x510] sm:$0xff]
        %v3186 = vld [vmem:[%s274 + $0x518] sm:$0xff]
        %v3187 = vld [vmem:[%s274 + $0x520] sm:$0xff]
        %v3188 = vld [vmem:[%s274 + $0x528] sm:$0xff]
        %v3189 = vld [vmem:[%s274 + $0x530] sm:$0xff]
        %v3190 = vld [vmem:[%s274 + $0x538] sm:$0xff]
        %v3191 = vld [vmem:[%s274 + $0x540] sm:$0xff]
        %v3192 = vld [vmem:[%s274 + $0x548] sm:$0xff]
        %v3193 = vld [vmem:[%s274 + $0x550] sm:$0xff]
        %v3194 = vld [vmem:[%s274 + $0x558] sm:$0xff]
        %v3195 = vld [vmem:[%s274 + $0x560] sm:$0xff]
        %v3196 = vld [vmem:[%s274 + $0x568] sm:$0xff]
        %v3197 = vld [vmem:[%s274 + $0x570] sm:$0xff]
        %v3198 = vld [vmem:[%s274 + $0x578] sm:$0xff]
        %v3199 = vld [vmem:[%s274 + $0x580] sm:$0xff]
        %v3200 = vld [vmem:[%s274 + $0x588] sm:$0xff]
        %v3201 = vld [vmem:[%s274 + $0x590] sm:$0xff]
        %v3202 = vld [vmem:[%s274 + $0x598] sm:$0xff]
        %v3203 = vld [vmem:[%s274 + $0x5a0] sm:$0xff]
        %v3204 = vld [vmem:[%s274 + $0x5a8] sm:$0xff]
        %v3205 = vld [vmem:[%s274 + $0x5b0] sm:$0xff]
        %v3206 = vld [vmem:[%s274 + $0x5b8] sm:$0xff]
        %v3207 = vld [vmem:[%s274 + $0x5c0] sm:$0xff]
        %v3208 = vld [vmem:[%s274 + $0x5c8] sm:$0xff]
        %v3209 = vld [vmem:[%s274 + $0x5d0] sm:$0xff]
        %v3210 = vld [vmem:[%s274 + $0x5d8] sm:$0xff]
        %v3211 = vld [vmem:[%s274 + $0x5e0] sm:$0xff]
        %v3212 = vld [vmem:[%s274 + $0x5e8] sm:$0xff]
        %v3213 = vld [vmem:[%s274 + $0x5f0] sm:$0xff]
        %v3214 = vld [vmem:[%s274 + $0x5f8] sm:$0xff]
        %v3215 = vld [vmem:[%s274 + $0x600] sm:$0xff]
        %v3216 = vld [vmem:[%s274 + $0x608] sm:$0xff]
        %v3217 = vld [vmem:[%s274 + $0x610] sm:$0xff]
        %v3218 = vld [vmem:[%s274 + $0x618] sm:$0xff]
        %v3219 = vld [vmem:[%s274 + $0x620] sm:$0xff]
        %v3220 = vld [vmem:[%s274 + $0x628] sm:$0xff]
        %v3221 = vld [vmem:[%s274 + $0x630] sm:$0xff]
        %v3222 = vld [vmem:[%s274 + $0x638] sm:$0xff]
        %v3223 = vld [vmem:[%s274 + $0x640] sm:$0xff]
        %v3224 = vld [vmem:[%s274 + $0x648] sm:$0xff]
        %v3225 = vld [vmem:[%s274 + $0x650] sm:$0xff]
        %v3226 = vld [vmem:[%s274 + $0x658] sm:$0xff]
        %v3227 = vld [vmem:[%s274 + $0x660] sm:$0xff]
        %v3228 = vld [vmem:[%s274 + $0x668] sm:$0xff]
        %v3229 = vld [vmem:[%s274 + $0x670] sm:$0xff]
        %v3230 = vld [vmem:[%s274 + $0x678] sm:$0xff]
        %v3231 = vld [vmem:[%s274 + $0x680] sm:$0xff]
        %v3232 = vld [vmem:[%s274 + $0x688] sm:$0xff]
        %v3233 = vld [vmem:[%s274 + $0x690] sm:$0xff]
        %v3234 = vld [vmem:[%s274 + $0x698] sm:$0xff]
        %v3235 = vld [vmem:[%s274 + $0x6a0] sm:$0xff]
        %v3236 = vld [vmem:[%s274 + $0x6a8] sm:$0xff]
        %v3237 = vld [vmem:[%s274 + $0x6b0] sm:$0xff]
        %v3238 = vld [vmem:[%s274 + $0x6b8] sm:$0xff]
        %v3239 = vld [vmem:[%s274 + $0x6c0] sm:$0xff]
        %v3240 = vld [vmem:[%s274 + $0x6c8] sm:$0xff]
        %v3241 = vld [vmem:[%s274 + $0x6d0] sm:$0xff]
        %v3242 = vld [vmem:[%s274 + $0x6d8] sm:$0xff]
        %v3243 = vld [vmem:[%s274 + $0x6e0] sm:$0xff]
        %v3244 = vld [vmem:[%s274 + $0x6e8] sm:$0xff]
        %v3245 = vld [vmem:[%s274 + $0x6f0] sm:$0xff]
        %v3246 = vld [vmem:[%s274 + $0x6f8] sm:$0xff]
        %v3247 = vld [vmem:[%s274 + $0x700] sm:$0xff]
        %v3248 = vld [vmem:[%s274 + $0x708] sm:$0xff]
        %v3249 = vld [vmem:[%s274 + $0x710] sm:$0xff]
        %v3250 = vld [vmem:[%s274 + $0x718] sm:$0xff]
        %v3251 = vld [vmem:[%s274 + $0x720] sm:$0xff]
        %v3252 = vld [vmem:[%s274 + $0x728] sm:$0xff]
        %v3253 = vld [vmem:[%s274 + $0x730] sm:$0xff]
        %v3254 = vld [vmem:[%s274 + $0x738] sm:$0xff]
        %v3255 = vld [vmem:[%s274 + $0x740] sm:$0xff]
        %v3256 = vld [vmem:[%s274 + $0x748] sm:$0xff]
        %v3257 = vld [vmem:[%s274 + $0x750] sm:$0xff]
        %v3258 = vld [vmem:[%s274 + $0x758] sm:$0xff]
        %v3259 = vld [vmem:[%s274 + $0x760] sm:$0xff]
        %v3260 = vld [vmem:[%s274 + $0x768] sm:$0xff]
        %v3261 = vld [vmem:[%s274 + $0x770] sm:$0xff]
        %v3262 = vld [vmem:[%s274 + $0x778] sm:$0xff]
        %v3263 = vld [vmem:[%s274 + $0x780] sm:$0xff]
        %v3264 = vld [vmem:[%s274 + $0x788] sm:$0xff]
        %v3265 = vld [vmem:[%s274 + $0x790] sm:$0xff]
        %v3266 = vld [vmem:[%s274 + $0x798] sm:$0xff]
        %v3267 = vld [vmem:[%s274 + $0x7a0] sm:$0xff]
        %v3268 = vld [vmem:[%s274 + $0x7a8] sm:$0xff]
        %v3269 = vld [vmem:[%s274 + $0x7b0] sm:$0xff]
        %v3270 = vld [vmem:[%s274 + $0x7b8] sm:$0xff]
        %v3271 = vld [vmem:[%s274 + $0x7c0] sm:$0xff]
        %v3272 = vld [vmem:[%s274 + $0x7c8] sm:$0xff]
        %v3273 = vld [vmem:[%s274 + $0x7d0] sm:$0xff]
        %v3274 = vld [vmem:[%s274 + $0x7d8] sm:$0xff]
        %v3275 = vld [vmem:[%s274 + $0x7e0] sm:$0xff]
        %v3276 = vld [vmem:[%s274 + $0x7e8] sm:$0xff]
        %v3277 = vld [vmem:[%s274 + $0x7f0] sm:$0xff]
        %v3278 = vld [vmem:[%s274 + $0x7f8] sm:$0xff]
        %3279 = vmatprep.subr.mxu0 %v3024
        %3280 = vmatpush1.msra.mxu0 %v3023
        %3281 = vmatprep.subr.mxu0 %v3026
        %3282 = vmatpush1.msra.mxu0 %v3025
        %3283 = vmatprep.subr.mxu0 %v3028
        %3284 = vmatpush1.msra.mxu0 %v3027
        %3285 = vmatprep.subr.mxu0 %v3030
        %3286 = vmatpush1.msra.mxu0 %v3029
        %3287 = vmatprep.subr.mxu0 %v3032
        %3288 = vmatpush1.msra.mxu0 %v3031
        %3289 = vmatprep.subr.mxu0 %v3034
        %3290 = vmatpush1.msra.mxu0 %v3033
        %3291 = vmatprep.subr.mxu0 %v3036
        %3292 = vmatpush1.msra.mxu0 %v3035
        %3293 = vmatprep.subr.mxu0 %v3038
        %3294 = vmatpush1.msra.mxu0 %v3037
        %3295 = vmatprep.subr.mxu0 %v3040
        %3296 = vmatpush1.msra.mxu0 %v3039
        %3297 = vmatprep.subr.mxu0 %v3042
        %3298 = vmatpush1.msra.mxu0 %v3041
        %3299 = vmatprep.subr.mxu0 %v3044
        %3300 = vmatpush1.msra.mxu0 %v3043
        %3301 = vmatprep.subr.mxu0 %v3046
        %3302 = vmatpush1.msra.mxu0 %v3045
        %3303 = vmatprep.subr.mxu0 %v3048
        %3304 = vmatpush1.msra.mxu0 %v3047
        %3305 = vmatprep.subr.mxu0 %v3050
        %3306 = vmatpush1.msra.mxu0 %v3049
        %3307 = vmatprep.subr.mxu0 %v3052
        %3308 = vmatpush1.msra.mxu0 %v3051
        %3309 = vmatprep.subr.mxu0 %v3054
        %3310 = vmatpush1.msra.mxu0 %v3053
        %3311 = vmatprep.subr.mxu0 0.0
        %3312 = vmatpush1.msra.mxu0 0.0
        %3313 = vmatprep.subr.mxu0 0.0
        %3314 = vmatpush1.msra.mxu0 0.0
        %3315 = vmatprep.subr.mxu0 0.0
        %3316 = vmatpush1.msra.mxu0 0.0
        %3317 = vmatprep.subr.mxu0 0.0
        %3318 = vmatpush1.msra.mxu0 0.0
        %3319 = vmatprep.subr.mxu0 0.0
        %3320 = vmatpush1.msra.mxu0 0.0
        %3321 = vmatprep.subr.mxu0 0.0
        %3322 = vmatpush1.msra.mxu0 0.0
        %3323 = vmatprep.subr.mxu0 0.0
        %3324 = vmatpush1.msra.mxu0 0.0
        %3325 = vmatprep.subr.mxu0 0.0
        %3326 = vmatpush1.msra.mxu0 0.0
        %3327 = vmatprep.subr.mxu0 0.0
        %3328 = vmatpush1.msra.mxu0 0.0
        %3329 = vmatprep.subr.mxu0 0.0
        %3330 = vmatpush1.msra.mxu0 0.0
        %3331 = vmatprep.subr.mxu0 0.0
        %3332 = vmatpush1.msra.mxu0 0.0
        %3333 = vmatprep.subr.mxu0 0.0
        %3334 = vmatpush1.msra.mxu0 0.0
        %3335 = vmatprep.subr.mxu0 0.0
        %3336 = vmatpush1.msra.mxu0 0.0
        %3337 = vmatprep.subr.mxu0 0.0
        %3338 = vmatpush1.msra.mxu0 0.0
        %3339 = vmatprep.subr.mxu0 0.0
        %3340 = vmatpush1.msra.mxu0 0.0
        %3341 = vmatprep.subr.mxu0 0.0
        %3342 = vmatpush1.msra.mxu0 0.0
        %3343 = vmatprep.mubr.f32.mxu0 0.0
        %3344 = vmatmul.mubr.f32.gmra.mrb[0].mxu0 %v2989
        %v3345 = vpop.f32.mrb[0].mxu0
        %v3346 = vadd.f32 0.0, %v3345
        %v3347 = vpop.f32.mrb[0].mxu0
        %v3348 = vadd.f32 0.0, %v3347
        %3349 = vdwg.mxu0
        %3350 = vmatprep.subr.mxu0 %v3056
        %3351 = vmatpush1.msra.mxu0 %v3055
        %3352 = vmatprep.subr.mxu0 %v3058
        %3353 = vmatpush1.msra.mxu0 %v3057
        %3354 = vmatprep.subr.mxu0 %v3060
        %3355 = vmatpush1.msra.mxu0 %v3059
        %3356 = vmatprep.subr.mxu0 %v3062
        %3357 = vmatpush1.msra.mxu0 %v3061
        %3358 = vmatprep.subr.mxu0 %v3064
        %3359 = vmatpush1.msra.mxu0 %v3063
        %3360 = vmatprep.subr.mxu0 %v3066
        %3361 = vmatpush1.msra.mxu0 %v3065
        %3362 = vmatprep.subr.mxu0 %v3068
        %3363 = vmatpush1.msra.mxu0 %v3067
        %3364 = vmatprep.subr.mxu0 %v3070
        %3365 = vmatpush1.msra.mxu0 %v3069
        %3366 = vmatprep.subr.mxu0 %v3072
        %3367 = vmatpush1.msra.mxu0 %v3071
        %3368 = vmatprep.subr.mxu0 %v3074
        %3369 = vmatpush1.msra.mxu0 %v3073
        %3370 = vmatprep.subr.mxu0 %v3076
        %3371 = vmatpush1.msra.mxu0 %v3075
        %3372 = vmatprep.subr.mxu0 %v3078
        %3373 = vmatpush1.msra.mxu0 %v3077
        %3374 = vmatprep.subr.mxu0 %v3080
        %3375 = vmatpush1.msra.mxu0 %v3079
        %3376 = vmatprep.subr.mxu0 %v3082
        %3377 = vmatpush1.msra.mxu0 %v3081
        %3378 = vmatprep.subr.mxu0 %v3084
        %3379 = vmatpush1.msra.mxu0 %v3083
        %3380 = vmatprep.subr.mxu0 %v3086
        %3381 = vmatpush1.msra.mxu0 %v3085
        %3382 = vmatprep.subr.mxu0 0.0
        %3383 = vmatpush1.msra.mxu0 0.0
        %3384 = vmatprep.subr.mxu0 0.0
        %3385 = vmatpush1.msra.mxu0 0.0
        %3386 = vmatprep.subr.mxu0 0.0
        %3387 = vmatpush1.msra.mxu0 0.0
        %3388 = vmatprep.subr.mxu0 0.0
        %3389 = vmatpush1.msra.mxu0 0.0
        %3390 = vmatprep.subr.mxu0 0.0
        %3391 = vmatpush1.msra.mxu0 0.0
        %3392 = vmatprep.subr.mxu0 0.0
        %3393 = vmatpush1.msra.mxu0 0.0
        %3394 = vmatprep.subr.mxu0 0.0
        %3395 = vmatpush1.msra.mxu0 0.0
        %3396 = vmatprep.subr.mxu0 0.0
        %3397 = vmatpush1.msra.mxu0 0.0
        %3398 = vmatprep.subr.mxu0 0.0
        %3399 = vmatpush1.msra.mxu0 0.0
        %3400 = vmatprep.subr.mxu0 0.0
        %3401 = vmatpush1.msra.mxu0 0.0
        %3402 = vmatprep.subr.mxu0 0.0
        %3403 = vmatpush1.msra.mxu0 0.0
        %3404 = vmatprep.subr.mxu0 0.0
        %3405 = vmatpush1.msra.mxu0 0.0
        %3406 = vmatprep.subr.mxu0 0.0
        %3407 = vmatpush1.msra.mxu0 0.0
        %3408 = vmatprep.subr.mxu0 0.0
        %3409 = vmatpush1.msra.mxu0 0.0
        %3410 = vmatprep.subr.mxu0 0.0
        %3411 = vmatpush1.msra.mxu0 0.0
        %3412 = vmatprep.subr.mxu0 0.0
        %3413 = vmatpush1.msra.mxu0 0.0
        %3414 = vmatprep.mubr.f32.mxu0 0.0
        %3415 = vmatmul.mubr.f32.gmra.mrb[0].mxu0 %v3003
        %v3416 = vpop.f32.mrb[0].mxu0
        %v3417 = vadd.f32 0.0, %v3416
        %v3418 = vpop.f32.mrb[0].mxu0
        %v3419 = vadd.f32 0.0, %v3418
        %3420 = vdwg.mxu0
        %3421 = vmatprep.subr.mxu0 %v3088
        %3422 = vmatpush1.msra.mxu0 %v3087
        %3423 = vmatprep.subr.mxu0 %v3090
        %3424 = vmatpush1.msra.mxu0 %v3089
        %3425 = vmatprep.subr.mxu0 %v3092
        %3426 = vmatpush1.msra.mxu0 %v3091
        %3427 = vmatprep.subr.mxu0 %v3094
        %3428 = vmatpush1.msra.mxu0 %v3093
        %3429 = vmatprep.subr.mxu0 %v3096
        %3430 = vmatpush1.msra.mxu0 %v3095
        %3431 = vmatprep.subr.mxu0 %v3098
        %3432 = vmatpush1.msra.mxu0 %v3097
        %3433 = vmatprep.subr.mxu0 %v3100
        %3434 = vmatpush1.msra.mxu0 %v3099
        %3435 = vmatprep.subr.mxu0 %v3102
        %3436 = vmatpush1.msra.mxu0 %v3101
        %3437 = vmatprep.subr.mxu0 %v3104
        %3438 = vmatpush1.msra.mxu0 %v3103
        %3439 = vmatprep.subr.mxu0 %v3106
        %3440 = vmatpush1.msra.mxu0 %v3105
        %3441 = vmatprep.subr.mxu0 %v3108
        %3442 = vmatpush1.msra.mxu0 %v3107
        %3443 = vmatprep.subr.mxu0 %v3110
        %3444 = vmatpush1.msra.mxu0 %v3109
        %3445 = vmatprep.subr.mxu0 %v3112
        %3446 = vmatpush1.msra.mxu0 %v3111
        %3447 = vmatprep.subr.mxu0 %v3114
        %3448 = vmatpush1.msra.mxu0 %v3113
        %3449 = vmatprep.subr.mxu0 %v3116
        %3450 = vmatpush1.msra.mxu0 %v3115
        %3451 = vmatprep.subr.mxu0 %v3118
        %3452 = vmatpush1.msra.mxu0 %v3117
        %3453 = vmatprep.subr.mxu0 0.0
        %3454 = vmatpush1.msra.mxu0 0.0
        %3455 = vmatprep.subr.mxu0 0.0
        %3456 = vmatpush1.msra.mxu0 0.0
        %3457 = vmatprep.subr.mxu0 0.0
        %3458 = vmatpush1.msra.mxu0 0.0
        %3459 = vmatprep.subr.mxu0 0.0
        %3460 = vmatpush1.msra.mxu0 0.0
        %3461 = vmatprep.subr.mxu0 0.0
        %3462 = vmatpush1.msra.mxu0 0.0
        %3463 = vmatprep.subr.mxu0 0.0
        %3464 = vmatpush1.msra.mxu0 0.0
        %3465 = vmatprep.subr.mxu0 0.0
        %3466 = vmatpush1.msra.mxu0 0.0
        %3467 = vmatprep.subr.mxu0 0.0
        %3468 = vmatpush1.msra.mxu0 0.0
        %3469 = vmatprep.subr.mxu0 0.0
        %3470 = vmatpush1.msra.mxu0 0.0
        %3471 = vmatprep.subr.mxu0 0.0
        %3472 = vmatpush1.msra.mxu0 0.0
        %3473 = vmatprep.subr.mxu0 0.0
        %3474 = vmatpush1.msra.mxu0 0.0
        %3475 = vmatprep.subr.mxu0 0.0
        %3476 = vmatpush1.msra.mxu0 0.0
        %3477 = vmatprep.subr.mxu0 0.0
        %3478 = vmatpush1.msra.mxu0 0.0
        %3479 = vmatprep.subr.mxu0 0.0
        %3480 = vmatpush1.msra.mxu0 0.0
        %3481 = vmatprep.subr.mxu0 0.0
        %3482 = vmatpush1.msra.mxu0 0.0
        %3483 = vmatprep.subr.mxu0 0.0
        %3484 = vmatpush1.msra.mxu0 0.0
        %3485 = vmatprep.mubr.f32.mxu0 0.0
        %3486 = vmatmul.mubr.f32.gmra.mrb[0].mxu0 %v3011
        %v3487 = vpop.f32.mrb[0].mxu0
        %v3488 = vadd.f32 0.0, %v3487
        %v3489 = vpop.f32.mrb[0].mxu0
        %v3490 = vadd.f32 0.0, %v3489
        %3491 = vdwg.mxu0
        %3492 = vmatprep.subr.mxu0 %v3120
        %3493 = vmatpush1.msra.mxu0 %v3119
        %3494 = vmatprep.subr.mxu0 %v3122
        %3495 = vmatpush1.msra.mxu0 %v3121
        %3496 = vmatprep.subr.mxu0 %v3124
        %3497 = vmatpush1.msra.mxu0 %v3123
        %3498 = vmatprep.subr.mxu0 %v3126
        %3499 = vmatpush1.msra.mxu0 %v3125
        %3500 = vmatprep.subr.mxu0 %v3128
        %3501 = vmatpush1.msra.mxu0 %v3127
        %3502 = vmatprep.subr.mxu0 %v3130
        %3503 = vmatpush1.msra.mxu0 %v3129
        %3504 = vmatprep.subr.mxu0 %v3132
        %3505 = vmatpush1.msra.mxu0 %v3131
        %3506 = vmatprep.subr.mxu0 %v3134
        %3507 = vmatpush1.msra.mxu0 %v3133
        %3508 = vmatprep.subr.mxu0 %v3136
        %3509 = vmatpush1.msra.mxu0 %v3135
        %3510 = vmatprep.subr.mxu0 %v3138
        %3511 = vmatpush1.msra.mxu0 %v3137
        %3512 = vmatprep.subr.mxu0 %v3140
        %3513 = vmatpush1.msra.mxu0 %v3139
        %3514 = vmatprep.subr.mxu0 %v3142
        %3515 = vmatpush1.msra.mxu0 %v3141
        %3516 = vmatprep.subr.mxu0 %v3144
        %3517 = vmatpush1.msra.mxu0 %v3143
        %3518 = vmatprep.subr.mxu0 %v3146
        %3519 = vmatpush1.msra.mxu0 %v3145
        %3520 = vmatprep.subr.mxu0 %v3148
        %3521 = vmatpush1.msra.mxu0 %v3147
        %3522 = vmatprep.subr.mxu0 %v3150
        %3523 = vmatpush1.msra.mxu0 %v3149
        %3524 = vmatprep.subr.mxu0 0.0
        %3525 = vmatpush1.msra.mxu0 0.0
        %3526 = vmatprep.subr.mxu0 0.0
        %3527 = vmatpush1.msra.mxu0 0.0
        %3528 = vmatprep.subr.mxu0 0.0
        %3529 = vmatpush1.msra.mxu0 0.0
        %3530 = vmatprep.subr.mxu0 0.0
        %3531 = vmatpush1.msra.mxu0 0.0
        %3532 = vmatprep.subr.mxu0 0.0
        %3533 = vmatpush1.msra.mxu0 0.0
        %3534 = vmatprep.subr.mxu0 0.0
        %3535 = vmatpush1.msra.mxu0 0.0
        %3536 = vmatprep.subr.mxu0 0.0
        %3537 = vmatpush1.msra.mxu0 0.0
        %3538 = vmatprep.subr.mxu0 0.0
        %3539 = vmatpush1.msra.mxu0 0.0
        %3540 = vmatprep.subr.mxu0 0.0
        %3541 = vmatpush1.msra.mxu0 0.0
        %3542 = vmatprep.subr.mxu0 0.0
        %3543 = vmatpush1.msra.mxu0 0.0
        %3544 = vmatprep.subr.mxu0 0.0
        %3545 = vmatpush1.msra.mxu0 0.0
        %3546 = vmatprep.subr.mxu0 0.0
        %3547 = vmatpush1.msra.mxu0 0.0
        %3548 = vmatprep.subr.mxu0 0.0
        %3549 = vmatpush1.msra.mxu0 0.0
        %3550 = vmatprep.subr.mxu0 0.0
        %3551 = vmatpush1.msra.mxu0 0.0
        %3552 = vmatprep.subr.mxu0 0.0
        %3553 = vmatpush1.msra.mxu0 0.0
        %3554 = vmatprep.subr.mxu0 0.0
        %3555 = vmatpush1.msra.mxu0 0.0
        %3556 = vmatprep.mubr.f32.mxu0 0.0
        %3557 = vmatmul.mubr.f32.gmra.mrb[0].mxu0 %v3013
        %v3558 = vpop.f32.mrb[0].mxu0
        %v3559 = vadd.f32 0.0, %v3558
        %v3560 = vpop.f32.mrb[0].mxu0
        %v3561 = vadd.f32 0.0, %v3560
        %3562 = vdwg.mxu0
        %3563 = vmatprep.subr.mxu0 %v3152
        %3564 = vmatpush1.msra.mxu0 %v3151
        %3565 = vmatprep.subr.mxu0 %v3154
        %3566 = vmatpush1.msra.mxu0 %v3153
        %3567 = vmatprep.subr.mxu0 %v3156
        %3568 = vmatpush1.msra.mxu0 %v3155
        %3569 = vmatprep.subr.mxu0 %v3158
        %3570 = vmatpush1.msra.mxu0 %v3157
        %3571 = vmatprep.subr.mxu0 %v3160
        %3572 = vmatpush1.msra.mxu0 %v3159
        %3573 = vmatprep.subr.mxu0 %v3162
        %3574 = vmatpush1.msra.mxu0 %v3161
        %3575 = vmatprep.subr.mxu0 %v3164
        %3576 = vmatpush1.msra.mxu0 %v3163
        %3577 = vmatprep.subr.mxu0 %v3166
        %3578 = vmatpush1.msra.mxu0 %v3165
        %3579 = vmatprep.subr.mxu0 %v3168
        %3580 = vmatpush1.msra.mxu0 %v3167
        %3581 = vmatprep.subr.mxu0 %v3170
        %3582 = vmatpush1.msra.mxu0 %v3169
        %3583 = vmatprep.subr.mxu0 %v3172
        %3584 = vmatpush1.msra.mxu0 %v3171
        %3585 = vmatprep.subr.mxu0 %v3174
        %3586 = vmatpush1.msra.mxu0 %v3173
        %3587 = vmatprep.subr.mxu0 %v3176
        %3588 = vmatpush1.msra.mxu0 %v3175
        %3589 = vmatprep.subr.mxu0 %v3178
        %3590 = vmatpush1.msra.mxu0 %v3177
        %3591 = vmatprep.subr.mxu0 %v3180
        %3592 = vmatpush1.msra.mxu0 %v3179
        %3593 = vmatprep.subr.mxu0 %v3182
        %3594 = vmatpush1.msra.mxu0 %v3181
        %3595 = vmatprep.subr.mxu0 0.0
        %3596 = vmatpush1.msra.mxu0 0.0
        %3597 = vmatprep.subr.mxu0 0.0
        %3598 = vmatpush1.msra.mxu0 0.0
        %3599 = vmatprep.subr.mxu0 0.0
        %3600 = vmatpush1.msra.mxu0 0.0
        %3601 = vmatprep.subr.mxu0 0.0
        %3602 = vmatpush1.msra.mxu0 0.0
        %3603 = vmatprep.subr.mxu0 0.0
        %3604 = vmatpush1.msra.mxu0 0.0
        %3605 = vmatprep.subr.mxu0 0.0
        %3606 = vmatpush1.msra.mxu0 0.0
        %3607 = vmatprep.subr.mxu0 0.0
        %3608 = vmatpush1.msra.mxu0 0.0
        %3609 = vmatprep.subr.mxu0 0.0
        %3610 = vmatpush1.msra.mxu0 0.0
        %3611 = vmatprep.subr.mxu0 0.0
        %3612 = vmatpush1.msra.mxu0 0.0
        %3613 = vmatprep.subr.mxu0 0.0
        %3614 = vmatpush1.msra.mxu0 0.0
        %3615 = vmatprep.subr.mxu0 0.0
        %3616 = vmatpush1.msra.mxu0 0.0
        %3617 = vmatprep.subr.mxu0 0.0
        %3618 = vmatpush1.msra.mxu0 0.0
        %3619 = vmatprep.subr.mxu0 0.0
        %3620 = vmatpush1.msra.mxu0 0.0
        %3621 = vmatprep.subr.mxu0 0.0
        %3622 = vmatpush1.msra.mxu0 0.0
        %3623 = vmatprep.subr.mxu0 0.0
        %3624 = vmatpush1.msra.mxu0 0.0
        %3625 = vmatprep.subr.mxu0 0.0
        %3626 = vmatpush1.msra.mxu0 0.0
        %3627 = vmatprep.mubr.f32.mxu0 0.0
        %3628 = vmatmul.mubr.f32.gmra.mrb[0].mxu0 %v2996
        %v3629 = vpop.f32.mrb[0].mxu0
        %v3630 = vadd.f32 0.0, %v3629
        %v3631 = vpop.f32.mrb[0].mxu0
        %v3632 = vadd.f32 0.0, %v3631
        %3633 = vdwg.mxu0
        %3634 = vmatprep.subr.mxu0 %v3184
        %3635 = vmatpush1.msra.mxu0 %v3183
        %3636 = vmatprep.subr.mxu0 %v3186
        %3637 = vmatpush1.msra.mxu0 %v3185
        %3638 = vmatprep.subr.mxu0 %v3188
        %3639 = vmatpush1.msra.mxu0 %v3187
        %3640 = vmatprep.subr.mxu0 %v3190
        %3641 = vmatpush1.msra.mxu0 %v3189
        %3642 = vmatprep.subr.mxu0 %v3192
        %3643 = vmatpush1.msra.mxu0 %v3191
        %3644 = vmatprep.subr.mxu0 %v3194
        %3645 = vmatpush1.msra.mxu0 %v3193
        %3646 = vmatprep.subr.mxu0 %v3196
        %3647 = vmatpush1.msra.mxu0 %v3195
        %3648 = vmatprep.subr.mxu0 %v3198
        %3649 = vmatpush1.msra.mxu0 %v3197
        %3650 = vmatprep.subr.mxu0 %v3200
        %3651 = vmatpush1.msra.mxu0 %v3199
        %3652 = vmatprep.subr.mxu0 %v3202
        %3653 = vmatpush1.msra.mxu0 %v3201
        %3654 = vmatprep.subr.mxu0 %v3204
        %3655 = vmatpush1.msra.mxu0 %v3203
        %3656 = vmatprep.subr.mxu0 %v3206
        %3657 = vmatpush1.msra.mxu0 %v3205
        %3658 = vmatprep.subr.mxu0 %v3208
        %3659 = vmatpush1.msra.mxu0 %v3207
        %3660 = vmatprep.subr.mxu0 %v3210
        %3661 = vmatpush1.msra.mxu0 %v3209
        %3662 = vmatprep.subr.mxu0 %v3212
        %3663 = vmatpush1.msra.mxu0 %v3211
        %3664 = vmatprep.subr.mxu0 %v3214
        %3665 = vmatpush1.msra.mxu0 %v3213
        %3666 = vmatprep.subr.mxu0 0.0
        %3667 = vmatpush1.msra.mxu0 0.0
        %3668 = vmatprep.subr.mxu0 0.0
        %3669 = vmatpush1.msra.mxu0 0.0
        %3670 = vmatprep.subr.mxu0 0.0
        %3671 = vmatpush1.msra.mxu0 0.0
        %3672 = vmatprep.subr.mxu0 0.0
        %3673 = vmatpush1.msra.mxu0 0.0
        %3674 = vmatprep.subr.mxu0 0.0
        %3675 = vmatpush1.msra.mxu0 0.0
        %3676 = vmatprep.subr.mxu0 0.0
        %3677 = vmatpush1.msra.mxu0 0.0
        %3678 = vmatprep.subr.mxu0 0.0
        %3679 = vmatpush1.msra.mxu0 0.0
        %3680 = vmatprep.subr.mxu0 0.0
        %3681 = vmatpush1.msra.mxu0 0.0
        %3682 = vmatprep.subr.mxu0 0.0
        %3683 = vmatpush1.msra.mxu0 0.0
        %3684 = vmatprep.subr.mxu0 0.0
        %3685 = vmatpush1.msra.mxu0 0.0
        %3686 = vmatprep.subr.mxu0 0.0
        %3687 = vmatpush1.msra.mxu0 0.0
        %3688 = vmatprep.subr.mxu0 0.0
        %3689 = vmatpush1.msra.mxu0 0.0
        %3690 = vmatprep.subr.mxu0 0.0
        %3691 = vmatpush1.msra.mxu0 0.0
        %3692 = vmatprep.subr.mxu0 0.0
        %3693 = vmatpush1.msra.mxu0 0.0
        %3694 = vmatprep.subr.mxu0 0.0
        %3695 = vmatpush1.msra.mxu0 0.0
        %3696 = vmatprep.subr.mxu0 0.0
        %3697 = vmatpush1.msra.mxu0 0.0
        %3698 = vmatprep.mubr.f32.mxu0 0.0
        %3699 = vmatmul.mubr.f32.gmra.mrb[0].mxu0 %v3010
        %v3700 = vpop.f32.mrb[0].mxu0
        %v3701 = vadd.f32 0.0, %v3700
        %v3702 = vpop.f32.mrb[0].mxu0
        %v3703 = vadd.f32 0.0, %v3702
        %3704 = vdwg.mxu0
        %3705 = vmatprep.subr.mxu0 %v3216
        %3706 = vmatpush1.msra.mxu0 %v3215
        %3707 = vmatprep.subr.mxu0 %v3218
        %3708 = vmatpush1.msra.mxu0 %v3217
        %3709 = vmatprep.subr.mxu0 %v3220
        %3710 = vmatpush1.msra.mxu0 %v3219
        %3711 = vmatprep.subr.mxu0 %v3222
        %3712 = vmatpush1.msra.mxu0 %v3221
        %3713 = vmatprep.subr.mxu0 %v3224
        %3714 = vmatpush1.msra.mxu0 %v3223
        %3715 = vmatprep.subr.mxu0 %v3226
        %3716 = vmatpush1.msra.mxu0 %v3225
        %3717 = vmatprep.subr.mxu0 %v3228
        %3718 = vmatpush1.msra.mxu0 %v3227
        %3719 = vmatprep.subr.mxu0 %v3230
        %3720 = vmatpush1.msra.mxu0 %v3229
        %3721 = vmatprep.subr.mxu0 %v3232
        %3722 = vmatpush1.msra.mxu0 %v3231
        %3723 = vmatprep.subr.mxu0 %v3234
        %3724 = vmatpush1.msra.mxu0 %v3233
        %3725 = vmatprep.subr.mxu0 %v3236
        %3726 = vmatpush1.msra.mxu0 %v3235
        %3727 = vmatprep.subr.mxu0 %v3238
        %3728 = vmatpush1.msra.mxu0 %v3237
        %3729 = vmatprep.subr.mxu0 %v3240
        %3730 = vmatpush1.msra.mxu0 %v3239
        %3731 = vmatprep.subr.mxu0 %v3242
        %3732 = vmatpush1.msra.mxu0 %v3241
        %3733 = vmatprep.subr.mxu0 %v3244
        %3734 = vmatpush1.msra.mxu0 %v3243
        %3735 = vmatprep.subr.mxu0 %v3246
        %3736 = vmatpush1.msra.mxu0 %v3245
        %3737 = vmatprep.subr.mxu0 0.0
        %3738 = vmatpush1.msra.mxu0 0.0
        %3739 = vmatprep.subr.mxu0 0.0
        %3740 = vmatpush1.msra.mxu0 0.0
        %3741 = vmatprep.subr.mxu0 0.0
        %3742 = vmatpush1.msra.mxu0 0.0
        %3743 = vmatprep.subr.mxu0 0.0
        %3744 = vmatpush1.msra.mxu0 0.0
        %3745 = vmatprep.subr.mxu0 0.0
        %3746 = vmatpush1.msra.mxu0 0.0
        %3747 = vmatprep.subr.mxu0 0.0
        %3748 = vmatpush1.msra.mxu0 0.0
        %3749 = vmatprep.subr.mxu0 0.0
        %3750 = vmatpush1.msra.mxu0 0.0
        %3751 = vmatprep.subr.mxu0 0.0
        %3752 = vmatpush1.msra.mxu0 0.0
        %3753 = vmatprep.subr.mxu0 0.0
        %3754 = vmatpush1.msra.mxu0 0.0
        %3755 = vmatprep.subr.mxu0 0.0
        %3756 = vmatpush1.msra.mxu0 0.0
        %3757 = vmatprep.subr.mxu0 0.0
        %3758 = vmatpush1.msra.mxu0 0.0
        %3759 = vmatprep.subr.mxu0 0.0
        %3760 = vmatpush1.msra.mxu0 0.0
        %3761 = vmatprep.subr.mxu0 0.0
        %3762 = vmatpush1.msra.mxu0 0.0
        %3763 = vmatprep.subr.mxu0 0.0
        %3764 = vmatpush1.msra.mxu0 0.0
        %3765 = vmatprep.subr.mxu0 0.0
        %3766 = vmatpush1.msra.mxu0 0.0
        %3767 = vmatprep.subr.mxu0 0.0
        %3768 = vmatpush1.msra.mxu0 0.0
        %3769 = vmatprep.mubr.f32.mxu0 0.0
        %3770 = vmatmul.mubr.f32.gmra.mrb[0].mxu0 %v3012
        %v3771 = vpop.f32.mrb[0].mxu0
        %v3772 = vadd.f32 0.0, %v3771
        %v3773 = vpop.f32.mrb[0].mxu0
        %v3774 = vadd.f32 0.0, %v3773
        %3775 = vdwg.mxu0
        %3776 = vmatprep.subr.mxu0 %v3248
        %3777 = vmatpush1.msra.mxu0 %v3247
        %3778 = vmatprep.subr.mxu0 %v3250
        %3779 = vmatpush1.msra.mxu0 %v3249
        %3780 = vmatprep.subr.mxu0 %v3252
        %3781 = vmatpush1.msra.mxu0 %v3251
        %3782 = vmatprep.subr.mxu0 %v3254
        %3783 = vmatpush1.msra.mxu0 %v3253
        %3784 = vmatprep.subr.mxu0 %v3256
        %3785 = vmatpush1.msra.mxu0 %v3255
        %3786 = vmatprep.subr.mxu0 %v3258
        %3787 = vmatpush1.msra.mxu0 %v3257
        %3788 = vmatprep.subr.mxu0 %v3260
        %3789 = vmatpush1.msra.mxu0 %v3259
        %3790 = vmatprep.subr.mxu0 %v3262
        %3791 = vmatpush1.msra.mxu0 %v3261
        %3792 = vmatprep.subr.mxu0 %v3264
        %3793 = vmatpush1.msra.mxu0 %v3263
        %3794 = vmatprep.subr.mxu0 %v3266
        %3795 = vmatpush1.msra.mxu0 %v3265
        %3796 = vmatprep.subr.mxu0 %v3268
        %3797 = vmatpush1.msra.mxu0 %v3267
        %3798 = vmatprep.subr.mxu0 %v3270
        %3799 = vmatpush1.msra.mxu0 %v3269
        %3800 = vmatprep.subr.mxu0 %v3272
        %3801 = vmatpush1.msra.mxu0 %v3271
        %3802 = vmatprep.subr.mxu0 %v3274
        %3803 = vmatpush1.msra.mxu0 %v3273
        %3804 = vmatprep.subr.mxu0 %v3276
        %3805 = vmatpush1.msra.mxu0 %v3275
        %3806 = vmatprep.subr.mxu0 %v3278
        %3807 = vmatpush1.msra.mxu0 %v3277
        %3808 = vmatprep.subr.mxu0 0.0
        %3809 = vmatpush1.msra.mxu0 0.0
        %3810 = vmatprep.subr.mxu0 0.0
        %3811 = vmatpush1.msra.mxu0 0.0
        %3812 = vmatprep.subr.mxu0 0.0
        %3813 = vmatpush1.msra.mxu0 0.0
        %3814 = vmatprep.subr.mxu0 0.0
        %3815 = vmatpush1.msra.mxu0 0.0
        %3816 = vmatprep.subr.mxu0 0.0
        %3817 = vmatpush1.msra.mxu0 0.0
        %3818 = vmatprep.subr.mxu0 0.0
        %3819 = vmatpush1.msra.mxu0 0.0
        %3820 = vmatprep.subr.mxu0 0.0
        %3821 = vmatpush1.msra.mxu0 0.0
        %3822 = vmatprep.subr.mxu0 0.0
        %3823 = vmatpush1.msra.mxu0 0.0
        %3824 = vmatprep.subr.mxu0 0.0
        %3825 = vmatpush1.msra.mxu0 0.0
        %3826 = vmatprep.subr.mxu0 0.0
        %3827 = vmatpush1.msra.mxu0 0.0
        %3828 = vmatprep.subr.mxu0 0.0
        %3829 = vmatpush1.msra.mxu0 0.0
        %3830 = vmatprep.subr.mxu0 0.0
        %3831 = vmatpush1.msra.mxu0 0.0
        %3832 = vmatprep.subr.mxu0 0.0
        %3833 = vmatpush1.msra.mxu0 0.0
        %3834 = vmatprep.subr.mxu0 0.0
        %3835 = vmatpush1.msra.mxu0 0.0
        %3836 = vmatprep.subr.mxu0 0.0
        %3837 = vmatpush1.msra.mxu0 0.0
        %3838 = vmatprep.subr.mxu0 0.0
        %3839 = vmatpush1.msra.mxu0 0.0
        %3840 = vmatprep.mubr.f32.mxu0 0.0
        %3841 = vmatmul.mubr.f32.gmra.mrb[0].mxu0 %v3014
        %v3842 = vpop.f32.mrb[0].mxu0
        %v3843 = vadd.f32 0.0, %v3842
        %v3844 = vpop.f32.mrb[0].mxu0
        %v3845 = vadd.f32 0.0, %v3844
        %3846 = vdwg.mxu0
        %v3863 = vrot.slane %v3417, 7
        %v3864 = vsel %vm2937, %v3863, %v3346
        %v3865 = vrot.slane %v3488, 6
        %v3866 = vsel %vm2939, %v3865, %v3864
        %v3867 = vrot.slane %v3559, 5
        %v3868 = vsel %vm2941, %v3867, %v3866
        %v3869 = vrot.slane %v3630, 4
        %v3870 = vsel %vm2943, %v3869, %v3868
        %v3871 = vrot.slane %v3701, 3
        %v3872 = vsel %vm2945, %v3871, %v3870
        %v3873 = vrot.slane %v3772, 2
        %v3874 = vsel %vm2947, %v3873, %v3872
        %v3875 = vrot.slane %v3843, 1
        %v3876 = vsel %vm2949, %v3875, %v3874
        %v3877 = vrot.slane %v3419, 7
        %v3878 = vsel %vm2937, %v3877, %v3348
        %v3879 = vrot.slane %v3490, 6
        %v3880 = vsel %vm2939, %v3879, %v3878
        %v3881 = vrot.slane %v3561, 5
        %v3882 = vsel %vm2941, %v3881, %v3880
        %v3883 = vrot.slane %v3632, 4
        %v3884 = vsel %vm2943, %v3883, %v3882
        %v3885 = vrot.slane %v3703, 3
        %v3886 = vsel %vm2945, %v3885, %v3884
        %v3887 = vrot.slane %v3774, 2
        %v3888 = vsel %vm2947, %v3887, %v3886
        %v3889 = vrot.slane %v3845, 1
        %v3890 = vsel %vm2949, %v3889, %v3888
        %3893 = vst [vmem:[%s262] sm:$0xff] %v3876
        %3894 = vst [vmem:[%s262 + $0x8] sm:$0xff] %v3890
        %3895 = vst [vmem:[%s283] sm:$0xff] %v2964
        %s3896 = sand.u32 %s145, 1
        %s3897 = scalar_lea.sflag [#allocation5], %s3896
        %s3898 = sand.u32 %s145, 1
        %s3899 = smul.addr %s3898, 16
        %s3900 = scalar_lea.vmem [#allocation4], %s3899
        %p3901 = scmp.lt.s32.totalorder %s22, 1
        %s3902 = scalar_select %p3901, %s22, 1
        %s3903 = smul.addr %s3902, 8
        %s3904 = scalar_lea.vmem %s6, %s3903
        // Predicated region
        $region41: #{bahdanau_attention.1} parent=39 // pred_check
          %p3905 = pneg %p155
        $region42: #{bahdanau_attention.1} parent=39 // pred_check_branch
          %3907 = sbr.rel (%p3905) target = $region44
        $region43: #{bahdanau_attention.1} parent=39 // pred_region
          %s3909 = ssub.s32 256, 256
          %3910 = vsyncadd %s3897, %s3909
          %s3911 = smul.addr %s22, 2
          %s3912 = smul.addr %s3911, 128
          %s3913 = scalar_lea.hbm %s5, %s3912
          %s3915 = sshll.u32 %s3900, 4
          %s3916 = int_to_ptr.vmem [resolvable:$true] %s3915
          %3918 = dma.vmem_to_hbm [thread:$0]  %s3916, 256, %s3913, %s3897
        $region44: #{bahdanau_attention.1} parent=39 // pred_fallthru
          _
        // Predicated region
        $region45: #{bahdanau_attention.1} parent=39 // pred_check
          %p3919 = pneg %p181
        $region46: #{bahdanau_attention.1} parent=39 // pred_check_branch
          %3921 = sbr.rel (%p3919) target = $region48
        $region47: #{bahdanau_attention.1} parent=39 // pred_region
          _
        $region48: #{bahdanau_attention.1} parent=39 // pred_fallthru
          _
      $region40: #{bahdanau_attention.1} parent=5 // pred_fallthru
        _
      %p3922 = scmp.le.s32.totalorder 2, %s17
      // Predicated region
      $region49: #{bahdanau_attention.1} parent=5 // pred_check
        %p3923 = pneg %p3922
      $region50: #{bahdanau_attention.1} parent=5 // pred_check_branch
        %3925 = sbr.rel (%p3923) target = $region52
      $region51: #{bahdanau_attention.1} parent=5 // pred_region
        %s3926 = ssub.s32 %s17, 2
        // Predicated region
        $region53: #{bahdanau_attention.1} parent=51 // pred_check
          %p3927 = pneg %p161
        $region54: #{bahdanau_attention.1} parent=51 // pred_check_branch
          %3929 = sbr.rel (%p3927) target = $region56
        $region55: #{bahdanau_attention.1} parent=51 // pred_region
          %s3930 = sand.u32 %s146, 1
          %s3931 = scalar_lea.sflag [#allocation5], %s3930
          %s3932 = sand.u32 %s146, 1
          %s3933 = smul.addr %s3932, 16
          %s3934 = scalar_lea.vmem [#allocation4], %s3933
          %3935 = dma.done %s3931, 256
        $region56: #{bahdanau_attention.1} parent=51 // pred_fallthru
          _
        // Predicated region
        $region57: #{bahdanau_attention.1} parent=51 // pred_check
          %p3936 = pneg %p187
        $region58: #{bahdanau_attention.1} parent=51 // pred_check_branch
          %3938 = sbr.rel (%p3936) target = $region60
        $region59: #{bahdanau_attention.1} parent=51 // pred_region
          %p3939 = scmp.lt.s32.totalorder %s23, 1
          %s3940 = scalar_select %p3939, %s23, 1
          %s3941 = smul.addr %s3940, 8
          %s3942 = scalar_lea.vmem %s6, %s3941
        $region60: #{bahdanau_attention.1} parent=51 // pred_fallthru
          _
      $region52: #{bahdanau_attention.1} parent=5 // pred_fallthru
        _
    $region6: #{bahdanau_attention.1} parent=1 // loop_footer
      %s21 = sadd.s32 1, %s17
    $region7: #{bahdanau_attention.1} parent=1 // loop_footer_branch
      %16 = sbr.rel target = $region3
    $region8: #{bahdanau_attention.1} parent=1 // loop_exit
      _
    %3943 = vsyncpa [#allocation5], 1
    %s3944 = scalar_lea.sflag [#allocation5], 1
    %3945 = vsyncpa %s3944, 1

// kernel: bahdanau_attention.1
$region0: #{bahdanau_attention.1}
  #allocation0 [shape = 'u32[]', space=smem, size = 0x4, offset = 0x4, fixed_abs, tag = 'smem constant byte address 0x4 - core index']
  #allocation1 [shape = 'u32[144,128]{1,0:T(1,128)}', space=vmem, size = 0x12000, scoped, tag = 'internal scratch']
  #allocation2 [shape = 'f32[8,128]{1,0:T(8,128)}', space=vmem, size = 0x1000, scoped, tag = 'scratch operand']
  #allocation3 [shape = 'f32[1,1]{1,0:T(1,128)S(6)}', space=smem, size = 0x200, scoped, tag = 'scoped memory for bahdanau_attention.1']
  %s0 = inlined_call_operand.vmem [shape: f32[16,128,256], index: 0, kind: input, shape index: {}]
  %s1 = inlined_call_operand.vmem [shape: f32[16,128], index: 1, kind: input, shape index: {}]
  %s2 = inlined_call_operand.vmem [shape: f32[256,128], index: 2, kind: input, shape index: {}]
  %s3 = inlined_call_operand.vmem [shape: f32[1,128], index: 3, kind: input, shape index: {}]
  %s4 = inlined_call_operand.<no memory space> [shape: f32[1,1], index: 4, kind: input, shape index: {}]
  %s5 = inlined_call_operand.hbm [shape: f32[16,256], index: 5, kind: output, shape index: {0}]
  %s6 = inlined_call_operand.vmem [shape: f32[16,128], index: 6, kind: output, shape index: {1}]
  %7 = xla_tuple %s5, %s6
  %s8 = sld [smem:[#allocation0]]
  $region61: #{bahdanau_attention.1} parent=0
    _
  %s10 = ssub.s32 1, %s8
  %s11 = scalar_select 0, %s10, %s8
  %12 = sst [smem:[#allocation3]] %s4
  $region1: #{bahdanau_attention.1} parent=0
    #allocation4 [shape = 'u8[16384]{0}', space=vmem, size = 0x4000, scoped, tag = 'output window, operand 0']
    #allocation5 [shape = 's32[2]{0}', space=sflag, size = 0x8, scoped, tag = 'scoped memory for bahdanau_attention.1']
    %13 = vsyncpa [#allocation5], 0
    %s14 = scalar_lea.sflag [#allocation5], 1
    %15 = vsyncpa %s14, 0
    loop: start=0, step=1, limit=4
    $region2: #{bahdanau_attention.1} parent=1 // loop_pre_header
      _
    $region3: #{bahdanau_attention.1} parent=1 // loop_header
      %s17 = sphi 0, %s21
      %p18 = scmp.ge.s32.totalorder %s17, 4
      %s27 = sphi 0, %s29
      %s30 = sphi 0, %s27
      %s31 = sphi 0, %s30
      %s47 = sphi 0, %s31
      %s53 = sphi 0, %s55
      %s56 = sphi 0, %s53
      %s57 = sphi 0, %s56
      %s73 = sphi 0, %s57
      %s77 = sphi 0, %s77
      %s79 = sphi 0, %s77
      %s80 = sphi 0, %s79
      %s94 = sphi 0, %s80
      %s98 = sphi 0, %s98
      %s100 = sphi 0, %s98
      %s101 = sphi 0, %s100
      %s115 = sphi 0, %s101
      %s119 = sphi 0, %s119
      %s121 = sphi 0, %s119
      %s122 = sphi 0, %s121
      %s136 = sphi 0, %s122
      %s142 = sphi 0, %s144
      %s145 = sphi 0, %s142
      %s146 = sphi 0, %s145
      %s162 = sphi 0, %s146
      %s168 = sphi 0, %s170
      %s171 = sphi 0, %s168
      %s172 = sphi 0, %s171
      %s188 = sphi 0, %s172
    $region4: #{bahdanau_attention.1} parent=1 // loop_header_branch
      %20 = sbr.rel (%p18) target = $region8
    $region5: #{bahdanau_attention.1} parent=1 // loop_body
      %s22 = ssub.s32 %s17, 1
      %s23 = ssub.s32 %s17, 2
      %s24 = sadd.s32 %s17, 1
      %s25 = ssub.s32 %s17, %s24
      %p26 = scmp.eq.s32.totalorder %s25, 0
      %s28 = sadd.s32 %s27, 1
      %s29 = scalar_select %p26, %s27, %s28
      %p32 = pneg %p26
      %p33 = scmp.eq.s32.totalorder %s17, 1
      %p34 = por %p32, %p33
      %p35 = scmp.ne.s32.totalorder %s27, %s30
      %p36 = scmp.eq.s32.totalorder %s17, 0
      %p37 = por %p35, %p36
      %p38 = scmp.ne.s32.totalorder %s27, %s30
      %p39 = scmp.eq.s32.totalorder %s22, 1
      %p40 = por %p38, %p39
      %p41 = scmp.ne.s32.totalorder %s30, %s31
      %p42 = scmp.eq.s32.totalorder %s22, 0
      %p43 = por %p41, %p42
      %p44 = scmp.ne.s32.totalorder %s30, %s31
      %p45 = scmp.eq.s32.totalorder %s23, 1
      %p46 = por %p44, %p45
      %p48 = scmp.ne.s32.totalorder %s31, %s47
      %p49 = scmp.eq.s32.totalorder %s23, 0
      %p50 = por %p48, %p49
      %s51 = ssub.s32 %s17, %s24
      %p52 = scmp.eq.s32.totalorder %s51, 0
      %s54 = sadd.s32 %s53, 1
      %s55 = scalar_select %p52, %s53, %s54
      %p58 = pneg %p52
      %p59 = scmp.eq.s32.totalorder %s17, 1
      %p60 = por %p58, %p59
      %p61 = scmp.ne.s32.totalorder %s53, %s56
      %p62 = scmp.eq.s32.totalorder %s17, 0
      %p63 = por %p61, %p62
      %p64 = scmp.ne.s32.totalorder %s53, %s56
      %p65 = scmp.eq.s32.totalorder %s22, 1
      %p66 = por %p64, %p65
      %p67 = scmp.ne.s32.totalorder %s56, %s57
      %p68 = scmp.eq.s32.totalorder %s22, 0
      %p69 = por %p67, %p68
      %p70 = scmp.ne.s32.totalorder %s56, %s57
      %p71 = scmp.eq.s32.totalorder %s23, 1
      %p72 = por %p70, %p71
      %p74 = scmp.ne.s32.totalorder %s57, %s73
      %p75 = scmp.eq.s32.totalorder %s23, 0
      %p76 = por %p74, %p75
      %s78 = sadd.s32 %s77, 1
      %p81 = scmp.eq.s32.totalorder %s17, 1
      %p82 = scmp.ne.s32.totalorder %s77, %s79
      %p83 = scmp.eq.s32.totalorder %s17, 0
      %p84 = por %p82, %p83
      %p85 = scmp.ne.s32.totalorder %s77, %s79
      %p86 = scmp.eq.s32.totalorder %s22, 1
      %p87 = por %p85, %p86
      %p88 = scmp.ne.s32.totalorder %s79, %s80
      %p89 = scmp.eq.s32.totalorder %s22, 0
      %p90 = por %p88, %p89
      %p91 = scmp.ne.s32.totalorder %s79, %s80
      %p92 = scmp.eq.s32.totalorder %s23, 1
      %p93 = por %p91, %p92
      %p95 = scmp.ne.s32.totalorder %s80, %s94
      %p96 = scmp.eq.s32.totalorder %s23, 0
      %p97 = por %p95, %p96
      %s99 = sadd.s32 %s98, 1
      %p102 = scmp.eq.s32.totalorder %s17, 1
      %p103 = scmp.ne.s32.totalorder %s98, %s100
      %p104 = scmp.eq.s32.totalorder %s17, 0
      %p105 = por %p103, %p104
      %p106 = scmp.ne.s32.totalorder %s98, %s100
      %p107 = scmp.eq.s32.totalorder %s22, 1
      %p108 = por %p106, %p107
      %p109 = scmp.ne.s32.totalorder %s100, %s101
      %p110 = scmp.eq.s32.totalorder %s22, 0
      %p111 = por %p109, %p110
      %p112 = scmp.ne.s32.totalorder %s100, %s101
      %p113 = scmp.eq.s32.totalorder %s23, 1
      %p114 = por %p112, %p113
      %p116 = scmp.ne.s32.totalorder %s101, %s115
      %p117 = scmp.eq.s32.totalorder %s23, 0
      %p118 = por %p116, %p117
      %s120 = sadd.s32 %s119, 1
      %p123 = scmp.eq.s32.totalorder %s17, 1
      %p124 = scmp.ne.s32.totalorder %s119, %s121
      %p125 = scmp.eq.s32.totalorder %s17, 0
      %p126 = por %p124, %p125
      %p127 = scmp.ne.s32.totalorder %s119, %s121
      %p128 = scmp.eq.s32.totalorder %s22, 1
      %p129 = por %p127, %p128
      %p130 = scmp.ne.s32.totalorder %s121, %s122
      %p131 = scmp.eq.s32.totalorder %s22, 0
      %p132 = por %p130, %p131
      %p133 = scmp.ne.s32.totalorder %s121, %s122
      %p134 = scmp.eq.s32.totalorder %s23, 1
      %p135 = por %p133, %p134
      %p137 = scmp.ne.s32.totalorder %s122, %s136
      %p138 = scmp.eq.s32.totalorder %s23, 0
      %p139 = por %p137, %p138
      %s140 = ssub.s32 %s17, %s24
      %p141 = scmp.eq.s32.totalorder %s140, 0
      %s143 = sadd.s32 %s142, 1
      %s144 = scalar_select %p141, %s142, %s143
      %p147 = pneg %p141
      %p148 = scmp.eq.s32.totalorder %s17, 1
      %p149 = por %p147, %p148
      %p150 = scmp.ne.s32.totalorder %s142, %s145
      %p151 = scmp.eq.s32.totalorder %s17, 0
      %p152 = por %p150, %p151
      %p153 = scmp.ne.s32.totalorder %s142, %s145
      %p154 = scmp.eq.s32.totalorder %s22, 1
      %p155 = por %p153, %p154
      %p156 = scmp.ne.s32.totalorder %s145, %s146
      %p157 = scmp.eq.s32.totalorder %s22, 0
      %p158 = por %p156, %p157
      %p159 = scmp.ne.s32.totalorder %s145, %s146
      %p160 = scmp.eq.s32.totalorder %s23, 1
      %p161 = por %p159, %p160
      %p163 = scmp.ne.s32.totalorder %s146, %s162
      %p164 = scmp.eq.s32.totalorder %s23, 0
      %p165 = por %p163, %p164
      %s166 = ssub.s32 %s17, %s24
      %p167 = scmp.eq.s32.totalorder %s166, 0
      %s169 = sadd.s32 %s168, 1
      %s170 = scalar_select %p167, %s168, %s169
      %p173 = pneg %p167
      %p174 = scmp.eq.s32.totalorder %s17, 1
      %p175 = por %p173, %p174
      %p176 = scmp.ne.s32.totalorder %s168, %s171
      %p177 = scmp.eq.s32.totalorder %s17, 0
      %p178 = por %p176, %p177
      %p179 = scmp.ne.s32.totalorder %s168, %s171
      %p180 = scmp.eq.s32.totalorder %s22, 1
      %p181 = por %p179, %p180
      %p182 = scmp.ne.s32.totalorder %s171, %s172
      %p183 = scmp.eq.s32.totalorder %s22, 0
      %p184 = por %p182, %p183
      %p185 = scmp.ne.s32.totalorder %s171, %s172
      %p186 = scmp.eq.s32.totalorder %s23, 1
      %p187 = por %p185, %p186
      %p189 = scmp.ne.s32.totalorder %s172, %s188
      %p190 = scmp.eq.s32.totalorder %s23, 0
      %p191 = por %p189, %p190
      %p192 = scmp.le.s32.totalorder 1, %s17
      %p193 = scmp.lt.s32.totalorder %s17, 3
      %p194 = pnand %p192, %p193
      %p195 = pneg %p194
      // Predicated region
      $region9: #{bahdanau_attention.1} parent=5 // pred_check
        _
      $region10: #{bahdanau_attention.1} parent=5 // pred_check_branch
        %197 = sbr.rel (%p194) target = $region12
      $region11: #{bahdanau_attention.1} parent=5 // pred_region
        %s198 = ssub.s32 %s17, 1
        // Predicated region
        $region13: #{bahdanau_attention.1} parent=11 // pred_check
          %p199 = pneg %p90
        $region14: #{bahdanau_attention.1} parent=11 // pred_check_branch
          %201 = sbr.rel (%p199) target = $region16
        $region15: #{bahdanau_attention.1} parent=11 // pred_region
          _
        $region16: #{bahdanau_attention.1} parent=11 // pred_fallthru
          _
        // Predicated region
        $region17: #{bahdanau_attention.1} parent=11 // pred_check
          %p202 = pneg %p111
        $region18: #{bahdanau_attention.1} parent=11 // pred_check_branch
          %204 = sbr.rel (%p202) target = $region20
        $region19: #{bahdanau_attention.1} parent=11 // pred_region
          _
        $region20: #{bahdanau_attention.1} parent=11 // pred_fallthru
          _
        // Predicated region
        $region21: #{bahdanau_attention.1} parent=11 // pred_check
          %p205 = pneg %p132
        $region22: #{bahdanau_attention.1} parent=11 // pred_check_branch
          %207 = sbr.rel (%p205) target = $region24
        $region23: #{bahdanau_attention.1} parent=11 // pred_region
          _
        $region24: #{bahdanau_attention.1} parent=11 // pred_fallthru
          _
      $region12: #{bahdanau_attention.1} parent=5 // pred_fallthru
        _
      %p208 = scmp.lt.s32.totalorder %s17, 2
      // Predicated region
      $region25: #{bahdanau_attention.1} parent=5 // pred_check
        %p209 = pneg %p208
      $region26: #{bahdanau_attention.1} parent=5 // pred_check_branch
        %211 = sbr.rel (%p209) target = $region28
      $region27: #{bahdanau_attention.1} parent=5 // pred_region
        // Predicated region
        $region29: #{bahdanau_attention.1} parent=27 // pred_check
          %p212 = pneg %p37
        $region30: #{bahdanau_attention.1} parent=27 // pred_check_branch
          %214 = sbr.rel (%p212) target = $region32
        $region31: #{bahdanau_attention.1} parent=27 // pred_region
          %s215 = smul.u32 8, %s17
          %p216 = scmp.lt.s32.totalorder %s215, 15
          %s217 = scalar_select %p216, %s215, 15
          %s218 = smul.addr %s217, 32
          %s219 = smul.addr %s218, 8
          %s220 = scalar_lea.vmem %s0, %s219
          %s221 = smul.u32 8, %s17
        $region32: #{bahdanau_attention.1} parent=27 // pred_fallthru
          _
        // Predicated region
        $region33: #{bahdanau_attention.1} parent=27 // pred_check
          %p222 = pneg %p63
        $region34: #{bahdanau_attention.1} parent=27 // pred_check_branch
          %224 = sbr.rel (%p222) target = $region36
        $region35: #{bahdanau_attention.1} parent=27 // pred_region
          %p225 = scmp.lt.s32.totalorder %s17, 1
          %s226 = scalar_select %p225, %s17, 1
          %s227 = smul.addr %s226, 8
          %s228 = scalar_lea.vmem %s1, %s227
        $region36: #{bahdanau_attention.1} parent=27 // pred_fallthru
          _
      $region28: #{bahdanau_attention.1} parent=5 // pred_fallthru
        _
      %p229 = scmp.le.s32.totalorder 1, %s17
      %p230 = scmp.lt.s32.totalorder %s17, 3
      %p231 = pnand %p229, %p230
      %p232 = pneg %p231
      // Predicated region
      $region37: #{bahdanau_attention.1} parent=5 // pred_check
        _
      $region38: #{bahdanau_attention.1} parent=5 // pred_check_branch
        %234 = sbr.rel (%p231) target = $region40
      $region39: #{bahdanau_attention.1} parent=5 // pred_region
        %s235 = ssub.s32 %s17, 1
        %s236 = smul.u32 8, %s22
        %p237 = scmp.lt.s32.totalorder %s236, 15
        %s238 = scalar_select %p237, %s236, 15
        %s239 = smul.addr %s238, 32
        %s240 = smul.addr %s239, 8
        %s241 = scalar_lea.vmem %s0, %s240
        %p242 = pneg %p43
        %p243 = pneg %p40
        %p244 = scmp.lt.s32.totalorder %s22, 1
        %s245 = scalar_select %p244, %s22, 1
        %s246 = smul.addr %s245, 8
        %s247 = scalar_lea.vmem %s1, %s246
        %p248 = pneg %p69
        %p249 = pneg %p66
        %p250 = pneg %p90
        %p251 = pneg %p87
        %p252 = pneg %p111
        %p253 = pneg %p108
        %p254 = pneg %p132
        %p255 = pneg %p129
        %p256 = pneg %p158
        %p257 = pneg %p155
        %s258 = sand.u32 %s145, 1
        %s259 = scalar_lea.sflag [#allocation5], %s258
        %s260 = sand.u32 %s145, 1
        %s261 = smul.addr %s260, 16
        %s262 = scalar_lea.vmem [#allocation4], %s261
        %p263 = pneg %p184
        %p264 = pneg %p181
        %p265 = scmp.lt.s32.totalorder %s22, 1
        %s266 = scalar_select %p265, %s22, 1
        %s267 = smul.addr %s266, 8
        %s268 = scalar_lea.vmem %s6, %s267
        %s269 = smul.u32 8, %s22
        %p270 = scmp.lt.s32.totalorder %s269, 15
        %s271 = scalar_select %p270, %s269, 15
        %s272 = smul.addr %s271, 32
        %s273 = smul.addr %s272, 8
        %s274 = scalar_lea.vmem %s0, %s273
        %s275 = smul.u32 8, %s22
        %p276 = scmp.lt.s32.totalorder %s22, 1
        %s277 = scalar_select %p276, %s22, 1
        %s278 = smul.addr %s277, 8
        %s279 = scalar_lea.vmem %s1, %s278
        %p280 = scmp.lt.s32.totalorder %s22, 1
        %s281 = scalar_select %p280, %s22, 1
        %s282 = smul.addr %s281, 8
        %s283 = scalar_lea.vmem %s6, %s282
        %v284 = vld [vmem:[%s279] sm:$0xff]
        %v285 = vld [vmem:[%s3] sm:$0x1]
        %s286 = sld [smem:[#allocation3]]
        %v287 = vld [vmem:[%s274] sm:$0xff]
        %v288 = vld [vmem:[%s274 + $0x8] sm:$0xff]
        %v289 = vld [vmem:[%s274 + $0x10] sm:$0xff]
        %v290 = vld [vmem:[%s274 + $0x18] sm:$0xff]
        %v291 = vld [vmem:[%s274 + $0x20] sm:$0xff]
        %v292 = vld [vmem:[%s274 + $0x28] sm:$0xff]
        %v293 = vld [vmem:[%s274 + $0x30] sm:$0xff]
        %v294 = vld [vmem:[%s274 + $0x38] sm:$0xff]
        %v295 = vld [vmem:[%s274 + $0x40] sm:$0xff]
        %v296 = vld [vmem:[%s274 + $0x48] sm:$0xff]
        %v297 = vld [vmem:[%s274 + $0x50] sm:$0xff]
        %v298 = vld [vmem:[%s274 + $0x58] sm:$0xff]
        %v299 = vld [vmem:[%s274 + $0x60] sm:$0xff]
        %v300 = vld [vmem:[%s274 + $0x68] sm:$0xff]
        %v301 = vld [vmem:[%s274 + $0x70] sm:$0xff]
        %v302 = vld [vmem:[%s274 + $0x78] sm:$0xff]
        %v303 = vld [vmem:[%s274 + $0x80] sm:$0xff]
        %v304 = vld [vmem:[%s274 + $0x88] sm:$0xff]
        %v305 = vld [vmem:[%s274 + $0x90] sm:$0xff]
        %v306 = vld [vmem:[%s274 + $0x98] sm:$0xff]
        %v307 = vld [vmem:[%s274 + $0xa0] sm:$0xff]
        %v308 = vld [vmem:[%s274 + $0xa8] sm:$0xff]
        %v309 = vld [vmem:[%s274 + $0xb0] sm:$0xff]
        %v310 = vld [vmem:[%s274 + $0xb8] sm:$0xff]
        %v311 = vld [vmem:[%s274 + $0xc0] sm:$0xff]
        %v312 = vld [vmem:[%s274 + $0xc8] sm:$0xff]
        %v313 = vld [vmem:[%s274 + $0xd0] sm:$0xff]
        %v314 = vld [vmem:[%s274 + $0xd8] sm:$0xff]
        %v315 = vld [vmem:[%s274 + $0xe0] sm:$0xff]
        %v316 = vld [vmem:[%s274 + $0xe8] sm:$0xff]
        %v317 = vld [vmem:[%s274 + $0xf0] sm:$0xff]
        %v318 = vld [vmem:[%s274 + $0xf8] sm:$0xff]
        %v319 = vld [vmem:[%s274 + $0x100] sm:$0xff]
        %v320 = vld [vmem:[%s274 + $0x108] sm:$0xff]
        %v321 = vld [vmem:[%s274 + $0x110] sm:$0xff]
        %v322 = vld [vmem:[%s274 + $0x118] sm:$0xff]
        %v323 = vld [vmem:[%s274 + $0x120] sm:$0xff]
        %v324 = vld [vmem:[%s274 + $0x128] sm:$0xff]
        %v325 = vld [vmem:[%s274 + $0x130] sm:$0xff]
        %v326 = vld [vmem:[%s274 + $0x138] sm:$0xff]
        %v327 = vld [vmem:[%s274 + $0x140] sm:$0xff]
        %v328 = vld [vmem:[%s274 + $0x148] sm:$0xff]
        %v329 = vld [vmem:[%s274 + $0x150] sm:$0xff]
        %v330 = vld [vmem:[%s274 + $0x158] sm:$0xff]
        %v331 = vld [vmem:[%s274 + $0x160] sm:$0xff]
        %v332 = vld [vmem:[%s274 + $0x168] sm:$0xff]
        %v333 = vld [vmem:[%s274 + $0x170] sm:$0xff]
        %v334 = vld [vmem:[%s274 + $0x178] sm:$0xff]
        %v335 = vld [vmem:[%s274 + $0x180] sm:$0xff]
        %v336 = vld [vmem:[%s274 + $0x188] sm:$0xff]
        %v337 = vld [vmem:[%s274 + $0x190] sm:$0xff]
        %v338 = vld [vmem:[%s274 + $0x198] sm:$0xff]
        %v339 = vld [vmem:[%s274 + $0x1a0] sm:$0xff]
        %v340 = vld [vmem:[%s274 + $0x1a8] sm:$0xff]
        %v341 = vld [vmem:[%s274 + $0x1b0] sm:$0xff]
        %v342 = vld [vmem:[%s274 + $0x1b8] sm:$0xff]
        %v343 = vld [vmem:[%s274 + $0x1c0] sm:$0xff]
        %v344 = vld [vmem:[%s274 + $0x1c8] sm:$0xff]
        %v345 = vld [vmem:[%s274 + $0x1d0] sm:$0xff]
        %v346 = vld [vmem:[%s274 + $0x1d8] sm:$0xff]
        %v347 = vld [vmem:[%s274 + $0x1e0] sm:$0xff]
        %v348 = vld [vmem:[%s274 + $0x1e8] sm:$0xff]
        %v349 = vld [vmem:[%s274 + $0x1f0] sm:$0xff]
        %v350 = vld [vmem:[%s274 + $0x1f8] sm:$0xff]
        %v351 = vld [vmem:[%s274 + $0x200] sm:$0xff]
        %v352 = vld [vmem:[%s274 + $0x208] sm:$0xff]
        %v353 = vld [vmem:[%s274 + $0x210] sm:$0xff]
        %v354 = vld [vmem:[%s274 + $0x218] sm:$0xff]
        %v355 = vld [vmem:[%s274 + $0x220] sm:$0xff]
        %v356 = vld [vmem:[%s274 + $0x228] sm:$0xff]
        %v357 = vld [vmem:[%s274 + $0x230] sm:$0xff]
        %v358 = vld [vmem:[%s274 + $0x238] sm:$0xff]
        %v359 = vld [vmem:[%s274 + $0x240] sm:$0xff]
        %v360 = vld [vmem:[%s274 + $0x248] sm:$0xff]
        %v361 = vld [vmem:[%s274 + $0x250] sm:$0xff]
        %v362 = vld [vmem:[%s274 + $0x258] sm:$0xff]
        %v363 = vld [vmem:[%s274 + $0x260] sm:$0xff]
        %v364 = vld [vmem:[%s274 + $0x268] sm:$0xff]
        %v365 = vld [vmem:[%s274 + $0x270] sm:$0xff]
        %v366 = vld [vmem:[%s274 + $0x278] sm:$0xff]
        %v367 = vld [vmem:[%s274 + $0x280] sm:$0xff]
        %v368 = vld [vmem:[%s274 + $0x288] sm:$0xff]
        %v369 = vld [vmem:[%s274 + $0x290] sm:$0xff]
        %v370 = vld [vmem:[%s274 + $0x298] sm:$0xff]
        %v371 = vld [vmem:[%s274 + $0x2a0] sm:$0xff]
        %v372 = vld [vmem:[%s274 + $0x2a8] sm:$0xff]
        %v373 = vld [vmem:[%s274 + $0x2b0] sm:$0xff]
        %v374 = vld [vmem:[%s274 + $0x2b8] sm:$0xff]
        %v375 = vld [vmem:[%s274 + $0x2c0] sm:$0xff]
        %v376 = vld [vmem:[%s274 + $0x2c8] sm:$0xff]
        %v377 = vld [vmem:[%s274 + $0x2d0] sm:$0xff]
        %v378 = vld [vmem:[%s274 + $0x2d8] sm:$0xff]
        %v379 = vld [vmem:[%s274 + $0x2e0] sm:$0xff]
        %v380 = vld [vmem:[%s274 + $0x2e8] sm:$0xff]
        %v381 = vld [vmem:[%s274 + $0x2f0] sm:$0xff]
        %v382 = vld [vmem:[%s274 + $0x2f8] sm:$0xff]
        %v383 = vld [vmem:[%s274 + $0x300] sm:$0xff]
        %v384 = vld [vmem:[%s274 + $0x308] sm:$0xff]
        %v385 = vld [vmem:[%s274 + $0x310] sm:$0xff]
        %v386 = vld [vmem:[%s274 + $0x318] sm:$0xff]
        %v387 = vld [vmem:[%s274 + $0x320] sm:$0xff]
        %v388 = vld [vmem:[%s274 + $0x328] sm:$0xff]
        %v389 = vld [vmem:[%s274 + $0x330] sm:$0xff]
        %v390 = vld [vmem:[%s274 + $0x338] sm:$0xff]
        %v391 = vld [vmem:[%s274 + $0x340] sm:$0xff]
        %v392 = vld [vmem:[%s274 + $0x348] sm:$0xff]
        %v393 = vld [vmem:[%s274 + $0x350] sm:$0xff]
        %v394 = vld [vmem:[%s274 + $0x358] sm:$0xff]
        %v395 = vld [vmem:[%s274 + $0x360] sm:$0xff]
        %v396 = vld [vmem:[%s274 + $0x368] sm:$0xff]
        %v397 = vld [vmem:[%s274 + $0x370] sm:$0xff]
        %v398 = vld [vmem:[%s274 + $0x378] sm:$0xff]
        %v399 = vld [vmem:[%s274 + $0x380] sm:$0xff]
        %v400 = vld [vmem:[%s274 + $0x388] sm:$0xff]
        %v401 = vld [vmem:[%s274 + $0x390] sm:$0xff]
        %v402 = vld [vmem:[%s274 + $0x398] sm:$0xff]
        %v403 = vld [vmem:[%s274 + $0x3a0] sm:$0xff]
        %v404 = vld [vmem:[%s274 + $0x3a8] sm:$0xff]
        %v405 = vld [vmem:[%s274 + $0x3b0] sm:$0xff]
        %v406 = vld [vmem:[%s274 + $0x3b8] sm:$0xff]
        %v407 = vld [vmem:[%s274 + $0x3c0] sm:$0xff]
        %v408 = vld [vmem:[%s274 + $0x3c8] sm:$0xff]
        %v409 = vld [vmem:[%s274 + $0x3d0] sm:$0xff]
        %v410 = vld [vmem:[%s274 + $0x3d8] sm:$0xff]
        %v411 = vld [vmem:[%s274 + $0x3e0] sm:$0xff]
        %v412 = vld [vmem:[%s274 + $0x3e8] sm:$0xff]
        %v413 = vld [vmem:[%s274 + $0x3f0] sm:$0xff]
        %v414 = vld [vmem:[%s274 + $0x3f8] sm:$0xff]
        %v415 = vld [vmem:[%s274 + $0x400] sm:$0xff]
        %v416 = vld [vmem:[%s274 + $0x408] sm:$0xff]
        %v417 = vld [vmem:[%s274 + $0x410] sm:$0xff]
        %v418 = vld [vmem:[%s274 + $0x418] sm:$0xff]
        %v419 = vld [vmem:[%s274 + $0x420] sm:$0xff]
        %v420 = vld [vmem:[%s274 + $0x428] sm:$0xff]
        %v421 = vld [vmem:[%s274 + $0x430] sm:$0xff]
        %v422 = vld [vmem:[%s274 + $0x438] sm:$0xff]
        %v423 = vld [vmem:[%s274 + $0x440] sm:$0xff]
        %v424 = vld [vmem:[%s274 + $0x448] sm:$0xff]
        %v425 = vld [vmem:[%s274 + $0x450] sm:$0xff]
        %v426 = vld [vmem:[%s274 + $0x458] sm:$0xff]
        %v427 = vld [vmem:[%s274 + $0x460] sm:$0xff]
        %v428 = vld [vmem:[%s274 + $0x468] sm:$0xff]
        %v429 = vld [vmem:[%s274 + $0x470] sm:$0xff]
        %v430 = vld [vmem:[%s274 + $0x478] sm:$0xff]
        %v431 = vld [vmem:[%s274 + $0x480] sm:$0xff]
        %v432 = vld [vmem:[%s274 + $0x488] sm:$0xff]
        %v433 = vld [vmem:[%s274 + $0x490] sm:$0xff]
        %v434 = vld [vmem:[%s274 + $0x498] sm:$0xff]
        %v435 = vld [vmem:[%s274 + $0x4a0] sm:$0xff]
        %v436 = vld [vmem:[%s274 + $0x4a8] sm:$0xff]
        %v437 = vld [vmem:[%s274 + $0x4b0] sm:$0xff]
        %v438 = vld [vmem:[%s274 + $0x4b8] sm:$0xff]
        %v439 = vld [vmem:[%s274 + $0x4c0] sm:$0xff]
        %v440 = vld [vmem:[%s274 + $0x4c8] sm:$0xff]
        %v441 = vld [vmem:[%s274 + $0x4d0] sm:$0xff]
        %v442 = vld [vmem:[%s274 + $0x4d8] sm:$0xff]
        %v443 = vld [vmem:[%s274 + $0x4e0] sm:$0xff]
        %v444 = vld [vmem:[%s274 + $0x4e8] sm:$0xff]
        %v445 = vld [vmem:[%s274 + $0x4f0] sm:$0xff]
        %v446 = vld [vmem:[%s274 + $0x4f8] sm:$0xff]
        %v447 = vld [vmem:[%s274 + $0x500] sm:$0xff]
        %v448 = vld [vmem:[%s274 + $0x508] sm:$0xff]
        %v449 = vld [vmem:[%s274 + $0x510] sm:$0xff]
        %v450 = vld [vmem:[%s274 + $0x518] sm:$0xff]
        %v451 = vld [vmem:[%s274 + $0x520] sm:$0xff]
        %v452 = vld [vmem:[%s274 + $0x528] sm:$0xff]
        %v453 = vld [vmem:[%s274 + $0x530] sm:$0xff]
        %v454 = vld [vmem:[%s274 + $0x538] sm:$0xff]
        %v455 = vld [vmem:[%s274 + $0x540] sm:$0xff]
        %v456 = vld [vmem:[%s274 + $0x548] sm:$0xff]
        %v457 = vld [vmem:[%s274 + $0x550] sm:$0xff]
        %v458 = vld [vmem:[%s274 + $0x558] sm:$0xff]
        %v459 = vld [vmem:[%s274 + $0x560] sm:$0xff]
        %v460 = vld [vmem:[%s274 + $0x568] sm:$0xff]
        %v461 = vld [vmem:[%s274 + $0x570] sm:$0xff]
        %v462 = vld [vmem:[%s274 + $0x578] sm:$0xff]
        %v463 = vld [vmem:[%s274 + $0x580] sm:$0xff]
        %v464 = vld [vmem:[%s274 + $0x588] sm:$0xff]
        %v465 = vld [vmem:[%s274 + $0x590] sm:$0xff]
        %v466 = vld [vmem:[%s274 + $0x598] sm:$0xff]
        %v467 = vld [vmem:[%s274 + $0x5a0] sm:$0xff]
        %v468 = vld [vmem:[%s274 + $0x5a8] sm:$0xff]
        %v469 = vld [vmem:[%s274 + $0x5b0] sm:$0xff]
        %v470 = vld [vmem:[%s274 + $0x5b8] sm:$0xff]
        %v471 = vld [vmem:[%s274 + $0x5c0] sm:$0xff]
        %v472 = vld [vmem:[%s274 + $0x5c8] sm:$0xff]
        %v473 = vld [vmem:[%s274 + $0x5d0] sm:$0xff]
        %v474 = vld [vmem:[%s274 + $0x5d8] sm:$0xff]
        %v475 = vld [vmem:[%s274 + $0x5e0] sm:$0xff]
        %v476 = vld [vmem:[%s274 + $0x5e8] sm:$0xff]
        %v477 = vld [vmem:[%s274 + $0x5f0] sm:$0xff]
        %v478 = vld [vmem:[%s274 + $0x5f8] sm:$0xff]
        %v479 = vld [vmem:[%s274 + $0x600] sm:$0xff]
        %v480 = vld [vmem:[%s274 + $0x608] sm:$0xff]
        %v481 = vld [vmem:[%s274 + $0x610] sm:$0xff]
        %v482 = vld [vmem:[%s274 + $0x618] sm:$0xff]
        %v483 = vld [vmem:[%s274 + $0x620] sm:$0xff]
        %v484 = vld [vmem:[%s274 + $0x628] sm:$0xff]
        %v485 = vld [vmem:[%s274 + $0x630] sm:$0xff]
        %v486 = vld [vmem:[%s274 + $0x638] sm:$0xff]
        %v487 = vld [vmem:[%s274 + $0x640] sm:$0xff]
        %v488 = vld [vmem:[%s274 + $0x648] sm:$0xff]
        %v489 = vld [vmem:[%s274 + $0x650] sm:$0xff]
        %v490 = vld [vmem:[%s274 + $0x658] sm:$0xff]
        %v491 = vld [vmem:[%s274 + $0x660] sm:$0xff]
        %v492 = vld [vmem:[%s274 + $0x668] sm:$0xff]
        %v493 = vld [vmem:[%s274 + $0x670] sm:$0xff]
        %v494 = vld [vmem:[%s274 + $0x678] sm:$0xff]
        %v495 = vld [vmem:[%s274 + $0x680] sm:$0xff]
        %v496 = vld [vmem:[%s274 + $0x688] sm:$0xff]
        %v497 = vld [vmem:[%s274 + $0x690] sm:$0xff]
        %v498 = vld [vmem:[%s274 + $0x698] sm:$0xff]
        %v499 = vld [vmem:[%s274 + $0x6a0] sm:$0xff]
        %v500 = vld [vmem:[%s274 + $0x6a8] sm:$0xff]
        %v501 = vld [vmem:[%s274 + $0x6b0] sm:$0xff]
        %v502 = vld [vmem:[%s274 + $0x6b8] sm:$0xff]
        %v503 = vld [vmem:[%s274 + $0x6c0] sm:$0xff]
        %v504 = vld [vmem:[%s274 + $0x6c8] sm:$0xff]
        %v505 = vld [vmem:[%s274 + $0x6d0] sm:$0xff]
        %v506 = vld [vmem:[%s274 + $0x6d8] sm:$0xff]
        %v507 = vld [vmem:[%s274 + $0x6e0] sm:$0xff]
        %v508 = vld [vmem:[%s274 + $0x6e8] sm:$0xff]
        %v509 = vld [vmem:[%s274 + $0x6f0] sm:$0xff]
        %v510 = vld [vmem:[%s274 + $0x6f8] sm:$0xff]
        %v511 = vld [vmem:[%s274 + $0x700] sm:$0xff]
        %v512 = vld [vmem:[%s274 + $0x708] sm:$0xff]
        %v513 = vld [vmem:[%s274 + $0x710] sm:$0xff]
        %v514 = vld [vmem:[%s274 + $0x718] sm:$0xff]
        %v515 = vld [vmem:[%s274 + $0x720] sm:$0xff]
        %v516 = vld [vmem:[%s274 + $0x728] sm:$0xff]
        %v517 = vld [vmem:[%s274 + $0x730] sm:$0xff]
        %v518 = vld [vmem:[%s274 + $0x738] sm:$0xff]
        %v519 = vld [vmem:[%s274 + $0x740] sm:$0xff]
        %v520 = vld [vmem:[%s274 + $0x748] sm:$0xff]
        %v521 = vld [vmem:[%s274 + $0x750] sm:$0xff]
        %v522 = vld [vmem:[%s274 + $0x758] sm:$0xff]
        %v523 = vld [vmem:[%s274 + $0x760] sm:$0xff]
        %v524 = vld [vmem:[%s274 + $0x768] sm:$0xff]
        %v525 = vld [vmem:[%s274 + $0x770] sm:$0xff]
        %v526 = vld [vmem:[%s274 + $0x778] sm:$0xff]
        %v527 = vld [vmem:[%s274 + $0x780] sm:$0xff]
        %v528 = vld [vmem:[%s274 + $0x788] sm:$0xff]
        %v529 = vld [vmem:[%s274 + $0x790] sm:$0xff]
        %v530 = vld [vmem:[%s274 + $0x798] sm:$0xff]
        %v531 = vld [vmem:[%s274 + $0x7a0] sm:$0xff]
        %v532 = vld [vmem:[%s274 + $0x7a8] sm:$0xff]
        %v533 = vld [vmem:[%s274 + $0x7b0] sm:$0xff]
        %v534 = vld [vmem:[%s274 + $0x7b8] sm:$0xff]
        %v535 = vld [vmem:[%s274 + $0x7c0] sm:$0xff]
        %v536 = vld [vmem:[%s274 + $0x7c8] sm:$0xff]
        %v537 = vld [vmem:[%s274 + $0x7d0] sm:$0xff]
        %v538 = vld [vmem:[%s274 + $0x7d8] sm:$0xff]
        %v539 = vld [vmem:[%s274 + $0x7e0] sm:$0xff]
        %v540 = vld [vmem:[%s274 + $0x7e8] sm:$0xff]
        %v541 = vld [vmem:[%s274 + $0x7f0] sm:$0xff]
        %v542 = vld [vmem:[%s274 + $0x7f8] sm:$0xff]
        %v543 = vld [vmem:[%s2] sm:$0xff]
        %v544 = vld [vmem:[%s2 + $0x8] sm:$0xff]
        %v545 = vld [vmem:[%s2 + $0x10] sm:$0xff]
        %v546 = vld [vmem:[%s2 + $0x18] sm:$0xff]
        %v547 = vld [vmem:[%s2 + $0x20] sm:$0xff]
        %v548 = vld [vmem:[%s2 + $0x28] sm:$0xff]
        %v549 = vld [vmem:[%s2 + $0x30] sm:$0xff]
        %v550 = vld [vmem:[%s2 + $0x38] sm:$0xff]
        %v551 = vld [vmem:[%s2 + $0x40] sm:$0xff]
        %v552 = vld [vmem:[%s2 + $0x48] sm:$0xff]
        %v553 = vld [vmem:[%s2 + $0x50] sm:$0xff]
        %v554 = vld [vmem:[%s2 + $0x58] sm:$0xff]
        %v555 = vld [vmem:[%s2 + $0x60] sm:$0xff]
        %v556 = vld [vmem:[%s2 + $0x68] sm:$0xff]
        %v557 = vld [vmem:[%s2 + $0x70] sm:$0xff]
        %v558 = vld [vmem:[%s2 + $0x78] sm:$0xff]
        %v559 = vld [vmem:[%s2 + $0x80] sm:$0xff]
        %v560 = vld [vmem:[%s2 + $0x88] sm:$0xff]
        %v561 = vld [vmem:[%s2 + $0x90] sm:$0xff]
        %v562 = vld [vmem:[%s2 + $0x98] sm:$0xff]
        %v563 = vld [vmem:[%s2 + $0xa0] sm:$0xff]
        %v564 = vld [vmem:[%s2 + $0xa8] sm:$0xff]
        %v565 = vld [vmem:[%s2 + $0xb0] sm:$0xff]
        %v566 = vld [vmem:[%s2 + $0xb8] sm:$0xff]
        %v567 = vld [vmem:[%s2 + $0xc0] sm:$0xff]
        %v568 = vld [vmem:[%s2 + $0xc8] sm:$0xff]
        %v569 = vld [vmem:[%s2 + $0xd0] sm:$0xff]
        %v570 = vld [vmem:[%s2 + $0xd8] sm:$0xff]
        %v571 = vld [vmem:[%s2 + $0xe0] sm:$0xff]
        %v572 = vld [vmem:[%s2 + $0xe8] sm:$0xff]
        %v573 = vld [vmem:[%s2 + $0xf0] sm:$0xff]
        %v574 = vld [vmem:[%s2 + $0xf8] sm:$0xff]
        %575 = vmatprep.subr.mxu0 0.0
        %576 = vmatpush1.msra.mxu0 %v543
        %577 = vmatprep.subr.mxu0 0.0
        %578 = vmatpush1.msra.mxu0 %v544
        %579 = vmatprep.subr.mxu0 0.0
        %580 = vmatpush1.msra.mxu0 %v545
        %581 = vmatprep.subr.mxu0 0.0
        %582 = vmatpush1.msra.mxu0 %v546
        %583 = vmatprep.subr.mxu0 0.0
        %584 = vmatpush1.msra.mxu0 %v547
        %585 = vmatprep.subr.mxu0 0.0
        %586 = vmatpush1.msra.mxu0 %v548
        %587 = vmatprep.subr.mxu0 0.0
        %588 = vmatpush1.msra.mxu0 %v549
        %589 = vmatprep.subr.mxu0 0.0
        %590 = vmatpush1.msra.mxu0 %v550
        %591 = vmatprep.subr.mxu0 0.0
        %592 = vmatpush1.msra.mxu0 %v551
        %593 = vmatprep.subr.mxu0 0.0
        %594 = vmatpush1.msra.mxu0 %v552
        %595 = vmatprep.subr.mxu0 0.0
        %596 = vmatpush1.msra.mxu0 %v553
        %597 = vmatprep.subr.mxu0 0.0
        %598 = vmatpush1.msra.mxu0 %v554
        %599 = vmatprep.subr.mxu0 0.0
        %600 = vmatpush1.msra.mxu0 %v555
        %601 = vmatprep.subr.mxu0 0.0
        %602 = vmatpush1.msra.mxu0 %v556
        %603 = vmatprep.subr.mxu0 0.0
        %604 = vmatpush1.msra.mxu0 %v557
        %605 = vmatprep.subr.mxu0 0.0
        %606 = vmatpush1.msra.mxu0 %v558
        %607 = vmatprep.subr.mxu0 0.0
        %608 = vmatpush1.msra.mxu0 %v559
        %609 = vmatprep.subr.mxu0 0.0
        %610 = vmatpush1.msra.mxu0 %v560
        %611 = vmatprep.subr.mxu0 0.0
        %612 = vmatpush1.msra.mxu0 %v561
        %613 = vmatprep.subr.mxu0 0.0
        %614 = vmatpush1.msra.mxu0 %v562
        %615 = vmatprep.subr.mxu0 0.0
        %616 = vmatpush1.msra.mxu0 %v563
        %617 = vmatprep.subr.mxu0 0.0
        %618 = vmatpush1.msra.mxu0 %v564
        %619 = vmatprep.subr.mxu0 0.0
        %620 = vmatpush1.msra.mxu0 %v565
        %621 = vmatprep.subr.mxu0 0.0
        %622 = vmatpush1.msra.mxu0 %v566
        %623 = vmatprep.subr.mxu0 0.0
        %624 = vmatpush1.msra.mxu0 %v567
        %625 = vmatprep.subr.mxu0 0.0
        %626 = vmatpush1.msra.mxu0 %v568
        %627 = vmatprep.subr.mxu0 0.0
        %628 = vmatpush1.msra.mxu0 %v569
        %629 = vmatprep.subr.mxu0 0.0
        %630 = vmatpush1.msra.mxu0 %v570
        %631 = vmatprep.subr.mxu0 0.0
        %632 = vmatpush1.msra.mxu0 %v571
        %633 = vmatprep.subr.mxu0 0.0
        %634 = vmatpush1.msra.mxu0 %v572
        %635 = vmatprep.subr.mxu0 0.0
        %636 = vmatpush1.msra.mxu0 %v573
        %637 = vmatprep.subr.mxu0 0.0
        %638 = vmatpush1.msra.mxu0 %v574
        %639 = vmatprep.mubr.f32.mxu0 %v288
        %640 = vmatmul.mubr.f32.gmra.mrb[0].mxu0 %v287
        %v641 = vpop.f32.mrb[0].mxu0
        %v642 = vadd.f32 0.0, %v641
        %v643 = vpop.f32.mrb[0].mxu0
        %644 = vmatprep.mubr.f32.mxu0 %v290
        %645 = vmatmul.mubr.f32.gmra.mrb[0].mxu0 %v289
        %v646 = vpop.f32.mrb[0].mxu0
        %v647 = vadd.f32 0.0, %v646
        %v648 = vpop.f32.mrb[0].mxu0
        %649 = vmatprep.mubr.f32.mxu0 %v292
        %650 = vmatmul.mubr.f32.gmra.mrb[0].mxu0 %v291
        %v651 = vpop.f32.mrb[0].mxu0
        %v652 = vadd.f32 0.0, %v651
        %v653 = vpop.f32.mrb[0].mxu0
        %654 = vmatprep.mubr.f32.mxu0 %v294
        %655 = vmatmul.mubr.f32.gmra.mrb[0].mxu0 %v293
        %v656 = vpop.f32.mrb[0].mxu0
        %v657 = vadd.f32 0.0, %v656
        %v658 = vpop.f32.mrb[0].mxu0
        %659 = vmatprep.mubr.f32.mxu0 %v296
        %660 = vmatmul.mubr.f32.gmra.mrb[0].mxu0 %v295
        %v661 = vpop.f32.mrb[0].mxu0
        %v662 = vadd.f32 0.0, %v661
        %v663 = vpop.f32.mrb[0].mxu0
        %664 = vmatprep.mubr.f32.mxu0 %v298
        %665 = vmatmul.mubr.f32.gmra.mrb[0].mxu0 %v297
        %v666 = vpop.f32.mrb[0].mxu0
        %v667 = vadd.f32 0.0, %v666
        %v668 = vpop.f32.mrb[0].mxu0
        %669 = vmatprep.mubr.f32.mxu0 %v300
        %670 = vmatmul.mubr.f32.gmra.mrb[0].mxu0 %v299
        %v671 = vpop.f32.mrb[0].mxu0
        %v672 = vadd.f32 0.0, %v671
        %v673 = vpop.f32.mrb[0].mxu0
        %674 = vmatprep.mubr.f32.mxu0 %v302
        %675 = vmatmul.mubr.f32.gmra.mrb[0].mxu0 %v301
        %v676 = vpop.f32.mrb[0].mxu0
        %v677 = vadd.f32 0.0, %v676
        %v678 = vpop.f32.mrb[0].mxu0
        %679 = vmatprep.mubr.f32.mxu0 %v304
        %680 = vmatmul.mubr.f32.gmra.mrb[0].mxu0 %v303
        %v681 = vpop.f32.mrb[0].mxu0
        %v682 = vadd.f32 0.0, %v681
        %v683 = vpop.f32.mrb[0].mxu0
        %684 = vmatprep.mubr.f32.mxu0 %v306
        %685 = vmatmul.mubr.f32.gmra.mrb[0].mxu0 %v305
        %v686 = vpop.f32.mrb[0].mxu0
        %v687 = vadd.f32 0.0, %v686
        %v688 = vpop.f32.mrb[0].mxu0
        %689 = vmatprep.mubr.f32.mxu0 %v308
        %690 = vmatmul.mubr.f32.gmra.mrb[0].mxu0 %v307
        %v691 = vpop.f32.mrb[0].mxu0
        %v692 = vadd.f32 0.0, %v691
        %v693 = vpop.f32.mrb[0].mxu0
        %694 = vmatprep.mubr.f32.mxu0 %v310
        %695 = vmatmul.mubr.f32.gmra.mrb[0].mxu0 %v309
        %v696 = vpop.f32.mrb[0].mxu0
        %v697 = vadd.f32 0.0, %v696
        %v698 = vpop.f32.mrb[0].mxu0
        %699 = vmatprep.mubr.f32.mxu0 %v312
        %700 = vmatmul.mubr.f32.gmra.mrb[0].mxu0 %v311
        %v701 = vpop.f32.mrb[0].mxu0
        %v702 = vadd.f32 0.0, %v701
        %v703 = vpop.f32.mrb[0].mxu0
        %704 = vmatprep.mubr.f32.mxu0 %v314
        %705 = vmatmul.mubr.f32.gmra.mrb[0].mxu0 %v313
        %v706 = vpop.f32.mrb[0].mxu0
        %v707 = vadd.f32 0.0, %v706
        %v708 = vpop.f32.mrb[0].mxu0
        %709 = vmatprep.mubr.f32.mxu0 %v316
        %710 = vmatmul.mubr.f32.gmra.mrb[0].mxu0 %v315
        %v711 = vpop.f32.mrb[0].mxu0
        %v712 = vadd.f32 0.0, %v711
        %v713 = vpop.f32.mrb[0].mxu0
        %714 = vmatprep.mubr.f32.mxu0 %v318
        %715 = vmatmul.mubr.f32.gmra.mrb[0].mxu0 %v317
        %v716 = vpop.f32.mrb[0].mxu0
        %v717 = vadd.f32 0.0, %v716
        %v718 = vpop.f32.mrb[0].mxu0
        %719 = vmatprep.mubr.f32.mxu0 %v320
        %720 = vmatmul.mubr.f32.gmra.mrb[0].mxu0 %v319
        %v721 = vpop.f32.mrb[0].mxu0
        %v722 = vadd.f32 0.0, %v721
        %v723 = vpop.f32.mrb[0].mxu0
        %724 = vmatprep.mubr.f32.mxu0 %v322
        %725 = vmatmul.mubr.f32.gmra.mrb[0].mxu0 %v321
        %v726 = vpop.f32.mrb[0].mxu0
        %v727 = vadd.f32 0.0, %v726
        %v728 = vpop.f32.mrb[0].mxu0
        %729 = vmatprep.mubr.f32.mxu0 %v324
        %730 = vmatmul.mubr.f32.gmra.mrb[0].mxu0 %v323
        %v731 = vpop.f32.mrb[0].mxu0
        %v732 = vadd.f32 0.0, %v731
        %v733 = vpop.f32.mrb[0].mxu0
        %734 = vmatprep.mubr.f32.mxu0 %v326
        %735 = vmatmul.mubr.f32.gmra.mrb[0].mxu0 %v325
        %v736 = vpop.f32.mrb[0].mxu0
        %v737 = vadd.f32 0.0, %v736
        %v738 = vpop.f32.mrb[0].mxu0
        %739 = vmatprep.mubr.f32.mxu0 %v328
        %740 = vmatmul.mubr.f32.gmra.mrb[0].mxu0 %v327
        %v741 = vpop.f32.mrb[0].mxu0
        %v742 = vadd.f32 0.0, %v741
        %v743 = vpop.f32.mrb[0].mxu0
        %744 = vmatprep.mubr.f32.mxu0 %v330
        %745 = vmatmul.mubr.f32.gmra.mrb[0].mxu0 %v329
        %v746 = vpop.f32.mrb[0].mxu0
        %v747 = vadd.f32 0.0, %v746
        %v748 = vpop.f32.mrb[0].mxu0
        %749 = vmatprep.mubr.f32.mxu0 %v332
        %750 = vmatmul.mubr.f32.gmra.mrb[0].mxu0 %v331
        %v751 = vpop.f32.mrb[0].mxu0
        %v752 = vadd.f32 0.0, %v751
        %v753 = vpop.f32.mrb[0].mxu0
        %754 = vmatprep.mubr.f32.mxu0 %v334
        %755 = vmatmul.mubr.f32.gmra.mrb[0].mxu0 %v333
        %v756 = vpop.f32.mrb[0].mxu0
        %v757 = vadd.f32 0.0, %v756
        %v758 = vpop.f32.mrb[0].mxu0
        %759 = vmatprep.mubr.f32.mxu0 %v336
        %760 = vmatmul.mubr.f32.gmra.mrb[0].mxu0 %v335
        %v761 = vpop.f32.mrb[0].mxu0
        %v762 = vadd.f32 0.0, %v761
        %v763 = vpop.f32.mrb[0].mxu0
        %764 = vmatprep.mubr.f32.mxu0 %v338
        %765 = vmatmul.mubr.f32.gmra.mrb[0].mxu0 %v337
        %v766 = vpop.f32.mrb[0].mxu0
        %v767 = vadd.f32 0.0, %v766
        %v768 = vpop.f32.mrb[0].mxu0
        %769 = vmatprep.mubr.f32.mxu0 %v340
        %770 = vmatmul.mubr.f32.gmra.mrb[0].mxu0 %v339
        %v771 = vpop.f32.mrb[0].mxu0
        %v772 = vadd.f32 0.0, %v771
        %v773 = vpop.f32.mrb[0].mxu0
        %774 = vmatprep.mubr.f32.mxu0 %v342
        %775 = vmatmul.mubr.f32.gmra.mrb[0].mxu0 %v341
        %v776 = vpop.f32.mrb[0].mxu0
        %v777 = vadd.f32 0.0, %v776
        %v778 = vpop.f32.mrb[0].mxu0
        %779 = vmatprep.mubr.f32.mxu0 %v344
        %780 = vmatmul.mubr.f32.gmra.mrb[0].mxu0 %v343
        %v781 = vpop.f32.mrb[0].mxu0
        %v782 = vadd.f32 0.0, %v781
        %v783 = vpop.f32.mrb[0].mxu0
        %784 = vmatprep.mubr.f32.mxu0 %v346
        %785 = vmatmul.mubr.f32.gmra.mrb[0].mxu0 %v345
        %v786 = vpop.f32.mrb[0].mxu0
        %v787 = vadd.f32 0.0, %v786
        %v788 = vpop.f32.mrb[0].mxu0
        %789 = vmatprep.mubr.f32.mxu0 %v348
        %790 = vmatmul.mubr.f32.gmra.mrb[0].mxu0 %v347
        %v791 = vpop.f32.mrb[0].mxu0
        %v792 = vadd.f32 0.0, %v791
        %v793 = vpop.f32.mrb[0].mxu0
        %794 = vmatprep.mubr.f32.mxu0 %v350
        %795 = vmatmul.mubr.f32.gmra.mrb[0].mxu0 %v349
        %v796 = vpop.f32.mrb[0].mxu0
        %v797 = vadd.f32 0.0, %v796
        %v798 = vpop.f32.mrb[0].mxu0
        %799 = vmatprep.mubr.f32.mxu0 %v352
        %800 = vmatmul.mubr.f32.gmra.mrb[0].mxu0 %v351
        %v801 = vpop.f32.mrb[0].mxu0
        %v802 = vadd.f32 0.0, %v801
        %v803 = vpop.f32.mrb[0].mxu0
        %804 = vmatprep.mubr.f32.mxu0 %v354
        %805 = vmatmul.mubr.f32.gmra.mrb[0].mxu0 %v353
        %v806 = vpop.f32.mrb[0].mxu0
        %v807 = vadd.f32 0.0, %v806
        %v808 = vpop.f32.mrb[0].mxu0
        %809 = vmatprep.mubr.f32.mxu0 %v356
        %810 = vmatmul.mubr.f32.gmra.mrb[0].mxu0 %v355
        %v811 = vpop.f32.mrb[0].mxu0
        %v812 = vadd.f32 0.0, %v811
        %v813 = vpop.f32.mrb[0].mxu0
        %814 = vmatprep.mubr.f32.mxu0 %v358
        %815 = vmatmul.mubr.f32.gmra.mrb[0].mxu0 %v357
        %v816 = vpop.f32.mrb[0].mxu0
        %v817 = vadd.f32 0.0, %v816
        %v818 = vpop.f32.mrb[0].mxu0
        %819 = vmatprep.mubr.f32.mxu0 %v360
        %820 = vmatmul.mubr.f32.gmra.mrb[0].mxu0 %v359
        %v821 = vpop.f32.mrb[0].mxu0
        %v822 = vadd.f32 0.0, %v821
        %v823 = vpop.f32.mrb[0].mxu0
        %824 = vmatprep.mubr.f32.mxu0 %v362
        %825 = vmatmul.mubr.f32.gmra.mrb[0].mxu0 %v361
        %v826 = vpop.f32.mrb[0].mxu0
        %v827 = vadd.f32 0.0, %v826
        %v828 = vpop.f32.mrb[0].mxu0
        %829 = vmatprep.mubr.f32.mxu0 %v364
        %830 = vmatmul.mubr.f32.gmra.mrb[0].mxu0 %v363
        %v831 = vpop.f32.mrb[0].mxu0
        %v832 = vadd.f32 0.0, %v831
        %v833 = vpop.f32.mrb[0].mxu0
        %834 = vmatprep.mubr.f32.mxu0 %v366
        %835 = vmatmul.mubr.f32.gmra.mrb[0].mxu0 %v365
        %v836 = vpop.f32.mrb[0].mxu0
        %v837 = vadd.f32 0.0, %v836
        %v838 = vpop.f32.mrb[0].mxu0
        %839 = vmatprep.mubr.f32.mxu0 %v368
        %840 = vmatmul.mubr.f32.gmra.mrb[0].mxu0 %v367
        %v841 = vpop.f32.mrb[0].mxu0
        %v842 = vadd.f32 0.0, %v841
        %v843 = vpop.f32.mrb[0].mxu0
        %844 = vmatprep.mubr.f32.mxu0 %v370
        %845 = vmatmul.mubr.f32.gmra.mrb[0].mxu0 %v369
        %v846 = vpop.f32.mrb[0].mxu0
        %v847 = vadd.f32 0.0, %v846
        %v848 = vpop.f32.mrb[0].mxu0
        %849 = vmatprep.mubr.f32.mxu0 %v372
        %850 = vmatmul.mubr.f32.gmra.mrb[0].mxu0 %v371
        %v851 = vpop.f32.mrb[0].mxu0
        %v852 = vadd.f32 0.0, %v851
        %v853 = vpop.f32.mrb[0].mxu0
        %854 = vmatprep.mubr.f32.mxu0 %v374
        %855 = vmatmul.mubr.f32.gmra.mrb[0].mxu0 %v373
        %v856 = vpop.f32.mrb[0].mxu0
        %v857 = vadd.f32 0.0, %v856
        %v858 = vpop.f32.mrb[0].mxu0
        %859 = vmatprep.mubr.f32.mxu0 %v376
        %860 = vmatmul.mubr.f32.gmra.mrb[0].mxu0 %v375
        %v861 = vpop.f32.mrb[0].mxu0
        %v862 = vadd.f32 0.0, %v861
        %v863 = vpop.f32.mrb[0].mxu0
        %864 = vmatprep.mubr.f32.mxu0 %v378
        %865 = vmatmul.mubr.f32.gmra.mrb[0].mxu0 %v377
        %v866 = vpop.f32.mrb[0].mxu0
        %v867 = vadd.f32 0.0, %v866
        %v868 = vpop.f32.mrb[0].mxu0
        %869 = vmatprep.mubr.f32.mxu0 %v380
        %870 = vmatmul.mubr.f32.gmra.mrb[0].mxu0 %v379
        %v871 = vpop.f32.mrb[0].mxu0
        %v872 = vadd.f32 0.0, %v871
        %v873 = vpop.f32.mrb[0].mxu0
        %874 = vmatprep.mubr.f32.mxu0 %v382
        %875 = vmatmul.mubr.f32.gmra.mrb[0].mxu0 %v381
        %v876 = vpop.f32.mrb[0].mxu0
        %v877 = vadd.f32 0.0, %v876
        %v878 = vpop.f32.mrb[0].mxu0
        %879 = vmatprep.mubr.f32.mxu0 %v384
        %880 = vmatmul.mubr.f32.gmra.mrb[0].mxu0 %v383
        %v881 = vpop.f32.mrb[0].mxu0
        %v882 = vadd.f32 0.0, %v881
        %v883 = vpop.f32.mrb[0].mxu0
        %884 = vmatprep.mubr.f32.mxu0 %v386
        %885 = vmatmul.mubr.f32.gmra.mrb[0].mxu0 %v385
        %v886 = vpop.f32.mrb[0].mxu0
        %v887 = vadd.f32 0.0, %v886
        %v888 = vpop.f32.mrb[0].mxu0
        %889 = vmatprep.mubr.f32.mxu0 %v388
        %890 = vmatmul.mubr.f32.gmra.mrb[0].mxu0 %v387
        %v891 = vpop.f32.mrb[0].mxu0
        %v892 = vadd.f32 0.0, %v891
        %v893 = vpop.f32.mrb[0].mxu0
        %894 = vmatprep.mubr.f32.mxu0 %v390
        %895 = vmatmul.mubr.f32.gmra.mrb[0].mxu0 %v389
        %v896 = vpop.f32.mrb[0].mxu0
        %v897 = vadd.f32 0.0, %v896
        %v898 = vpop.f32.mrb[0].mxu0
        %899 = vmatprep.mubr.f32.mxu0 %v392
        %900 = vmatmul.mubr.f32.gmra.mrb[0].mxu0 %v391
        %v901 = vpop.f32.mrb[0].mxu0
        %v902 = vadd.f32 0.0, %v901
        %v903 = vpop.f32.mrb[0].mxu0
        %904 = vmatprep.mubr.f32.mxu0 %v394
        %905 = vmatmul.mubr.f32.gmra.mrb[0].mxu0 %v393
        %v906 = vpop.f32.mrb[0].mxu0
        %v907 = vadd.f32 0.0, %v906
        %v908 = vpop.f32.mrb[0].mxu0
        %909 = vmatprep.mubr.f32.mxu0 %v396
        %910 = vmatmul.mubr.f32.gmra.mrb[0].mxu0 %v395
        %v911 = vpop.f32.mrb[0].mxu0
        %v912 = vadd.f32 0.0, %v911
        %v913 = vpop.f32.mrb[0].mxu0
        %914 = vmatprep.mubr.f32.mxu0 %v398
        %915 = vmatmul.mubr.f32.gmra.mrb[0].mxu0 %v397
        %v916 = vpop.f32.mrb[0].mxu0
        %v917 = vadd.f32 0.0, %v916
        %v918 = vpop.f32.mrb[0].mxu0
        %919 = vmatprep.mubr.f32.mxu0 %v400
        %920 = vmatmul.mubr.f32.gmra.mrb[0].mxu0 %v399
        %v921 = vpop.f32.mrb[0].mxu0
        %v922 = vadd.f32 0.0, %v921
        %v923 = vpop.f32.mrb[0].mxu0
        %924 = vmatprep.mubr.f32.mxu0 %v402
        %925 = vmatmul.mubr.f32.gmra.mrb[0].mxu0 %v401
        %v926 = vpop.f32.mrb[0].mxu0
        %v927 = vadd.f32 0.0, %v926
        %v928 = vpop.f32.mrb[0].mxu0
        %929 = vmatprep.mubr.f32.mxu0 %v404
        %930 = vmatmul.mubr.f32.gmra.mrb[0].mxu0 %v403
        %v931 = vpop.f32.mrb[0].mxu0
        %v932 = vadd.f32 0.0, %v931
        %v933 = vpop.f32.mrb[0].mxu0
        %934 = vmatprep.mubr.f32.mxu0 %v406
        %935 = vmatmul.mubr.f32.gmra.mrb[0].mxu0 %v405
        %v936 = vpop.f32.mrb[0].mxu0
        %v937 = vadd.f32 0.0, %v936
        %v938 = vpop.f32.mrb[0].mxu0
        %939 = vmatprep.mubr.f32.mxu0 %v408
        %940 = vmatmul.mubr.f32.gmra.mrb[0].mxu0 %v407
        %v941 = vpop.f32.mrb[0].mxu0
        %v942 = vadd.f32 0.0, %v941
        %v943 = vpop.f32.mrb[0].mxu0
        %944 = vmatprep.mubr.f32.mxu0 %v410
        %945 = vmatmul.mubr.f32.gmra.mrb[0].mxu0 %v409
        %v946 = vpop.f32.mrb[0].mxu0
        %v947 = vadd.f32 0.0, %v946
        %v948 = vpop.f32.mrb[0].mxu0
        %949 = vmatprep.mubr.f32.mxu0 %v412
        %950 = vmatmul.mubr.f32.gmra.mrb[0].mxu0 %v411
        %v951 = vpop.f32.mrb[0].mxu0
        %v952 = vadd.f32 0.0, %v951
        %v953 = vpop.f32.mrb[0].mxu0
        %954 = vmatprep.mubr.f32.mxu0 %v414
        %955 = vmatmul.mubr.f32.gmra.mrb[0].mxu0 %v413
        %v956 = vpop.f32.mrb[0].mxu0
        %v957 = vadd.f32 0.0, %v956
        %v958 = vpop.f32.mrb[0].mxu0
        %959 = vmatprep.mubr.f32.mxu0 %v416
        %960 = vmatmul.mubr.f32.gmra.mrb[0].mxu0 %v415
        %v961 = vpop.f32.mrb[0].mxu0
        %v962 = vadd.f32 0.0, %v961
        %v963 = vpop.f32.mrb[0].mxu0
        %964 = vmatprep.mubr.f32.mxu0 %v418
        %965 = vmatmul.mubr.f32.gmra.mrb[0].mxu0 %v417
        %v966 = vpop.f32.mrb[0].mxu0
        %v967 = vadd.f32 0.0, %v966
        %v968 = vpop.f32.mrb[0].mxu0
        %969 = vmatprep.mubr.f32.mxu0 %v420
        %970 = vmatmul.mubr.f32.gmra.mrb[0].mxu0 %v419
        %v971 = vpop.f32.mrb[0].mxu0
        %v972 = vadd.f32 0.0, %v971
        %v973 = vpop.f32.mrb[0].mxu0
        %974 = vmatprep.mubr.f32.mxu0 %v422
        %975 = vmatmul.mubr.f32.gmra.mrb[0].mxu0 %v421
        %v976 = vpop.f32.mrb[0].mxu0
        %v977 = vadd.f32 0.0, %v976
        %v978 = vpop.f32.mrb[0].mxu0
        %979 = vmatprep.mubr.f32.mxu0 %v424
        %980 = vmatmul.mubr.f32.gmra.mrb[0].mxu0 %v423
        %v981 = vpop.f32.mrb[0].mxu0
        %v982 = vadd.f32 0.0, %v981
        %v983 = vpop.f32.mrb[0].mxu0
        %984 = vmatprep.mubr.f32.mxu0 %v426
        %985 = vmatmul.mubr.f32.gmra.mrb[0].mxu0 %v425
        %v986 = vpop.f32.mrb[0].mxu0
        %v987 = vadd.f32 0.0, %v986
        %v988 = vpop.f32.mrb[0].mxu0
        %989 = vmatprep.mubr.f32.mxu0 %v428
        %990 = vmatmul.mubr.f32.gmra.mrb[0].mxu0 %v427
        %v991 = vpop.f32.mrb[0].mxu0
        %v992 = vadd.f32 0.0, %v991
        %v993 = vpop.f32.mrb[0].mxu0
        %994 = vmatprep.mubr.f32.mxu0 %v430
        %995 = vmatmul.mubr.f32.gmra.mrb[0].mxu0 %v429
        %v996 = vpop.f32.mrb[0].mxu0
        %v997 = vadd.f32 0.0, %v996
        %v998 = vpop.f32.mrb[0].mxu0
        %999 = vmatprep.mubr.f32.mxu0 %v432
        %1000 = vmatmul.mubr.f32.gmra.mrb[0].mxu0 %v431
        %v1001 = vpop.f32.mrb[0].mxu0
        %v1002 = vadd.f32 0.0, %v1001
        %v1003 = vpop.f32.mrb[0].mxu0
        %1004 = vmatprep.mubr.f32.mxu0 %v434
        %1005 = vmatmul.mubr.f32.gmra.mrb[0].mxu0 %v433
        %v1006 = vpop.f32.mrb[0].mxu0
        %v1007 = vadd.f32 0.0, %v1006
        %v1008 = vpop.f32.mrb[0].mxu0
        %1009 = vmatprep.mubr.f32.mxu0 %v436
        %1010 = vmatmul.mubr.f32.gmra.mrb[0].mxu0 %v435
        %v1011 = vpop.f32.mrb[0].mxu0
        %v1012 = vadd.f32 0.0, %v1011
        %v1013 = vpop.f32.mrb[0].mxu0
        %1014 = vmatprep.mubr.f32.mxu0 %v438
        %1015 = vmatmul.mubr.f32.gmra.mrb[0].mxu0 %v437
        %v1016 = vpop.f32.mrb[0].mxu0
        %v1017 = vadd.f32 0.0, %v1016
        %v1018 = vpop.f32.mrb[0].mxu0
        %1019 = vmatprep.mubr.f32.mxu0 %v440
        %1020 = vmatmul.mubr.f32.gmra.mrb[0].mxu0 %v439
        %v1021 = vpop.f32.mrb[0].mxu0
        %v1022 = vadd.f32 0.0, %v1021
        %v1023 = vpop.f32.mrb[0].mxu0
        %1024 = vmatprep.mubr.f32.mxu0 %v442
        %1025 = vmatmul.mubr.f32.gmra.mrb[0].mxu0 %v441
        %v1026 = vpop.f32.mrb[0].mxu0
        %v1027 = vadd.f32 0.0, %v1026
        %v1028 = vpop.f32.mrb[0].mxu0
        %1029 = vmatprep.mubr.f32.mxu0 %v444
        %1030 = vmatmul.mubr.f32.gmra.mrb[0].mxu0 %v443
        %v1031 = vpop.f32.mrb[0].mxu0
        %v1032 = vadd.f32 0.0, %v1031
        %v1033 = vpop.f32.mrb[0].mxu0
        %1034 = vmatprep.mubr.f32.mxu0 %v446
        %1035 = vmatmul.mubr.f32.gmra.mrb[0].mxu0 %v445
        %v1036 = vpop.f32.mrb[0].mxu0
        %v1037 = vadd.f32 0.0, %v1036
        %v1038 = vpop.f32.mrb[0].mxu0
        %1039 = vmatprep.mubr.f32.mxu0 %v448
        %1040 = vmatmul.mubr.f32.gmra.mrb[0].mxu0 %v447
        %v1041 = vpop.f32.mrb[0].mxu0
        %v1042 = vadd.f32 0.0, %v1041
        %v1043 = vpop.f32.mrb[0].mxu0
        %1044 = vmatprep.mubr.f32.mxu0 %v450
        %1045 = vmatmul.mubr.f32.gmra.mrb[0].mxu0 %v449
        %v1046 = vpop.f32.mrb[0].mxu0
        %v1047 = vadd.f32 0.0, %v1046
        %v1048 = vpop.f32.mrb[0].mxu0
        %1049 = vmatprep.mubr.f32.mxu0 %v452
        %1050 = vmatmul.mubr.f32.gmra.mrb[0].mxu0 %v451
        %v1051 = vpop.f32.mrb[0].mxu0
        %v1052 = vadd.f32 0.0, %v1051
        %v1053 = vpop.f32.mrb[0].mxu0
        %1054 = vmatprep.mubr.f32.mxu0 %v454
        %1055 = vmatmul.mubr.f32.gmra.mrb[0].mxu0 %v453
        %v1056 = vpop.f32.mrb[0].mxu0
        %v1057 = vadd.f32 0.0, %v1056
        %v1058 = vpop.f32.mrb[0].mxu0
        %1059 = vmatprep.mubr.f32.mxu0 %v456
        %1060 = vmatmul.mubr.f32.gmra.mrb[0].mxu0 %v455
        %v1061 = vpop.f32.mrb[0].mxu0
        %v1062 = vadd.f32 0.0, %v1061
        %v1063 = vpop.f32.mrb[0].mxu0
        %1064 = vmatprep.mubr.f32.mxu0 %v458
        %1065 = vmatmul.mubr.f32.gmra.mrb[0].mxu0 %v457
        %v1066 = vpop.f32.mrb[0].mxu0
        %v1067 = vadd.f32 0.0, %v1066
        %v1068 = vpop.f32.mrb[0].mxu0
        %1069 = vmatprep.mubr.f32.mxu0 %v460
        %1070 = vmatmul.mubr.f32.gmra.mrb[0].mxu0 %v459
        %v1071 = vpop.f32.mrb[0].mxu0
        %v1072 = vadd.f32 0.0, %v1071
        %v1073 = vpop.f32.mrb[0].mxu0
        %1074 = vmatprep.mubr.f32.mxu0 %v462
        %1075 = vmatmul.mubr.f32.gmra.mrb[0].mxu0 %v461
        %v1076 = vpop.f32.mrb[0].mxu0
        %v1077 = vadd.f32 0.0, %v1076
        %v1078 = vpop.f32.mrb[0].mxu0
        %1079 = vmatprep.mubr.f32.mxu0 %v464
        %1080 = vmatmul.mubr.f32.gmra.mrb[0].mxu0 %v463
        %v1081 = vpop.f32.mrb[0].mxu0
        %v1082 = vadd.f32 0.0, %v1081
        %v1083 = vpop.f32.mrb[0].mxu0
        %1084 = vmatprep.mubr.f32.mxu0 %v466
        %1085 = vmatmul.mubr.f32.gmra.mrb[0].mxu0 %v465
        %v1086 = vpop.f32.mrb[0].mxu0
        %v1087 = vadd.f32 0.0, %v1086
        %v1088 = vpop.f32.mrb[0].mxu0
        %1089 = vmatprep.mubr.f32.mxu0 %v468
        %1090 = vmatmul.mubr.f32.gmra.mrb[0].mxu0 %v467
        %v1091 = vpop.f32.mrb[0].mxu0
        %v1092 = vadd.f32 0.0, %v1091
        %v1093 = vpop.f32.mrb[0].mxu0
        %1094 = vmatprep.mubr.f32.mxu0 %v470
        %1095 = vmatmul.mubr.f32.gmra.mrb[0].mxu0 %v469
        %v1096 = vpop.f32.mrb[0].mxu0
        %v1097 = vadd.f32 0.0, %v1096
        %v1098 = vpop.f32.mrb[0].mxu0
        %1099 = vmatprep.mubr.f32.mxu0 %v472
        %1100 = vmatmul.mubr.f32.gmra.mrb[0].mxu0 %v471
        %v1101 = vpop.f32.mrb[0].mxu0
        %v1102 = vadd.f32 0.0, %v1101
        %v1103 = vpop.f32.mrb[0].mxu0
        %1104 = vmatprep.mubr.f32.mxu0 %v474
        %1105 = vmatmul.mubr.f32.gmra.mrb[0].mxu0 %v473
        %v1106 = vpop.f32.mrb[0].mxu0
        %v1107 = vadd.f32 0.0, %v1106
        %v1108 = vpop.f32.mrb[0].mxu0
        %1109 = vmatprep.mubr.f32.mxu0 %v476
        %1110 = vmatmul.mubr.f32.gmra.mrb[0].mxu0 %v475
        %v1111 = vpop.f32.mrb[0].mxu0
        %v1112 = vadd.f32 0.0, %v1111
        %v1113 = vpop.f32.mrb[0].mxu0
        %1114 = vmatprep.mubr.f32.mxu0 %v478
        %1115 = vmatmul.mubr.f32.gmra.mrb[0].mxu0 %v477
        %v1116 = vpop.f32.mrb[0].mxu0
        %v1117 = vadd.f32 0.0, %v1116
        %v1118 = vpop.f32.mrb[0].mxu0
        %1119 = vmatprep.mubr.f32.mxu0 %v480
        %1120 = vmatmul.mubr.f32.gmra.mrb[0].mxu0 %v479
        %v1121 = vpop.f32.mrb[0].mxu0
        %v1122 = vadd.f32 0.0, %v1121
        %v1123 = vpop.f32.mrb[0].mxu0
        %1124 = vmatprep.mubr.f32.mxu0 %v482
        %1125 = vmatmul.mubr.f32.gmra.mrb[0].mxu0 %v481
        %v1126 = vpop.f32.mrb[0].mxu0
        %v1127 = vadd.f32 0.0, %v1126
        %v1128 = vpop.f32.mrb[0].mxu0
        %1129 = vmatprep.mubr.f32.mxu0 %v484
        %1130 = vmatmul.mubr.f32.gmra.mrb[0].mxu0 %v483
        %v1131 = vpop.f32.mrb[0].mxu0
        %v1132 = vadd.f32 0.0, %v1131
        %v1133 = vpop.f32.mrb[0].mxu0
        %1134 = vmatprep.mubr.f32.mxu0 %v486
        %1135 = vmatmul.mubr.f32.gmra.mrb[0].mxu0 %v485
        %v1136 = vpop.f32.mrb[0].mxu0
        %v1137 = vadd.f32 0.0, %v1136
        %v1138 = vpop.f32.mrb[0].mxu0
        %1139 = vmatprep.mubr.f32.mxu0 %v488
        %1140 = vmatmul.mubr.f32.gmra.mrb[0].mxu0 %v487
        %v1141 = vpop.f32.mrb[0].mxu0
        %v1142 = vadd.f32 0.0, %v1141
        %v1143 = vpop.f32.mrb[0].mxu0
        %1144 = vmatprep.mubr.f32.mxu0 %v490
        %1145 = vmatmul.mubr.f32.gmra.mrb[0].mxu0 %v489
        %v1146 = vpop.f32.mrb[0].mxu0
        %v1147 = vadd.f32 0.0, %v1146
        %v1148 = vpop.f32.mrb[0].mxu0
        %1149 = vmatprep.mubr.f32.mxu0 %v492
        %1150 = vmatmul.mubr.f32.gmra.mrb[0].mxu0 %v491
        %v1151 = vpop.f32.mrb[0].mxu0
        %v1152 = vadd.f32 0.0, %v1151
        %v1153 = vpop.f32.mrb[0].mxu0
        %1154 = vmatprep.mubr.f32.mxu0 %v494
        %1155 = vmatmul.mubr.f32.gmra.mrb[0].mxu0 %v493
        %v1156 = vpop.f32.mrb[0].mxu0
        %v1157 = vadd.f32 0.0, %v1156
        %v1158 = vpop.f32.mrb[0].mxu0
        %1159 = vmatprep.mubr.f32.mxu0 %v496
        %1160 = vmatmul.mubr.f32.gmra.mrb[0].mxu0 %v495
        %v1161 = vpop.f32.mrb[0].mxu0
        %v1162 = vadd.f32 0.0, %v1161
        %v1163 = vpop.f32.mrb[0].mxu0
        %1164 = vmatprep.mubr.f32.mxu0 %v498
        %1165 = vmatmul.mubr.f32.gmra.mrb[0].mxu0 %v497
        %v1166 = vpop.f32.mrb[0].mxu0
        %v1167 = vadd.f32 0.0, %v1166
        %v1168 = vpop.f32.mrb[0].mxu0
        %1169 = vmatprep.mubr.f32.mxu0 %v500
        %1170 = vmatmul.mubr.f32.gmra.mrb[0].mxu0 %v499
        %v1171 = vpop.f32.mrb[0].mxu0
        %v1172 = vadd.f32 0.0, %v1171
        %v1173 = vpop.f32.mrb[0].mxu0
        %1174 = vmatprep.mubr.f32.mxu0 %v502
        %1175 = vmatmul.mubr.f32.gmra.mrb[0].mxu0 %v501
        %v1176 = vpop.f32.mrb[0].mxu0
        %v1177 = vadd.f32 0.0, %v1176
        %v1178 = vpop.f32.mrb[0].mxu0
        %1179 = vmatprep.mubr.f32.mxu0 %v504
        %1180 = vmatmul.mubr.f32.gmra.mrb[0].mxu0 %v503
        %v1181 = vpop.f32.mrb[0].mxu0
        %v1182 = vadd.f32 0.0, %v1181
        %v1183 = vpop.f32.mrb[0].mxu0
        %1184 = vmatprep.mubr.f32.mxu0 %v506
        %1185 = vmatmul.mubr.f32.gmra.mrb[0].mxu0 %v505
        %v1186 = vpop.f32.mrb[0].mxu0
        %v1187 = vadd.f32 0.0, %v1186
        %v1188 = vpop.f32.mrb[0].mxu0
        %1189 = vmatprep.mubr.f32.mxu0 %v508
        %1190 = vmatmul.mubr.f32.gmra.mrb[0].mxu0 %v507
        %v1191 = vpop.f32.mrb[0].mxu0
        %v1192 = vadd.f32 0.0, %v1191
        %v1193 = vpop.f32.mrb[0].mxu0
        %1194 = vmatprep.mubr.f32.mxu0 %v510
        %1195 = vmatmul.mubr.f32.gmra.mrb[0].mxu0 %v509
        %v1196 = vpop.f32.mrb[0].mxu0
        %v1197 = vadd.f32 0.0, %v1196
        %v1198 = vpop.f32.mrb[0].mxu0
        %1199 = vmatprep.mubr.f32.mxu0 %v512
        %1200 = vmatmul.mubr.f32.gmra.mrb[0].mxu0 %v511
        %v1201 = vpop.f32.mrb[0].mxu0
        %v1202 = vadd.f32 0.0, %v1201
        %v1203 = vpop.f32.mrb[0].mxu0
        %1204 = vmatprep.mubr.f32.mxu0 %v514
        %1205 = vmatmul.mubr.f32.gmra.mrb[0].mxu0 %v513
        %v1206 = vpop.f32.mrb[0].mxu0
        %v1207 = vadd.f32 0.0, %v1206
        %v1208 = vpop.f32.mrb[0].mxu0
        %1209 = vmatprep.mubr.f32.mxu0 %v516
        %1210 = vmatmul.mubr.f32.gmra.mrb[0].mxu0 %v515
        %v1211 = vpop.f32.mrb[0].mxu0
        %v1212 = vadd.f32 0.0, %v1211
        %v1213 = vpop.f32.mrb[0].mxu0
        %1214 = vmatprep.mubr.f32.mxu0 %v518
        %1215 = vmatmul.mubr.f32.gmra.mrb[0].mxu0 %v517
        %v1216 = vpop.f32.mrb[0].mxu0
        %v1217 = vadd.f32 0.0, %v1216
        %v1218 = vpop.f32.mrb[0].mxu0
        %1219 = vmatprep.mubr.f32.mxu0 %v520
        %1220 = vmatmul.mubr.f32.gmra.mrb[0].mxu0 %v519
        %v1221 = vpop.f32.mrb[0].mxu0
        %v1222 = vadd.f32 0.0, %v1221
        %v1223 = vpop.f32.mrb[0].mxu0
        %1224 = vmatprep.mubr.f32.mxu0 %v522
        %1225 = vmatmul.mubr.f32.gmra.mrb[0].mxu0 %v521
        %v1226 = vpop.f32.mrb[0].mxu0
        %v1227 = vadd.f32 0.0, %v1226
        %v1228 = vpop.f32.mrb[0].mxu0
        %1229 = vmatprep.mubr.f32.mxu0 %v524
        %1230 = vmatmul.mubr.f32.gmra.mrb[0].mxu0 %v523
        %v1231 = vpop.f32.mrb[0].mxu0
        %v1232 = vadd.f32 0.0, %v1231
        %v1233 = vpop.f32.mrb[0].mxu0
        %1234 = vmatprep.mubr.f32.mxu0 %v526
        %1235 = vmatmul.mubr.f32.gmra.mrb[0].mxu0 %v525
        %v1236 = vpop.f32.mrb[0].mxu0
        %v1237 = vadd.f32 0.0, %v1236
        %v1238 = vpop.f32.mrb[0].mxu0
        %1239 = vmatprep.mubr.f32.mxu0 %v528
        %1240 = vmatmul.mubr.f32.gmra.mrb[0].mxu0 %v527
        %v1241 = vpop.f32.mrb[0].mxu0
        %v1242 = vadd.f32 0.0, %v1241
        %v1243 = vpop.f32.mrb[0].mxu0
        %1244 = vmatprep.mubr.f32.mxu0 %v530
        %1245 = vmatmul.mubr.f32.gmra.mrb[0].mxu0 %v529
        %v1246 = vpop.f32.mrb[0].mxu0
        %v1247 = vadd.f32 0.0, %v1246
        %v1248 = vpop.f32.mrb[0].mxu0
        %1249 = vmatprep.mubr.f32.mxu0 %v532
        %1250 = vmatmul.mubr.f32.gmra.mrb[0].mxu0 %v531
        %v1251 = vpop.f32.mrb[0].mxu0
        %v1252 = vadd.f32 0.0, %v1251
        %v1253 = vpop.f32.mrb[0].mxu0
        %1254 = vmatprep.mubr.f32.mxu0 %v534
        %1255 = vmatmul.mubr.f32.gmra.mrb[0].mxu0 %v533
        %v1256 = vpop.f32.mrb[0].mxu0
        %v1257 = vadd.f32 0.0, %v1256
        %v1258 = vpop.f32.mrb[0].mxu0
        %1259 = vmatprep.mubr.f32.mxu0 %v536
        %1260 = vmatmul.mubr.f32.gmra.mrb[0].mxu0 %v535
        %v1261 = vpop.f32.mrb[0].mxu0
        %v1262 = vadd.f32 0.0, %v1261
        %v1263 = vpop.f32.mrb[0].mxu0
        %1264 = vmatprep.mubr.f32.mxu0 %v538
        %1265 = vmatmul.mubr.f32.gmra.mrb[0].mxu0 %v537
        %v1266 = vpop.f32.mrb[0].mxu0
        %v1267 = vadd.f32 0.0, %v1266
        %v1268 = vpop.f32.mrb[0].mxu0
        %1269 = vmatprep.mubr.f32.mxu0 %v540
        %1270 = vmatmul.mubr.f32.gmra.mrb[0].mxu0 %v539
        %v1271 = vpop.f32.mrb[0].mxu0
        %v1272 = vadd.f32 0.0, %v1271
        %v1273 = vpop.f32.mrb[0].mxu0
        %1274 = vmatprep.mubr.f32.mxu0 %v542
        %1275 = vmatmul.mubr.f32.gmra.mrb[0].mxu0 %v541
        %v1276 = vpop.f32.mrb[0].mxu0
        %v1277 = vadd.f32 0.0, %v1276
        %v1278 = vpop.f32.mrb[0].mxu0
        %1279 = vdwg.mxu0
        %v1281 = vcombine.high %v284, %v284
        %v1283 = vunpack.c.l.s4 1966171168
        %v1284 = vunpack.c.0.s8 %v1283
        %v1285 = vlaneseq
        %v1286 = vshrl.u32 %v1285, 7
        %v1287 = vsub.s32 %v1284, %v1286
        %v1288 = vrot.slane %v284, %v1287
        %v1290 = vunpack.c.l.s4 1966171168
        %v1291 = vunpack.c.0.s8 %v1290
        %v1292 = vlaneseq
        %v1293 = vshrl.u32 %v1292, 7
        %v1294 = vsub.s32 %v1291, %v1293
        %v1295 = vrot.slane %v1281, %v1294
        %v1296 = vcombine.high %v1288, %v1288
        %v1297 = vcombine.high %v1295, %v1295
        %v1299 = vunpack.c.l.s4 1966171168
        %v1300 = vunpack.c.0.s8 %v1299
        %v1301 = vlaneseq
        %v1302 = vshrl.u32 %v1301, 7
        %v1303 = vsub.s32 %v1300, %v1302
        %v1304 = vrot.slane %v1288, %v1303
        %v1306 = vunpack.c.l.s4 1966171168
        %v1307 = vunpack.c.0.s8 %v1306
        %v1308 = vlaneseq
        %v1309 = vshrl.u32 %v1308, 7
        %v1310 = vsub.s32 %v1307, %v1309
        %v1311 = vrot.slane %v1295, %v1310
        %v1313 = vunpack.c.l.s4 1966171168
        %v1314 = vunpack.c.0.s8 %v1313
        %v1315 = vlaneseq
        %v1316 = vshrl.u32 %v1315, 7
        %v1317 = vsub.s32 %v1314, %v1316
        %v1318 = vrot.slane %v1296, %v1317
        %v1320 = vunpack.c.l.s4 1966171168
        %v1321 = vunpack.c.0.s8 %v1320
        %v1322 = vlaneseq
        %v1323 = vshrl.u32 %v1322, 7
        %v1324 = vsub.s32 %v1321, %v1323
        %v1325 = vrot.slane %v1297, %v1324
        %v1326 = vcombine.high %v1304, %v1304
        %v1327 = vcombine.high %v1311, %v1311
        %v1328 = vcombine.high %v1318, %v1318
        %v1329 = vcombine.high %v1325, %v1325
        %v1330 = vlaneseq
        %v1331 = vshrl.u32 %v1330, 7
        %v1332 = vsub.s32 0, %v1331
        %v1333 = vrot.slane %v1304, %v1332
        %v1334 = vlaneseq
        %v1335 = vshrl.u32 %v1334, 7
        %v1336 = vsub.s32 0, %v1335
        %v1337 = vrot.slane %v1318, %v1336
        %v1338 = vlaneseq
        %v1339 = vshrl.u32 %v1338, 7
        %v1340 = vsub.s32 0, %v1339
        %v1341 = vrot.slane %v1326, %v1340
        %v1342 = vlaneseq
        %v1343 = vshrl.u32 %v1342, 7
        %v1344 = vsub.s32 0, %v1343
        %v1345 = vrot.slane %v1328, %v1344
        %v1346 = vlaneseq
        %v1347 = vshrl.u32 %v1346, 7
        %v1348 = vsub.s32 0, %v1347
        %v1349 = vrot.slane %v1311, %v1348
        %v1350 = vlaneseq
        %v1351 = vshrl.u32 %v1350, 7
        %v1352 = vsub.s32 0, %v1351
        %v1353 = vrot.slane %v1325, %v1352
        %v1354 = vlaneseq
        %v1355 = vshrl.u32 %v1354, 7
        %v1356 = vsub.s32 0, %v1355
        %v1357 = vrot.slane %v1327, %v1356
        %v1358 = vlaneseq
        %v1359 = vshrl.u32 %v1358, 7
        %v1360 = vsub.s32 0, %v1359
        %v1361 = vrot.slane %v1329, %v1360
        %v1370 = vadd.f32 %v642, %v1333
        %v1371 = vadd.f32 %v647, %v1333
        %v1372 = vadd.f32 %v652, %v1333
        %v1373 = vadd.f32 %v657, %v1333
        %v1374 = vadd.f32 %v662, %v1333
        %v1375 = vadd.f32 %v667, %v1333
        %v1376 = vadd.f32 %v672, %v1333
        %v1377 = vadd.f32 %v677, %v1333
        %v1378 = vadd.f32 %v682, %v1333
        %v1379 = vadd.f32 %v687, %v1333
        %v1380 = vadd.f32 %v692, %v1333
        %v1381 = vadd.f32 %v697, %v1333
        %v1382 = vadd.f32 %v702, %v1333
        %v1383 = vadd.f32 %v707, %v1333
        %v1384 = vadd.f32 %v712, %v1333
        %v1385 = vadd.f32 %v717, %v1333
        %v1386 = vadd.f32 %v722, %v1337
        %v1387 = vadd.f32 %v727, %v1337
        %v1388 = vadd.f32 %v732, %v1337
        %v1389 = vadd.f32 %v737, %v1337
        %v1390 = vadd.f32 %v742, %v1337
        %v1391 = vadd.f32 %v747, %v1337
        %v1392 = vadd.f32 %v752, %v1337
        %v1393 = vadd.f32 %v757, %v1337
        %v1394 = vadd.f32 %v762, %v1337
        %v1395 = vadd.f32 %v767, %v1337
        %v1396 = vadd.f32 %v772, %v1337
        %v1397 = vadd.f32 %v777, %v1337
        %v1398 = vadd.f32 %v782, %v1337
        %v1399 = vadd.f32 %v787, %v1337
        %v1400 = vadd.f32 %v792, %v1337
        %v1401 = vadd.f32 %v797, %v1337
        %v1402 = vadd.f32 %v802, %v1341
        %v1403 = vadd.f32 %v807, %v1341
        %v1404 = vadd.f32 %v812, %v1341
        %v1405 = vadd.f32 %v817, %v1341
        %v1406 = vadd.f32 %v822, %v1341
        %v1407 = vadd.f32 %v827, %v1341
        %v1408 = vadd.f32 %v832, %v1341
        %v1409 = vadd.f32 %v837, %v1341
        %v1410 = vadd.f32 %v842, %v1341
        %v1411 = vadd.f32 %v847, %v1341
        %v1412 = vadd.f32 %v852, %v1341
        %v1413 = vadd.f32 %v857, %v1341
        %v1414 = vadd.f32 %v862, %v1341
        %v1415 = vadd.f32 %v867, %v1341
        %v1416 = vadd.f32 %v872, %v1341
        %v1417 = vadd.f32 %v877, %v1341
        %v1418 = vadd.f32 %v882, %v1345
        %v1419 = vadd.f32 %v887, %v1345
        %v1420 = vadd.f32 %v892, %v1345
        %v1421 = vadd.f32 %v897, %v1345
        %v1422 = vadd.f32 %v902, %v1345
        %v1423 = vadd.f32 %v907, %v1345
        %v1424 = vadd.f32 %v912, %v1345
        %v1425 = vadd.f32 %v917, %v1345
        %v1426 = vadd.f32 %v922, %v1345
        %v1427 = vadd.f32 %v927, %v1345
        %v1428 = vadd.f32 %v932, %v1345
        %v1429 = vadd.f32 %v937, %v1345
        %v1430 = vadd.f32 %v942, %v1345
        %v1431 = vadd.f32 %v947, %v1345
        %v1432 = vadd.f32 %v952, %v1345
        %v1433 = vadd.f32 %v957, %v1345
        %v1434 = vadd.f32 %v962, %v1349
        %v1435 = vadd.f32 %v967, %v1349
        %v1436 = vadd.f32 %v972, %v1349
        %v1437 = vadd.f32 %v977, %v1349
        %v1438 = vadd.f32 %v982, %v1349
        %v1439 = vadd.f32 %v987, %v1349
        %v1440 = vadd.f32 %v992, %v1349
        %v1441 = vadd.f32 %v997, %v1349
        %v1442 = vadd.f32 %v1002, %v1349
        %v1443 = vadd.f32 %v1007, %v1349
        %v1444 = vadd.f32 %v1012, %v1349
        %v1445 = vadd.f32 %v1017, %v1349
        %v1446 = vadd.f32 %v1022, %v1349
        %v1447 = vadd.f32 %v1027, %v1349
        %v1448 = vadd.f32 %v1032, %v1349
        %v1449 = vadd.f32 %v1037, %v1349
        %v1450 = vadd.f32 %v1042, %v1353
        %v1451 = vadd.f32 %v1047, %v1353
        %v1452 = vadd.f32 %v1052, %v1353
        %v1453 = vadd.f32 %v1057, %v1353
        %v1454 = vadd.f32 %v1062, %v1353
        %v1455 = vadd.f32 %v1067, %v1353
        %v1456 = vadd.f32 %v1072, %v1353
        %v1457 = vadd.f32 %v1077, %v1353
        %v1458 = vadd.f32 %v1082, %v1353
        %v1459 = vadd.f32 %v1087, %v1353
        %v1460 = vadd.f32 %v1092, %v1353
        %v1461 = vadd.f32 %v1097, %v1353
        %v1462 = vadd.f32 %v1102, %v1353
        %v1463 = vadd.f32 %v1107, %v1353
        %v1464 = vadd.f32 %v1112, %v1353
        %v1465 = vadd.f32 %v1117, %v1353
        %v1466 = vadd.f32 %v1122, %v1357
        %v1467 = vadd.f32 %v1127, %v1357
        %v1468 = vadd.f32 %v1132, %v1357
        %v1469 = vadd.f32 %v1137, %v1357
        %v1470 = vadd.f32 %v1142, %v1357
        %v1471 = vadd.f32 %v1147, %v1357
        %v1472 = vadd.f32 %v1152, %v1357
        %v1473 = vadd.f32 %v1157, %v1357
        %v1474 = vadd.f32 %v1162, %v1357
        %v1475 = vadd.f32 %v1167, %v1357
        %v1476 = vadd.f32 %v1172, %v1357
        %v1477 = vadd.f32 %v1177, %v1357
        %v1478 = vadd.f32 %v1182, %v1357
        %v1479 = vadd.f32 %v1187, %v1357
        %v1480 = vadd.f32 %v1192, %v1357
        %v1481 = vadd.f32 %v1197, %v1357
        %v1482 = vadd.f32 %v1202, %v1361
        %v1483 = vadd.f32 %v1207, %v1361
        %v1484 = vadd.f32 %v1212, %v1361
        %v1485 = vadd.f32 %v1217, %v1361
        %v1486 = vadd.f32 %v1222, %v1361
        %v1487 = vadd.f32 %v1227, %v1361
        %v1488 = vadd.f32 %v1232, %v1361
        %v1489 = vadd.f32 %v1237, %v1361
        %v1490 = vadd.f32 %v1242, %v1361
        %v1491 = vadd.f32 %v1247, %v1361
        %v1492 = vadd.f32 %v1252, %v1361
        %v1493 = vadd.f32 %v1257, %v1361
        %v1494 = vadd.f32 %v1262, %v1361
        %v1495 = vadd.f32 %v1267, %v1361
        %v1496 = vadd.f32 %v1272, %v1361
        %v1497 = vadd.f32 %v1277, %v1361
        %v1498 = vmax.f32 %v1370, 0.0
        %v1499 = vmax.f32 %v1371, 0.0
        %v1500 = vmax.f32 %v1372, 0.0
        %v1501 = vmax.f32 %v1373, 0.0
        %v1502 = vmax.f32 %v1374, 0.0
        %v1503 = vmax.f32 %v1375, 0.0
        %v1504 = vmax.f32 %v1376, 0.0
        %v1505 = vmax.f32 %v1377, 0.0
        %v1506 = vmax.f32 %v1378, 0.0
        %v1507 = vmax.f32 %v1379, 0.0
        %v1508 = vmax.f32 %v1380, 0.0
        %v1509 = vmax.f32 %v1381, 0.0
        %v1510 = vmax.f32 %v1382, 0.0
        %v1511 = vmax.f32 %v1383, 0.0
        %v1512 = vmax.f32 %v1384, 0.0
        %v1513 = vmax.f32 %v1385, 0.0
        %v1514 = vmax.f32 %v1386, 0.0
        %v1515 = vmax.f32 %v1387, 0.0
        %v1516 = vmax.f32 %v1388, 0.0
        %v1517 = vmax.f32 %v1389, 0.0
        %v1518 = vmax.f32 %v1390, 0.0
        %v1519 = vmax.f32 %v1391, 0.0
        %v1520 = vmax.f32 %v1392, 0.0
        %v1521 = vmax.f32 %v1393, 0.0
        %v1522 = vmax.f32 %v1394, 0.0
        %v1523 = vmax.f32 %v1395, 0.0
        %v1524 = vmax.f32 %v1396, 0.0
        %v1525 = vmax.f32 %v1397, 0.0
        %v1526 = vmax.f32 %v1398, 0.0
        %v1527 = vmax.f32 %v1399, 0.0
        %v1528 = vmax.f32 %v1400, 0.0
        %v1529 = vmax.f32 %v1401, 0.0
        %v1530 = vmax.f32 %v1402, 0.0
        %v1531 = vmax.f32 %v1403, 0.0
        %v1532 = vmax.f32 %v1404, 0.0
        %v1533 = vmax.f32 %v1405, 0.0
        %v1534 = vmax.f32 %v1406, 0.0
        %v1535 = vmax.f32 %v1407, 0.0
        %v1536 = vmax.f32 %v1408, 0.0
        %v1537 = vmax.f32 %v1409, 0.0
        %v1538 = vmax.f32 %v1410, 0.0
        %v1539 = vmax.f32 %v1411, 0.0
        %v1540 = vmax.f32 %v1412, 0.0
        %v1541 = vmax.f32 %v1413, 0.0
        %v1542 = vmax.f32 %v1414, 0.0
        %v1543 = vmax.f32 %v1415, 0.0
        %v1544 = vmax.f32 %v1416, 0.0
        %v1545 = vmax.f32 %v1417, 0.0
        %v1546 = vmax.f32 %v1418, 0.0
        %v1547 = vmax.f32 %v1419, 0.0
        %v1548 = vmax.f32 %v1420, 0.0
        %v1549 = vmax.f32 %v1421, 0.0
        %v1550 = vmax.f32 %v1422, 0.0
        %v1551 = vmax.f32 %v1423, 0.0
        %v1552 = vmax.f32 %v1424, 0.0
        %v1553 = vmax.f32 %v1425, 0.0
        %v1554 = vmax.f32 %v1426, 0.0
        %v1555 = vmax.f32 %v1427, 0.0
        %v1556 = vmax.f32 %v1428, 0.0
        %v1557 = vmax.f32 %v1429, 0.0
        %v1558 = vmax.f32 %v1430, 0.0
        %v1559 = vmax.f32 %v1431, 0.0
        %v1560 = vmax.f32 %v1432, 0.0
        %v1561 = vmax.f32 %v1433, 0.0
        %v1562 = vmax.f32 %v1434, 0.0
        %v1563 = vmax.f32 %v1435, 0.0
        %v1564 = vmax.f32 %v1436, 0.0
        %v1565 = vmax.f32 %v1437, 0.0
        %v1566 = vmax.f32 %v1438, 0.0
        %v1567 = vmax.f32 %v1439, 0.0
        %v1568 = vmax.f32 %v1440, 0.0
        %v1569 = vmax.f32 %v1441, 0.0
        %v1570 = vmax.f32 %v1442, 0.0
        %v1571 = vmax.f32 %v1443, 0.0
        %v1572 = vmax.f32 %v1444, 0.0
        %v1573 = vmax.f32 %v1445, 0.0
        %v1574 = vmax.f32 %v1446, 0.0
        %v1575 = vmax.f32 %v1447, 0.0
        %v1576 = vmax.f32 %v1448, 0.0
        %v1577 = vmax.f32 %v1449, 0.0
        %v1578 = vmax.f32 %v1450, 0.0
        %v1579 = vmax.f32 %v1451, 0.0
        %v1580 = vmax.f32 %v1452, 0.0
        %v1581 = vmax.f32 %v1453, 0.0
        %v1582 = vmax.f32 %v1454, 0.0
        %v1583 = vmax.f32 %v1455, 0.0
        %v1584 = vmax.f32 %v1456, 0.0
        %v1585 = vmax.f32 %v1457, 0.0
        %v1586 = vmax.f32 %v1458, 0.0
        %v1587 = vmax.f32 %v1459, 0.0
        %v1588 = vmax.f32 %v1460, 0.0
        %v1589 = vmax.f32 %v1461, 0.0
        %v1590 = vmax.f32 %v1462, 0.0
        %v1591 = vmax.f32 %v1463, 0.0
        %v1592 = vmax.f32 %v1464, 0.0
        %v1593 = vmax.f32 %v1465, 0.0
        %v1594 = vmax.f32 %v1466, 0.0
        %v1595 = vmax.f32 %v1467, 0.0
        %v1596 = vmax.f32 %v1468, 0.0
        %v1597 = vmax.f32 %v1469, 0.0
        %v1598 = vmax.f32 %v1470, 0.0
        %v1599 = vmax.f32 %v1471, 0.0
        %v1600 = vmax.f32 %v1472, 0.0
        %v1601 = vmax.f32 %v1473, 0.0
        %v1602 = vmax.f32 %v1474, 0.0
        %v1603 = vmax.f32 %v1475, 0.0
        %v1604 = vmax.f32 %v1476, 0.0
        %v1605 = vmax.f32 %v1477, 0.0
        %v1606 = vmax.f32 %v1478, 0.0
        %v1607 = vmax.f32 %v1479, 0.0
        %v1608 = vmax.f32 %v1480, 0.0
        %v1609 = vmax.f32 %v1481, 0.0
        %v1610 = vmax.f32 %v1482, 0.0
        %v1611 = vmax.f32 %v1483, 0.0
        %v1612 = vmax.f32 %v1484, 0.0
        %v1613 = vmax.f32 %v1485, 0.0
        %v1614 = vmax.f32 %v1486, 0.0
        %v1615 = vmax.f32 %v1487, 0.0
        %v1616 = vmax.f32 %v1488, 0.0
        %v1617 = vmax.f32 %v1489, 0.0
        %v1618 = vmax.f32 %v1490, 0.0
        %v1619 = vmax.f32 %v1491, 0.0
        %v1620 = vmax.f32 %v1492, 0.0
        %v1621 = vmax.f32 %v1493, 0.0
        %v1622 = vmax.f32 %v1494, 0.0
        %v1623 = vmax.f32 %v1495, 0.0
        %v1624 = vmax.f32 %v1496, 0.0
        %v1625 = vmax.f32 %v1497, 0.0
        %v1627 = vlaneseq
        %v1628 = vshrl.u32 %v1627, 7
        %v1629 = vsub.s32 0, %v1628
        %v1630 = vrot.slane %v285, %v1629
        %v1632 = vmul.f32 %v1498, %v1630
        %v1633 = vmul.f32 %v1499, %v1630
        %v1634 = vmul.f32 %v1500, %v1630
        %v1635 = vmul.f32 %v1501, %v1630
        %v1636 = vmul.f32 %v1502, %v1630
        %v1637 = vmul.f32 %v1503, %v1630
        %v1638 = vmul.f32 %v1504, %v1630
        %v1639 = vmul.f32 %v1505, %v1630
        %v1640 = vmul.f32 %v1506, %v1630
        %v1641 = vmul.f32 %v1507, %v1630
        %v1642 = vmul.f32 %v1508, %v1630
        %v1643 = vmul.f32 %v1509, %v1630
        %v1644 = vmul.f32 %v1510, %v1630
        %v1645 = vmul.f32 %v1511, %v1630
        %v1646 = vmul.f32 %v1512, %v1630
        %v1647 = vmul.f32 %v1513, %v1630
        %v1648 = vmul.f32 %v1514, %v1630
        %v1649 = vmul.f32 %v1515, %v1630
        %v1650 = vmul.f32 %v1516, %v1630
        %v1651 = vmul.f32 %v1517, %v1630
        %v1652 = vmul.f32 %v1518, %v1630
        %v1653 = vmul.f32 %v1519, %v1630
        %v1654 = vmul.f32 %v1520, %v1630
        %v1655 = vmul.f32 %v1521, %v1630
        %v1656 = vmul.f32 %v1522, %v1630
        %v1657 = vmul.f32 %v1523, %v1630
        %v1658 = vmul.f32 %v1524, %v1630
        %v1659 = vmul.f32 %v1525, %v1630
        %v1660 = vmul.f32 %v1526, %v1630
        %v1661 = vmul.f32 %v1527, %v1630
        %v1662 = vmul.f32 %v1528, %v1630
        %v1663 = vmul.f32 %v1529, %v1630
        %v1664 = vmul.f32 %v1530, %v1630
        %v1665 = vmul.f32 %v1531, %v1630
        %v1666 = vmul.f32 %v1532, %v1630
        %v1667 = vmul.f32 %v1533, %v1630
        %v1668 = vmul.f32 %v1534, %v1630
        %v1669 = vmul.f32 %v1535, %v1630
        %v1670 = vmul.f32 %v1536, %v1630
        %v1671 = vmul.f32 %v1537, %v1630
        %v1672 = vmul.f32 %v1538, %v1630
        %v1673 = vmul.f32 %v1539, %v1630
        %v1674 = vmul.f32 %v1540, %v1630
        %v1675 = vmul.f32 %v1541, %v1630
        %v1676 = vmul.f32 %v1542, %v1630
        %v1677 = vmul.f32 %v1543, %v1630
        %v1678 = vmul.f32 %v1544, %v1630
        %v1679 = vmul.f32 %v1545, %v1630
        %v1680 = vmul.f32 %v1546, %v1630
        %v1681 = vmul.f32 %v1547, %v1630
        %v1682 = vmul.f32 %v1548, %v1630
        %v1683 = vmul.f32 %v1549, %v1630
        %v1684 = vmul.f32 %v1550, %v1630
        %v1685 = vmul.f32 %v1551, %v1630
        %v1686 = vmul.f32 %v1552, %v1630
        %v1687 = vmul.f32 %v1553, %v1630
        %v1688 = vmul.f32 %v1554, %v1630
        %v1689 = vmul.f32 %v1555, %v1630
        %v1690 = vmul.f32 %v1556, %v1630
        %v1691 = vmul.f32 %v1557, %v1630
        %v1692 = vmul.f32 %v1558, %v1630
        %v1693 = vmul.f32 %v1559, %v1630
        %v1694 = vmul.f32 %v1560, %v1630
        %v1695 = vmul.f32 %v1561, %v1630
        %v1696 = vmul.f32 %v1562, %v1630
        %v1697 = vmul.f32 %v1563, %v1630
        %v1698 = vmul.f32 %v1564, %v1630
        %v1699 = vmul.f32 %v1565, %v1630
        %v1700 = vmul.f32 %v1566, %v1630
        %v1701 = vmul.f32 %v1567, %v1630
        %v1702 = vmul.f32 %v1568, %v1630
        %v1703 = vmul.f32 %v1569, %v1630
        %v1704 = vmul.f32 %v1570, %v1630
        %v1705 = vmul.f32 %v1571, %v1630
        %v1706 = vmul.f32 %v1572, %v1630
        %v1707 = vmul.f32 %v1573, %v1630
        %v1708 = vmul.f32 %v1574, %v1630
        %v1709 = vmul.f32 %v1575, %v1630
        %v1710 = vmul.f32 %v1576, %v1630
        %v1711 = vmul.f32 %v1577, %v1630
        %v1712 = vmul.f32 %v1578, %v1630
        %v1713 = vmul.f32 %v1579, %v1630
        %v1714 = vmul.f32 %v1580, %v1630
        %v1715 = vmul.f32 %v1581, %v1630
        %v1716 = vmul.f32 %v1582, %v1630
        %v1717 = vmul.f32 %v1583, %v1630
        %v1718 = vmul.f32 %v1584, %v1630
        %v1719 = vmul.f32 %v1585, %v1630
        %v1720 = vmul.f32 %v1586, %v1630
        %v1721 = vmul.f32 %v1587, %v1630
        %v1722 = vmul.f32 %v1588, %v1630
        %v1723 = vmul.f32 %v1589, %v1630
        %v1724 = vmul.f32 %v1590, %v1630
        %v1725 = vmul.f32 %v1591, %v1630
        %v1726 = vmul.f32 %v1592, %v1630
        %v1727 = vmul.f32 %v1593, %v1630
        %v1728 = vmul.f32 %v1594, %v1630
        %v1729 = vmul.f32 %v1595, %v1630
        %v1730 = vmul.f32 %v1596, %v1630
        %v1731 = vmul.f32 %v1597, %v1630
        %v1732 = vmul.f32 %v1598, %v1630
        %v1733 = vmul.f32 %v1599, %v1630
        %v1734 = vmul.f32 %v1600, %v1630
        %v1735 = vmul.f32 %v1601, %v1630
        %v1736 = vmul.f32 %v1602, %v1630
        %v1737 = vmul.f32 %v1603, %v1630
        %v1738 = vmul.f32 %v1604, %v1630
        %v1739 = vmul.f32 %v1605, %v1630
        %v1740 = vmul.f32 %v1606, %v1630
        %v1741 = vmul.f32 %v1607, %v1630
        %v1742 = vmul.f32 %v1608, %v1630
        %v1743 = vmul.f32 %v1609, %v1630
        %v1744 = vmul.f32 %v1610, %v1630
        %v1745 = vmul.f32 %v1611, %v1630
        %v1746 = vmul.f32 %v1612, %v1630
        %v1747 = vmul.f32 %v1613, %v1630
        %v1748 = vmul.f32 %v1614, %v1630
        %v1749 = vmul.f32 %v1615, %v1630
        %v1750 = vmul.f32 %v1616, %v1630
        %v1751 = vmul.f32 %v1617, %v1630
        %v1752 = vmul.f32 %v1618, %v1630
        %v1753 = vmul.f32 %v1619, %v1630
        %v1754 = vmul.f32 %v1620, %v1630
        %v1755 = vmul.f32 %v1621, %v1630
        %v1756 = vmul.f32 %v1622, %v1630
        %v1757 = vmul.f32 %v1623, %v1630
        %v1758 = vmul.f32 %v1624, %v1630
        %v1759 = vmul.f32 %v1625, %v1630
        %1760 = vadd.xlane.f32.xlu0 %v1632
        %v1761 = vpop.xlane.xlu0 %1760
        %1762 = vadd.xlane.f32.xlu0 %v1633
        %v1763 = vpop.xlane.xlu0 %1762
        %1764 = vadd.xlane.f32.xlu0 %v1634
        %v1765 = vpop.xlane.xlu0 %1764
        %1766 = vadd.xlane.f32.xlu0 %v1635
        %v1767 = vpop.xlane.xlu0 %1766
        %1768 = vadd.xlane.f32.xlu0 %v1636
        %v1769 = vpop.xlane.xlu0 %1768
        %1770 = vadd.xlane.f32.xlu0 %v1637
        %v1771 = vpop.xlane.xlu0 %1770
        %1772 = vadd.xlane.f32.xlu0 %v1638
        %v1773 = vpop.xlane.xlu0 %1772
        %1774 = vadd.xlane.f32.xlu0 %v1639
        %v1775 = vpop.xlane.xlu0 %1774
        %1776 = vadd.xlane.f32.xlu0 %v1640
        %v1777 = vpop.xlane.xlu0 %1776
        %1778 = vadd.xlane.f32.xlu0 %v1641
        %v1779 = vpop.xlane.xlu0 %1778
        %1780 = vadd.xlane.f32.xlu0 %v1642
        %v1781 = vpop.xlane.xlu0 %1780
        %1782 = vadd.xlane.f32.xlu0 %v1643
        %v1783 = vpop.xlane.xlu0 %1782
        %1784 = vadd.xlane.f32.xlu0 %v1644
        %v1785 = vpop.xlane.xlu0 %1784
        %1786 = vadd.xlane.f32.xlu0 %v1645
        %v1787 = vpop.xlane.xlu0 %1786
        %1788 = vadd.xlane.f32.xlu0 %v1646
        %v1789 = vpop.xlane.xlu0 %1788
        %1790 = vadd.xlane.f32.xlu0 %v1647
        %v1791 = vpop.xlane.xlu0 %1790
        %1792 = vadd.xlane.f32.xlu0 %v1648
        %v1793 = vpop.xlane.xlu0 %1792
        %1794 = vadd.xlane.f32.xlu0 %v1649
        %v1795 = vpop.xlane.xlu0 %1794
        %1796 = vadd.xlane.f32.xlu0 %v1650
        %v1797 = vpop.xlane.xlu0 %1796
        %1798 = vadd.xlane.f32.xlu0 %v1651
        %v1799 = vpop.xlane.xlu0 %1798
        %1800 = vadd.xlane.f32.xlu0 %v1652
        %v1801 = vpop.xlane.xlu0 %1800
        %1802 = vadd.xlane.f32.xlu0 %v1653
        %v1803 = vpop.xlane.xlu0 %1802
        %1804 = vadd.xlane.f32.xlu0 %v1654
        %v1805 = vpop.xlane.xlu0 %1804
        %1806 = vadd.xlane.f32.xlu0 %v1655
        %v1807 = vpop.xlane.xlu0 %1806
        %1808 = vadd.xlane.f32.xlu0 %v1656
        %v1809 = vpop.xlane.xlu0 %1808
        %1810 = vadd.xlane.f32.xlu0 %v1657
        %v1811 = vpop.xlane.xlu0 %1810
        %1812 = vadd.xlane.f32.xlu0 %v1658
        %v1813 = vpop.xlane.xlu0 %1812
        %1814 = vadd.xlane.f32.xlu0 %v1659
        %v1815 = vpop.xlane.xlu0 %1814
        %1816 = vadd.xlane.f32.xlu0 %v1660
        %v1817 = vpop.xlane.xlu0 %1816
        %1818 = vadd.xlane.f32.xlu0 %v1661
        %v1819 = vpop.xlane.xlu0 %1818
        %1820 = vadd.xlane.f32.xlu0 %v1662
        %v1821 = vpop.xlane.xlu0 %1820
        %1822 = vadd.xlane.f32.xlu0 %v1663
        %v1823 = vpop.xlane.xlu0 %1822
        %1824 = vadd.xlane.f32.xlu0 %v1664
        %v1825 = vpop.xlane.xlu0 %1824
        %1826 = vadd.xlane.f32.xlu0 %v1665
        %v1827 = vpop.xlane.xlu0 %1826
        %1828 = vadd.xlane.f32.xlu0 %v1666
        %v1829 = vpop.xlane.xlu0 %1828
        %1830 = vadd.xlane.f32.xlu0 %v1667
        %v1831 = vpop.xlane.xlu0 %1830
        %1832 = vadd.xlane.f32.xlu0 %v1668
        %v1833 = vpop.xlane.xlu0 %1832
        %1834 = vadd.xlane.f32.xlu0 %v1669
        %v1835 = vpop.xlane.xlu0 %1834
        %1836 = vadd.xlane.f32.xlu0 %v1670
        %v1837 = vpop.xlane.xlu0 %1836
        %1838 = vadd.xlane.f32.xlu0 %v1671
        %v1839 = vpop.xlane.xlu0 %1838
        %1840 = vadd.xlane.f32.xlu0 %v1672
        %v1841 = vpop.xlane.xlu0 %1840
        %1842 = vadd.xlane.f32.xlu0 %v1673
        %v1843 = vpop.xlane.xlu0 %1842
        %1844 = vadd.xlane.f32.xlu0 %v1674
        %v1845 = vpop.xlane.xlu0 %1844
        %1846 = vadd.xlane.f32.xlu0 %v1675
        %v1847 = vpop.xlane.xlu0 %1846
        %1848 = vadd.xlane.f32.xlu0 %v1676
        %v1849 = vpop.xlane.xlu0 %1848
        %1850 = vadd.xlane.f32.xlu0 %v1677
        %v1851 = vpop.xlane.xlu0 %1850
        %1852 = vadd.xlane.f32.xlu0 %v1678
        %v1853 = vpop.xlane.xlu0 %1852
        %1854 = vadd.xlane.f32.xlu0 %v1679
        %v1855 = vpop.xlane.xlu0 %1854
        %1856 = vadd.xlane.f32.xlu0 %v1680
        %v1857 = vpop.xlane.xlu0 %1856
        %1858 = vadd.xlane.f32.xlu0 %v1681
        %v1859 = vpop.xlane.xlu0 %1858
        %1860 = vadd.xlane.f32.xlu0 %v1682
        %v1861 = vpop.xlane.xlu0 %1860
        %1862 = vadd.xlane.f32.xlu0 %v1683
        %v1863 = vpop.xlane.xlu0 %1862
        %1864 = vadd.xlane.f32.xlu0 %v1684
        %v1865 = vpop.xlane.xlu0 %1864
        %1866 = vadd.xlane.f32.xlu0 %v1685
        %v1867 = vpop.xlane.xlu0 %1866
        %1868 = vadd.xlane.f32.xlu0 %v1686
        %v1869 = vpop.xlane.xlu0 %1868
        %1870 = vadd.xlane.f32.xlu0 %v1687
        %v1871 = vpop.xlane.xlu0 %1870
        %1872 = vadd.xlane.f32.xlu0 %v1688
        %v1873 = vpop.xlane.xlu0 %1872
        %1874 = vadd.xlane.f32.xlu0 %v1689
        %v1875 = vpop.xlane.xlu0 %1874
        %1876 = vadd.xlane.f32.xlu0 %v1690
        %v1877 = vpop.xlane.xlu0 %1876
        %1878 = vadd.xlane.f32.xlu0 %v1691
        %v1879 = vpop.xlane.xlu0 %1878
        %1880 = vadd.xlane.f32.xlu0 %v1692
        %v1881 = vpop.xlane.xlu0 %1880
        %1882 = vadd.xlane.f32.xlu0 %v1693
        %v1883 = vpop.xlane.xlu0 %1882
        %1884 = vadd.xlane.f32.xlu0 %v1694
        %v1885 = vpop.xlane.xlu0 %1884
        %1886 = vadd.xlane.f32.xlu0 %v1695
        %v1887 = vpop.xlane.xlu0 %1886
        %1888 = vadd.xlane.f32.xlu0 %v1696
        %v1889 = vpop.xlane.xlu0 %1888
        %1890 = vadd.xlane.f32.xlu0 %v1697
        %v1891 = vpop.xlane.xlu0 %1890
        %1892 = vadd.xlane.f32.xlu0 %v1698
        %v1893 = vpop.xlane.xlu0 %1892
        %1894 = vadd.xlane.f32.xlu0 %v1699
        %v1895 = vpop.xlane.xlu0 %1894
        %1896 = vadd.xlane.f32.xlu0 %v1700
        %v1897 = vpop.xlane.xlu0 %1896
        %1898 = vadd.xlane.f32.xlu0 %v1701
        %v1899 = vpop.xlane.xlu0 %1898
        %1900 = vadd.xlane.f32.xlu0 %v1702
        %v1901 = vpop.xlane.xlu0 %1900
        %1902 = vadd.xlane.f32.xlu0 %v1703
        %v1903 = vpop.xlane.xlu0 %1902
        %1904 = vadd.xlane.f32.xlu0 %v1704
        %v1905 = vpop.xlane.xlu0 %1904
        %1906 = vadd.xlane.f32.xlu0 %v1705
        %v1907 = vpop.xlane.xlu0 %1906
        %1908 = vadd.xlane.f32.xlu0 %v1706
        %v1909 = vpop.xlane.xlu0 %1908
        %1910 = vadd.xlane.f32.xlu0 %v1707
        %v1911 = vpop.xlane.xlu0 %1910
        %1912 = vadd.xlane.f32.xlu0 %v1708
        %v1913 = vpop.xlane.xlu0 %1912
        %1914 = vadd.xlane.f32.xlu0 %v1709
        %v1915 = vpop.xlane.xlu0 %1914
        %1916 = vadd.xlane.f32.xlu0 %v1710
        %v1917 = vpop.xlane.xlu0 %1916
        %1918 = vadd.xlane.f32.xlu0 %v1711
        %v1919 = vpop.xlane.xlu0 %1918
        %1920 = vadd.xlane.f32.xlu0 %v1712
        %v1921 = vpop.xlane.xlu0 %1920
        %1922 = vadd.xlane.f32.xlu0 %v1713
        %v1923 = vpop.xlane.xlu0 %1922
        %1924 = vadd.xlane.f32.xlu0 %v1714
        %v1925 = vpop.xlane.xlu0 %1924
        %1926 = vadd.xlane.f32.xlu0 %v1715
        %v1927 = vpop.xlane.xlu0 %1926
        %1928 = vadd.xlane.f32.xlu0 %v1716
        %v1929 = vpop.xlane.xlu0 %1928
        %1930 = vadd.xlane.f32.xlu0 %v1717
        %v1931 = vpop.xlane.xlu0 %1930
        %1932 = vadd.xlane.f32.xlu0 %v1718
        %v1933 = vpop.xlane.xlu0 %1932
        %1934 = vadd.xlane.f32.xlu0 %v1719
        %v1935 = vpop.xlane.xlu0 %1934
        %1936 = vadd.xlane.f32.xlu0 %v1720
        %v1937 = vpop.xlane.xlu0 %1936
        %1938 = vadd.xlane.f32.xlu0 %v1721
        %v1939 = vpop.xlane.xlu0 %1938
        %1940 = vadd.xlane.f32.xlu0 %v1722
        %v1941 = vpop.xlane.xlu0 %1940
        %1942 = vadd.xlane.f32.xlu0 %v1723
        %v1943 = vpop.xlane.xlu0 %1942
        %1944 = vadd.xlane.f32.xlu0 %v1724
        %v1945 = vpop.xlane.xlu0 %1944
        %1946 = vadd.xlane.f32.xlu0 %v1725
        %v1947 = vpop.xlane.xlu0 %1946
        %1948 = vadd.xlane.f32.xlu0 %v1726
        %v1949 = vpop.xlane.xlu0 %1948
        %1950 = vadd.xlane.f32.xlu0 %v1727
        %v1951 = vpop.xlane.xlu0 %1950
        %1952 = vadd.xlane.f32.xlu0 %v1728
        %v1953 = vpop.xlane.xlu0 %1952
        %1954 = vadd.xlane.f32.xlu0 %v1729
        %v1955 = vpop.xlane.xlu0 %1954
        %1956 = vadd.xlane.f32.xlu0 %v1730
        %v1957 = vpop.xlane.xlu0 %1956
        %1958 = vadd.xlane.f32.xlu0 %v1731
        %v1959 = vpop.xlane.xlu0 %1958
        %1960 = vadd.xlane.f32.xlu0 %v1732
        %v1961 = vpop.xlane.xlu0 %1960
        %1962 = vadd.xlane.f32.xlu0 %v1733
        %v1963 = vpop.xlane.xlu0 %1962
        %1964 = vadd.xlane.f32.xlu0 %v1734
        %v1965 = vpop.xlane.xlu0 %1964
        %1966 = vadd.xlane.f32.xlu0 %v1735
        %v1967 = vpop.xlane.xlu0 %1966
        %1968 = vadd.xlane.f32.xlu0 %v1736
        %v1969 = vpop.xlane.xlu0 %1968
        %1970 = vadd.xlane.f32.xlu0 %v1737
        %v1971 = vpop.xlane.xlu0 %1970
        %1972 = vadd.xlane.f32.xlu0 %v1738
        %v1973 = vpop.xlane.xlu0 %1972
        %1974 = vadd.xlane.f32.xlu0 %v1739
        %v1975 = vpop.xlane.xlu0 %1974
        %1976 = vadd.xlane.f32.xlu0 %v1740
        %v1977 = vpop.xlane.xlu0 %1976
        %1978 = vadd.xlane.f32.xlu0 %v1741
        %v1979 = vpop.xlane.xlu0 %1978
        %1980 = vadd.xlane.f32.xlu0 %v1742
        %v1981 = vpop.xlane.xlu0 %1980
        %1982 = vadd.xlane.f32.xlu0 %v1743
        %v1983 = vpop.xlane.xlu0 %1982
        %1984 = vadd.xlane.f32.xlu0 %v1744
        %v1985 = vpop.xlane.xlu0 %1984
        %1986 = vadd.xlane.f32.xlu0 %v1745
        %v1987 = vpop.xlane.xlu0 %1986
        %1988 = vadd.xlane.f32.xlu0 %v1746
        %v1989 = vpop.xlane.xlu0 %1988
        %1990 = vadd.xlane.f32.xlu0 %v1747
        %v1991 = vpop.xlane.xlu0 %1990
        %1992 = vadd.xlane.f32.xlu0 %v1748
        %v1993 = vpop.xlane.xlu0 %1992
        %1994 = vadd.xlane.f32.xlu0 %v1749
        %v1995 = vpop.xlane.xlu0 %1994
        %1996 = vadd.xlane.f32.xlu0 %v1750
        %v1997 = vpop.xlane.xlu0 %1996
        %1998 = vadd.xlane.f32.xlu0 %v1751
        %v1999 = vpop.xlane.xlu0 %1998
        %2000 = vadd.xlane.f32.xlu0 %v1752
        %v2001 = vpop.xlane.xlu0 %2000
        %2002 = vadd.xlane.f32.xlu0 %v1753
        %v2003 = vpop.xlane.xlu0 %2002
        %2004 = vadd.xlane.f32.xlu0 %v1754
        %v2005 = vpop.xlane.xlu0 %2004
        %2006 = vadd.xlane.f32.xlu0 %v1755
        %v2007 = vpop.xlane.xlu0 %2006
        %2008 = vadd.xlane.f32.xlu0 %v1756
        %v2009 = vpop.xlane.xlu0 %2008
        %2010 = vadd.xlane.f32.xlu0 %v1757
        %v2011 = vpop.xlane.xlu0 %2010
        %2012 = vadd.xlane.f32.xlu0 %v1758
        %v2013 = vpop.xlane.xlu0 %2012
        %2014 = vadd.xlane.f32.xlu0 %v1759
        %v2015 = vpop.xlane.xlu0 %2014
        %v2016 = vstv %s286
        %v2017 = vadd.f32 %v1761, %v2016
        %v2018 = vadd.f32 %v1763, %v2016
        %v2019 = vadd.f32 %v1765, %v2016
        %v2020 = vadd.f32 %v1767, %v2016
        %v2021 = vadd.f32 %v1769, %v2016
        %v2022 = vadd.f32 %v1771, %v2016
        %v2023 = vadd.f32 %v1773, %v2016
        %v2024 = vadd.f32 %v1775, %v2016
        %v2025 = vadd.f32 %v1777, %v2016
        %v2026 = vadd.f32 %v1779, %v2016
        %v2027 = vadd.f32 %v1781, %v2016
        %v2028 = vadd.f32 %v1783, %v2016
        %v2029 = vadd.f32 %v1785, %v2016
        %v2030 = vadd.f32 %v1787, %v2016
        %v2031 = vadd.f32 %v1789, %v2016
        %v2032 = vadd.f32 %v1791, %v2016
        %v2033 = vadd.f32 %v1793, %v2016
        %v2034 = vadd.f32 %v1795, %v2016
        %v2035 = vadd.f32 %v1797, %v2016
        %v2036 = vadd.f32 %v1799, %v2016
        %v2037 = vadd.f32 %v1801, %v2016
        %v2038 = vadd.f32 %v1803, %v2016
        %v2039 = vadd.f32 %v1805, %v2016
        %v2040 = vadd.f32 %v1807, %v2016
        %v2041 = vadd.f32 %v1809, %v2016
        %v2042 = vadd.f32 %v1811, %v2016
        %v2043 = vadd.f32 %v1813, %v2016
        %v2044 = vadd.f32 %v1815, %v2016
        %v2045 = vadd.f32 %v1817, %v2016
        %v2046 = vadd.f32 %v1819, %v2016
        %v2047 = vadd.f32 %v1821, %v2016
        %v2048 = vadd.f32 %v1823, %v2016
        %v2049 = vadd.f32 %v1825, %v2016
        %v2050 = vadd.f32 %v1827, %v2016
        %v2051 = vadd.f32 %v1829, %v2016
        %v2052 = vadd.f32 %v1831, %v2016
        %v2053 = vadd.f32 %v1833, %v2016
        %v2054 = vadd.f32 %v1835, %v2016
        %v2055 = vadd.f32 %v1837, %v2016
        %v2056 = vadd.f32 %v1839, %v2016
        %v2057 = vadd.f32 %v1841, %v2016
        %v2058 = vadd.f32 %v1843, %v2016
        %v2059 = vadd.f32 %v1845, %v2016
        %v2060 = vadd.f32 %v1847, %v2016
        %v2061 = vadd.f32 %v1849, %v2016
        %v2062 = vadd.f32 %v1851, %v2016
        %v2063 = vadd.f32 %v1853, %v2016
        %v2064 = vadd.f32 %v1855, %v2016
        %v2065 = vadd.f32 %v1857, %v2016
        %v2066 = vadd.f32 %v1859, %v2016
        %v2067 = vadd.f32 %v1861, %v2016
        %v2068 = vadd.f32 %v1863, %v2016
        %v2069 = vadd.f32 %v1865, %v2016
        %v2070 = vadd.f32 %v1867, %v2016
        %v2071 = vadd.f32 %v1869, %v2016
        %v2072 = vadd.f32 %v1871, %v2016
        %v2073 = vadd.f32 %v1873, %v2016
        %v2074 = vadd.f32 %v1875, %v2016
        %v2075 = vadd.f32 %v1877, %v2016
        %v2076 = vadd.f32 %v1879, %v2016
        %v2077 = vadd.f32 %v1881, %v2016
        %v2078 = vadd.f32 %v1883, %v2016
        %v2079 = vadd.f32 %v1885, %v2016
        %v2080 = vadd.f32 %v1887, %v2016
        %v2081 = vadd.f32 %v1889, %v2016
        %v2082 = vadd.f32 %v1891, %v2016
        %v2083 = vadd.f32 %v1893, %v2016
        %v2084 = vadd.f32 %v1895, %v2016
        %v2085 = vadd.f32 %v1897, %v2016
        %v2086 = vadd.f32 %v1899, %v2016
        %v2087 = vadd.f32 %v1901, %v2016
        %v2088 = vadd.f32 %v1903, %v2016
        %v2089 = vadd.f32 %v1905, %v2016
        %v2090 = vadd.f32 %v1907, %v2016
        %v2091 = vadd.f32 %v1909, %v2016
        %v2092 = vadd.f32 %v1911, %v2016
        %v2093 = vadd.f32 %v1913, %v2016
        %v2094 = vadd.f32 %v1915, %v2016
        %v2095 = vadd.f32 %v1917, %v2016
        %v2096 = vadd.f32 %v1919, %v2016
        %v2097 = vadd.f32 %v1921, %v2016
        %v2098 = vadd.f32 %v1923, %v2016
        %v2099 = vadd.f32 %v1925, %v2016
        %v2100 = vadd.f32 %v1927, %v2016
        %v2101 = vadd.f32 %v1929, %v2016
        %v2102 = vadd.f32 %v1931, %v2016
        %v2103 = vadd.f32 %v1933, %v2016
        %v2104 = vadd.f32 %v1935, %v2016
        %v2105 = vadd.f32 %v1937, %v2016
        %v2106 = vadd.f32 %v1939, %v2016
        %v2107 = vadd.f32 %v1941, %v2016
        %v2108 = vadd.f32 %v1943, %v2016
        %v2109 = vadd.f32 %v1945, %v2016
        %v2110 = vadd.f32 %v1947, %v2016
        %v2111 = vadd.f32 %v1949, %v2016
        %v2112 = vadd.f32 %v1951, %v2016
        %v2113 = vadd.f32 %v1953, %v2016
        %v2114 = vadd.f32 %v1955, %v2016
        %v2115 = vadd.f32 %v1957, %v2016
        %v2116 = vadd.f32 %v1959, %v2016
        %v2117 = vadd.f32 %v1961, %v2016
        %v2118 = vadd.f32 %v1963, %v2016
        %v2119 = vadd.f32 %v1965, %v2016
        %v2120 = vadd.f32 %v1967, %v2016
        %v2121 = vadd.f32 %v1969, %v2016
        %v2122 = vadd.f32 %v1971, %v2016
        %v2123 = vadd.f32 %v1973, %v2016
        %v2124 = vadd.f32 %v1975, %v2016
        %v2125 = vadd.f32 %v1977, %v2016
        %v2126 = vadd.f32 %v1979, %v2016
        %v2127 = vadd.f32 %v1981, %v2016
        %v2128 = vadd.f32 %v1983, %v2016
        %v2129 = vadd.f32 %v1985, %v2016
        %v2130 = vadd.f32 %v1987, %v2016
        %v2131 = vadd.f32 %v1989, %v2016
        %v2132 = vadd.f32 %v1991, %v2016
        %v2133 = vadd.f32 %v1993, %v2016
        %v2134 = vadd.f32 %v1995, %v2016
        %v2135 = vadd.f32 %v1997, %v2016
        %v2136 = vadd.f32 %v1999, %v2016
        %v2137 = vadd.f32 %v2001, %v2016
        %v2138 = vadd.f32 %v2003, %v2016
        %v2139 = vadd.f32 %v2005, %v2016
        %v2140 = vadd.f32 %v2007, %v2016
        %v2141 = vadd.f32 %v2009, %v2016
        %v2142 = vadd.f32 %v2011, %v2016
        %v2143 = vadd.f32 %v2013, %v2016
        %v2144 = vadd.f32 %v2015, %v2016
        %v2273 = vlaneseq
        %v2274 = vand.u32 %v2273, 127
        %v2275 = vlaneseq
        %v2276 = vshrl.u32 %v2275, 7
        %v2277 = vsub.s32 %v2274, %v2276
        %v2278 = vrot.slane %v2017, %v2277
        %v2279 = vadd.s32 %v2274, 4294967288
        %v2280 = vlaneseq
        %v2281 = vshrl.u32 %v2280, 7
        %v2282 = vsub.s32 %v2279, %v2281
        %v2283 = vrot.slane %v2018, %v2282
        %vm2284 = vcmask 130112
        %v2285 = vsel %vm2284, %v2283, %v2278
        %v2286 = vadd.s32 %v2274, 4294967280
        %v2287 = vlaneseq
        %v2288 = vshrl.u32 %v2287, 7
        %v2289 = vsub.s32 %v2286, %v2288
        %v2290 = vrot.slane %v2019, %v2289
        %vm2291 = vcmask 195712
        %v2292 = vsel %vm2291, %v2290, %v2285
        %v2293 = vadd.s32 %v2274, 4294967272
        %v2294 = vlaneseq
        %v2295 = vshrl.u32 %v2294, 7
        %v2296 = vsub.s32 %v2293, %v2295
        %v2297 = vrot.slane %v2020, %v2296
        %vm2298 = vcmask 261312
        %v2299 = vsel %vm2298, %v2297, %v2292
        %v2300 = vadd.s32 %v2274, 4294967264
        %v2301 = vlaneseq
        %v2302 = vshrl.u32 %v2301, 7
        %v2303 = vsub.s32 %v2300, %v2302
        %v2304 = vrot.slane %v2021, %v2303
        %vm2305 = vcmask 326912
        %v2306 = vsel %vm2305, %v2304, %v2299
        %v2307 = vadd.s32 %v2274, 4294967256
        %v2308 = vlaneseq
        %v2309 = vshrl.u32 %v2308, 7
        %v2310 = vsub.s32 %v2307, %v2309
        %v2311 = vrot.slane %v2022, %v2310
        %vm2312 = vcmask 392512
        %v2313 = vsel %vm2312, %v2311, %v2306
        %v2314 = vadd.s32 %v2274, 4294967248
        %v2315 = vlaneseq
        %v2316 = vshrl.u32 %v2315, 7
        %v2317 = vsub.s32 %v2314, %v2316
        %v2318 = vrot.slane %v2023, %v2317
        %vm2319 = vcmask 458112
        %v2320 = vsel %vm2319, %v2318, %v2313
        %v2321 = vadd.s32 %v2274, 4294967240
        %v2322 = vlaneseq
        %v2323 = vshrl.u32 %v2322, 7
        %v2324 = vsub.s32 %v2321, %v2323
        %v2325 = vrot.slane %v2024, %v2324
        %vm2326 = vcmask 523712
        %v2327 = vsel %vm2326, %v2325, %v2320
        %v2328 = vadd.s32 %v2274, 4294967232
        %v2329 = vlaneseq
        %v2330 = vshrl.u32 %v2329, 7
        %v2331 = vsub.s32 %v2328, %v2330
        %v2332 = vrot.slane %v2025, %v2331
        %vm2333 = vcmask 589312
        %v2334 = vsel %vm2333, %v2332, %v2327
        %v2335 = vadd.s32 %v2274, 4294967224
        %v2336 = vlaneseq
        %v2337 = vshrl.u32 %v2336, 7
        %v2338 = vsub.s32 %v2335, %v2337
        %v2339 = vrot.slane %v2026, %v2338
        %vm2340 = vcmask 654912
        %v2341 = vsel %vm2340, %v2339, %v2334
        %v2342 = vadd.s32 %v2274, 4294967216
        %v2343 = vlaneseq
        %v2344 = vshrl.u32 %v2343, 7
        %v2345 = vsub.s32 %v2342, %v2344
        %v2346 = vrot.slane %v2027, %v2345
        %vm2347 = vcmask 720512
        %v2348 = vsel %vm2347, %v2346, %v2341
        %v2349 = vadd.s32 %v2274, 4294967208
        %v2350 = vlaneseq
        %v2351 = vshrl.u32 %v2350, 7
        %v2352 = vsub.s32 %v2349, %v2351
        %v2353 = vrot.slane %v2028, %v2352
        %vm2354 = vcmask 786112
        %v2355 = vsel %vm2354, %v2353, %v2348
        %v2356 = vadd.s32 %v2274, 4294967200
        %v2357 = vlaneseq
        %v2358 = vshrl.u32 %v2357, 7
        %v2359 = vsub.s32 %v2356, %v2358
        %v2360 = vrot.slane %v2029, %v2359
        %vm2361 = vcmask 851712
        %v2362 = vsel %vm2361, %v2360, %v2355
        %v2363 = vadd.s32 %v2274, 4294967192
        %v2364 = vlaneseq
        %v2365 = vshrl.u32 %v2364, 7
        %v2366 = vsub.s32 %v2363, %v2365
        %v2367 = vrot.slane %v2030, %v2366
        %vm2368 = vcmask 917312
        %v2369 = vsel %vm2368, %v2367, %v2362
        %v2370 = vadd.s32 %v2274, 4294967184
        %v2371 = vlaneseq
        %v2372 = vshrl.u32 %v2371, 7
        %v2373 = vsub.s32 %v2370, %v2372
        %v2374 = vrot.slane %v2031, %v2373
        %vm2375 = vcmask 982912
        %v2376 = vsel %vm2375, %v2374, %v2369
        %v2377 = vadd.s32 %v2274, 4294967176
        %v2378 = vlaneseq
        %v2379 = vshrl.u32 %v2378, 7
        %v2380 = vsub.s32 %v2377, %v2379
        %v2381 = vrot.slane %v2032, %v2380
        %vm2382 = vcmask 1048512
        %v2383 = vsel %vm2382, %v2381, %v2376
        %v2384 = vlaneseq
        %v2385 = vshrl.u32 %v2384, 7
        %v2386 = vsub.s32 %v2274, %v2385
        %v2387 = vrot.slane %v2033, %v2386
        %v2388 = vlaneseq
        %v2389 = vshrl.u32 %v2388, 7
        %v2390 = vsub.s32 %v2279, %v2389
        %v2391 = vrot.slane %v2034, %v2390
        %v2392 = vsel %vm2284, %v2391, %v2387
        %v2393 = vlaneseq
        %v2394 = vshrl.u32 %v2393, 7
        %v2395 = vsub.s32 %v2286, %v2394
        %v2396 = vrot.slane %v2035, %v2395
        %v2397 = vsel %vm2291, %v2396, %v2392
        %v2398 = vlaneseq
        %v2399 = vshrl.u32 %v2398, 7
        %v2400 = vsub.s32 %v2293, %v2399
        %v2401 = vrot.slane %v2036, %v2400
        %v2402 = vsel %vm2298, %v2401, %v2397
        %v2403 = vlaneseq
        %v2404 = vshrl.u32 %v2403, 7
        %v2405 = vsub.s32 %v2300, %v2404
        %v2406 = vrot.slane %v2037, %v2405
        %v2407 = vsel %vm2305, %v2406, %v2402
        %v2408 = vlaneseq
        %v2409 = vshrl.u32 %v2408, 7
        %v2410 = vsub.s32 %v2307, %v2409
        %v2411 = vrot.slane %v2038, %v2410
        %v2412 = vsel %vm2312, %v2411, %v2407
        %v2413 = vlaneseq
        %v2414 = vshrl.u32 %v2413, 7
        %v2415 = vsub.s32 %v2314, %v2414
        %v2416 = vrot.slane %v2039, %v2415
        %v2417 = vsel %vm2319, %v2416, %v2412
        %v2418 = vlaneseq
        %v2419 = vshrl.u32 %v2418, 7
        %v2420 = vsub.s32 %v2321, %v2419
        %v2421 = vrot.slane %v2040, %v2420
        %v2422 = vsel %vm2326, %v2421, %v2417
        %v2423 = vlaneseq
        %v2424 = vshrl.u32 %v2423, 7
        %v2425 = vsub.s32 %v2328, %v2424
        %v2426 = vrot.slane %v2041, %v2425
        %v2427 = vsel %vm2333, %v2426, %v2422
        %v2428 = vlaneseq
        %v2429 = vshrl.u32 %v2428, 7
        %v2430 = vsub.s32 %v2335, %v2429
        %v2431 = vrot.slane %v2042, %v2430
        %v2432 = vsel %vm2340, %v2431, %v2427
        %v2433 = vlaneseq
        %v2434 = vshrl.u32 %v2433, 7
        %v2435 = vsub.s32 %v2342, %v2434
        %v2436 = vrot.slane %v2043, %v2435
        %v2437 = vsel %vm2347, %v2436, %v2432
        %v2438 = vlaneseq
        %v2439 = vshrl.u32 %v2438, 7
        %v2440 = vsub.s32 %v2349, %v2439
        %v2441 = vrot.slane %v2044, %v2440
        %v2442 = vsel %vm2354, %v2441, %v2437
        %v2443 = vlaneseq
        %v2444 = vshrl.u32 %v2443, 7
        %v2445 = vsub.s32 %v2356, %v2444
        %v2446 = vrot.slane %v2045, %v2445
        %v2447 = vsel %vm2361, %v2446, %v2442
        %v2448 = vlaneseq
        %v2449 = vshrl.u32 %v2448, 7
        %v2450 = vsub.s32 %v2363, %v2449
        %v2451 = vrot.slane %v2046, %v2450
        %v2452 = vsel %vm2368, %v2451, %v2447
        %v2453 = vlaneseq
        %v2454 = vshrl.u32 %v2453, 7
        %v2455 = vsub.s32 %v2370, %v2454
        %v2456 = vrot.slane %v2047, %v2455
        %v2457 = vsel %vm2375, %v2456, %v2452
        %v2458 = vlaneseq
        %v2459 = vshrl.u32 %v2458, 7
        %v2460 = vsub.s32 %v2377, %v2459
        %v2461 = vrot.slane %v2048, %v2460
        %v2462 = vsel %vm2382, %v2461, %v2457
        %v2463 = vlaneseq
        %v2464 = vshrl.u32 %v2463, 7
        %v2465 = vsub.s32 %v2274, %v2464
        %v2466 = vrot.slane %v2049, %v2465
        %v2467 = vlaneseq
        %v2468 = vshrl.u32 %v2467, 7
        %v2469 = vsub.s32 %v2279, %v2468
        %v2470 = vrot.slane %v2050, %v2469
        %v2471 = vsel %vm2284, %v2470, %v2466
        %v2472 = vlaneseq
        %v2473 = vshrl.u32 %v2472, 7
        %v2474 = vsub.s32 %v2286, %v2473
        %v2475 = vrot.slane %v2051, %v2474
        %v2476 = vsel %vm2291, %v2475, %v2471
        %v2477 = vlaneseq
        %v2478 = vshrl.u32 %v2477, 7
        %v2479 = vsub.s32 %v2293, %v2478
        %v2480 = vrot.slane %v2052, %v2479
        %v2481 = vsel %vm2298, %v2480, %v2476
        %v2482 = vlaneseq
        %v2483 = vshrl.u32 %v2482, 7
        %v2484 = vsub.s32 %v2300, %v2483
        %v2485 = vrot.slane %v2053, %v2484
        %v2486 = vsel %vm2305, %v2485, %v2481
        %v2487 = vlaneseq
        %v2488 = vshrl.u32 %v2487, 7
        %v2489 = vsub.s32 %v2307, %v2488
        %v2490 = vrot.slane %v2054, %v2489
        %v2491 = vsel %vm2312, %v2490, %v2486
        %v2492 = vlaneseq
        %v2493 = vshrl.u32 %v2492, 7
        %v2494 = vsub.s32 %v2314, %v2493
        %v2495 = vrot.slane %v2055, %v2494
        %v2496 = vsel %vm2319, %v2495, %v2491
        %v2497 = vlaneseq
        %v2498 = vshrl.u32 %v2497, 7
        %v2499 = vsub.s32 %v2321, %v2498
        %v2500 = vrot.slane %v2056, %v2499
        %v2501 = vsel %vm2326, %v2500, %v2496
        %v2502 = vlaneseq
        %v2503 = vshrl.u32 %v2502, 7
        %v2504 = vsub.s32 %v2328, %v2503
        %v2505 = vrot.slane %v2057, %v2504
        %v2506 = vsel %vm2333, %v2505, %v2501
        %v2507 = vlaneseq
        %v2508 = vshrl.u32 %v2507, 7
        %v2509 = vsub.s32 %v2335, %v2508
        %v2510 = vrot.slane %v2058, %v2509
        %v2511 = vsel %vm2340, %v2510, %v2506
        %v2512 = vlaneseq
        %v2513 = vshrl.u32 %v2512, 7
        %v2514 = vsub.s32 %v2342, %v2513
        %v2515 = vrot.slane %v2059, %v2514
        %v2516 = vsel %vm2347, %v2515, %v2511
        %v2517 = vlaneseq
        %v2518 = vshrl.u32 %v2517, 7
        %v2519 = vsub.s32 %v2349, %v2518
        %v2520 = vrot.slane %v2060, %v2519
        %v2521 = vsel %vm2354, %v2520, %v2516
        %v2522 = vlaneseq
        %v2523 = vshrl.u32 %v2522, 7
        %v2524 = vsub.s32 %v2356, %v2523
        %v2525 = vrot.slane %v2061, %v2524
        %v2526 = vsel %vm2361, %v2525, %v2521
        %v2527 = vlaneseq
        %v2528 = vshrl.u32 %v2527, 7
        %v2529 = vsub.s32 %v2363, %v2528
        %v2530 = vrot.slane %v2062, %v2529
        %v2531 = vsel %vm2368, %v2530, %v2526
        %v2532 = vlaneseq
        %v2533 = vshrl.u32 %v2532, 7
        %v2534 = vsub.s32 %v2370, %v2533
        %v2535 = vrot.slane %v2063, %v2534
        %v2536 = vsel %vm2375, %v2535, %v2531
        %v2537 = vlaneseq
        %v2538 = vshrl.u32 %v2537, 7
        %v2539 = vsub.s32 %v2377, %v2538
        %v2540 = vrot.slane %v2064, %v2539
        %v2541 = vsel %vm2382, %v2540, %v2536
        %v2542 = vlaneseq
        %v2543 = vshrl.u32 %v2542, 7
        %v2544 = vsub.s32 %v2274, %v2543
        %v2545 = vrot.slane %v2065, %v2544
        %v2546 = vlaneseq
        %v2547 = vshrl.u32 %v2546, 7
        %v2548 = vsub.s32 %v2279, %v2547
        %v2549 = vrot.slane %v2066, %v2548
        %v2550 = vsel %vm2284, %v2549, %v2545
        %v2551 = vlaneseq
        %v2552 = vshrl.u32 %v2551, 7
        %v2553 = vsub.s32 %v2286, %v2552
        %v2554 = vrot.slane %v2067, %v2553
        %v2555 = vsel %vm2291, %v2554, %v2550
        %v2556 = vlaneseq
        %v2557 = vshrl.u32 %v2556, 7
        %v2558 = vsub.s32 %v2293, %v2557
        %v2559 = vrot.slane %v2068, %v2558
        %v2560 = vsel %vm2298, %v2559, %v2555
        %v2561 = vlaneseq
        %v2562 = vshrl.u32 %v2561, 7
        %v2563 = vsub.s32 %v2300, %v2562
        %v2564 = vrot.slane %v2069, %v2563
        %v2565 = vsel %vm2305, %v2564, %v2560
        %v2566 = vlaneseq
        %v2567 = vshrl.u32 %v2566, 7
        %v2568 = vsub.s32 %v2307, %v2567
        %v2569 = vrot.slane %v2070, %v2568
        %v2570 = vsel %vm2312, %v2569, %v2565
        %v2571 = vlaneseq
        %v2572 = vshrl.u32 %v2571, 7
        %v2573 = vsub.s32 %v2314, %v2572
        %v2574 = vrot.slane %v2071, %v2573
        %v2575 = vsel %vm2319, %v2574, %v2570
        %v2576 = vlaneseq
        %v2577 = vshrl.u32 %v2576, 7
        %v2578 = vsub.s32 %v2321, %v2577
        %v2579 = vrot.slane %v2072, %v2578
        %v2580 = vsel %vm2326, %v2579, %v2575
        %v2581 = vlaneseq
        %v2582 = vshrl.u32 %v2581, 7
        %v2583 = vsub.s32 %v2328, %v2582
        %v2584 = vrot.slane %v2073, %v2583
        %v2585 = vsel %vm2333, %v2584, %v2580
        %v2586 = vlaneseq
        %v2587 = vshrl.u32 %v2586, 7
        %v2588 = vsub.s32 %v2335, %v2587
        %v2589 = vrot.slane %v2074, %v2588
        %v2590 = vsel %vm2340, %v2589, %v2585
        %v2591 = vlaneseq
        %v2592 = vshrl.u32 %v2591, 7
        %v2593 = vsub.s32 %v2342, %v2592
        %v2594 = vrot.slane %v2075, %v2593
        %v2595 = vsel %vm2347, %v2594, %v2590
        %v2596 = vlaneseq
        %v2597 = vshrl.u32 %v2596, 7
        %v2598 = vsub.s32 %v2349, %v2597
        %v2599 = vrot.slane %v2076, %v2598
        %v2600 = vsel %vm2354, %v2599, %v2595
        %v2601 = vlaneseq
        %v2602 = vshrl.u32 %v2601, 7
        %v2603 = vsub.s32 %v2356, %v2602
        %v2604 = vrot.slane %v2077, %v2603
        %v2605 = vsel %vm2361, %v2604, %v2600
        %v2606 = vlaneseq
        %v2607 = vshrl.u32 %v2606, 7
        %v2608 = vsub.s32 %v2363, %v2607
        %v2609 = vrot.slane %v2078, %v2608
        %v2610 = vsel %vm2368, %v2609, %v2605
        %v2611 = vlaneseq
        %v2612 = vshrl.u32 %v2611, 7
        %v2613 = vsub.s32 %v2370, %v2612
        %v2614 = vrot.slane %v2079, %v2613
        %v2615 = vsel %vm2375, %v2614, %v2610
        %v2616 = vlaneseq
        %v2617 = vshrl.u32 %v2616, 7
        %v2618 = vsub.s32 %v2377, %v2617
        %v2619 = vrot.slane %v2080, %v2618
        %v2620 = vsel %vm2382, %v2619, %v2615
        %v2621 = vlaneseq
        %v2622 = vshrl.u32 %v2621, 7
        %v2623 = vsub.s32 %v2274, %v2622
        %v2624 = vrot.slane %v2081, %v2623
        %v2625 = vlaneseq
        %v2626 = vshrl.u32 %v2625, 7
        %v2627 = vsub.s32 %v2279, %v2626
        %v2628 = vrot.slane %v2082, %v2627
        %v2629 = vsel %vm2284, %v2628, %v2624
        %v2630 = vlaneseq
        %v2631 = vshrl.u32 %v2630, 7
        %v2632 = vsub.s32 %v2286, %v2631
        %v2633 = vrot.slane %v2083, %v2632
        %v2634 = vsel %vm2291, %v2633, %v2629
        %v2635 = vlaneseq
        %v2636 = vshrl.u32 %v2635, 7
        %v2637 = vsub.s32 %v2293, %v2636
        %v2638 = vrot.slane %v2084, %v2637
        %v2639 = vsel %vm2298, %v2638, %v2634
        %v2640 = vlaneseq
        %v2641 = vshrl.u32 %v2640, 7
        %v2642 = vsub.s32 %v2300, %v2641
        %v2643 = vrot.slane %v2085, %v2642
        %v2644 = vsel %vm2305, %v2643, %v2639
        %v2645 = vlaneseq
        %v2646 = vshrl.u32 %v2645, 7
        %v2647 = vsub.s32 %v2307, %v2646
        %v2648 = vrot.slane %v2086, %v2647
        %v2649 = vsel %vm2312, %v2648, %v2644
        %v2650 = vlaneseq
        %v2651 = vshrl.u32 %v2650, 7
        %v2652 = vsub.s32 %v2314, %v2651
        %v2653 = vrot.slane %v2087, %v2652
        %v2654 = vsel %vm2319, %v2653, %v2649
        %v2655 = vlaneseq
        %v2656 = vshrl.u32 %v2655, 7
        %v2657 = vsub.s32 %v2321, %v2656
        %v2658 = vrot.slane %v2088, %v2657
        %v2659 = vsel %vm2326, %v2658, %v2654
        %v2660 = vlaneseq
        %v2661 = vshrl.u32 %v2660, 7
        %v2662 = vsub.s32 %v2328, %v2661
        %v2663 = vrot.slane %v2089, %v2662
        %v2664 = vsel %vm2333, %v2663, %v2659
        %v2665 = vlaneseq
        %v2666 = vshrl.u32 %v2665, 7
        %v2667 = vsub.s32 %v2335, %v2666
        %v2668 = vrot.slane %v2090, %v2667
        %v2669 = vsel %vm2340, %v2668, %v2664
        %v2670 = vlaneseq
        %v2671 = vshrl.u32 %v2670, 7
        %v2672 = vsub.s32 %v2342, %v2671
        %v2673 = vrot.slane %v2091, %v2672
        %v2674 = vsel %vm2347, %v2673, %v2669
        %v2675 = vlaneseq
        %v2676 = vshrl.u32 %v2675, 7
        %v2677 = vsub.s32 %v2349, %v2676
        %v2678 = vrot.slane %v2092, %v2677
        %v2679 = vsel %vm2354, %v2678, %v2674
        %v2680 = vlaneseq
        %v2681 = vshrl.u32 %v2680, 7
        %v2682 = vsub.s32 %v2356, %v2681
        %v2683 = vrot.slane %v2093, %v2682
        %v2684 = vsel %vm2361, %v2683, %v2679
        %v2685 = vlaneseq
        %v2686 = vshrl.u32 %v2685, 7
        %v2687 = vsub.s32 %v2363, %v2686
        %v2688 = vrot.slane %v2094, %v2687
        %v2689 = vsel %vm2368, %v2688, %v2684
        %v2690 = vlaneseq
        %v2691 = vshrl.u32 %v2690, 7
        %v2692 = vsub.s32 %v2370, %v2691
        %v2693 = vrot.slane %v2095, %v2692
        %v2694 = vsel %vm2375, %v2693, %v2689
        %v2695 = vlaneseq
        %v2696 = vshrl.u32 %v2695, 7
        %v2697 = vsub.s32 %v2377, %v2696
        %v2698 = vrot.slane %v2096, %v2697
        %v2699 = vsel %vm2382, %v2698, %v2694
        %v2700 = vlaneseq
        %v2701 = vshrl.u32 %v2700, 7
        %v2702 = vsub.s32 %v2274, %v2701
        %v2703 = vrot.slane %v2097, %v2702
        %v2704 = vlaneseq
        %v2705 = vshrl.u32 %v2704, 7
        %v2706 = vsub.s32 %v2279, %v2705
        %v2707 = vrot.slane %v2098, %v2706
        %v2708 = vsel %vm2284, %v2707, %v2703
        %v2709 = vlaneseq
        %v2710 = vshrl.u32 %v2709, 7
        %v2711 = vsub.s32 %v2286, %v2710
        %v2712 = vrot.slane %v2099, %v2711
        %v2713 = vsel %vm2291, %v2712, %v2708
        %v2714 = vlaneseq
        %v2715 = vshrl.u32 %v2714, 7
        %v2716 = vsub.s32 %v2293, %v2715
        %v2717 = vrot.slane %v2100, %v2716
        %v2718 = vsel %vm2298, %v2717, %v2713
        %v2719 = vlaneseq
        %v2720 = vshrl.u32 %v2719, 7
        %v2721 = vsub.s32 %v2300, %v2720
        %v2722 = vrot.slane %v2101, %v2721
        %v2723 = vsel %vm2305, %v2722, %v2718
        %v2724 = vlaneseq
        %v2725 = vshrl.u32 %v2724, 7
        %v2726 = vsub.s32 %v2307, %v2725
        %v2727 = vrot.slane %v2102, %v2726
        %v2728 = vsel %vm2312, %v2727, %v2723
        %v2729 = vlaneseq
        %v2730 = vshrl.u32 %v2729, 7
        %v2731 = vsub.s32 %v2314, %v2730
        %v2732 = vrot.slane %v2103, %v2731
        %v2733 = vsel %vm2319, %v2732, %v2728
        %v2734 = vlaneseq
        %v2735 = vshrl.u32 %v2734, 7
        %v2736 = vsub.s32 %v2321, %v2735
        %v2737 = vrot.slane %v2104, %v2736
        %v2738 = vsel %vm2326, %v2737, %v2733
        %v2739 = vlaneseq
        %v2740 = vshrl.u32 %v2739, 7
        %v2741 = vsub.s32 %v2328, %v2740
        %v2742 = vrot.slane %v2105, %v2741
        %v2743 = vsel %vm2333, %v2742, %v2738
        %v2744 = vlaneseq
        %v2745 = vshrl.u32 %v2744, 7
        %v2746 = vsub.s32 %v2335, %v2745
        %v2747 = vrot.slane %v2106, %v2746
        %v2748 = vsel %vm2340, %v2747, %v2743
        %v2749 = vlaneseq
        %v2750 = vshrl.u32 %v2749, 7
        %v2751 = vsub.s32 %v2342, %v2750
        %v2752 = vrot.slane %v2107, %v2751
        %v2753 = vsel %vm2347, %v2752, %v2748
        %v2754 = vlaneseq
        %v2755 = vshrl.u32 %v2754, 7
        %v2756 = vsub.s32 %v2349, %v2755
        %v2757 = vrot.slane %v2108, %v2756
        %v2758 = vsel %vm2354, %v2757, %v2753
        %v2759 = vlaneseq
        %v2760 = vshrl.u32 %v2759, 7
        %v2761 = vsub.s32 %v2356, %v2760
        %v2762 = vrot.slane %v2109, %v2761
        %v2763 = vsel %vm2361, %v2762, %v2758
        %v2764 = vlaneseq
        %v2765 = vshrl.u32 %v2764, 7
        %v2766 = vsub.s32 %v2363, %v2765
        %v2767 = vrot.slane %v2110, %v2766
        %v2768 = vsel %vm2368, %v2767, %v2763
        %v2769 = vlaneseq
        %v2770 = vshrl.u32 %v2769, 7
        %v2771 = vsub.s32 %v2370, %v2770
        %v2772 = vrot.slane %v2111, %v2771
        %v2773 = vsel %vm2375, %v2772, %v2768
        %v2774 = vlaneseq
        %v2775 = vshrl.u32 %v2774, 7
        %v2776 = vsub.s32 %v2377, %v2775
        %v2777 = vrot.slane %v2112, %v2776
        %v2778 = vsel %vm2382, %v2777, %v2773
        %v2779 = vlaneseq
        %v2780 = vshrl.u32 %v2779, 7
        %v2781 = vsub.s32 %v2274, %v2780
        %v2782 = vrot.slane %v2113, %v2781
        %v2783 = vlaneseq
        %v2784 = vshrl.u32 %v2783, 7
        %v2785 = vsub.s32 %v2279, %v2784
        %v2786 = vrot.slane %v2114, %v2785
        %v2787 = vsel %vm2284, %v2786, %v2782
        %v2788 = vlaneseq
        %v2789 = vshrl.u32 %v2788, 7
        %v2790 = vsub.s32 %v2286, %v2789
        %v2791 = vrot.slane %v2115, %v2790
        %v2792 = vsel %vm2291, %v2791, %v2787
        %v2793 = vlaneseq
        %v2794 = vshrl.u32 %v2793, 7
        %v2795 = vsub.s32 %v2293, %v2794
        %v2796 = vrot.slane %v2116, %v2795
        %v2797 = vsel %vm2298, %v2796, %v2792
        %v2798 = vlaneseq
        %v2799 = vshrl.u32 %v2798, 7
        %v2800 = vsub.s32 %v2300, %v2799
        %v2801 = vrot.slane %v2117, %v2800
        %v2802 = vsel %vm2305, %v2801, %v2797
        %v2803 = vlaneseq
        %v2804 = vshrl.u32 %v2803, 7
        %v2805 = vsub.s32 %v2307, %v2804
        %v2806 = vrot.slane %v2118, %v2805
        %v2807 = vsel %vm2312, %v2806, %v2802
        %v2808 = vlaneseq
        %v2809 = vshrl.u32 %v2808, 7
        %v2810 = vsub.s32 %v2314, %v2809
        %v2811 = vrot.slane %v2119, %v2810
        %v2812 = vsel %vm2319, %v2811, %v2807
        %v2813 = vlaneseq
        %v2814 = vshrl.u32 %v2813, 7
        %v2815 = vsub.s32 %v2321, %v2814
        %v2816 = vrot.slane %v2120, %v2815
        %v2817 = vsel %vm2326, %v2816, %v2812
        %v2818 = vlaneseq
        %v2819 = vshrl.u32 %v2818, 7
        %v2820 = vsub.s32 %v2328, %v2819
        %v2821 = vrot.slane %v2121, %v2820
        %v2822 = vsel %vm2333, %v2821, %v2817
        %v2823 = vlaneseq
        %v2824 = vshrl.u32 %v2823, 7
        %v2825 = vsub.s32 %v2335, %v2824
        %v2826 = vrot.slane %v2122, %v2825
        %v2827 = vsel %vm2340, %v2826, %v2822
        %v2828 = vlaneseq
        %v2829 = vshrl.u32 %v2828, 7
        %v2830 = vsub.s32 %v2342, %v2829
        %v2831 = vrot.slane %v2123, %v2830
        %v2832 = vsel %vm2347, %v2831, %v2827
        %v2833 = vlaneseq
        %v2834 = vshrl.u32 %v2833, 7
        %v2835 = vsub.s32 %v2349, %v2834
        %v2836 = vrot.slane %v2124, %v2835
        %v2837 = vsel %vm2354, %v2836, %v2832
        %v2838 = vlaneseq
        %v2839 = vshrl.u32 %v2838, 7
        %v2840 = vsub.s32 %v2356, %v2839
        %v2841 = vrot.slane %v2125, %v2840
        %v2842 = vsel %vm2361, %v2841, %v2837
        %v2843 = vlaneseq
        %v2844 = vshrl.u32 %v2843, 7
        %v2845 = vsub.s32 %v2363, %v2844
        %v2846 = vrot.slane %v2126, %v2845
        %v2847 = vsel %vm2368, %v2846, %v2842
        %v2848 = vlaneseq
        %v2849 = vshrl.u32 %v2848, 7
        %v2850 = vsub.s32 %v2370, %v2849
        %v2851 = vrot.slane %v2127, %v2850
        %v2852 = vsel %vm2375, %v2851, %v2847
        %v2853 = vlaneseq
        %v2854 = vshrl.u32 %v2853, 7
        %v2855 = vsub.s32 %v2377, %v2854
        %v2856 = vrot.slane %v2128, %v2855
        %v2857 = vsel %vm2382, %v2856, %v2852
        %v2858 = vlaneseq
        %v2859 = vshrl.u32 %v2858, 7
        %v2860 = vsub.s32 %v2274, %v2859
        %v2861 = vrot.slane %v2129, %v2860
        %v2862 = vlaneseq
        %v2863 = vshrl.u32 %v2862, 7
        %v2864 = vsub.s32 %v2279, %v2863
        %v2865 = vrot.slane %v2130, %v2864
        %v2866 = vsel %vm2284, %v2865, %v2861
        %v2867 = vlaneseq
        %v2868 = vshrl.u32 %v2867, 7
        %v2869 = vsub.s32 %v2286, %v2868
        %v2870 = vrot.slane %v2131, %v2869
        %v2871 = vsel %vm2291, %v2870, %v2866
        %v2872 = vlaneseq
        %v2873 = vshrl.u32 %v2872, 7
        %v2874 = vsub.s32 %v2293, %v2873
        %v2875 = vrot.slane %v2132, %v2874
        %v2876 = vsel %vm2298, %v2875, %v2871
        %v2877 = vlaneseq
        %v2878 = vshrl.u32 %v2877, 7
        %v2879 = vsub.s32 %v2300, %v2878
        %v2880 = vrot.slane %v2133, %v2879
        %v2881 = vsel %vm2305, %v2880, %v2876
        %v2882 = vlaneseq
        %v2883 = vshrl.u32 %v2882, 7
        %v2884 = vsub.s32 %v2307, %v2883
        %v2885 = vrot.slane %v2134, %v2884
        %v2886 = vsel %vm2312, %v2885, %v2881
        %v2887 = vlaneseq
        %v2888 = vshrl.u32 %v2887, 7
        %v2889 = vsub.s32 %v2314, %v2888
        %v2890 = vrot.slane %v2135, %v2889
        %v2891 = vsel %vm2319, %v2890, %v2886
        %v2892 = vlaneseq
        %v2893 = vshrl.u32 %v2892, 7
        %v2894 = vsub.s32 %v2321, %v2893
        %v2895 = vrot.slane %v2136, %v2894
        %v2896 = vsel %vm2326, %v2895, %v2891
        %v2897 = vlaneseq
        %v2898 = vshrl.u32 %v2897, 7
        %v2899 = vsub.s32 %v2328, %v2898
        %v2900 = vrot.slane %v2137, %v2899
        %v2901 = vsel %vm2333, %v2900, %v2896
        %v2902 = vlaneseq
        %v2903 = vshrl.u32 %v2902, 7
        %v2904 = vsub.s32 %v2335, %v2903
        %v2905 = vrot.slane %v2138, %v2904
        %v2906 = vsel %vm2340, %v2905, %v2901
        %v2907 = vlaneseq
        %v2908 = vshrl.u32 %v2907, 7
        %v2909 = vsub.s32 %v2342, %v2908
        %v2910 = vrot.slane %v2139, %v2909
        %v2911 = vsel %vm2347, %v2910, %v2906
        %v2912 = vlaneseq
        %v2913 = vshrl.u32 %v2912, 7
        %v2914 = vsub.s32 %v2349, %v2913
        %v2915 = vrot.slane %v2140, %v2914
        %v2916 = vsel %vm2354, %v2915, %v2911
        %v2917 = vlaneseq
        %v2918 = vshrl.u32 %v2917, 7
        %v2919 = vsub.s32 %v2356, %v2918
        %v2920 = vrot.slane %v2141, %v2919
        %v2921 = vsel %vm2361, %v2920, %v2916
        %v2922 = vlaneseq
        %v2923 = vshrl.u32 %v2922, 7
        %v2924 = vsub.s32 %v2363, %v2923
        %v2925 = vrot.slane %v2142, %v2924
        %v2926 = vsel %vm2368, %v2925, %v2921
        %v2927 = vlaneseq
        %v2928 = vshrl.u32 %v2927, 7
        %v2929 = vsub.s32 %v2370, %v2928
        %v2930 = vrot.slane %v2143, %v2929
        %v2931 = vsel %vm2375, %v2930, %v2926
        %v2932 = vlaneseq
        %v2933 = vshrl.u32 %v2932, 7
        %v2934 = vsub.s32 %v2377, %v2933
        %v2935 = vrot.slane %v2144, %v2934
        %v2936 = vsel %vm2382, %v2935, %v2931
        %vm2937 = vcmask 1041409
        %v2938 = vsel %vm2937, %v2462, %v2383
        %vm2939 = vcmask 1042434
        %v2940 = vsel %vm2939, %v2541, %v2938
        %vm2941 = vcmask 1043459
        %v2942 = vsel %vm2941, %v2620, %v2940
        %vm2943 = vcmask 1044484
        %v2944 = vsel %vm2943, %v2699, %v2942
        %vm2945 = vcmask 1045509
        %v2946 = vsel %vm2945, %v2778, %v2944
        %vm2947 = vcmask 1046534
        %v2948 = vsel %vm2947, %v2857, %v2946
        %vm2949 = vcmask 1047559
        %v2950 = vsel %vm2949, %v2936, %v2948
        %2952 = vst [vmem:[#allocation2] sm:$0xff] %v2950
        %v2953 = vld [vmem:[#allocation2] sm:$0xff]
        %vm2954 = vcmp.lt.s32.totalorder %v2274, 8
        %v2955 = vsel %vm2954, %v2953, -1e+30
        %2956 = vmax.xlane.f32.xlu0 %v2955
        %v2957 = vpop.xlane.xlu0 %2956
        %v2958 = vsub.f32 %v2955, %v2957
        %v2959 = vmul.f32 %v2958, 1.442695
        %v2960 = vpow.pop %v2959
        %2961 = vadd.xlane.f32.xlu0 %v2960
        %v2962 = vpop.xlane.xlu0 %2961
        %v2963 = vrcp.pop %v2962
        %v2964 = vmul.f32 %v2960, %v2963
        %v2966 = vcombine.high %v2964, %v2964
        %v2968 = vunpack.c.l.s4 1966171168
        %v2969 = vunpack.c.0.s8 %v2968
        %v2970 = vlaneseq
        %v2971 = vshrl.u32 %v2970, 7
        %v2972 = vsub.s32 %v2969, %v2971
        %v2973 = vrot.slane %v2964, %v2972
        %v2975 = vunpack.c.l.s4 1966171168
        %v2976 = vunpack.c.0.s8 %v2975
        %v2977 = vlaneseq
        %v2978 = vshrl.u32 %v2977, 7
        %v2979 = vsub.s32 %v2976, %v2978
        %v2980 = vrot.slane %v2966, %v2979
        %v2981 = vcombine.high %v2973, %v2973
        %v2982 = vcombine.high %v2980, %v2980
        %v2984 = vunpack.c.l.s4 1966171168
        %v2985 = vunpack.c.0.s8 %v2984
        %v2986 = vlaneseq
        %v2987 = vshrl.u32 %v2986, 7
        %v2988 = vsub.s32 %v2985, %v2987
        %v2989 = vrot.slane %v2973, %v2988
        %v2991 = vunpack.c.l.s4 1966171168
        %v2992 = vunpack.c.0.s8 %v2991
        %v2993 = vlaneseq
        %v2994 = vshrl.u32 %v2993, 7
        %v2995 = vsub.s32 %v2992, %v2994
        %v2996 = vrot.slane %v2980, %v2995
        %v2998 = vunpack.c.l.s4 1966171168
        %v2999 = vunpack.c.0.s8 %v2998
        %v3000 = vlaneseq
        %v3001 = vshrl.u32 %v3000, 7
        %v3002 = vsub.s32 %v2999, %v3001
        %v3003 = vrot.slane %v2981, %v3002
        %v3005 = vunpack.c.l.s4 1966171168
        %v3006 = vunpack.c.0.s8 %v3005
        %v3007 = vlaneseq
        %v3008 = vshrl.u32 %v3007, 7
        %v3009 = vsub.s32 %v3006, %v3008
        %v3010 = vrot.slane %v2982, %v3009
        %v3011 = vcombine.high %v2989, %v2989
        %v3012 = vcombine.high %v2996, %v2996
        %v3013 = vcombine.high %v3003, %v3003
        %v3014 = vcombine.high %v3010, %v3010
        %v3023 = vld [vmem:[%s274] sm:$0xff]
        %v3024 = vld [vmem:[%s274 + $0x8] sm:$0xff]
        %v3025 = vld [vmem:[%s274 + $0x10] sm:$0xff]
        %v3026 = vld [vmem:[%s274 + $0x18] sm:$0xff]
        %v3027 = vld [vmem:[%s274 + $0x20] sm:$0xff]
        %v3028 = vld [vmem:[%s274 + $0x28] sm:$0xff]
        %v3029 = vld [vmem:[%s274 + $0x30] sm:$0xff]
        %v3030 = vld [vmem:[%s274 + $0x38] sm:$0xff]
        %v3031 = vld [vmem:[%s274 + $0x40] sm:$0xff]
        %v3032 = vld [vmem:[%s274 + $0x48] sm:$0xff]
        %v3033 = vld [vmem:[%s274 + $0x50] sm:$0xff]
        %v3034 = vld [vmem:[%s274 + $0x58] sm:$0xff]
        %v3035 = vld [vmem:[%s274 + $0x60] sm:$0xff]
        %v3036 = vld [vmem:[%s274 + $0x68] sm:$0xff]
        %v3037 = vld [vmem:[%s274 + $0x70] sm:$0xff]
        %v3038 = vld [vmem:[%s274 + $0x78] sm:$0xff]
        %v3039 = vld [vmem:[%s274 + $0x80] sm:$0xff]
        %v3040 = vld [vmem:[%s274 + $0x88] sm:$0xff]
        %v3041 = vld [vmem:[%s274 + $0x90] sm:$0xff]
        %v3042 = vld [vmem:[%s274 + $0x98] sm:$0xff]
        %v3043 = vld [vmem:[%s274 + $0xa0] sm:$0xff]
        %v3044 = vld [vmem:[%s274 + $0xa8] sm:$0xff]
        %v3045 = vld [vmem:[%s274 + $0xb0] sm:$0xff]
        %v3046 = vld [vmem:[%s274 + $0xb8] sm:$0xff]
        %v3047 = vld [vmem:[%s274 + $0xc0] sm:$0xff]
        %v3048 = vld [vmem:[%s274 + $0xc8] sm:$0xff]
        %v3049 = vld [vmem:[%s274 + $0xd0] sm:$0xff]
        %v3050 = vld [vmem:[%s274 + $0xd8] sm:$0xff]
        %v3051 = vld [vmem:[%s274 + $0xe0] sm:$0xff]
        %v3052 = vld [vmem:[%s274 + $0xe8] sm:$0xff]
        %v3053 = vld [vmem:[%s274 + $0xf0] sm:$0xff]
        %v3054 = vld [vmem:[%s274 + $0xf8] sm:$0xff]
        %v3055 = vld [vmem:[%s274 + $0x100] sm:$0xff]
        %v3056 = vld [vmem:[%s274 + $0x108] sm:$0xff]
        %v3057 = vld [vmem:[%s274 + $0x110] sm:$0xff]
        %v3058 = vld [vmem:[%s274 + $0x118] sm:$0xff]
        %v3059 = vld [vmem:[%s274 + $0x120] sm:$0xff]
        %v3060 = vld [vmem:[%s274 + $0x128] sm:$0xff]
        %v3061 = vld [vmem:[%s274 + $0x130] sm:$0xff]
        %v3062 = vld [vmem:[%s274 + $0x138] sm:$0xff]
        %v3063 = vld [vmem:[%s274 + $0x140] sm:$0xff]
        %v3064 = vld [vmem:[%s274 + $0x148] sm:$0xff]
        %v3065 = vld [vmem:[%s274 + $0x150] sm:$0xff]
        %v3066 = vld [vmem:[%s274 + $0x158] sm:$0xff]
        %v3067 = vld [vmem:[%s274 + $0x160] sm:$0xff]
        %v3068 = vld [vmem:[%s274 + $0x168] sm:$0xff]
        %v3069 = vld [vmem:[%s274 + $0x170] sm:$0xff]
        %v3070 = vld [vmem:[%s274 + $0x178] sm:$0xff]
        %v3071 = vld [vmem:[%s274 + $0x180] sm:$0xff]
        %v3072 = vld [vmem:[%s274 + $0x188] sm:$0xff]
        %v3073 = vld [vmem:[%s274 + $0x190] sm:$0xff]
        %v3074 = vld [vmem:[%s274 + $0x198] sm:$0xff]
        %v3075 = vld [vmem:[%s274 + $0x1a0] sm:$0xff]
        %v3076 = vld [vmem:[%s274 + $0x1a8] sm:$0xff]
        %v3077 = vld [vmem:[%s274 + $0x1b0] sm:$0xff]
        %v3078 = vld [vmem:[%s274 + $0x1b8] sm:$0xff]
        %v3079 = vld [vmem:[%s274 + $0x1c0] sm:$0xff]
        %v3080 = vld [vmem:[%s274 + $0x1c8] sm:$0xff]
        %v3081 = vld [vmem:[%s274 + $0x1d0] sm:$0xff]
        %v3082 = vld [vmem:[%s274 + $0x1d8] sm:$0xff]
        %v3083 = vld [vmem:[%s274 + $0x1e0] sm:$0xff]
        %v3084 = vld [vmem:[%s274 + $0x1e8] sm:$0xff]
        %v3085 = vld [vmem:[%s274 + $0x1f0] sm:$0xff]
        %v3086 = vld [vmem:[%s274 + $0x1f8] sm:$0xff]
        %v3087 = vld [vmem:[%s274 + $0x200] sm:$0xff]
        %v3088 = vld [vmem:[%s274 + $0x208] sm:$0xff]
        %v3089 = vld [vmem:[%s274 + $0x210] sm:$0xff]
        %v3090 = vld [vmem:[%s274 + $0x218] sm:$0xff]
        %v3091 = vld [vmem:[%s274 + $0x220] sm:$0xff]
        %v3092 = vld [vmem:[%s274 + $0x228] sm:$0xff]
        %v3093 = vld [vmem:[%s274 + $0x230] sm:$0xff]
        %v3094 = vld [vmem:[%s274 + $0x238] sm:$0xff]
        %v3095 = vld [vmem:[%s274 + $0x240] sm:$0xff]
        %v3096 = vld [vmem:[%s274 + $0x248] sm:$0xff]
        %v3097 = vld [vmem:[%s274 + $0x250] sm:$0xff]
        %v3098 = vld [vmem:[%s274 + $0x258] sm:$0xff]
        %v3099 = vld [vmem:[%s274 + $0x260] sm:$0xff]
        %v3100 = vld [vmem:[%s274 + $0x268] sm:$0xff]
        %v3101 = vld [vmem:[%s274 + $0x270] sm:$0xff]
        %v3102 = vld [vmem:[%s274 + $0x278] sm:$0xff]
        %v3103 = vld [vmem:[%s274 + $0x280] sm:$0xff]
        %v3104 = vld [vmem:[%s274 + $0x288] sm:$0xff]
        %v3105 = vld [vmem:[%s274 + $0x290] sm:$0xff]
        %v3106 = vld [vmem:[%s274 + $0x298] sm:$0xff]
        %v3107 = vld [vmem:[%s274 + $0x2a0] sm:$0xff]
        %v3108 = vld [vmem:[%s274 + $0x2a8] sm:$0xff]
        %v3109 = vld [vmem:[%s274 + $0x2b0] sm:$0xff]
        %v3110 = vld [vmem:[%s274 + $0x2b8] sm:$0xff]
        %v3111 = vld [vmem:[%s274 + $0x2c0] sm:$0xff]
        %v3112 = vld [vmem:[%s274 + $0x2c8] sm:$0xff]
        %v3113 = vld [vmem:[%s274 + $0x2d0] sm:$0xff]
        %v3114 = vld [vmem:[%s274 + $0x2d8] sm:$0xff]
        %v3115 = vld [vmem:[%s274 + $0x2e0] sm:$0xff]
        %v3116 = vld [vmem:[%s274 + $0x2e8] sm:$0xff]
        %v3117 = vld [vmem:[%s274 + $0x2f0] sm:$0xff]
        %v3118 = vld [vmem:[%s274 + $0x2f8] sm:$0xff]
        %v3119 = vld [vmem:[%s274 + $0x300] sm:$0xff]
        %v3120 = vld [vmem:[%s274 + $0x308] sm:$0xff]
        %v3121 = vld [vmem:[%s274 + $0x310] sm:$0xff]
        %v3122 = vld [vmem:[%s274 + $0x318] sm:$0xff]
        %v3123 = vld [vmem:[%s274 + $0x320] sm:$0xff]
        %v3124 = vld [vmem:[%s274 + $0x328] sm:$0xff]
        %v3125 = vld [vmem:[%s274 + $0x330] sm:$0xff]
        %v3126 = vld [vmem:[%s274 + $0x338] sm:$0xff]
        %v3127 = vld [vmem:[%s274 + $0x340] sm:$0xff]
        %v3128 = vld [vmem:[%s274 + $0x348] sm:$0xff]
        %v3129 = vld [vmem:[%s274 + $0x350] sm:$0xff]
        %v3130 = vld [vmem:[%s274 + $0x358] sm:$0xff]
        %v3131 = vld [vmem:[%s274 + $0x360] sm:$0xff]
        %v3132 = vld [vmem:[%s274 + $0x368] sm:$0xff]
        %v3133 = vld [vmem:[%s274 + $0x370] sm:$0xff]
        %v3134 = vld [vmem:[%s274 + $0x378] sm:$0xff]
        %v3135 = vld [vmem:[%s274 + $0x380] sm:$0xff]
        %v3136 = vld [vmem:[%s274 + $0x388] sm:$0xff]
        %v3137 = vld [vmem:[%s274 + $0x390] sm:$0xff]
        %v3138 = vld [vmem:[%s274 + $0x398] sm:$0xff]
        %v3139 = vld [vmem:[%s274 + $0x3a0] sm:$0xff]
        %v3140 = vld [vmem:[%s274 + $0x3a8] sm:$0xff]
        %v3141 = vld [vmem:[%s274 + $0x3b0] sm:$0xff]
        %v3142 = vld [vmem:[%s274 + $0x3b8] sm:$0xff]
        %v3143 = vld [vmem:[%s274 + $0x3c0] sm:$0xff]
        %v3144 = vld [vmem:[%s274 + $0x3c8] sm:$0xff]
        %v3145 = vld [vmem:[%s274 + $0x3d0] sm:$0xff]
        %v3146 = vld [vmem:[%s274 + $0x3d8] sm:$0xff]
        %v3147 = vld [vmem:[%s274 + $0x3e0] sm:$0xff]
        %v3148 = vld [vmem:[%s274 + $0x3e8] sm:$0xff]
        %v3149 = vld [vmem:[%s274 + $0x3f0] sm:$0xff]
        %v3150 = vld [vmem:[%s274 + $0x3f8] sm:$0xff]
        %v3151 = vld [vmem:[%s274 + $0x400] sm:$0xff]
        %v3152 = vld [vmem:[%s274 + $0x408] sm:$0xff]
        %v3153 = vld [vmem:[%s274 + $0x410] sm:$0xff]
        %v3154 = vld [vmem:[%s274 + $0x418] sm:$0xff]
        %v3155 = vld [vmem:[%s274 + $0x420] sm:$0xff]
        %v3156 = vld [vmem:[%s274 + $0x428] sm:$0xff]
        %v3157 = vld [vmem:[%s274 + $0x430] sm:$0xff]
        %v3158 = vld [vmem:[%s274 + $0x438] sm:$0xff]
        %v3159 = vld [vmem:[%s274 + $0x440] sm:$0xff]
        %v3160 = vld [vmem:[%s274 + $0x448] sm:$0xff]
        %v3161 = vld [vmem:[%s274 + $0x450] sm:$0xff]
        %v3162 = vld [vmem:[%s274 + $0x458] sm:$0xff]
        %v3163 = vld [vmem:[%s274 + $0x460] sm:$0xff]
        %v3164 = vld [vmem:[%s274 + $0x468] sm:$0xff]
        %v3165 = vld [vmem:[%s274 + $0x470] sm:$0xff]
        %v3166 = vld [vmem:[%s274 + $0x478] sm:$0xff]
        %v3167 = vld [vmem:[%s274 + $0x480] sm:$0xff]
        %v3168 = vld [vmem:[%s274 + $0x488] sm:$0xff]
        %v3169 = vld [vmem:[%s274 + $0x490] sm:$0xff]
        %v3170 = vld [vmem:[%s274 + $0x498] sm:$0xff]
        %v3171 = vld [vmem:[%s274 + $0x4a0] sm:$0xff]
        %v3172 = vld [vmem:[%s274 + $0x4a8] sm:$0xff]
        %v3173 = vld [vmem:[%s274 + $0x4b0] sm:$0xff]
        %v3174 = vld [vmem:[%s274 + $0x4b8] sm:$0xff]
        %v3175 = vld [vmem:[%s274 + $0x4c0] sm:$0xff]
        %v3176 = vld [vmem:[%s274 + $0x4c8] sm:$0xff]
        %v3177 = vld [vmem:[%s274 + $0x4d0] sm:$0xff]
        %v3178 = vld [vmem:[%s274 + $0x4d8] sm:$0xff]
        %v3179 = vld [vmem:[%s274 + $0x4e0] sm:$0xff]
        %v3180 = vld [vmem:[%s274 + $0x4e8] sm:$0xff]
        %v3181 = vld [vmem:[%s274 + $0x4f0] sm:$0xff]
        %v3182 = vld [vmem:[%s274 + $0x4f8] sm:$0xff]
        %v3183 = vld [vmem:[%s274 + $0x500] sm:$0xff]
        %v3184 = vld [vmem:[%s274 + $0x508] sm:$0xff]
        %v3185 = vld [vmem:[%s274 + $0x510] sm:$0xff]
        %v3186 = vld [vmem:[%s274 + $0x518] sm:$0xff]
        %v3187 = vld [vmem:[%s274 + $0x520] sm:$0xff]
        %v3188 = vld [vmem:[%s274 + $0x528] sm:$0xff]
        %v3189 = vld [vmem:[%s274 + $0x530] sm:$0xff]
        %v3190 = vld [vmem:[%s274 + $0x538] sm:$0xff]
        %v3191 = vld [vmem:[%s274 + $0x540] sm:$0xff]
        %v3192 = vld [vmem:[%s274 + $0x548] sm:$0xff]
        %v3193 = vld [vmem:[%s274 + $0x550] sm:$0xff]
        %v3194 = vld [vmem:[%s274 + $0x558] sm:$0xff]
        %v3195 = vld [vmem:[%s274 + $0x560] sm:$0xff]
        %v3196 = vld [vmem:[%s274 + $0x568] sm:$0xff]
        %v3197 = vld [vmem:[%s274 + $0x570] sm:$0xff]
        %v3198 = vld [vmem:[%s274 + $0x578] sm:$0xff]
        %v3199 = vld [vmem:[%s274 + $0x580] sm:$0xff]
        %v3200 = vld [vmem:[%s274 + $0x588] sm:$0xff]
        %v3201 = vld [vmem:[%s274 + $0x590] sm:$0xff]
        %v3202 = vld [vmem:[%s274 + $0x598] sm:$0xff]
        %v3203 = vld [vmem:[%s274 + $0x5a0] sm:$0xff]
        %v3204 = vld [vmem:[%s274 + $0x5a8] sm:$0xff]
        %v3205 = vld [vmem:[%s274 + $0x5b0] sm:$0xff]
        %v3206 = vld [vmem:[%s274 + $0x5b8] sm:$0xff]
        %v3207 = vld [vmem:[%s274 + $0x5c0] sm:$0xff]
        %v3208 = vld [vmem:[%s274 + $0x5c8] sm:$0xff]
        %v3209 = vld [vmem:[%s274 + $0x5d0] sm:$0xff]
        %v3210 = vld [vmem:[%s274 + $0x5d8] sm:$0xff]
        %v3211 = vld [vmem:[%s274 + $0x5e0] sm:$0xff]
        %v3212 = vld [vmem:[%s274 + $0x5e8] sm:$0xff]
        %v3213 = vld [vmem:[%s274 + $0x5f0] sm:$0xff]
        %v3214 = vld [vmem:[%s274 + $0x5f8] sm:$0xff]
        %v3215 = vld [vmem:[%s274 + $0x600] sm:$0xff]
        %v3216 = vld [vmem:[%s274 + $0x608] sm:$0xff]
        %v3217 = vld [vmem:[%s274 + $0x610] sm:$0xff]
        %v3218 = vld [vmem:[%s274 + $0x618] sm:$0xff]
        %v3219 = vld [vmem:[%s274 + $0x620] sm:$0xff]
        %v3220 = vld [vmem:[%s274 + $0x628] sm:$0xff]
        %v3221 = vld [vmem:[%s274 + $0x630] sm:$0xff]
        %v3222 = vld [vmem:[%s274 + $0x638] sm:$0xff]
        %v3223 = vld [vmem:[%s274 + $0x640] sm:$0xff]
        %v3224 = vld [vmem:[%s274 + $0x648] sm:$0xff]
        %v3225 = vld [vmem:[%s274 + $0x650] sm:$0xff]
        %v3226 = vld [vmem:[%s274 + $0x658] sm:$0xff]
        %v3227 = vld [vmem:[%s274 + $0x660] sm:$0xff]
        %v3228 = vld [vmem:[%s274 + $0x668] sm:$0xff]
        %v3229 = vld [vmem:[%s274 + $0x670] sm:$0xff]
        %v3230 = vld [vmem:[%s274 + $0x678] sm:$0xff]
        %v3231 = vld [vmem:[%s274 + $0x680] sm:$0xff]
        %v3232 = vld [vmem:[%s274 + $0x688] sm:$0xff]
        %v3233 = vld [vmem:[%s274 + $0x690] sm:$0xff]
        %v3234 = vld [vmem:[%s274 + $0x698] sm:$0xff]
        %v3235 = vld [vmem:[%s274 + $0x6a0] sm:$0xff]
        %v3236 = vld [vmem:[%s274 + $0x6a8] sm:$0xff]
        %v3237 = vld [vmem:[%s274 + $0x6b0] sm:$0xff]
        %v3238 = vld [vmem:[%s274 + $0x6b8] sm:$0xff]
        %v3239 = vld [vmem:[%s274 + $0x6c0] sm:$0xff]
        %v3240 = vld [vmem:[%s274 + $0x6c8] sm:$0xff]
        %v3241 = vld [vmem:[%s274 + $0x6d0] sm:$0xff]
        %v3242 = vld [vmem:[%s274 + $0x6d8] sm:$0xff]
        %v3243 = vld [vmem:[%s274 + $0x6e0] sm:$0xff]
        %v3244 = vld [vmem:[%s274 + $0x6e8] sm:$0xff]
        %v3245 = vld [vmem:[%s274 + $0x6f0] sm:$0xff]
        %v3246 = vld [vmem:[%s274 + $0x6f8] sm:$0xff]
        %v3247 = vld [vmem:[%s274 + $0x700] sm:$0xff]
        %v3248 = vld [vmem:[%s274 + $0x708] sm:$0xff]
        %v3249 = vld [vmem:[%s274 + $0x710] sm:$0xff]
        %v3250 = vld [vmem:[%s274 + $0x718] sm:$0xff]
        %v3251 = vld [vmem:[%s274 + $0x720] sm:$0xff]
        %v3252 = vld [vmem:[%s274 + $0x728] sm:$0xff]
        %v3253 = vld [vmem:[%s274 + $0x730] sm:$0xff]
        %v3254 = vld [vmem:[%s274 + $0x738] sm:$0xff]
        %v3255 = vld [vmem:[%s274 + $0x740] sm:$0xff]
        %v3256 = vld [vmem:[%s274 + $0x748] sm:$0xff]
        %v3257 = vld [vmem:[%s274 + $0x750] sm:$0xff]
        %v3258 = vld [vmem:[%s274 + $0x758] sm:$0xff]
        %v3259 = vld [vmem:[%s274 + $0x760] sm:$0xff]
        %v3260 = vld [vmem:[%s274 + $0x768] sm:$0xff]
        %v3261 = vld [vmem:[%s274 + $0x770] sm:$0xff]
        %v3262 = vld [vmem:[%s274 + $0x778] sm:$0xff]
        %v3263 = vld [vmem:[%s274 + $0x780] sm:$0xff]
        %v3264 = vld [vmem:[%s274 + $0x788] sm:$0xff]
        %v3265 = vld [vmem:[%s274 + $0x790] sm:$0xff]
        %v3266 = vld [vmem:[%s274 + $0x798] sm:$0xff]
        %v3267 = vld [vmem:[%s274 + $0x7a0] sm:$0xff]
        %v3268 = vld [vmem:[%s274 + $0x7a8] sm:$0xff]
        %v3269 = vld [vmem:[%s274 + $0x7b0] sm:$0xff]
        %v3270 = vld [vmem:[%s274 + $0x7b8] sm:$0xff]
        %v3271 = vld [vmem:[%s274 + $0x7c0] sm:$0xff]
        %v3272 = vld [vmem:[%s274 + $0x7c8] sm:$0xff]
        %v3273 = vld [vmem:[%s274 + $0x7d0] sm:$0xff]
        %v3274 = vld [vmem:[%s274 + $0x7d8] sm:$0xff]
        %v3275 = vld [vmem:[%s274 + $0x7e0] sm:$0xff]
        %v3276 = vld [vmem:[%s274 + $0x7e8] sm:$0xff]
        %v3277 = vld [vmem:[%s274 + $0x7f0] sm:$0xff]
        %v3278 = vld [vmem:[%s274 + $0x7f8] sm:$0xff]
        %3279 = vmatprep.subr.mxu0 %v3024
        %3280 = vmatpush1.msra.mxu0 %v3023
        %3281 = vmatprep.subr.mxu0 %v3026
        %3282 = vmatpush1.msra.mxu0 %v3025
        %3283 = vmatprep.subr.mxu0 %v3028
        %3284 = vmatpush1.msra.mxu0 %v3027
        %3285 = vmatprep.subr.mxu0 %v3030
        %3286 = vmatpush1.msra.mxu0 %v3029
        %3287 = vmatprep.subr.mxu0 %v3032
        %3288 = vmatpush1.msra.mxu0 %v3031
        %3289 = vmatprep.subr.mxu0 %v3034
        %3290 = vmatpush1.msra.mxu0 %v3033
        %3291 = vmatprep.subr.mxu0 %v3036
        %3292 = vmatpush1.msra.mxu0 %v3035
        %3293 = vmatprep.subr.mxu0 %v3038
        %3294 = vmatpush1.msra.mxu0 %v3037
        %3295 = vmatprep.subr.mxu0 %v3040
        %3296 = vmatpush1.msra.mxu0 %v3039
        %3297 = vmatprep.subr.mxu0 %v3042
        %3298 = vmatpush1.msra.mxu0 %v3041
        %3299 = vmatprep.subr.mxu0 %v3044
        %3300 = vmatpush1.msra.mxu0 %v3043
        %3301 = vmatprep.subr.mxu0 %v3046
        %3302 = vmatpush1.msra.mxu0 %v3045
        %3303 = vmatprep.subr.mxu0 %v3048
        %3304 = vmatpush1.msra.mxu0 %v3047
        %3305 = vmatprep.subr.mxu0 %v3050
        %3306 = vmatpush1.msra.mxu0 %v3049
        %3307 = vmatprep.subr.mxu0 %v3052
        %3308 = vmatpush1.msra.mxu0 %v3051
        %3309 = vmatprep.subr.mxu0 %v3054
        %3310 = vmatpush1.msra.mxu0 %v3053
        %3311 = vmatprep.subr.mxu0 0.0
        %3312 = vmatpush1.msra.mxu0 0.0
        %3313 = vmatprep.subr.mxu0 0.0
        %3314 = vmatpush1.msra.mxu0 0.0
        %3315 = vmatprep.subr.mxu0 0.0
        %3316 = vmatpush1.msra.mxu0 0.0
        %3317 = vmatprep.subr.mxu0 0.0
        %3318 = vmatpush1.msra.mxu0 0.0
        %3319 = vmatprep.subr.mxu0 0.0
        %3320 = vmatpush1.msra.mxu0 0.0
        %3321 = vmatprep.subr.mxu0 0.0
        %3322 = vmatpush1.msra.mxu0 0.0
        %3323 = vmatprep.subr.mxu0 0.0
        %3324 = vmatpush1.msra.mxu0 0.0
        %3325 = vmatprep.subr.mxu0 0.0
        %3326 = vmatpush1.msra.mxu0 0.0
        %3327 = vmatprep.subr.mxu0 0.0
        %3328 = vmatpush1.msra.mxu0 0.0
        %3329 = vmatprep.subr.mxu0 0.0
        %3330 = vmatpush1.msra.mxu0 0.0
        %3331 = vmatprep.subr.mxu0 0.0
        %3332 = vmatpush1.msra.mxu0 0.0
        %3333 = vmatprep.subr.mxu0 0.0
        %3334 = vmatpush1.msra.mxu0 0.0
        %3335 = vmatprep.subr.mxu0 0.0
        %3336 = vmatpush1.msra.mxu0 0.0
        %3337 = vmatprep.subr.mxu0 0.0
        %3338 = vmatpush1.msra.mxu0 0.0
        %3339 = vmatprep.subr.mxu0 0.0
        %3340 = vmatpush1.msra.mxu0 0.0
        %3341 = vmatprep.subr.mxu0 0.0
        %3342 = vmatpush1.msra.mxu0 0.0
        %3343 = vmatprep.mubr.f32.mxu0 0.0
        %3344 = vmatmul.mubr.f32.gmra.mrb[0].mxu0 %v2989
        %v3345 = vpop.f32.mrb[0].mxu0
        %v3346 = vadd.f32 0.0, %v3345
        %v3347 = vpop.f32.mrb[0].mxu0
        %v3348 = vadd.f32 0.0, %v3347
        %3349 = vdwg.mxu0
        %3350 = vmatprep.subr.mxu0 %v3056
        %3351 = vmatpush1.msra.mxu0 %v3055
        %3352 = vmatprep.subr.mxu0 %v3058
        %3353 = vmatpush1.msra.mxu0 %v3057
        %3354 = vmatprep.subr.mxu0 %v3060
        %3355 = vmatpush1.msra.mxu0 %v3059
        %3356 = vmatprep.subr.mxu0 %v3062
        %3357 = vmatpush1.msra.mxu0 %v3061
        %3358 = vmatprep.subr.mxu0 %v3064
        %3359 = vmatpush1.msra.mxu0 %v3063
        %3360 = vmatprep.subr.mxu0 %v3066
        %3361 = vmatpush1.msra.mxu0 %v3065
        %3362 = vmatprep.subr.mxu0 %v3068
        %3363 = vmatpush1.msra.mxu0 %v3067
        %3364 = vmatprep.subr.mxu0 %v3070
        %3365 = vmatpush1.msra.mxu0 %v3069
        %3366 = vmatprep.subr.mxu0 %v3072
        %3367 = vmatpush1.msra.mxu0 %v3071
        %3368 = vmatprep.subr.mxu0 %v3074
        %3369 = vmatpush1.msra.mxu0 %v3073
        %3370 = vmatprep.subr.mxu0 %v3076
        %3371 = vmatpush1.msra.mxu0 %v3075
        %3372 = vmatprep.subr.mxu0 %v3078
        %3373 = vmatpush1.msra.mxu0 %v3077
        %3374 = vmatprep.subr.mxu0 %v3080
        %3375 = vmatpush1.msra.mxu0 %v3079
        %3376 = vmatprep.subr.mxu0 %v3082
        %3377 = vmatpush1.msra.mxu0 %v3081
        %3378 = vmatprep.subr.mxu0 %v3084
        %3379 = vmatpush1.msra.mxu0 %v3083
        %3380 = vmatprep.subr.mxu0 %v3086
        %3381 = vmatpush1.msra.mxu0 %v3085
        %3382 = vmatprep.subr.mxu0 0.0
        %3383 = vmatpush1.msra.mxu0 0.0
        %3384 = vmatprep.subr.mxu0 0.0
        %3385 = vmatpush1.msra.mxu0 0.0
        %3386 = vmatprep.subr.mxu0 0.0
        %3387 = vmatpush1.msra.mxu0 0.0
        %3388 = vmatprep.subr.mxu0 0.0
        %3389 = vmatpush1.msra.mxu0 0.0
        %3390 = vmatprep.subr.mxu0 0.0
        %3391 = vmatpush1.msra.mxu0 0.0
        %3392 = vmatprep.subr.mxu0 0.0
        %3393 = vmatpush1.msra.mxu0 0.0
        %3394 = vmatprep.subr.mxu0 0.0
        %3395 = vmatpush1.msra.mxu0 0.0
        %3396 = vmatprep.subr.mxu0 0.0
        %3397 = vmatpush1.msra.mxu0 0.0
        %3398 = vmatprep.subr.mxu0 0.0
        %3399 = vmatpush1.msra.mxu0 0.0
        %3400 = vmatprep.subr.mxu0 0.0
        %3401 = vmatpush1.msra.mxu0 0.0
        %3402 = vmatprep.subr.mxu0 0.0
        %3403 = vmatpush1.msra.mxu0 0.0
        %3404 = vmatprep.subr.mxu0 0.0
        %3405 = vmatpush1.msra.mxu0 0.0
        %3406 = vmatprep.subr.mxu0 0.0
        %3407 = vmatpush1.msra.mxu0 0.0
        %3408 = vmatprep.subr.mxu0 0.0
        %3409 = vmatpush1.msra.mxu0 0.0
        %3410 = vmatprep.subr.mxu0 0.0
        %3411 = vmatpush1.msra.mxu0 0.0
        %3412 = vmatprep.subr.mxu0 0.0
        %3413 = vmatpush1.msra.mxu0 0.0
        %3414 = vmatprep.mubr.f32.mxu0 0.0
        %3415 = vmatmul.mubr.f32.gmra.mrb[0].mxu0 %v3003
        %v3416 = vpop.f32.mrb[0].mxu0
        %v3417 = vadd.f32 0.0, %v3416
        %v3418 = vpop.f32.mrb[0].mxu0
        %v3419 = vadd.f32 0.0, %v3418
        %3420 = vdwg.mxu0
        %3421 = vmatprep.subr.mxu0 %v3088
        %3422 = vmatpush1.msra.mxu0 %v3087
        %3423 = vmatprep.subr.mxu0 %v3090
        %3424 = vmatpush1.msra.mxu0 %v3089
        %3425 = vmatprep.subr.mxu0 %v3092
        %3426 = vmatpush1.msra.mxu0 %v3091
        %3427 = vmatprep.subr.mxu0 %v3094
        %3428 = vmatpush1.msra.mxu0 %v3093
        %3429 = vmatprep.subr.mxu0 %v3096
        %3430 = vmatpush1.msra.mxu0 %v3095
        %3431 = vmatprep.subr.mxu0 %v3098
        %3432 = vmatpush1.msra.mxu0 %v3097
        %3433 = vmatprep.subr.mxu0 %v3100
        %3434 = vmatpush1.msra.mxu0 %v3099
        %3435 = vmatprep.subr.mxu0 %v3102
        %3436 = vmatpush1.msra.mxu0 %v3101
        %3437 = vmatprep.subr.mxu0 %v3104
        %3438 = vmatpush1.msra.mxu0 %v3103
        %3439 = vmatprep.subr.mxu0 %v3106
        %3440 = vmatpush1.msra.mxu0 %v3105
        %3441 = vmatprep.subr.mxu0 %v3108
        %3442 = vmatpush1.msra.mxu0 %v3107
        %3443 = vmatprep.subr.mxu0 %v3110
        %3444 = vmatpush1.msra.mxu0 %v3109
        %3445 = vmatprep.subr.mxu0 %v3112
        %3446 = vmatpush1.msra.mxu0 %v3111
        %3447 = vmatprep.subr.mxu0 %v3114
        %3448 = vmatpush1.msra.mxu0 %v3113
        %3449 = vmatprep.subr.mxu0 %v3116
        %3450 = vmatpush1.msra.mxu0 %v3115
        %3451 = vmatprep.subr.mxu0 %v3118
        %3452 = vmatpush1.msra.mxu0 %v3117
        %3453 = vmatprep.subr.mxu0 0.0
        %3454 = vmatpush1.msra.mxu0 0.0
        %3455 = vmatprep.subr.mxu0 0.0
        %3456 = vmatpush1.msra.mxu0 0.0
        %3457 = vmatprep.subr.mxu0 0.0
        %3458 = vmatpush1.msra.mxu0 0.0
        %3459 = vmatprep.subr.mxu0 0.0
        %3460 = vmatpush1.msra.mxu0 0.0
        %3461 = vmatprep.subr.mxu0 0.0
        %3462 = vmatpush1.msra.mxu0 0.0
        %3463 = vmatprep.subr.mxu0 0.0
        %3464 = vmatpush1.msra.mxu0 0.0
        %3465 = vmatprep.subr.mxu0 0.0
        %3466 = vmatpush1.msra.mxu0 0.0
        %3467 = vmatprep.subr.mxu0 0.0
        %3468 = vmatpush1.msra.mxu0 0.0
        %3469 = vmatprep.subr.mxu0 0.0
        %3470 = vmatpush1.msra.mxu0 0.0
        %3471 = vmatprep.subr.mxu0 0.0
        %3472 = vmatpush1.msra.mxu0 0.0
        %3473 = vmatprep.subr.mxu0 0.0
        %3474 = vmatpush1.msra.mxu0 0.0
        %3475 = vmatprep.subr.mxu0 0.0
        %3476 = vmatpush1.msra.mxu0 0.0
        %3477 = vmatprep.subr.mxu0 0.0
        %3478 = vmatpush1.msra.mxu0 0.0
        %3479 = vmatprep.subr.mxu0 0.0
        %3480 = vmatpush1.msra.mxu0 0.0
        %3481 = vmatprep.subr.mxu0 0.0
        %3482 = vmatpush1.msra.mxu0 0.0
        %3483 = vmatprep.subr.mxu0 0.0
        %3484 = vmatpush1.msra.mxu0 0.0
        %3485 = vmatprep.mubr.f32.mxu0 0.0
        %3486 = vmatmul.mubr.f32.gmra.mrb[0].mxu0 %v3011
        %v3487 = vpop.f32.mrb[0].mxu0
        %v3488 = vadd.f32 0.0, %v3487
        %v3489 = vpop.f32.mrb[0].mxu0
        %v3490 = vadd.f32 0.0, %v3489
        %3491 = vdwg.mxu0
        %3492 = vmatprep.subr.mxu0 %v3120
        %3493 = vmatpush1.msra.mxu0 %v3119
        %3494 = vmatprep.subr.mxu0 %v3122
        %3495 = vmatpush1.msra.mxu0 %v3121
        %3496 = vmatprep.subr.mxu0 %v3124
        %3497 = vmatpush1.msra.mxu0 %v3123
        %3498 = vmatprep.subr.mxu0 %v3126
        %3499 = vmatpush1.msra.mxu0 %v3125
        %3500 = vmatprep.subr.mxu0 %v3128
        %3501 = vmatpush1.msra.mxu0 %v3127
        %3502 = vmatprep.subr.mxu0 %v3130
        %3503 = vmatpush1.msra.mxu0 %v3129
        %3504 = vmatprep.subr.mxu0 %v3132
        %3505 = vmatpush1.msra.mxu0 %v3131
        %3506 = vmatprep.subr.mxu0 %v3134
        %3507 = vmatpush1.msra.mxu0 %v3133
        %3508 = vmatprep.subr.mxu0 %v3136
        %3509 = vmatpush1.msra.mxu0 %v3135
        %3510 = vmatprep.subr.mxu0 %v3138
        %3511 = vmatpush1.msra.mxu0 %v3137
        %3512 = vmatprep.subr.mxu0 %v3140
        %3513 = vmatpush1.msra.mxu0 %v3139
        %3514 = vmatprep.subr.mxu0 %v3142
        %3515 = vmatpush1.msra.mxu0 %v3141
        %3516 = vmatprep.subr.mxu0 %v3144
        %3517 = vmatpush1.msra.mxu0 %v3143
        %3518 = vmatprep.subr.mxu0 %v3146
        %3519 = vmatpush1.msra.mxu0 %v3145
        %3520 = vmatprep.subr.mxu0 %v3148
        %3521 = vmatpush1.msra.mxu0 %v3147
        %3522 = vmatprep.subr.mxu0 %v3150
        %3523 = vmatpush1.msra.mxu0 %v3149
        %3524 = vmatprep.subr.mxu0 0.0
        %3525 = vmatpush1.msra.mxu0 0.0
        %3526 = vmatprep.subr.mxu0 0.0
        %3527 = vmatpush1.msra.mxu0 0.0
        %3528 = vmatprep.subr.mxu0 0.0
        %3529 = vmatpush1.msra.mxu0 0.0
        %3530 = vmatprep.subr.mxu0 0.0
        %3531 = vmatpush1.msra.mxu0 0.0
        %3532 = vmatprep.subr.mxu0 0.0
        %3533 = vmatpush1.msra.mxu0 0.0
        %3534 = vmatprep.subr.mxu0 0.0
        %3535 = vmatpush1.msra.mxu0 0.0
        %3536 = vmatprep.subr.mxu0 0.0
        %3537 = vmatpush1.msra.mxu0 0.0
        %3538 = vmatprep.subr.mxu0 0.0
        %3539 = vmatpush1.msra.mxu0 0.0
        %3540 = vmatprep.subr.mxu0 0.0
        %3541 = vmatpush1.msra.mxu0 0.0
        %3542 = vmatprep.subr.mxu0 0.0
        %3543 = vmatpush1.msra.mxu0 0.0
        %3544 = vmatprep.subr.mxu0 0.0
        %3545 = vmatpush1.msra.mxu0 0.0
        %3546 = vmatprep.subr.mxu0 0.0
        %3547 = vmatpush1.msra.mxu0 0.0
        %3548 = vmatprep.subr.mxu0 0.0
        %3549 = vmatpush1.msra.mxu0 0.0
        %3550 = vmatprep.subr.mxu0 0.0
        %3551 = vmatpush1.msra.mxu0 0.0
        %3552 = vmatprep.subr.mxu0 0.0
        %3553 = vmatpush1.msra.mxu0 0.0
        %3554 = vmatprep.subr.mxu0 0.0
        %3555 = vmatpush1.msra.mxu0 0.0
        %3556 = vmatprep.mubr.f32.mxu0 0.0
        %3557 = vmatmul.mubr.f32.gmra.mrb[0].mxu0 %v3013
        %v3558 = vpop.f32.mrb[0].mxu0
        %v3559 = vadd.f32 0.0, %v3558
        %v3560 = vpop.f32.mrb[0].mxu0
        %v3561 = vadd.f32 0.0, %v3560
        %3562 = vdwg.mxu0
        %3563 = vmatprep.subr.mxu0 %v3152
        %3564 = vmatpush1.msra.mxu0 %v3151
        %3565 = vmatprep.subr.mxu0 %v3154
        %3566 = vmatpush1.msra.mxu0 %v3153
        %3567 = vmatprep.subr.mxu0 %v3156
        %3568 = vmatpush1.msra.mxu0 %v3155
        %3569 = vmatprep.subr.mxu0 %v3158
        %3570 = vmatpush1.msra.mxu0 %v3157
        %3571 = vmatprep.subr.mxu0 %v3160
        %3572 = vmatpush1.msra.mxu0 %v3159
        %3573 = vmatprep.subr.mxu0 %v3162
        %3574 = vmatpush1.msra.mxu0 %v3161
        %3575 = vmatprep.subr.mxu0 %v3164
        %3576 = vmatpush1.msra.mxu0 %v3163
        %3577 = vmatprep.subr.mxu0 %v3166
        %3578 = vmatpush1.msra.mxu0 %v3165
        %3579 = vmatprep.subr.mxu0 %v3168
        %3580 = vmatpush1.msra.mxu0 %v3167
        %3581 = vmatprep.subr.mxu0 %v3170
        %3582 = vmatpush1.msra.mxu0 %v3169
        %3583 = vmatprep.subr.mxu0 %v3172
        %3584 = vmatpush1.msra.mxu0 %v3171
        %3585 = vmatprep.subr.mxu0 %v3174
        %3586 = vmatpush1.msra.mxu0 %v3173
        %3587 = vmatprep.subr.mxu0 %v3176
        %3588 = vmatpush1.msra.mxu0 %v3175
        %3589 = vmatprep.subr.mxu0 %v3178
        %3590 = vmatpush1.msra.mxu0 %v3177
        %3591 = vmatprep.subr.mxu0 %v3180
        %3592 = vmatpush1.msra.mxu0 %v3179
        %3593 = vmatprep.subr.mxu0 %v3182
        %3594 = vmatpush1.msra.mxu0 %v3181
        %3595 = vmatprep.subr.mxu0 0.0
        %3596 = vmatpush1.msra.mxu0 0.0
        %3597 = vmatprep.subr.mxu0 0.0
        %3598 = vmatpush1.msra.mxu0 0.0
        %3599 = vmatprep.subr.mxu0 0.0
        %3600 = vmatpush1.msra.mxu0 0.0
        %3601 = vmatprep.subr.mxu0 0.0
        %3602 = vmatpush1.msra.mxu0 0.0
        %3603 = vmatprep.subr.mxu0 0.0
        %3604 = vmatpush1.msra.mxu0 0.0
        %3605 = vmatprep.subr.mxu0 0.0
        %3606 = vmatpush1.msra.mxu0 0.0
        %3607 = vmatprep.subr.mxu0 0.0
        %3608 = vmatpush1.msra.mxu0 0.0
        %3609 = vmatprep.subr.mxu0 0.0
        %3610 = vmatpush1.msra.mxu0 0.0
        %3611 = vmatprep.subr.mxu0 0.0
        %3612 = vmatpush1.msra.mxu0 0.0
        %3613 = vmatprep.subr.mxu0 0.0
        %3614 = vmatpush1.msra.mxu0 0.0
        %3615 = vmatprep.subr.mxu0 0.0
        %3616 = vmatpush1.msra.mxu0 0.0
        %3617 = vmatprep.subr.mxu0 0.0
        %3618 = vmatpush1.msra.mxu0 0.0
        %3619 = vmatprep.subr.mxu0 0.0
        %3620 = vmatpush1.msra.mxu0 0.0
        %3621 = vmatprep.subr.mxu0 0.0
        %3622 = vmatpush1.msra.mxu0 0.0
        %3623 = vmatprep.subr.mxu0 0.0
        %3624 = vmatpush1.msra.mxu0 0.0
        %3625 = vmatprep.subr.mxu0 0.0
        %3626 = vmatpush1.msra.mxu0 0.0
        %3627 = vmatprep.mubr.f32.mxu0 0.0
        %3628 = vmatmul.mubr.f32.gmra.mrb[0].mxu0 %v2996
        %v3629 = vpop.f32.mrb[0].mxu0
        %v3630 = vadd.f32 0.0, %v3629
        %v3631 = vpop.f32.mrb[0].mxu0
        %v3632 = vadd.f32 0.0, %v3631
        %3633 = vdwg.mxu0
        %3634 = vmatprep.subr.mxu0 %v3184
        %3635 = vmatpush1.msra.mxu0 %v3183
        %3636 = vmatprep.subr.mxu0 %v3186
        %3637 = vmatpush1.msra.mxu0 %v3185
        %3638 = vmatprep.subr.mxu0 %v3188
        %3639 = vmatpush1.msra.mxu0 %v3187
        %3640 = vmatprep.subr.mxu0 %v3190
        %3641 = vmatpush1.msra.mxu0 %v3189
        %3642 = vmatprep.subr.mxu0 %v3192
        %3643 = vmatpush1.msra.mxu0 %v3191
        %3644 = vmatprep.subr.mxu0 %v3194
        %3645 = vmatpush1.msra.mxu0 %v3193
        %3646 = vmatprep.subr.mxu0 %v3196
        %3647 = vmatpush1.msra.mxu0 %v3195
        %3648 = vmatprep.subr.mxu0 %v3198
        %3649 = vmatpush1.msra.mxu0 %v3197
        %3650 = vmatprep.subr.mxu0 %v3200
        %3651 = vmatpush1.msra.mxu0 %v3199
        %3652 = vmatprep.subr.mxu0 %v3202
        %3653 = vmatpush1.msra.mxu0 %v3201
        %3654 = vmatprep.subr.mxu0 %v3204
        %3655 = vmatpush1.msra.mxu0 %v3203
        %3656 = vmatprep.subr.mxu0 %v3206
        %3657 = vmatpush1.msra.mxu0 %v3205
        %3658 = vmatprep.subr.mxu0 %v3208
        %3659 = vmatpush1.msra.mxu0 %v3207
        %3660 = vmatprep.subr.mxu0 %v3210
        %3661 = vmatpush1.msra.mxu0 %v3209
        %3662 = vmatprep.subr.mxu0 %v3212
        %3663 = vmatpush1.msra.mxu0 %v3211
        %3664 = vmatprep.subr.mxu0 %v3214
        %3665 = vmatpush1.msra.mxu0 %v3213
        %3666 = vmatprep.subr.mxu0 0.0
        %3667 = vmatpush1.msra.mxu0 0.0
        %3668 = vmatprep.subr.mxu0 0.0
        %3669 = vmatpush1.msra.mxu0 0.0
        %3670 = vmatprep.subr.mxu0 0.0
        %3671 = vmatpush1.msra.mxu0 0.0
        %3672 = vmatprep.subr.mxu0 0.0
        %3673 = vmatpush1.msra.mxu0 0.0
        %3674 = vmatprep.subr.mxu0 0.0
        %3675 = vmatpush1.msra.mxu0 0.0
        %3676 = vmatprep.subr.mxu0 0.0
        %3677 = vmatpush1.msra.mxu0 0.0
        %3678 = vmatprep.subr.mxu0 0.0
        %3679 = vmatpush1.msra.mxu0 0.0
        %3680 = vmatprep.subr.mxu0 0.0
        %3681 = vmatpush1.msra.mxu0 0.0
        %3682 = vmatprep.subr.mxu0 0.0
        %3683 = vmatpush1.msra.mxu0 0.0
        %3684 = vmatprep.subr.mxu0 0.0
        %3685 = vmatpush1.msra.mxu0 0.0
        %3686 = vmatprep.subr.mxu0 0.0
        %3687 = vmatpush1.msra.mxu0 0.0
        %3688 = vmatprep.subr.mxu0 0.0
        %3689 = vmatpush1.msra.mxu0 0.0
        %3690 = vmatprep.subr.mxu0 0.0
        %3691 = vmatpush1.msra.mxu0 0.0
        %3692 = vmatprep.subr.mxu0 0.0
        %3693 = vmatpush1.msra.mxu0 0.0
        %3694 = vmatprep.subr.mxu0 0.0
        %3695 = vmatpush1.msra.mxu0 0.0
        %3696 = vmatprep.subr.mxu0 0.0
        %3697 = vmatpush1.msra.mxu0 0.0
        %3698 = vmatprep.mubr.f32.mxu0 0.0
        %3699 = vmatmul.mubr.f32.gmra.mrb[0].mxu0 %v3010
        %v3700 = vpop.f32.mrb[0].mxu0
        %v3701 = vadd.f32 0.0, %v3700
        %v3702 = vpop.f32.mrb[0].mxu0
        %v3703 = vadd.f32 0.0, %v3702
        %3704 = vdwg.mxu0
        %3705 = vmatprep.subr.mxu0 %v3216
        %3706 = vmatpush1.msra.mxu0 %v3215
        %3707 = vmatprep.subr.mxu0 %v3218
        %3708 = vmatpush1.msra.mxu0 %v3217
        %3709 = vmatprep.subr.mxu0 %v3220
        %3710 = vmatpush1.msra.mxu0 %v3219
        %3711 = vmatprep.subr.mxu0 %v3222
        %3712 = vmatpush1.msra.mxu0 %v3221
        %3713 = vmatprep.subr.mxu0 %v3224
        %3714 = vmatpush1.msra.mxu0 %v3223
        %3715 = vmatprep.subr.mxu0 %v3226
        %3716 = vmatpush1.msra.mxu0 %v3225
        %3717 = vmatprep.subr.mxu0 %v3228
        %3718 = vmatpush1.msra.mxu0 %v3227
        %3719 = vmatprep.subr.mxu0 %v3230
        %3720 = vmatpush1.msra.mxu0 %v3229
        %3721 = vmatprep.subr.mxu0 %v3232
        %3722 = vmatpush1.msra.mxu0 %v3231
        %3723 = vmatprep.subr.mxu0 %v3234
        %3724 = vmatpush1.msra.mxu0 %v3233
        %3725 = vmatprep.subr.mxu0 %v3236
        %3726 = vmatpush1.msra.mxu0 %v3235
        %3727 = vmatprep.subr.mxu0 %v3238
        %3728 = vmatpush1.msra.mxu0 %v3237
        %3729 = vmatprep.subr.mxu0 %v3240
        %3730 = vmatpush1.msra.mxu0 %v3239
        %3731 = vmatprep.subr.mxu0 %v3242
        %3732 = vmatpush1.msra.mxu0 %v3241
        %3733 = vmatprep.subr.mxu0 %v3244
        %3734 = vmatpush1.msra.mxu0 %v3243
        %3735 = vmatprep.subr.mxu0 %v3246
        %3736 = vmatpush1.msra.mxu0 %v3245
        %3737 = vmatprep.subr.mxu0 0.0
        %3738 = vmatpush1.msra.mxu0 0.0
        %3739 = vmatprep.subr.mxu0 0.0
        %3740 = vmatpush1.msra.mxu0 0.0
        %3741 = vmatprep.subr.mxu0 0.0
        %3742 = vmatpush1.msra.mxu0 0.0
        %3743 = vmatprep.subr.mxu0 0.0
        %3744 = vmatpush1.msra.mxu0 0.0
        %3745 = vmatprep.subr.mxu0 0.0
        %3746 = vmatpush1.msra.mxu0 0.0
        %3747 = vmatprep.subr.mxu0 0.0
        %3748 = vmatpush1.msra.mxu0 0.0
        %3749 = vmatprep.subr.mxu0 0.0
        %3750 = vmatpush1.msra.mxu0 0.0
        %3751 = vmatprep.subr.mxu0 0.0
        %3752 = vmatpush1.msra.mxu0 0.0
        %3753 = vmatprep.subr.mxu0 0.0
        %3754 = vmatpush1.msra.mxu0 0.0
        %3755 = vmatprep.subr.mxu0 0.0
        %3756 = vmatpush1.msra.mxu0 0.0
        %3757 = vmatprep.subr.mxu0 0.0
        %3758 = vmatpush1.msra.mxu0 0.0
        %3759 = vmatprep.subr.mxu0 0.0
        %3760 = vmatpush1.msra.mxu0 0.0
        %3761 = vmatprep.subr.mxu0 0.0
        %3762 = vmatpush1.msra.mxu0 0.0
        %3763 = vmatprep.subr.mxu0 0.0
        %3764 = vmatpush1.msra.mxu0 0.0
        %3765 = vmatprep.subr.mxu0 0.0
        %3766 = vmatpush1.msra.mxu0 0.0
        %3767 = vmatprep.subr.mxu0 0.0
        %3768 = vmatpush1.msra.mxu0 0.0
        %3769 = vmatprep.mubr.f32.mxu0 0.0
        %3770 = vmatmul.mubr.f32.gmra.mrb[0].mxu0 %v3012
        %v3771 = vpop.f32.mrb[0].mxu0
        %v3772 = vadd.f32 0.0, %v3771
        %v3773 = vpop.f32.mrb[0].mxu0
        %v3774 = vadd.f32 0.0, %v3773
        %3775 = vdwg.mxu0
        %3776 = vmatprep.subr.mxu0 %v3248
        %3777 = vmatpush1.msra.mxu0 %v3247
        %3778 = vmatprep.subr.mxu0 %v3250
        %3779 = vmatpush1.msra.mxu0 %v3249
        %3780 = vmatprep.subr.mxu0 %v3252
        %3781 = vmatpush1.msra.mxu0 %v3251
        %3782 = vmatprep.subr.mxu0 %v3254
        %3783 = vmatpush1.msra.mxu0 %v3253
        %3784 = vmatprep.subr.mxu0 %v3256
        %3785 = vmatpush1.msra.mxu0 %v3255
        %3786 = vmatprep.subr.mxu0 %v3258
        %3787 = vmatpush1.msra.mxu0 %v3257
        %3788 = vmatprep.subr.mxu0 %v3260
        %3789 = vmatpush1.msra.mxu0 %v3259
        %3790 = vmatprep.subr.mxu0 %v3262
        %3791 = vmatpush1.msra.mxu0 %v3261
        %3792 = vmatprep.subr.mxu0 %v3264
        %3793 = vmatpush1.msra.mxu0 %v3263
        %3794 = vmatprep.subr.mxu0 %v3266
        %3795 = vmatpush1.msra.mxu0 %v3265
        %3796 = vmatprep.subr.mxu0 %v3268
        %3797 = vmatpush1.msra.mxu0 %v3267
        %3798 = vmatprep.subr.mxu0 %v3270
        %3799 = vmatpush1.msra.mxu0 %v3269
        %3800 = vmatprep.subr.mxu0 %v3272
        %3801 = vmatpush1.msra.mxu0 %v3271
        %3802 = vmatprep.subr.mxu0 %v3274
        %3803 = vmatpush1.msra.mxu0 %v3273
        %3804 = vmatprep.subr.mxu0 %v3276
        %3805 = vmatpush1.msra.mxu0 %v3275
        %3806 = vmatprep.subr.mxu0 %v3278
        %3807 = vmatpush1.msra.mxu0 %v3277
        %3808 = vmatprep.subr.mxu0 0.0
        %3809 = vmatpush1.msra.mxu0 0.0
        %3810 = vmatprep.subr.mxu0 0.0
        %3811 = vmatpush1.msra.mxu0 0.0
        %3812 = vmatprep.subr.mxu0 0.0
        %3813 = vmatpush1.msra.mxu0 0.0
        %3814 = vmatprep.subr.mxu0 0.0
        %3815 = vmatpush1.msra.mxu0 0.0
        %3816 = vmatprep.subr.mxu0 0.0
        %3817 = vmatpush1.msra.mxu0 0.0
        %3818 = vmatprep.subr.mxu0 0.0
        %3819 = vmatpush1.msra.mxu0 0.0
        %3820 = vmatprep.subr.mxu0 0.0
        %3821 = vmatpush1.msra.mxu0 0.0
        %3822 = vmatprep.subr.mxu0 0.0
        %3823 = vmatpush1.msra.mxu0 0.0
        %3824 = vmatprep.subr.mxu0 0.0
        %3825 = vmatpush1.msra.mxu0 0.0
        %3826 = vmatprep.subr.mxu0 0.0
        %3827 = vmatpush1.msra.mxu0 0.0
        %3828 = vmatprep.subr.mxu0 0.0
        %3829 = vmatpush1.msra.mxu0 0.0
        %3830 = vmatprep.subr.mxu0 0.0
        %3831 = vmatpush1.msra.mxu0 0.0
        %3832 = vmatprep.subr.mxu0 0.0
        %3833 = vmatpush1.msra.mxu0 0.0
        %3834 = vmatprep.subr.mxu0 0.0
        %3835 = vmatpush1.msra.mxu0 0.0
        %3836 = vmatprep.subr.mxu0 0.0
        %3837 = vmatpush1.msra.mxu0 0.0
        %3838 = vmatprep.subr.mxu0 0.0
        %3839 = vmatpush1.msra.mxu0 0.0
        %3840 = vmatprep.mubr.f32.mxu0 0.0
        %3841 = vmatmul.mubr.f32.gmra.mrb[0].mxu0 %v3014
        %v3842 = vpop.f32.mrb[0].mxu0
        %v3843 = vadd.f32 0.0, %v3842
        %v3844 = vpop.f32.mrb[0].mxu0
        %v3845 = vadd.f32 0.0, %v3844
        %3846 = vdwg.mxu0
        %v3863 = vrot.slane %v3417, 7
        %v3864 = vsel %vm2937, %v3863, %v3346
        %v3865 = vrot.slane %v3488, 6
        %v3866 = vsel %vm2939, %v3865, %v3864
        %v3867 = vrot.slane %v3559, 5
        %v3868 = vsel %vm2941, %v3867, %v3866
        %v3869 = vrot.slane %v3630, 4
        %v3870 = vsel %vm2943, %v3869, %v3868
        %v3871 = vrot.slane %v3701, 3
        %v3872 = vsel %vm2945, %v3871, %v3870
        %v3873 = vrot.slane %v3772, 2
        %v3874 = vsel %vm2947, %v3873, %v3872
        %v3875 = vrot.slane %v3843, 1
        %v3876 = vsel %vm2949, %v3875, %v3874
        %v3877 = vrot.slane %v3419, 7
        %v3878 = vsel %vm2937, %v3877, %v3348
        %v3879 = vrot.slane %v3490, 6
        %v3880 = vsel %vm2939, %v3879, %v3878
        %v3881 = vrot.slane %v3561, 5
        %v3882 = vsel %vm2941, %v3881, %v3880
        %v3883 = vrot.slane %v3632, 4
        %v3884 = vsel %vm2943, %v3883, %v3882
        %v3885 = vrot.slane %v3703, 3
        %v3886 = vsel %vm2945, %v3885, %v3884
        %v3887 = vrot.slane %v3774, 2
        %v3888 = vsel %vm2947, %v3887, %v3886
        %v3889 = vrot.slane %v3845, 1
        %v3890 = vsel %vm2949, %v3889, %v3888
        %3893 = vst [vmem:[%s262] sm:$0xff] %v3876
        %3894 = vst [vmem:[%s262 + $0x8] sm:$0xff] %v3890
        %3895 = vst [vmem:[%s283] sm:$0xff] %v2964
        %s3896 = sand.u32 %s145, 1
        %s3897 = scalar_lea.sflag [#allocation5], %s3896
        %s3898 = sand.u32 %s145, 1
        %s3899 = smul.addr %s3898, 16
        %s3900 = scalar_lea.vmem [#allocation4], %s3899
        %p3901 = scmp.lt.s32.totalorder %s22, 1
        %s3902 = scalar_select %p3901, %s22, 1
        %s3903 = smul.addr %s3902, 8
        %s3904 = scalar_lea.vmem %s6, %s3903
        // Predicated region
        $region41: #{bahdanau_attention.1} parent=39 // pred_check
          %p3905 = pneg %p155
        $region42: #{bahdanau_attention.1} parent=39 // pred_check_branch
          %3907 = sbr.rel (%p3905) target = $region44
        $region43: #{bahdanau_attention.1} parent=39 // pred_region
          %s3909 = ssub.s32 256, 256
          %3910 = vsyncadd %s3897, %s3909
          %s3911 = smul.addr %s22, 2
          %s3912 = smul.addr %s3911, 128
          %s3913 = scalar_lea.hbm %s5, %s3912
          %s3915 = sshll.u32 %s3900, 4
          %s3916 = int_to_ptr.vmem [resolvable:$true] %s3915
          %3918 = dma.vmem_to_hbm [thread:$0]  %s3916, 256, %s3913, %s3897
        $region44: #{bahdanau_attention.1} parent=39 // pred_fallthru
          _
        // Predicated region
        $region45: #{bahdanau_attention.1} parent=39 // pred_check
          %p3919 = pneg %p181
        $region46: #{bahdanau_attention.1} parent=39 // pred_check_branch
          %3921 = sbr.rel (%p3919) target = $region48
        $region47: #{bahdanau_attention.1} parent=39 // pred_region
          _
        $region48: #{bahdanau_attention.1} parent=39 // pred_fallthru
          _
      $region40: #{bahdanau_attention.1} parent=5 // pred_fallthru
        _
      %p3922 = scmp.le.s32.totalorder 2, %s17
      // Predicated region
      $region49: #{bahdanau_attention.1} parent=5 // pred_check
        %p3923 = pneg %p3922
      $region50: #{bahdanau_attention.1} parent=5 // pred_check_branch
        %3925 = sbr.rel (%p3923) target = $region52
      $region51: #{bahdanau_attention.1} parent=5 // pred_region
        %s3926 = ssub.s32 %s17, 2
        // Predicated region
        $region53: #{bahdanau_attention.1} parent=51 // pred_check
          %p3927 = pneg %p161
        $region54: #{bahdanau_attention.1} parent=51 // pred_check_branch
          %3929 = sbr.rel (%p3927) target = $region56
        $region55: #{bahdanau_attention.1} parent=51 // pred_region
          %s3930 = sand.u32 %s146, 1
          %s3931 = scalar_lea.sflag [#allocation5], %s3930
          %s3932 = sand.u32 %s146, 1
          %s3933 = smul.addr %s3932, 16
          %s3934 = scalar_lea.vmem [#allocation4], %s3933
          %3935 = dma.done %s3931, 256
        $region56: #{bahdanau_attention.1} parent=51 // pred_fallthru
          _
        // Predicated region
        $region57: #{bahdanau_attention.1} parent=51 // pred_check
          %p3936 = pneg %p187
        $region58: #{bahdanau_attention.1} parent=51 // pred_check_branch
          %3938 = sbr.rel (%p3936) target = $region60
        $region59: #{bahdanau_attention.1} parent=51 // pred_region
          %p3939 = scmp.lt.s32.totalorder %s23, 1
          %s3940 = scalar_select %p3939, %s23, 1
          %s3941 = smul.addr %s3940, 8
          %s3942 = scalar_lea.vmem %s6, %s3941
        $region60: #{bahdanau_attention.1} parent=51 // pred_fallthru
          _
      $region52: #{bahdanau_attention.1} parent=5 // pred_fallthru
        _
    $region6: #{bahdanau_attention.1} parent=1 // loop_footer
      %s21 = sadd.s32 1, %s17
    $region7: #{bahdanau_attention.1} parent=1 // loop_footer_branch
      %16 = sbr.rel target = $region3
    $region8: #{bahdanau_attention.1} parent=1 // loop_exit
      _
    %3943 = vsyncpa [#allocation5], 1
    %s3944 = scalar_lea.sflag [#allocation5], 1
    %3945 = vsyncpa %s3944, 1

</llo_original>
